<compile_context>
chip_gen: v5e
topology: v5e:2x2
jax: 0.10.0
libtpu: 0.0.40
codegen_flags: <defaults>
</compile_context>

<pallas_src>
import math

import jax
import jax.numpy as jnp
from jax import lax
from jax.experimental import pallas as pl
from jax.experimental.pallas import tpu as pltpu

_INT32_MIN = -(2 ** 31)
_INT32_MAX = 2 ** 31 - 1
_NEG_INF = float("-inf")

# Crossover in XLU-reduce terms: extraction ~2 reduces/round, binsearch 32x1.
_MAX_EXTRACTION_ROUNDS = 16
# Force binsearch on wide layers (extraction keeps ~3 full-size arrays live).
_WIDE_BINSEARCH_LANES = 512


def _round_up(x, m):
    return ((x + m - 1) // m) * m


def _pad_last(a, target):
    pad = target - a.shape[-1]
    if pad == 0:
        return a
    cfg = [(0, 0)] * a.ndim
    cfg[-1] = (0, pad)
    return jnp.pad(a, cfg)


def _pad2(a, rows, cols):
    pr, pc = rows - a.shape[0], cols - a.shape[1]
    if pr == 0 and pc == 0:
        return a
    return jnp.pad(a, ((0, pr), (0, pc)))


def _topk_mask_extract(a, k):
    """Mask of elements >= k-th largest along axis -1 (duplicates counted).

    k rounds of max extraction, removing exactly one occurrence of the current
    max per round (torch.topk duplicate semantics).  Index bookkeeping in f32
    (exact for widths < 2^24, guaranteed by _WIDE_BINSEARCH_LANES).
    """
    n = a.shape[-1]
    col = lax.broadcasted_iota(jnp.int32, a.shape, a.ndim - 1).astype(jnp.float32)
    big = jnp.float32(n)
    vals = a
    m = None
    for r in range(k):  # k is a small static int on this path
        m = jnp.max(vals, axis=-1, keepdims=True)                      # (B, 1)
        if r + 1 < k:   # skip the dead removal on the final round
            first = jnp.min(jnp.where(vals == m, col, big),
                            axis=-1, keepdims=True)                    # (B, 1)
            vals = jnp.where(col == first, _NEG_INF, vals)             # drop one occurrence
    return a >= m


def _float_sort_key(a):
    """Monotone f32 -> int32 map:  a >= b  <=>  key(a) >= key(b); key(-0)==key(+0)."""
    bits = pltpu.bitcast(a, jnp.int32)
    return jnp.where(bits >= 0, bits, jnp.int32(_INT32_MIN) - bits)


def _topk_mask_binsearch(a, k):
    """Mask of elements >= k-th largest along axis -1 via a fully-unrolled
    32-round binary search on the order-preserving int32 bit pattern.
    One f32 cross-lane count per round, independent of k; only `key` + (B,1)
    bounds stay live (low vreg pressure on wide layers)."""
    rows = a.shape[0]
    key = _float_sort_key(a)
    kf = jnp.float32(k)
    lo = jnp.full((rows, 1), _INT32_MIN, jnp.int32)   # count(key >= lo) == n >= k
    hi = jnp.full((rows, 1), _INT32_MAX, jnp.int32)   # answer <= hi
    for _ in range(32):                                # fully unrolled (static)
        # mid = ceil((lo + hi) / 2) without int32 overflow.
        mid = (lo >> 1) + (hi >> 1) + ((lo | hi) & 1)
        cnt = jnp.sum((key >= mid).astype(jnp.float32), axis=-1, keepdims=True)
        ok = cnt >= kf
        lo = jnp.where(ok, mid, lo)
        hi = jnp.where(ok, hi, mid - 1)
    return key >= lo


def _topk_mask(a, k):
    """Boolean mask of elements >= the k-th largest per row (torch.topk semantics)."""
    n = a.shape[-1]
    if k >= n:
        return jnp.ones(a.shape, dtype=jnp.bool_)
    if k <= _MAX_EXTRACTION_ROUNDS and n <= _WIDE_BINSEARCH_LANES:
        return _topk_mask_extract(a, k)
    return _topk_mask_binsearch(a, k)


def hsdtp_forward_fused(x_bt, forward_weights_io, floating_thresholds, *,
                        scarcity, lr_threshold,
                        matmul_dtype=jnp.bfloat16, batch_tile=None):
    """Fused HSDTP.forward (theta=True) as a single Pallas TPU kernel.

    Kernel-native layouts (no per-call transposes):
      x_bt:                (batch, layer_sizes[0])
      forward_weights_io:  list of (in_i, out_i) weight matrices
      floating_thresholds: list of (out_i,)

    Returns:
      (output of shape (batch, out_last),
       new_floating_thresholds  [list of (out_i,)],
       membrane_potentials      [list of (out_i,)  -- unchanged thresholds]).
    """
    n_layers = len(forward_weights_io)
    assert n_layers == len(floating_thresholds)
    batch, in0 = x_bt.shape
    lr = float(lr_threshold)
    inv_batch = 1.0 / float(batch)

    sizes = [int(in0)] + [int(w.shape[1]) for w in forward_weights_io]
    for i, w in enumerate(forward_weights_io):
        assert int(w.shape[0]) == sizes[i], "weight in-dims must chain layer sizes"
    out_dims = sizes[1:]
    ks = [int(scarcity * d) for d in out_dims]
    for kk in ks:
        assert kk >= 1, "scarcity * out_dim must be >= 1 (torch.topk needs k >= 1)"

    # Lane-dense padding: every feature dim rounded up to a multiple of 128.
    pads = [_round_up(s, 128) for s in sizes]

    # Batch-tiled "parallel" grid axis (v7x: one tile per TensorCore).
    bt = batch if batch_tile is None else int(batch_tile)
    if batch % bt != 0 or (bt != batch and bt % 8 != 0):
        bt = batch
    num_tiles = batch // bt

    # One-time host-side preparation (zero padding; bf16 weight cast for MXU).
    xp = _pad_last(jnp.asarray(x_bt, jnp.float32), pads[0])
    w_pad = [_pad2(jnp.asarray(w, jnp.float32), pads[i], pads[i + 1])
             for i, w in enumerate(forward_weights_io)]
    if matmul_dtype != jnp.float32:
        w_pad = [w.astype(matmul_dtype) for w in w_pad]
    thr_pad = [_pad_last(jnp.asarray(t, jnp.float32).reshape(1, -1), pads[i + 1])
               for i, t in enumerate(floating_thresholds)]

    def kernel(*refs):
        x_ref = refs[0]
        w_refs = refs[1:1 + n_layers]
        thr_refs = refs[1 + n_layers:1 + 2 * n_layers]
        y_ref = refs[1 + 2 * n_layers]
        nthr_refs = refs[2 + 2 * n_layers:]

        h = x_ref[...]                                                # (bt, in_pad0) f32
        for i in range(n_layers):
            is_last = (i == n_layers - 1)
            out_real, out_pad = out_dims[i], pads[i + 1]
            padded = out_pad > out_real
            w = w_refs[i][...]                                        # (in_pad, out_pad)
            thr = thr_refs[i][...]                                    # (1, out_pad), pad lanes = 0

            # bf16 MXU path by default; accumulate in f32, elementwise stays f32.
            lhs = h if matmul_dtype == jnp.float32 else h.astype(matmul_dtype)
            z = jnp.dot(lhs, w, preferred_element_type=jnp.float32)   # (bt, out_pad)

            if not is_last:
                z = jnp.tanh(z)                                       # forward_activation (EUP)

            if padded:
                lane = lax.broadcasted_iota(jnp.int32, z.shape, 1)
                valid = lane < out_real

            # ---- theta: top-k sparsification vs. the floating threshold ----
            a = z - thr
            if padded:
                a = jnp.where(valid, a, _NEG_INF)                     # exclude padded lanes
            mask = _topk_mask(a, ks[i])
            z = jnp.where(mask, z, 0.0)

            if is_last:
                # output_activation: softmax over real features (lane axis).
                zs = jnp.where(valid, z, _NEG_INF) if padded else z
                m = jnp.max(zs, axis=-1, keepdims=True)
                e = jnp.exp(zs - m)                                   # padded lanes -> 0
                s = jnp.sum(e, axis=-1, keepdims=True)
                r = pl.reciprocal(s, approx=True)                     # EUP vrcp
                r = r * (2.0 - s * r)                                 # 1 Newton step -> ~f32 exact
                act = e * r
                y_ref[...] = act
            else:
                act = z                                               # padded lanes stay 0

            # ---- update_thresholds partials (activations[i+1]) --------------
            # Restructured: per-feature sublane sums only; no full (B,out) reduce.
            fired = (act > 0.0).astype(jnp.float32)
            not_fired = (act == 0.0).astype(jnp.float32)              # pad lanes hit thr==0 below
            fsum = jnp.sum(fired, axis=0, keepdims=True)              # (1, out_pad)
            asum = jnp.sum(fired * act, axis=0, keepdims=True)        # (1, out_pad)
            nfsum = jnp.sum(not_fired, axis=0, keepdims=True)         # (1, out_pad)
            f_part = ((1.0 - lr) * thr * fsum + lr * asum) * inv_batch        # (1, out_pad)
            nf_part = jnp.sum(thr * nfsum, axis=-1, keepdims=True) * inv_batch  # (1, 1) scalar
            # Per-tile partial; scalar folded onto every lane so a plain sum over
            # tiles in the epilogue reconstructs nf_term + f_term exactly.
            nthr_refs[i][...] = (f_part + nf_part).reshape(1, 1, out_pad)

            h = act

    in_arrays = [xp] + w_pad + thr_pad
    in_specs = ([pl.BlockSpec((bt, pads[0]), lambda b: (b, 0))]
                + [pl.BlockSpec(w.shape, lambda b: (0, 0)) for w in w_pad]      # resident
                + [pl.BlockSpec(t.shape, lambda b: (0, 0)) for t in thr_pad])   # resident

    out_shapes = ([jax.ShapeDtypeStruct((batch, pads[-1]), jnp.float32)]
                  + [jax.ShapeDtypeStruct((num_tiles, 1, pads[i + 1]), jnp.float32)
                     for i in range(n_layers)])
    out_specs = ([pl.BlockSpec((bt, pads[-1]), lambda b: (b, 0))]
                 + [pl.BlockSpec((1, 1, pads[i + 1]), lambda b: (b, 0, 0))
                    for i in range(n_layers)])

    # Explicit VMEM budget sized from the actual footprint (x2: double-buffering).
    bytes_needed = (sum(int(a.size) * a.dtype.itemsize for a in in_arrays)
                    + sum(math.prod(s.shape) * 4 for s in out_shapes))
    vmem_limit = int(min(100 * 1024 * 1024,
                         max(32 * 1024 * 1024, 2 * bytes_needed + (4 << 20))))

    outs = pl.pallas_call(
        kernel,
        grid=(num_tiles,),
        in_specs=in_specs,
        out_specs=out_specs,
        out_shape=tuple(out_shapes),
        compiler_params=pltpu.CompilerParams(
            dimension_semantics=("parallel",),
            vmem_limit_bytes=vmem_limit),
    )(*in_arrays)

    y = outs[0][:, :out_dims[-1]]                                     # (B, out_last)
    # Tiny XLA epilogue: combine per-tile partial threshold updates, drop padding.
    new_thresholds = [jnp.sum(outs[1 + i], axis=0)[0, :out_dims[i]]
                      for i in range(n_layers)]
    # forward() sets membrane_potentials[i] = floating_threshold[i] (pre-update).
    membrane_potentials = [jnp.asarray(t, jnp.float32) for t in floating_thresholds]
    return y, new_thresholds, membrane_potentials


def hsdtp_forward(x, forward_weights, floating_thresholds, **kwargs):
    """PyTorch-layout compatibility wrapper: x is (in0, B), weights are (out, in)
    like nn.Linear; returns output of shape (out_last, B)."""
    y, new_thr, mem = hsdtp_forward_fused(
        jnp.asarray(x).T,
        [jnp.asarray(w).T for w in forward_weights],
        floating_thresholds, **kwargs)
    return y.T, new_thr, mem


if __name__ == "__main__":
    # Small synthetic config consistent with the module's __init__.
    layer_sizes = [96, 160, 64, 32]   # lane-padded to 128 / 256 / 128 / 128 in-kernel
    batch_size = 128                  # fills the MXU M dim (vs. 8 previously)
    scarcity = 0.25                   # -> k = 40, 16, 8 (exercises binsearch + extraction)
    lr_threshold = 0.01
    starting_threshold = 0.1

    key = jax.random.PRNGKey(0)
    keys = jax.random.split(key, len(layer_sizes))

    # weight_initialization: uniform(-0.1, 0.1); stored kernel-native as (in, out).
    forward_weights_io = [
        jax.random.uniform(keys[l], (layer_sizes[l], layer_sizes[l + 1]),
                           minval=-0.1, maxval=0.1, dtype=jnp.float32)
        for l in range(len(layer_sizes) - 1)
    ]
    floating_thresholds = [
        jnp.full((s,), starting_threshold, jnp.float32) for s in layer_sizes[1:]
    ]
    x_bt = jax.random.normal(keys[-1], (batch_size, layer_sizes[0]), dtype=jnp.float32)

    out, new_thr, mem_pot = hsdtp_forward_fused(
        x_bt, forward_weights_io, floating_thresholds,
        scarcity=scarcity, lr_threshold=lr_threshold,
        batch_tile=64)                # 2 "parallel" batch tiles (v7x: one per TensorCore)

    jax.block_until_ready(out)
    for t in new_thr:
        jax.block_until_ready(t)
    print("KERNEL_OK")
</pallas_src>

<mosaic_0001>
module attributes {stable_mosaic.version = 11 : i64} {
  func.func @kernel(%arg0: i32, %arg1: memref<64x128xf32, #tpu.memory_space<vmem>>, %arg2: memref<128x256xbf16, #tpu.memory_space<vmem>>, %arg3: memref<256x128xbf16, #tpu.memory_space<vmem>>, %arg4: memref<128x128xbf16, #tpu.memory_space<vmem>>, %arg5: memref<1x256xf32, #tpu.memory_space<vmem>>, %arg6: memref<1x128xf32, #tpu.memory_space<vmem>>, %arg7: memref<1x128xf32, #tpu.memory_space<vmem>>, %arg8: memref<64x128xf32, #tpu.memory_space<vmem>>, %arg9: memref<1x1x256xf32, #tpu.memory_space<vmem>>, %arg10: memref<1x1x128xf32, #tpu.memory_space<vmem>>, %arg11: memref<1x1x128xf32, #tpu.memory_space<vmem>>) attributes {dimension_semantics = [#tpu.dimension_semantics<parallel>], iteration_bounds = array<i64: 2>, scalar_prefetch = 0 : i64, scratch_operands = 0 : i64, tpu.core_type = #tpu.core_type<tc>, window_params = [{transform_indices = @transform_0, window_bounds = array<i64: 64, 128>}, {pipeline_mode = #tpu.pipeline_mode<synchronous>, transform_indices = @transform_1, window_bounds = array<i64: 128, 256>}, {pipeline_mode = #tpu.pipeline_mode<synchronous>, transform_indices = @transform_2, window_bounds = array<i64: 256, 128>}, {pipeline_mode = #tpu.pipeline_mode<synchronous>, transform_indices = @transform_3, window_bounds = array<i64: 128, 128>}, {pipeline_mode = #tpu.pipeline_mode<synchronous>, transform_indices = @transform_4, window_bounds = array<i64: 1, 256>}, {pipeline_mode = #tpu.pipeline_mode<synchronous>, transform_indices = @transform_5, window_bounds = array<i64: 1, 128>}, {pipeline_mode = #tpu.pipeline_mode<synchronous>, transform_indices = @transform_6, window_bounds = array<i64: 1, 128>}, {transform_indices = @transform_7, window_bounds = array<i64: 64, 128>}, {transform_indices = @transform_8, window_bounds = array<i64: 1, 1, 256>}, {transform_indices = @transform_9, window_bounds = array<i64: 1, 1, 128>}, {transform_indices = @transform_10, window_bounds = array<i64: 1, 1, 128>}]} {
    %c0 = arith.constant 0 : index
    %c0_0 = arith.constant 0 : index
    %0 = vector.load %arg1[%c0, %c0_0] : memref<64x128xf32, #tpu.memory_space<vmem>>, vector<64x128xf32>
    %c0_1 = arith.constant 0 : index
    %c0_2 = arith.constant 0 : index
    %1 = vector.load %arg2[%c0_1, %c0_2] : memref<128x256xbf16, #tpu.memory_space<vmem>>, vector<128x256xbf16>
    %c0_3 = arith.constant 0 : index
    %c0_4 = arith.constant 0 : index
    %2 = vector.load %arg5[%c0_3, %c0_4] : memref<1x256xf32, #tpu.memory_space<vmem>>, vector<1x256xf32>
    %3 = arith.truncf %0 : vector<64x128xf32> to vector<64x128xbf16>
    %cst = arith.constant dense<0.000000e+00> : vector<64x256xf32>
    %4 = tpu.matmul %3, %1, %cst {dimension_numbers = #tpu.dot_dimension_numbers<[1], [0], [0], [1], [0, 0, 1, 1], [], []>} : vector<64x128xbf16>, vector<128x256xbf16>, vector<64x256xf32> -> vector<64x256xf32>
    %5 = math.tanh %4 : vector<64x256xf32>
    %6 = tpu.iota {dimensions = array<i32: 1>} : vector<64x256xi32>
    %c160_i32 = arith.constant 160 : i32
    %7 = vector.broadcast %c160_i32 : i32 to vector<64x256xi32>
    %8 = arith.cmpi slt, %6, %7 : vector<64x256xi32>
    %9 = vector.broadcast %2 : vector<1x256xf32> to vector<64x256xf32>
    %10 = arith.subf %5, %9 : vector<64x256xf32>
    %cst_5 = arith.constant 0xFF800000 : f32
    %11 = vector.broadcast %cst_5 : f32 to vector<64x256xf32>
    %12 = arith.select %8, %10, %11 : vector<64x256xi1>, vector<64x256xf32>
    %13 = tpu.bitcast %12 : vector<64x256xf32> -> vector<64x256xi32>
    %c0_i32 = arith.constant 0 : i32
    %14 = vector.broadcast %c0_i32 : i32 to vector<64x256xi32>
    %15 = arith.cmpi sge, %13, %14 : vector<64x256xi32>
    %c-2147483648_i32 = arith.constant -2147483648 : i32
    %16 = vector.broadcast %c-2147483648_i32 : i32 to vector<64x256xi32>
    %17 = arith.subi %16, %13 : vector<64x256xi32>
    %18 = arith.select %15, %13, %17 : vector<64x256xi1>, vector<64x256xi32>
    %c-2147483648_i32_6 = arith.constant -2147483648 : i32
    %19 = vector.broadcast %c-2147483648_i32_6 : i32 to vector<64x1xi32>
    %c2147483647_i32 = arith.constant 2147483647 : i32
    %20 = vector.broadcast %c2147483647_i32 : i32 to vector<64x1xi32>
    %c1_i32 = arith.constant 1 : i32
    %21 = vector.broadcast %c1_i32 : i32 to vector<64x1xi32>
    %22 = arith.shrsi %19, %21 : vector<64x1xi32>
    %c1_i32_7 = arith.constant 1 : i32
    %23 = vector.broadcast %c1_i32_7 : i32 to vector<64x1xi32>
    %24 = arith.shrsi %20, %23 : vector<64x1xi32>
    %25 = arith.addi %22, %24 : vector<64x1xi32>
    %26 = arith.ori %19, %20 : vector<64x1xi32>
    %c1_i32_8 = arith.constant 1 : i32
    %27 = vector.broadcast %c1_i32_8 : i32 to vector<64x1xi32>
    %28 = arith.andi %26, %27 : vector<64x1xi32>
    %29 = arith.addi %25, %28 : vector<64x1xi32>
    %30 = vector.broadcast %29 : vector<64x1xi32> to vector<64x256xi32>
    %31 = arith.cmpi sge, %18, %30 : vector<64x256xi32>
    %32 = arith.extui %31 : vector<64x256xi1> to vector<64x256xi32>
    %33 = arith.sitofp %32 : vector<64x256xi32> to vector<64x256xf32>
    %cst_9 = arith.constant dense<0.000000e+00> : vector<64xf32>
    %34 = vector.multi_reduction <add>, %33, %cst_9 [1] : vector<64x256xf32> to vector<64xf32>
    %35 = vector.shape_cast %34 : vector<64xf32> to vector<64x1xf32>
    %cst_10 = arith.constant 4.000000e+01 : f32
    %36 = vector.broadcast %cst_10 : f32 to vector<64x1xf32>
    %37 = arith.cmpf oge, %35, %36 : vector<64x1xf32>
    %38 = arith.select %37, %29, %19 : vector<64x1xi1>, vector<64x1xi32>
    %c1_i32_11 = arith.constant 1 : i32
    %39 = vector.broadcast %c1_i32_11 : i32 to vector<64x1xi32>
    %40 = arith.subi %29, %39 : vector<64x1xi32>
    %41 = arith.select %37, %20, %40 : vector<64x1xi1>, vector<64x1xi32>
    %c1_i32_12 = arith.constant 1 : i32
    %42 = vector.broadcast %c1_i32_12 : i32 to vector<64x1xi32>
    %43 = arith.shrsi %38, %42 : vector<64x1xi32>
    %c1_i32_13 = arith.constant 1 : i32
    %44 = vector.broadcast %c1_i32_13 : i32 to vector<64x1xi32>
    %45 = arith.shrsi %41, %44 : vector<64x1xi32>
    %46 = arith.addi %43, %45 : vector<64x1xi32>
    %47 = arith.ori %38, %41 : vector<64x1xi32>
    %c1_i32_14 = arith.constant 1 : i32
    %48 = vector.broadcast %c1_i32_14 : i32 to vector<64x1xi32>
    %49 = arith.andi %47, %48 : vector<64x1xi32>
    %50 = arith.addi %46, %49 : vector<64x1xi32>
    %51 = vector.broadcast %50 : vector<64x1xi32> to vector<64x256xi32>
    %52 = arith.cmpi sge, %18, %51 : vector<64x256xi32>
    %53 = arith.extui %52 : vector<64x256xi1> to vector<64x256xi32>
    %54 = arith.sitofp %53 : vector<64x256xi32> to vector<64x256xf32>
    %cst_15 = arith.constant dense<0.000000e+00> : vector<64xf32>
    %55 = vector.multi_reduction <add>, %54, %cst_15 [1] : vector<64x256xf32> to vector<64xf32>
    %56 = vector.shape_cast %55 : vector<64xf32> to vector<64x1xf32>
    %cst_16 = arith.constant 4.000000e+01 : f32
    %57 = vector.broadcast %cst_16 : f32 to vector<64x1xf32>
    %58 = arith.cmpf oge, %56, %57 : vector<64x1xf32>
    %59 = arith.select %58, %50, %38 : vector<64x1xi1>, vector<64x1xi32>
    %c1_i32_17 = arith.constant 1 : i32
    %60 = vector.broadcast %c1_i32_17 : i32 to vector<64x1xi32>
    %61 = arith.subi %50, %60 : vector<64x1xi32>
    %62 = arith.select %58, %41, %61 : vector<64x1xi1>, vector<64x1xi32>
    %c1_i32_18 = arith.constant 1 : i32
    %63 = vector.broadcast %c1_i32_18 : i32 to vector<64x1xi32>
    %64 = arith.shrsi %59, %63 : vector<64x1xi32>
    %c1_i32_19 = arith.constant 1 : i32
    %65 = vector.broadcast %c1_i32_19 : i32 to vector<64x1xi32>
    %66 = arith.shrsi %62, %65 : vector<64x1xi32>
    %67 = arith.addi %64, %66 : vector<64x1xi32>
    %68 = arith.ori %59, %62 : vector<64x1xi32>
    %c1_i32_20 = arith.constant 1 : i32
    %69 = vector.broadcast %c1_i32_20 : i32 to vector<64x1xi32>
    %70 = arith.andi %68, %69 : vector<64x1xi32>
    %71 = arith.addi %67, %70 : vector<64x1xi32>
    %72 = vector.broadcast %71 : vector<64x1xi32> to vector<64x256xi32>
    %73 = arith.cmpi sge, %18, %72 : vector<64x256xi32>
    %74 = arith.extui %73 : vector<64x256xi1> to vector<64x256xi32>
    %75 = arith.sitofp %74 : vector<64x256xi32> to vector<64x256xf32>
    %cst_21 = arith.constant dense<0.000000e+00> : vector<64xf32>
    %76 = vector.multi_reduction <add>, %75, %cst_21 [1] : vector<64x256xf32> to vector<64xf32>
    %77 = vector.shape_cast %76 : vector<64xf32> to vector<64x1xf32>
    %cst_22 = arith.constant 4.000000e+01 : f32
    %78 = vector.broadcast %cst_22 : f32 to vector<64x1xf32>
    %79 = arith.cmpf oge, %77, %78 : vector<64x1xf32>
    %80 = arith.select %79, %71, %59 : vector<64x1xi1>, vector<64x1xi32>
    %c1_i32_23 = arith.constant 1 : i32
    %81 = vector.broadcast %c1_i32_23 : i32 to vector<64x1xi32>
    %82 = arith.subi %71, %81 : vector<64x1xi32>
    %83 = arith.select %79, %62, %82 : vector<64x1xi1>, vector<64x1xi32>
    %c1_i32_24 = arith.constant 1 : i32
    %84 = vector.broadcast %c1_i32_24 : i32 to vector<64x1xi32>
    %85 = arith.shrsi %80, %84 : vector<64x1xi32>
    %c1_i32_25 = arith.constant 1 : i32
    %86 = vector.broadcast %c1_i32_25 : i32 to vector<64x1xi32>
    %87 = arith.shrsi %83, %86 : vector<64x1xi32>
    %88 = arith.addi %85, %87 : vector<64x1xi32>
    %89 = arith.ori %80, %83 : vector<64x1xi32>
    %c1_i32_26 = arith.constant 1 : i32
    %90 = vector.broadcast %c1_i32_26 : i32 to vector<64x1xi32>
    %91 = arith.andi %89, %90 : vector<64x1xi32>
    %92 = arith.addi %88, %91 : vector<64x1xi32>
    %93 = vector.broadcast %92 : vector<64x1xi32> to vector<64x256xi32>
    %94 = arith.cmpi sge, %18, %93 : vector<64x256xi32>
    %95 = arith.extui %94 : vector<64x256xi1> to vector<64x256xi32>
    %96 = arith.sitofp %95 : vector<64x256xi32> to vector<64x256xf32>
    %cst_27 = arith.constant dense<0.000000e+00> : vector<64xf32>
    %97 = vector.multi_reduction <add>, %96, %cst_27 [1] : vector<64x256xf32> to vector<64xf32>
    %98 = vector.shape_cast %97 : vector<64xf32> to vector<64x1xf32>
    %cst_28 = arith.constant 4.000000e+01 : f32
    %99 = vector.broadcast %cst_28 : f32 to vector<64x1xf32>
    %100 = arith.cmpf oge, %98, %99 : vector<64x1xf32>
    %101 = arith.select %100, %92, %80 : vector<64x1xi1>, vector<64x1xi32>
    %c1_i32_29 = arith.constant 1 : i32
    %102 = vector.broadcast %c1_i32_29 : i32 to vector<64x1xi32>
    %103 = arith.subi %92, %102 : vector<64x1xi32>
    %104 = arith.select %100, %83, %103 : vector<64x1xi1>, vector<64x1xi32>
    %c1_i32_30 = arith.constant 1 : i32
    %105 = vector.broadcast %c1_i32_30 : i32 to vector<64x1xi32>
    %106 = arith.shrsi %101, %105 : vector<64x1xi32>
    %c1_i32_31 = arith.constant 1 : i32
    %107 = vector.broadcast %c1_i32_31 : i32 to vector<64x1xi32>
    %108 = arith.shrsi %104, %107 : vector<64x1xi32>
    %109 = arith.addi %106, %108 : vector<64x1xi32>
    %110 = arith.ori %101, %104 : vector<64x1xi32>
    %c1_i32_32 = arith.constant 1 : i32
    %111 = vector.broadcast %c1_i32_32 : i32 to vector<64x1xi32>
    %112 = arith.andi %110, %111 : vector<64x1xi32>
    %113 = arith.addi %109, %112 : vector<64x1xi32>
    %114 = vector.broadcast %113 : vector<64x1xi32> to vector<64x256xi32>
    %115 = arith.cmpi sge, %18, %114 : vector<64x256xi32>
    %116 = arith.extui %115 : vector<64x256xi1> to vector<64x256xi32>
    %117 = arith.sitofp %116 : vector<64x256xi32> to vector<64x256xf32>
    %cst_33 = arith.constant dense<0.000000e+00> : vector<64xf32>
    %118 = vector.multi_reduction <add>, %117, %cst_33 [1] : vector<64x256xf32> to vector<64xf32>
    %119 = vector.shape_cast %118 : vector<64xf32> to vector<64x1xf32>
    %cst_34 = arith.constant 4.000000e+01 : f32
    %120 = vector.broadcast %cst_34 : f32 to vector<64x1xf32>
    %121 = arith.cmpf oge, %119, %120 : vector<64x1xf32>
    %122 = arith.select %121, %113, %101 : vector<64x1xi1>, vector<64x1xi32>
    %c1_i32_35 = arith.constant 1 : i32
    %123 = vector.broadcast %c1_i32_35 : i32 to vector<64x1xi32>
    %124 = arith.subi %113, %123 : vector<64x1xi32>
    %125 = arith.select %121, %104, %124 : vector<64x1xi1>, vector<64x1xi32>
    %c1_i32_36 = arith.constant 1 : i32
    %126 = vector.broadcast %c1_i32_36 : i32 to vector<64x1xi32>
    %127 = arith.shrsi %122, %126 : vector<64x1xi32>
    %c1_i32_37 = arith.constant 1 : i32
    %128 = vector.broadcast %c1_i32_37 : i32 to vector<64x1xi32>
    %129 = arith.shrsi %125, %128 : vector<64x1xi32>
    %130 = arith.addi %127, %129 : vector<64x1xi32>
    %131 = arith.ori %122, %125 : vector<64x1xi32>
    %c1_i32_38 = arith.constant 1 : i32
    %132 = vector.broadcast %c1_i32_38 : i32 to vector<64x1xi32>
    %133 = arith.andi %131, %132 : vector<64x1xi32>
    %134 = arith.addi %130, %133 : vector<64x1xi32>
    %135 = vector.broadcast %134 : vector<64x1xi32> to vector<64x256xi32>
    %136 = arith.cmpi sge, %18, %135 : vector<64x256xi32>
    %137 = arith.extui %136 : vector<64x256xi1> to vector<64x256xi32>
    %138 = arith.sitofp %137 : vector<64x256xi32> to vector<64x256xf32>
    %cst_39 = arith.constant dense<0.000000e+00> : vector<64xf32>
    %139 = vector.multi_reduction <add>, %138, %cst_39 [1] : vector<64x256xf32> to vector<64xf32>
    %140 = vector.shape_cast %139 : vector<64xf32> to vector<64x1xf32>
    %cst_40 = arith.constant 4.000000e+01 : f32
    %141 = vector.broadcast %cst_40 : f32 to vector<64x1xf32>
    %142 = arith.cmpf oge, %140, %141 : vector<64x1xf32>
    %143 = arith.select %142, %134, %122 : vector<64x1xi1>, vector<64x1xi32>
    %c1_i32_41 = arith.constant 1 : i32
    %144 = vector.broadcast %c1_i32_41 : i32 to vector<64x1xi32>
    %145 = arith.subi %134, %144 : vector<64x1xi32>
    %146 = arith.select %142, %125, %145 : vector<64x1xi1>, vector<64x1xi32>
    %c1_i32_42 = arith.constant 1 : i32
    %147 = vector.broadcast %c1_i32_42 : i32 to vector<64x1xi32>
    %148 = arith.shrsi %143, %147 : vector<64x1xi32>
    %c1_i32_43 = arith.constant 1 : i32
    %149 = vector.broadcast %c1_i32_43 : i32 to vector<64x1xi32>
    %150 = arith.shrsi %146, %149 : vector<64x1xi32>
    %151 = arith.addi %148, %150 : vector<64x1xi32>
    %152 = arith.ori %143, %146 : vector<64x1xi32>
    %c1_i32_44 = arith.constant 1 : i32
    %153 = vector.broadcast %c1_i32_44 : i32 to vector<64x1xi32>
    %154 = arith.andi %152, %153 : vector<64x1xi32>
    %155 = arith.addi %151, %154 : vector<64x1xi32>
    %156 = vector.broadcast %155 : vector<64x1xi32> to vector<64x256xi32>
    %157 = arith.cmpi sge, %18, %156 : vector<64x256xi32>
    %158 = arith.extui %157 : vector<64x256xi1> to vector<64x256xi32>
    %159 = arith.sitofp %158 : vector<64x256xi32> to vector<64x256xf32>
    %cst_45 = arith.constant dense<0.000000e+00> : vector<64xf32>
    %160 = vector.multi_reduction <add>, %159, %cst_45 [1] : vector<64x256xf32> to vector<64xf32>
    %161 = vector.shape_cast %160 : vector<64xf32> to vector<64x1xf32>
    %cst_46 = arith.constant 4.000000e+01 : f32
    %162 = vector.broadcast %cst_46 : f32 to vector<64x1xf32>
    %163 = arith.cmpf oge, %161, %162 : vector<64x1xf32>
    %164 = arith.select %163, %155, %143 : vector<64x1xi1>, vector<64x1xi32>
    %c1_i32_47 = arith.constant 1 : i32
    %165 = vector.broadcast %c1_i32_47 : i32 to vector<64x1xi32>
    %166 = arith.subi %155, %165 : vector<64x1xi32>
    %167 = arith.select %163, %146, %166 : vector<64x1xi1>, vector<64x1xi32>
    %c1_i32_48 = arith.constant 1 : i32
    %168 = vector.broadcast %c1_i32_48 : i32 to vector<64x1xi32>
    %169 = arith.shrsi %164, %168 : vector<64x1xi32>
    %c1_i32_49 = arith.constant 1 : i32
    %170 = vector.broadcast %c1_i32_49 : i32 to vector<64x1xi32>
    %171 = arith.shrsi %167, %170 : vector<64x1xi32>
    %172 = arith.addi %169, %171 : vector<64x1xi32>
    %173 = arith.ori %164, %167 : vector<64x1xi32>
    %c1_i32_50 = arith.constant 1 : i32
    %174 = vector.broadcast %c1_i32_50 : i32 to vector<64x1xi32>
    %175 = arith.andi %173, %174 : vector<64x1xi32>
    %176 = arith.addi %172, %175 : vector<64x1xi32>
    %177 = vector.broadcast %176 : vector<64x1xi32> to vector<64x256xi32>
    %178 = arith.cmpi sge, %18, %177 : vector<64x256xi32>
    %179 = arith.extui %178 : vector<64x256xi1> to vector<64x256xi32>
    %180 = arith.sitofp %179 : vector<64x256xi32> to vector<64x256xf32>
    %cst_51 = arith.constant dense<0.000000e+00> : vector<64xf32>
    %181 = vector.multi_reduction <add>, %180, %cst_51 [1] : vector<64x256xf32> to vector<64xf32>
    %182 = vector.shape_cast %181 : vector<64xf32> to vector<64x1xf32>
    %cst_52 = arith.constant 4.000000e+01 : f32
    %183 = vector.broadcast %cst_52 : f32 to vector<64x1xf32>
    %184 = arith.cmpf oge, %182, %183 : vector<64x1xf32>
    %185 = arith.select %184, %176, %164 : vector<64x1xi1>, vector<64x1xi32>
    %c1_i32_53 = arith.constant 1 : i32
    %186 = vector.broadcast %c1_i32_53 : i32 to vector<64x1xi32>
    %187 = arith.subi %176, %186 : vector<64x1xi32>
    %188 = arith.select %184, %167, %187 : vector<64x1xi1>, vector<64x1xi32>
    %c1_i32_54 = arith.constant 1 : i32
    %189 = vector.broadcast %c1_i32_54 : i32 to vector<64x1xi32>
    %190 = arith.shrsi %185, %189 : vector<64x1xi32>
    %c1_i32_55 = arith.constant 1 : i32
    %191 = vector.broadcast %c1_i32_55 : i32 to vector<64x1xi32>
    %192 = arith.shrsi %188, %191 : vector<64x1xi32>
    %193 = arith.addi %190, %192 : vector<64x1xi32>
    %194 = arith.ori %185, %188 : vector<64x1xi32>
    %c1_i32_56 = arith.constant 1 : i32
    %195 = vector.broadcast %c1_i32_56 : i32 to vector<64x1xi32>
    %196 = arith.andi %194, %195 : vector<64x1xi32>
    %197 = arith.addi %193, %196 : vector<64x1xi32>
    %198 = vector.broadcast %197 : vector<64x1xi32> to vector<64x256xi32>
    %199 = arith.cmpi sge, %18, %198 : vector<64x256xi32>
    %200 = arith.extui %199 : vector<64x256xi1> to vector<64x256xi32>
    %201 = arith.sitofp %200 : vector<64x256xi32> to vector<64x256xf32>
    %cst_57 = arith.constant dense<0.000000e+00> : vector<64xf32>
    %202 = vector.multi_reduction <add>, %201, %cst_57 [1] : vector<64x256xf32> to vector<64xf32>
    %203 = vector.shape_cast %202 : vector<64xf32> to vector<64x1xf32>
    %cst_58 = arith.constant 4.000000e+01 : f32
    %204 = vector.broadcast %cst_58 : f32 to vector<64x1xf32>
    %205 = arith.cmpf oge, %203, %204 : vector<64x1xf32>
    %206 = arith.select %205, %197, %185 : vector<64x1xi1>, vector<64x1xi32>
    %c1_i32_59 = arith.constant 1 : i32
    %207 = vector.broadcast %c1_i32_59 : i32 to vector<64x1xi32>
    %208 = arith.subi %197, %207 : vector<64x1xi32>
    %209 = arith.select %205, %188, %208 : vector<64x1xi1>, vector<64x1xi32>
    %c1_i32_60 = arith.constant 1 : i32
    %210 = vector.broadcast %c1_i32_60 : i32 to vector<64x1xi32>
    %211 = arith.shrsi %206, %210 : vector<64x1xi32>
    %c1_i32_61 = arith.constant 1 : i32
    %212 = vector.broadcast %c1_i32_61 : i32 to vector<64x1xi32>
    %213 = arith.shrsi %209, %212 : vector<64x1xi32>
    %214 = arith.addi %211, %213 : vector<64x1xi32>
    %215 = arith.ori %206, %209 : vector<64x1xi32>
    %c1_i32_62 = arith.constant 1 : i32
    %216 = vector.broadcast %c1_i32_62 : i32 to vector<64x1xi32>
    %217 = arith.andi %215, %216 : vector<64x1xi32>
    %218 = arith.addi %214, %217 : vector<64x1xi32>
    %219 = vector.broadcast %218 : vector<64x1xi32> to vector<64x256xi32>
    %220 = arith.cmpi sge, %18, %219 : vector<64x256xi32>
    %221 = arith.extui %220 : vector<64x256xi1> to vector<64x256xi32>
    %222 = arith.sitofp %221 : vector<64x256xi32> to vector<64x256xf32>
    %cst_63 = arith.constant dense<0.000000e+00> : vector<64xf32>
    %223 = vector.multi_reduction <add>, %222, %cst_63 [1] : vector<64x256xf32> to vector<64xf32>
    %224 = vector.shape_cast %223 : vector<64xf32> to vector<64x1xf32>
    %cst_64 = arith.constant 4.000000e+01 : f32
    %225 = vector.broadcast %cst_64 : f32 to vector<64x1xf32>
    %226 = arith.cmpf oge, %224, %225 : vector<64x1xf32>
    %227 = arith.select %226, %218, %206 : vector<64x1xi1>, vector<64x1xi32>
    %c1_i32_65 = arith.constant 1 : i32
    %228 = vector.broadcast %c1_i32_65 : i32 to vector<64x1xi32>
    %229 = arith.subi %218, %228 : vector<64x1xi32>
    %230 = arith.select %226, %209, %229 : vector<64x1xi1>, vector<64x1xi32>
    %c1_i32_66 = arith.constant 1 : i32
    %231 = vector.broadcast %c1_i32_66 : i32 to vector<64x1xi32>
    %232 = arith.shrsi %227, %231 : vector<64x1xi32>
    %c1_i32_67 = arith.constant 1 : i32
    %233 = vector.broadcast %c1_i32_67 : i32 to vector<64x1xi32>
    %234 = arith.shrsi %230, %233 : vector<64x1xi32>
    %235 = arith.addi %232, %234 : vector<64x1xi32>
    %236 = arith.ori %227, %230 : vector<64x1xi32>
    %c1_i32_68 = arith.constant 1 : i32
    %237 = vector.broadcast %c1_i32_68 : i32 to vector<64x1xi32>
    %238 = arith.andi %236, %237 : vector<64x1xi32>
    %239 = arith.addi %235, %238 : vector<64x1xi32>
    %240 = vector.broadcast %239 : vector<64x1xi32> to vector<64x256xi32>
    %241 = arith.cmpi sge, %18, %240 : vector<64x256xi32>
    %242 = arith.extui %241 : vector<64x256xi1> to vector<64x256xi32>
    %243 = arith.sitofp %242 : vector<64x256xi32> to vector<64x256xf32>
    %cst_69 = arith.constant dense<0.000000e+00> : vector<64xf32>
    %244 = vector.multi_reduction <add>, %243, %cst_69 [1] : vector<64x256xf32> to vector<64xf32>
    %245 = vector.shape_cast %244 : vector<64xf32> to vector<64x1xf32>
    %cst_70 = arith.constant 4.000000e+01 : f32
    %246 = vector.broadcast %cst_70 : f32 to vector<64x1xf32>
    %247 = arith.cmpf oge, %245, %246 : vector<64x1xf32>
    %248 = arith.select %247, %239, %227 : vector<64x1xi1>, vector<64x1xi32>
    %c1_i32_71 = arith.constant 1 : i32
    %249 = vector.broadcast %c1_i32_71 : i32 to vector<64x1xi32>
    %250 = arith.subi %239, %249 : vector<64x1xi32>
    %251 = arith.select %247, %230, %250 : vector<64x1xi1>, vector<64x1xi32>
    %c1_i32_72 = arith.constant 1 : i32
    %252 = vector.broadcast %c1_i32_72 : i32 to vector<64x1xi32>
    %253 = arith.shrsi %248, %252 : vector<64x1xi32>
    %c1_i32_73 = arith.constant 1 : i32
    %254 = vector.broadcast %c1_i32_73 : i32 to vector<64x1xi32>
    %255 = arith.shrsi %251, %254 : vector<64x1xi32>
    %256 = arith.addi %253, %255 : vector<64x1xi32>
    %257 = arith.ori %248, %251 : vector<64x1xi32>
    %c1_i32_74 = arith.constant 1 : i32
    %258 = vector.broadcast %c1_i32_74 : i32 to vector<64x1xi32>
    %259 = arith.andi %257, %258 : vector<64x1xi32>
    %260 = arith.addi %256, %259 : vector<64x1xi32>
    %261 = vector.broadcast %260 : vector<64x1xi32> to vector<64x256xi32>
    %262 = arith.cmpi sge, %18, %261 : vector<64x256xi32>
    %263 = arith.extui %262 : vector<64x256xi1> to vector<64x256xi32>
    %264 = arith.sitofp %263 : vector<64x256xi32> to vector<64x256xf32>
    %cst_75 = arith.constant dense<0.000000e+00> : vector<64xf32>
    %265 = vector.multi_reduction <add>, %264, %cst_75 [1] : vector<64x256xf32> to vector<64xf32>
    %266 = vector.shape_cast %265 : vector<64xf32> to vector<64x1xf32>
    %cst_76 = arith.constant 4.000000e+01 : f32
    %267 = vector.broadcast %cst_76 : f32 to vector<64x1xf32>
    %268 = arith.cmpf oge, %266, %267 : vector<64x1xf32>
    %269 = arith.select %268, %260, %248 : vector<64x1xi1>, vector<64x1xi32>
    %c1_i32_77 = arith.constant 1 : i32
    %270 = vector.broadcast %c1_i32_77 : i32 to vector<64x1xi32>
    %271 = arith.subi %260, %270 : vector<64x1xi32>
    %272 = arith.select %268, %251, %271 : vector<64x1xi1>, vector<64x1xi32>
    %c1_i32_78 = arith.constant 1 : i32
    %273 = vector.broadcast %c1_i32_78 : i32 to vector<64x1xi32>
    %274 = arith.shrsi %269, %273 : vector<64x1xi32>
    %c1_i32_79 = arith.constant 1 : i32
    %275 = vector.broadcast %c1_i32_79 : i32 to vector<64x1xi32>
    %276 = arith.shrsi %272, %275 : vector<64x1xi32>
    %277 = arith.addi %274, %276 : vector<64x1xi32>
    %278 = arith.ori %269, %272 : vector<64x1xi32>
    %c1_i32_80 = arith.constant 1 : i32
    %279 = vector.broadcast %c1_i32_80 : i32 to vector<64x1xi32>
    %280 = arith.andi %278, %279 : vector<64x1xi32>
    %281 = arith.addi %277, %280 : vector<64x1xi32>
    %282 = vector.broadcast %281 : vector<64x1xi32> to vector<64x256xi32>
    %283 = arith.cmpi sge, %18, %282 : vector<64x256xi32>
    %284 = arith.extui %283 : vector<64x256xi1> to vector<64x256xi32>
    %285 = arith.sitofp %284 : vector<64x256xi32> to vector<64x256xf32>
    %cst_81 = arith.constant dense<0.000000e+00> : vector<64xf32>
    %286 = vector.multi_reduction <add>, %285, %cst_81 [1] : vector<64x256xf32> to vector<64xf32>
    %287 = vector.shape_cast %286 : vector<64xf32> to vector<64x1xf32>
    %cst_82 = arith.constant 4.000000e+01 : f32
    %288 = vector.broadcast %cst_82 : f32 to vector<64x1xf32>
    %289 = arith.cmpf oge, %287, %288 : vector<64x1xf32>
    %290 = arith.select %289, %281, %269 : vector<64x1xi1>, vector<64x1xi32>
    %c1_i32_83 = arith.constant 1 : i32
    %291 = vector.broadcast %c1_i32_83 : i32 to vector<64x1xi32>
    %292 = arith.subi %281, %291 : vector<64x1xi32>
    %293 = arith.select %289, %272, %292 : vector<64x1xi1>, vector<64x1xi32>
    %c1_i32_84 = arith.constant 1 : i32
    %294 = vector.broadcast %c1_i32_84 : i32 to vector<64x1xi32>
    %295 = arith.shrsi %290, %294 : vector<64x1xi32>
    %c1_i32_85 = arith.constant 1 : i32
    %296 = vector.broadcast %c1_i32_85 : i32 to vector<64x1xi32>
    %297 = arith.shrsi %293, %296 : vector<64x1xi32>
    %298 = arith.addi %295, %297 : vector<64x1xi32>
    %299 = arith.ori %290, %293 : vector<64x1xi32>
    %c1_i32_86 = arith.constant 1 : i32
    %300 = vector.broadcast %c1_i32_86 : i32 to vector<64x1xi32>
    %301 = arith.andi %299, %300 : vector<64x1xi32>
    %302 = arith.addi %298, %301 : vector<64x1xi32>
    %303 = vector.broadcast %302 : vector<64x1xi32> to vector<64x256xi32>
    %304 = arith.cmpi sge, %18, %303 : vector<64x256xi32>
    %305 = arith.extui %304 : vector<64x256xi1> to vector<64x256xi32>
    %306 = arith.sitofp %305 : vector<64x256xi32> to vector<64x256xf32>
    %cst_87 = arith.constant dense<0.000000e+00> : vector<64xf32>
    %307 = vector.multi_reduction <add>, %306, %cst_87 [1] : vector<64x256xf32> to vector<64xf32>
    %308 = vector.shape_cast %307 : vector<64xf32> to vector<64x1xf32>
    %cst_88 = arith.constant 4.000000e+01 : f32
    %309 = vector.broadcast %cst_88 : f32 to vector<64x1xf32>
    %310 = arith.cmpf oge, %308, %309 : vector<64x1xf32>
    %311 = arith.select %310, %302, %290 : vector<64x1xi1>, vector<64x1xi32>
    %c1_i32_89 = arith.constant 1 : i32
    %312 = vector.broadcast %c1_i32_89 : i32 to vector<64x1xi32>
    %313 = arith.subi %302, %312 : vector<64x1xi32>
    %314 = arith.select %310, %293, %313 : vector<64x1xi1>, vector<64x1xi32>
    %c1_i32_90 = arith.constant 1 : i32
    %315 = vector.broadcast %c1_i32_90 : i32 to vector<64x1xi32>
    %316 = arith.shrsi %311, %315 : vector<64x1xi32>
    %c1_i32_91 = arith.constant 1 : i32
    %317 = vector.broadcast %c1_i32_91 : i32 to vector<64x1xi32>
    %318 = arith.shrsi %314, %317 : vector<64x1xi32>
    %319 = arith.addi %316, %318 : vector<64x1xi32>
    %320 = arith.ori %311, %314 : vector<64x1xi32>
    %c1_i32_92 = arith.constant 1 : i32
    %321 = vector.broadcast %c1_i32_92 : i32 to vector<64x1xi32>
    %322 = arith.andi %320, %321 : vector<64x1xi32>
    %323 = arith.addi %319, %322 : vector<64x1xi32>
    %324 = vector.broadcast %323 : vector<64x1xi32> to vector<64x256xi32>
    %325 = arith.cmpi sge, %18, %324 : vector<64x256xi32>
    %326 = arith.extui %325 : vector<64x256xi1> to vector<64x256xi32>
    %327 = arith.sitofp %326 : vector<64x256xi32> to vector<64x256xf32>
    %cst_93 = arith.constant dense<0.000000e+00> : vector<64xf32>
    %328 = vector.multi_reduction <add>, %327, %cst_93 [1] : vector<64x256xf32> to vector<64xf32>
    %329 = vector.shape_cast %328 : vector<64xf32> to vector<64x1xf32>
    %cst_94 = arith.constant 4.000000e+01 : f32
    %330 = vector.broadcast %cst_94 : f32 to vector<64x1xf32>
    %331 = arith.cmpf oge, %329, %330 : vector<64x1xf32>
    %332 = arith.select %331, %323, %311 : vector<64x1xi1>, vector<64x1xi32>
    %c1_i32_95 = arith.constant 1 : i32
    %333 = vector.broadcast %c1_i32_95 : i32 to vector<64x1xi32>
    %334 = arith.subi %323, %333 : vector<64x1xi32>
    %335 = arith.select %331, %314, %334 : vector<64x1xi1>, vector<64x1xi32>
    %c1_i32_96 = arith.constant 1 : i32
    %336 = vector.broadcast %c1_i32_96 : i32 to vector<64x1xi32>
    %337 = arith.shrsi %332, %336 : vector<64x1xi32>
    %c1_i32_97 = arith.constant 1 : i32
    %338 = vector.broadcast %c1_i32_97 : i32 to vector<64x1xi32>
    %339 = arith.shrsi %335, %338 : vector<64x1xi32>
    %340 = arith.addi %337, %339 : vector<64x1xi32>
    %341 = arith.ori %332, %335 : vector<64x1xi32>
    %c1_i32_98 = arith.constant 1 : i32
    %342 = vector.broadcast %c1_i32_98 : i32 to vector<64x1xi32>
    %343 = arith.andi %341, %342 : vector<64x1xi32>
    %344 = arith.addi %340, %343 : vector<64x1xi32>
    %345 = vector.broadcast %344 : vector<64x1xi32> to vector<64x256xi32>
    %346 = arith.cmpi sge, %18, %345 : vector<64x256xi32>
    %347 = arith.extui %346 : vector<64x256xi1> to vector<64x256xi32>
    %348 = arith.sitofp %347 : vector<64x256xi32> to vector<64x256xf32>
    %cst_99 = arith.constant dense<0.000000e+00> : vector<64xf32>
    %349 = vector.multi_reduction <add>, %348, %cst_99 [1] : vector<64x256xf32> to vector<64xf32>
    %350 = vector.shape_cast %349 : vector<64xf32> to vector<64x1xf32>
    %cst_100 = arith.constant 4.000000e+01 : f32
    %351 = vector.broadcast %cst_100 : f32 to vector<64x1xf32>
    %352 = arith.cmpf oge, %350, %351 : vector<64x1xf32>
    %353 = arith.select %352, %344, %332 : vector<64x1xi1>, vector<64x1xi32>
    %c1_i32_101 = arith.constant 1 : i32
    %354 = vector.broadcast %c1_i32_101 : i32 to vector<64x1xi32>
    %355 = arith.subi %344, %354 : vector<64x1xi32>
    %356 = arith.select %352, %335, %355 : vector<64x1xi1>, vector<64x1xi32>
    %c1_i32_102 = arith.constant 1 : i32
    %357 = vector.broadcast %c1_i32_102 : i32 to vector<64x1xi32>
    %358 = arith.shrsi %353, %357 : vector<64x1xi32>
    %c1_i32_103 = arith.constant 1 : i32
    %359 = vector.broadcast %c1_i32_103 : i32 to vector<64x1xi32>
    %360 = arith.shrsi %356, %359 : vector<64x1xi32>
    %361 = arith.addi %358, %360 : vector<64x1xi32>
    %362 = arith.ori %353, %356 : vector<64x1xi32>
    %c1_i32_104 = arith.constant 1 : i32
    %363 = vector.broadcast %c1_i32_104 : i32 to vector<64x1xi32>
    %364 = arith.andi %362, %363 : vector<64x1xi32>
    %365 = arith.addi %361, %364 : vector<64x1xi32>
    %366 = vector.broadcast %365 : vector<64x1xi32> to vector<64x256xi32>
    %367 = arith.cmpi sge, %18, %366 : vector<64x256xi32>
    %368 = arith.extui %367 : vector<64x256xi1> to vector<64x256xi32>
    %369 = arith.sitofp %368 : vector<64x256xi32> to vector<64x256xf32>
    %cst_105 = arith.constant dense<0.000000e+00> : vector<64xf32>
    %370 = vector.multi_reduction <add>, %369, %cst_105 [1] : vector<64x256xf32> to vector<64xf32>
    %371 = vector.shape_cast %370 : vector<64xf32> to vector<64x1xf32>
    %cst_106 = arith.constant 4.000000e+01 : f32
    %372 = vector.broadcast %cst_106 : f32 to vector<64x1xf32>
    %373 = arith.cmpf oge, %371, %372 : vector<64x1xf32>
    %374 = arith.select %373, %365, %353 : vector<64x1xi1>, vector<64x1xi32>
    %c1_i32_107 = arith.constant 1 : i32
    %375 = vector.broadcast %c1_i32_107 : i32 to vector<64x1xi32>
    %376 = arith.subi %365, %375 : vector<64x1xi32>
    %377 = arith.select %373, %356, %376 : vector<64x1xi1>, vector<64x1xi32>
    %c1_i32_108 = arith.constant 1 : i32
    %378 = vector.broadcast %c1_i32_108 : i32 to vector<64x1xi32>
    %379 = arith.shrsi %374, %378 : vector<64x1xi32>
    %c1_i32_109 = arith.constant 1 : i32
    %380 = vector.broadcast %c1_i32_109 : i32 to vector<64x1xi32>
    %381 = arith.shrsi %377, %380 : vector<64x1xi32>
    %382 = arith.addi %379, %381 : vector<64x1xi32>
    %383 = arith.ori %374, %377 : vector<64x1xi32>
    %c1_i32_110 = arith.constant 1 : i32
    %384 = vector.broadcast %c1_i32_110 : i32 to vector<64x1xi32>
    %385 = arith.andi %383, %384 : vector<64x1xi32>
    %386 = arith.addi %382, %385 : vector<64x1xi32>
    %387 = vector.broadcast %386 : vector<64x1xi32> to vector<64x256xi32>
    %388 = arith.cmpi sge, %18, %387 : vector<64x256xi32>
    %389 = arith.extui %388 : vector<64x256xi1> to vector<64x256xi32>
    %390 = arith.sitofp %389 : vector<64x256xi32> to vector<64x256xf32>
    %cst_111 = arith.constant dense<0.000000e+00> : vector<64xf32>
    %391 = vector.multi_reduction <add>, %390, %cst_111 [1] : vector<64x256xf32> to vector<64xf32>
    %392 = vector.shape_cast %391 : vector<64xf32> to vector<64x1xf32>
    %cst_112 = arith.constant 4.000000e+01 : f32
    %393 = vector.broadcast %cst_112 : f32 to vector<64x1xf32>
    %394 = arith.cmpf oge, %392, %393 : vector<64x1xf32>
    %395 = arith.select %394, %386, %374 : vector<64x1xi1>, vector<64x1xi32>
    %c1_i32_113 = arith.constant 1 : i32
    %396 = vector.broadcast %c1_i32_113 : i32 to vector<64x1xi32>
    %397 = arith.subi %386, %396 : vector<64x1xi32>
    %398 = arith.select %394, %377, %397 : vector<64x1xi1>, vector<64x1xi32>
    %c1_i32_114 = arith.constant 1 : i32
    %399 = vector.broadcast %c1_i32_114 : i32 to vector<64x1xi32>
    %400 = arith.shrsi %395, %399 : vector<64x1xi32>
    %c1_i32_115 = arith.constant 1 : i32
    %401 = vector.broadcast %c1_i32_115 : i32 to vector<64x1xi32>
    %402 = arith.shrsi %398, %401 : vector<64x1xi32>
    %403 = arith.addi %400, %402 : vector<64x1xi32>
    %404 = arith.ori %395, %398 : vector<64x1xi32>
    %c1_i32_116 = arith.constant 1 : i32
    %405 = vector.broadcast %c1_i32_116 : i32 to vector<64x1xi32>
    %406 = arith.andi %404, %405 : vector<64x1xi32>
    %407 = arith.addi %403, %406 : vector<64x1xi32>
    %408 = vector.broadcast %407 : vector<64x1xi32> to vector<64x256xi32>
    %409 = arith.cmpi sge, %18, %408 : vector<64x256xi32>
    %410 = arith.extui %409 : vector<64x256xi1> to vector<64x256xi32>
    %411 = arith.sitofp %410 : vector<64x256xi32> to vector<64x256xf32>
    %cst_117 = arith.constant dense<0.000000e+00> : vector<64xf32>
    %412 = vector.multi_reduction <add>, %411, %cst_117 [1] : vector<64x256xf32> to vector<64xf32>
    %413 = vector.shape_cast %412 : vector<64xf32> to vector<64x1xf32>
    %cst_118 = arith.constant 4.000000e+01 : f32
    %414 = vector.broadcast %cst_118 : f32 to vector<64x1xf32>
    %415 = arith.cmpf oge, %413, %414 : vector<64x1xf32>
    %416 = arith.select %415, %407, %395 : vector<64x1xi1>, vector<64x1xi32>
    %c1_i32_119 = arith.constant 1 : i32
    %417 = vector.broadcast %c1_i32_119 : i32 to vector<64x1xi32>
    %418 = arith.subi %407, %417 : vector<64x1xi32>
    %419 = arith.select %415, %398, %418 : vector<64x1xi1>, vector<64x1xi32>
    %c1_i32_120 = arith.constant 1 : i32
    %420 = vector.broadcast %c1_i32_120 : i32 to vector<64x1xi32>
    %421 = arith.shrsi %416, %420 : vector<64x1xi32>
    %c1_i32_121 = arith.constant 1 : i32
    %422 = vector.broadcast %c1_i32_121 : i32 to vector<64x1xi32>
    %423 = arith.shrsi %419, %422 : vector<64x1xi32>
    %424 = arith.addi %421, %423 : vector<64x1xi32>
    %425 = arith.ori %416, %419 : vector<64x1xi32>
    %c1_i32_122 = arith.constant 1 : i32
    %426 = vector.broadcast %c1_i32_122 : i32 to vector<64x1xi32>
    %427 = arith.andi %425, %426 : vector<64x1xi32>
    %428 = arith.addi %424, %427 : vector<64x1xi32>
    %429 = vector.broadcast %428 : vector<64x1xi32> to vector<64x256xi32>
    %430 = arith.cmpi sge, %18, %429 : vector<64x256xi32>
    %431 = arith.extui %430 : vector<64x256xi1> to vector<64x256xi32>
    %432 = arith.sitofp %431 : vector<64x256xi32> to vector<64x256xf32>
    %cst_123 = arith.constant dense<0.000000e+00> : vector<64xf32>
    %433 = vector.multi_reduction <add>, %432, %cst_123 [1] : vector<64x256xf32> to vector<64xf32>
    %434 = vector.shape_cast %433 : vector<64xf32> to vector<64x1xf32>
    %cst_124 = arith.constant 4.000000e+01 : f32
    %435 = vector.broadcast %cst_124 : f32 to vector<64x1xf32>
    %436 = arith.cmpf oge, %434, %435 : vector<64x1xf32>
    %437 = arith.select %436, %428, %416 : vector<64x1xi1>, vector<64x1xi32>
    %c1_i32_125 = arith.constant 1 : i32
    %438 = vector.broadcast %c1_i32_125 : i32 to vector<64x1xi32>
    %439 = arith.subi %428, %438 : vector<64x1xi32>
    %440 = arith.select %436, %419, %439 : vector<64x1xi1>, vector<64x1xi32>
    %c1_i32_126 = arith.constant 1 : i32
    %441 = vector.broadcast %c1_i32_126 : i32 to vector<64x1xi32>
    %442 = arith.shrsi %437, %441 : vector<64x1xi32>
    %c1_i32_127 = arith.constant 1 : i32
    %443 = vector.broadcast %c1_i32_127 : i32 to vector<64x1xi32>
    %444 = arith.shrsi %440, %443 : vector<64x1xi32>
    %445 = arith.addi %442, %444 : vector<64x1xi32>
    %446 = arith.ori %437, %440 : vector<64x1xi32>
    %c1_i32_128 = arith.constant 1 : i32
    %447 = vector.broadcast %c1_i32_128 : i32 to vector<64x1xi32>
    %448 = arith.andi %446, %447 : vector<64x1xi32>
    %449 = arith.addi %445, %448 : vector<64x1xi32>
    %450 = vector.broadcast %449 : vector<64x1xi32> to vector<64x256xi32>
    %451 = arith.cmpi sge, %18, %450 : vector<64x256xi32>
    %452 = arith.extui %451 : vector<64x256xi1> to vector<64x256xi32>
    %453 = arith.sitofp %452 : vector<64x256xi32> to vector<64x256xf32>
    %cst_129 = arith.constant dense<0.000000e+00> : vector<64xf32>
    %454 = vector.multi_reduction <add>, %453, %cst_129 [1] : vector<64x256xf32> to vector<64xf32>
    %455 = vector.shape_cast %454 : vector<64xf32> to vector<64x1xf32>
    %cst_130 = arith.constant 4.000000e+01 : f32
    %456 = vector.broadcast %cst_130 : f32 to vector<64x1xf32>
    %457 = arith.cmpf oge, %455, %456 : vector<64x1xf32>
    %458 = arith.select %457, %449, %437 : vector<64x1xi1>, vector<64x1xi32>
    %c1_i32_131 = arith.constant 1 : i32
    %459 = vector.broadcast %c1_i32_131 : i32 to vector<64x1xi32>
    %460 = arith.subi %449, %459 : vector<64x1xi32>
    %461 = arith.select %457, %440, %460 : vector<64x1xi1>, vector<64x1xi32>
    %c1_i32_132 = arith.constant 1 : i32
    %462 = vector.broadcast %c1_i32_132 : i32 to vector<64x1xi32>
    %463 = arith.shrsi %458, %462 : vector<64x1xi32>
    %c1_i32_133 = arith.constant 1 : i32
    %464 = vector.broadcast %c1_i32_133 : i32 to vector<64x1xi32>
    %465 = arith.shrsi %461, %464 : vector<64x1xi32>
    %466 = arith.addi %463, %465 : vector<64x1xi32>
    %467 = arith.ori %458, %461 : vector<64x1xi32>
    %c1_i32_134 = arith.constant 1 : i32
    %468 = vector.broadcast %c1_i32_134 : i32 to vector<64x1xi32>
    %469 = arith.andi %467, %468 : vector<64x1xi32>
    %470 = arith.addi %466, %469 : vector<64x1xi32>
    %471 = vector.broadcast %470 : vector<64x1xi32> to vector<64x256xi32>
    %472 = arith.cmpi sge, %18, %471 : vector<64x256xi32>
    %473 = arith.extui %472 : vector<64x256xi1> to vector<64x256xi32>
    %474 = arith.sitofp %473 : vector<64x256xi32> to vector<64x256xf32>
    %cst_135 = arith.constant dense<0.000000e+00> : vector<64xf32>
    %475 = vector.multi_reduction <add>, %474, %cst_135 [1] : vector<64x256xf32> to vector<64xf32>
    %476 = vector.shape_cast %475 : vector<64xf32> to vector<64x1xf32>
    %cst_136 = arith.constant 4.000000e+01 : f32
    %477 = vector.broadcast %cst_136 : f32 to vector<64x1xf32>
    %478 = arith.cmpf oge, %476, %477 : vector<64x1xf32>
    %479 = arith.select %478, %470, %458 : vector<64x1xi1>, vector<64x1xi32>
    %c1_i32_137 = arith.constant 1 : i32
    %480 = vector.broadcast %c1_i32_137 : i32 to vector<64x1xi32>
    %481 = arith.subi %470, %480 : vector<64x1xi32>
    %482 = arith.select %478, %461, %481 : vector<64x1xi1>, vector<64x1xi32>
    %c1_i32_138 = arith.constant 1 : i32
    %483 = vector.broadcast %c1_i32_138 : i32 to vector<64x1xi32>
    %484 = arith.shrsi %479, %483 : vector<64x1xi32>
    %c1_i32_139 = arith.constant 1 : i32
    %485 = vector.broadcast %c1_i32_139 : i32 to vector<64x1xi32>
    %486 = arith.shrsi %482, %485 : vector<64x1xi32>
    %487 = arith.addi %484, %486 : vector<64x1xi32>
    %488 = arith.ori %479, %482 : vector<64x1xi32>
    %c1_i32_140 = arith.constant 1 : i32
    %489 = vector.broadcast %c1_i32_140 : i32 to vector<64x1xi32>
    %490 = arith.andi %488, %489 : vector<64x1xi32>
    %491 = arith.addi %487, %490 : vector<64x1xi32>
    %492 = vector.broadcast %491 : vector<64x1xi32> to vector<64x256xi32>
    %493 = arith.cmpi sge, %18, %492 : vector<64x256xi32>
    %494 = arith.extui %493 : vector<64x256xi1> to vector<64x256xi32>
    %495 = arith.sitofp %494 : vector<64x256xi32> to vector<64x256xf32>
    %cst_141 = arith.constant dense<0.000000e+00> : vector<64xf32>
    %496 = vector.multi_reduction <add>, %495, %cst_141 [1] : vector<64x256xf32> to vector<64xf32>
    %497 = vector.shape_cast %496 : vector<64xf32> to vector<64x1xf32>
    %cst_142 = arith.constant 4.000000e+01 : f32
    %498 = vector.broadcast %cst_142 : f32 to vector<64x1xf32>
    %499 = arith.cmpf oge, %497, %498 : vector<64x1xf32>
    %500 = arith.select %499, %491, %479 : vector<64x1xi1>, vector<64x1xi32>
    %c1_i32_143 = arith.constant 1 : i32
    %501 = vector.broadcast %c1_i32_143 : i32 to vector<64x1xi32>
    %502 = arith.subi %491, %501 : vector<64x1xi32>
    %503 = arith.select %499, %482, %502 : vector<64x1xi1>, vector<64x1xi32>
    %c1_i32_144 = arith.constant 1 : i32
    %504 = vector.broadcast %c1_i32_144 : i32 to vector<64x1xi32>
    %505 = arith.shrsi %500, %504 : vector<64x1xi32>
    %c1_i32_145 = arith.constant 1 : i32
    %506 = vector.broadcast %c1_i32_145 : i32 to vector<64x1xi32>
    %507 = arith.shrsi %503, %506 : vector<64x1xi32>
    %508 = arith.addi %505, %507 : vector<64x1xi32>
    %509 = arith.ori %500, %503 : vector<64x1xi32>
    %c1_i32_146 = arith.constant 1 : i32
    %510 = vector.broadcast %c1_i32_146 : i32 to vector<64x1xi32>
    %511 = arith.andi %509, %510 : vector<64x1xi32>
    %512 = arith.addi %508, %511 : vector<64x1xi32>
    %513 = vector.broadcast %512 : vector<64x1xi32> to vector<64x256xi32>
    %514 = arith.cmpi sge, %18, %513 : vector<64x256xi32>
    %515 = arith.extui %514 : vector<64x256xi1> to vector<64x256xi32>
    %516 = arith.sitofp %515 : vector<64x256xi32> to vector<64x256xf32>
    %cst_147 = arith.constant dense<0.000000e+00> : vector<64xf32>
    %517 = vector.multi_reduction <add>, %516, %cst_147 [1] : vector<64x256xf32> to vector<64xf32>
    %518 = vector.shape_cast %517 : vector<64xf32> to vector<64x1xf32>
    %cst_148 = arith.constant 4.000000e+01 : f32
    %519 = vector.broadcast %cst_148 : f32 to vector<64x1xf32>
    %520 = arith.cmpf oge, %518, %519 : vector<64x1xf32>
    %521 = arith.select %520, %512, %500 : vector<64x1xi1>, vector<64x1xi32>
    %c1_i32_149 = arith.constant 1 : i32
    %522 = vector.broadcast %c1_i32_149 : i32 to vector<64x1xi32>
    %523 = arith.subi %512, %522 : vector<64x1xi32>
    %524 = arith.select %520, %503, %523 : vector<64x1xi1>, vector<64x1xi32>
    %c1_i32_150 = arith.constant 1 : i32
    %525 = vector.broadcast %c1_i32_150 : i32 to vector<64x1xi32>
    %526 = arith.shrsi %521, %525 : vector<64x1xi32>
    %c1_i32_151 = arith.constant 1 : i32
    %527 = vector.broadcast %c1_i32_151 : i32 to vector<64x1xi32>
    %528 = arith.shrsi %524, %527 : vector<64x1xi32>
    %529 = arith.addi %526, %528 : vector<64x1xi32>
    %530 = arith.ori %521, %524 : vector<64x1xi32>
    %c1_i32_152 = arith.constant 1 : i32
    %531 = vector.broadcast %c1_i32_152 : i32 to vector<64x1xi32>
    %532 = arith.andi %530, %531 : vector<64x1xi32>
    %533 = arith.addi %529, %532 : vector<64x1xi32>
    %534 = vector.broadcast %533 : vector<64x1xi32> to vector<64x256xi32>
    %535 = arith.cmpi sge, %18, %534 : vector<64x256xi32>
    %536 = arith.extui %535 : vector<64x256xi1> to vector<64x256xi32>
    %537 = arith.sitofp %536 : vector<64x256xi32> to vector<64x256xf32>
    %cst_153 = arith.constant dense<0.000000e+00> : vector<64xf32>
    %538 = vector.multi_reduction <add>, %537, %cst_153 [1] : vector<64x256xf32> to vector<64xf32>
    %539 = vector.shape_cast %538 : vector<64xf32> to vector<64x1xf32>
    %cst_154 = arith.constant 4.000000e+01 : f32
    %540 = vector.broadcast %cst_154 : f32 to vector<64x1xf32>
    %541 = arith.cmpf oge, %539, %540 : vector<64x1xf32>
    %542 = arith.select %541, %533, %521 : vector<64x1xi1>, vector<64x1xi32>
    %c1_i32_155 = arith.constant 1 : i32
    %543 = vector.broadcast %c1_i32_155 : i32 to vector<64x1xi32>
    %544 = arith.subi %533, %543 : vector<64x1xi32>
    %545 = arith.select %541, %524, %544 : vector<64x1xi1>, vector<64x1xi32>
    %c1_i32_156 = arith.constant 1 : i32
    %546 = vector.broadcast %c1_i32_156 : i32 to vector<64x1xi32>
    %547 = arith.shrsi %542, %546 : vector<64x1xi32>
    %c1_i32_157 = arith.constant 1 : i32
    %548 = vector.broadcast %c1_i32_157 : i32 to vector<64x1xi32>
    %549 = arith.shrsi %545, %548 : vector<64x1xi32>
    %550 = arith.addi %547, %549 : vector<64x1xi32>
    %551 = arith.ori %542, %545 : vector<64x1xi32>
    %c1_i32_158 = arith.constant 1 : i32
    %552 = vector.broadcast %c1_i32_158 : i32 to vector<64x1xi32>
    %553 = arith.andi %551, %552 : vector<64x1xi32>
    %554 = arith.addi %550, %553 : vector<64x1xi32>
    %555 = vector.broadcast %554 : vector<64x1xi32> to vector<64x256xi32>
    %556 = arith.cmpi sge, %18, %555 : vector<64x256xi32>
    %557 = arith.extui %556 : vector<64x256xi1> to vector<64x256xi32>
    %558 = arith.sitofp %557 : vector<64x256xi32> to vector<64x256xf32>
    %cst_159 = arith.constant dense<0.000000e+00> : vector<64xf32>
    %559 = vector.multi_reduction <add>, %558, %cst_159 [1] : vector<64x256xf32> to vector<64xf32>
    %560 = vector.shape_cast %559 : vector<64xf32> to vector<64x1xf32>
    %cst_160 = arith.constant 4.000000e+01 : f32
    %561 = vector.broadcast %cst_160 : f32 to vector<64x1xf32>
    %562 = arith.cmpf oge, %560, %561 : vector<64x1xf32>
    %563 = arith.select %562, %554, %542 : vector<64x1xi1>, vector<64x1xi32>
    %c1_i32_161 = arith.constant 1 : i32
    %564 = vector.broadcast %c1_i32_161 : i32 to vector<64x1xi32>
    %565 = arith.subi %554, %564 : vector<64x1xi32>
    %566 = arith.select %562, %545, %565 : vector<64x1xi1>, vector<64x1xi32>
    %c1_i32_162 = arith.constant 1 : i32
    %567 = vector.broadcast %c1_i32_162 : i32 to vector<64x1xi32>
    %568 = arith.shrsi %563, %567 : vector<64x1xi32>
    %c1_i32_163 = arith.constant 1 : i32
    %569 = vector.broadcast %c1_i32_163 : i32 to vector<64x1xi32>
    %570 = arith.shrsi %566, %569 : vector<64x1xi32>
    %571 = arith.addi %568, %570 : vector<64x1xi32>
    %572 = arith.ori %563, %566 : vector<64x1xi32>
    %c1_i32_164 = arith.constant 1 : i32
    %573 = vector.broadcast %c1_i32_164 : i32 to vector<64x1xi32>
    %574 = arith.andi %572, %573 : vector<64x1xi32>
    %575 = arith.addi %571, %574 : vector<64x1xi32>
    %576 = vector.broadcast %575 : vector<64x1xi32> to vector<64x256xi32>
    %577 = arith.cmpi sge, %18, %576 : vector<64x256xi32>
    %578 = arith.extui %577 : vector<64x256xi1> to vector<64x256xi32>
    %579 = arith.sitofp %578 : vector<64x256xi32> to vector<64x256xf32>
    %cst_165 = arith.constant dense<0.000000e+00> : vector<64xf32>
    %580 = vector.multi_reduction <add>, %579, %cst_165 [1] : vector<64x256xf32> to vector<64xf32>
    %581 = vector.shape_cast %580 : vector<64xf32> to vector<64x1xf32>
    %cst_166 = arith.constant 4.000000e+01 : f32
    %582 = vector.broadcast %cst_166 : f32 to vector<64x1xf32>
    %583 = arith.cmpf oge, %581, %582 : vector<64x1xf32>
    %584 = arith.select %583, %575, %563 : vector<64x1xi1>, vector<64x1xi32>
    %c1_i32_167 = arith.constant 1 : i32
    %585 = vector.broadcast %c1_i32_167 : i32 to vector<64x1xi32>
    %586 = arith.subi %575, %585 : vector<64x1xi32>
    %587 = arith.select %583, %566, %586 : vector<64x1xi1>, vector<64x1xi32>
    %c1_i32_168 = arith.constant 1 : i32
    %588 = vector.broadcast %c1_i32_168 : i32 to vector<64x1xi32>
    %589 = arith.shrsi %584, %588 : vector<64x1xi32>
    %c1_i32_169 = arith.constant 1 : i32
    %590 = vector.broadcast %c1_i32_169 : i32 to vector<64x1xi32>
    %591 = arith.shrsi %587, %590 : vector<64x1xi32>
    %592 = arith.addi %589, %591 : vector<64x1xi32>
    %593 = arith.ori %584, %587 : vector<64x1xi32>
    %c1_i32_170 = arith.constant 1 : i32
    %594 = vector.broadcast %c1_i32_170 : i32 to vector<64x1xi32>
    %595 = arith.andi %593, %594 : vector<64x1xi32>
    %596 = arith.addi %592, %595 : vector<64x1xi32>
    %597 = vector.broadcast %596 : vector<64x1xi32> to vector<64x256xi32>
    %598 = arith.cmpi sge, %18, %597 : vector<64x256xi32>
    %599 = arith.extui %598 : vector<64x256xi1> to vector<64x256xi32>
    %600 = arith.sitofp %599 : vector<64x256xi32> to vector<64x256xf32>
    %cst_171 = arith.constant dense<0.000000e+00> : vector<64xf32>
    %601 = vector.multi_reduction <add>, %600, %cst_171 [1] : vector<64x256xf32> to vector<64xf32>
    %602 = vector.shape_cast %601 : vector<64xf32> to vector<64x1xf32>
    %cst_172 = arith.constant 4.000000e+01 : f32
    %603 = vector.broadcast %cst_172 : f32 to vector<64x1xf32>
    %604 = arith.cmpf oge, %602, %603 : vector<64x1xf32>
    %605 = arith.select %604, %596, %584 : vector<64x1xi1>, vector<64x1xi32>
    %c1_i32_173 = arith.constant 1 : i32
    %606 = vector.broadcast %c1_i32_173 : i32 to vector<64x1xi32>
    %607 = arith.subi %596, %606 : vector<64x1xi32>
    %608 = arith.select %604, %587, %607 : vector<64x1xi1>, vector<64x1xi32>
    %c1_i32_174 = arith.constant 1 : i32
    %609 = vector.broadcast %c1_i32_174 : i32 to vector<64x1xi32>
    %610 = arith.shrsi %605, %609 : vector<64x1xi32>
    %c1_i32_175 = arith.constant 1 : i32
    %611 = vector.broadcast %c1_i32_175 : i32 to vector<64x1xi32>
    %612 = arith.shrsi %608, %611 : vector<64x1xi32>
    %613 = arith.addi %610, %612 : vector<64x1xi32>
    %614 = arith.ori %605, %608 : vector<64x1xi32>
    %c1_i32_176 = arith.constant 1 : i32
    %615 = vector.broadcast %c1_i32_176 : i32 to vector<64x1xi32>
    %616 = arith.andi %614, %615 : vector<64x1xi32>
    %617 = arith.addi %613, %616 : vector<64x1xi32>
    %618 = vector.broadcast %617 : vector<64x1xi32> to vector<64x256xi32>
    %619 = arith.cmpi sge, %18, %618 : vector<64x256xi32>
    %620 = arith.extui %619 : vector<64x256xi1> to vector<64x256xi32>
    %621 = arith.sitofp %620 : vector<64x256xi32> to vector<64x256xf32>
    %cst_177 = arith.constant dense<0.000000e+00> : vector<64xf32>
    %622 = vector.multi_reduction <add>, %621, %cst_177 [1] : vector<64x256xf32> to vector<64xf32>
    %623 = vector.shape_cast %622 : vector<64xf32> to vector<64x1xf32>
    %cst_178 = arith.constant 4.000000e+01 : f32
    %624 = vector.broadcast %cst_178 : f32 to vector<64x1xf32>
    %625 = arith.cmpf oge, %623, %624 : vector<64x1xf32>
    %626 = arith.select %625, %617, %605 : vector<64x1xi1>, vector<64x1xi32>
    %c1_i32_179 = arith.constant 1 : i32
    %627 = vector.broadcast %c1_i32_179 : i32 to vector<64x1xi32>
    %628 = arith.subi %617, %627 : vector<64x1xi32>
    %629 = arith.select %625, %608, %628 : vector<64x1xi1>, vector<64x1xi32>
    %c1_i32_180 = arith.constant 1 : i32
    %630 = vector.broadcast %c1_i32_180 : i32 to vector<64x1xi32>
    %631 = arith.shrsi %626, %630 : vector<64x1xi32>
    %c1_i32_181 = arith.constant 1 : i32
    %632 = vector.broadcast %c1_i32_181 : i32 to vector<64x1xi32>
    %633 = arith.shrsi %629, %632 : vector<64x1xi32>
    %634 = arith.addi %631, %633 : vector<64x1xi32>
    %635 = arith.ori %626, %629 : vector<64x1xi32>
    %c1_i32_182 = arith.constant 1 : i32
    %636 = vector.broadcast %c1_i32_182 : i32 to vector<64x1xi32>
    %637 = arith.andi %635, %636 : vector<64x1xi32>
    %638 = arith.addi %634, %637 : vector<64x1xi32>
    %639 = vector.broadcast %638 : vector<64x1xi32> to vector<64x256xi32>
    %640 = arith.cmpi sge, %18, %639 : vector<64x256xi32>
    %641 = arith.extui %640 : vector<64x256xi1> to vector<64x256xi32>
    %642 = arith.sitofp %641 : vector<64x256xi32> to vector<64x256xf32>
    %cst_183 = arith.constant dense<0.000000e+00> : vector<64xf32>
    %643 = vector.multi_reduction <add>, %642, %cst_183 [1] : vector<64x256xf32> to vector<64xf32>
    %644 = vector.shape_cast %643 : vector<64xf32> to vector<64x1xf32>
    %cst_184 = arith.constant 4.000000e+01 : f32
    %645 = vector.broadcast %cst_184 : f32 to vector<64x1xf32>
    %646 = arith.cmpf oge, %644, %645 : vector<64x1xf32>
    %647 = arith.select %646, %638, %626 : vector<64x1xi1>, vector<64x1xi32>
    %c1_i32_185 = arith.constant 1 : i32
    %648 = vector.broadcast %c1_i32_185 : i32 to vector<64x1xi32>
    %649 = arith.subi %638, %648 : vector<64x1xi32>
    %650 = arith.select %646, %629, %649 : vector<64x1xi1>, vector<64x1xi32>
    %c1_i32_186 = arith.constant 1 : i32
    %651 = vector.broadcast %c1_i32_186 : i32 to vector<64x1xi32>
    %652 = arith.shrsi %647, %651 : vector<64x1xi32>
    %c1_i32_187 = arith.constant 1 : i32
    %653 = vector.broadcast %c1_i32_187 : i32 to vector<64x1xi32>
    %654 = arith.shrsi %650, %653 : vector<64x1xi32>
    %655 = arith.addi %652, %654 : vector<64x1xi32>
    %656 = arith.ori %647, %650 : vector<64x1xi32>
    %c1_i32_188 = arith.constant 1 : i32
    %657 = vector.broadcast %c1_i32_188 : i32 to vector<64x1xi32>
    %658 = arith.andi %656, %657 : vector<64x1xi32>
    %659 = arith.addi %655, %658 : vector<64x1xi32>
    %660 = vector.broadcast %659 : vector<64x1xi32> to vector<64x256xi32>
    %661 = arith.cmpi sge, %18, %660 : vector<64x256xi32>
    %662 = arith.extui %661 : vector<64x256xi1> to vector<64x256xi32>
    %663 = arith.sitofp %662 : vector<64x256xi32> to vector<64x256xf32>
    %cst_189 = arith.constant dense<0.000000e+00> : vector<64xf32>
    %664 = vector.multi_reduction <add>, %663, %cst_189 [1] : vector<64x256xf32> to vector<64xf32>
    %665 = vector.shape_cast %664 : vector<64xf32> to vector<64x1xf32>
    %cst_190 = arith.constant 4.000000e+01 : f32
    %666 = vector.broadcast %cst_190 : f32 to vector<64x1xf32>
    %667 = arith.cmpf oge, %665, %666 : vector<64x1xf32>
    %668 = arith.select %667, %659, %647 : vector<64x1xi1>, vector<64x1xi32>
    %c1_i32_191 = arith.constant 1 : i32
    %669 = vector.broadcast %c1_i32_191 : i32 to vector<64x1xi32>
    %670 = arith.subi %659, %669 : vector<64x1xi32>
    %671 = arith.select %667, %650, %670 : vector<64x1xi1>, vector<64x1xi32>
    %c1_i32_192 = arith.constant 1 : i32
    %672 = vector.broadcast %c1_i32_192 : i32 to vector<64x1xi32>
    %673 = arith.shrsi %668, %672 : vector<64x1xi32>
    %c1_i32_193 = arith.constant 1 : i32
    %674 = vector.broadcast %c1_i32_193 : i32 to vector<64x1xi32>
    %675 = arith.shrsi %671, %674 : vector<64x1xi32>
    %676 = arith.addi %673, %675 : vector<64x1xi32>
    %677 = arith.ori %668, %671 : vector<64x1xi32>
    %c1_i32_194 = arith.constant 1 : i32
    %678 = vector.broadcast %c1_i32_194 : i32 to vector<64x1xi32>
    %679 = arith.andi %677, %678 : vector<64x1xi32>
    %680 = arith.addi %676, %679 : vector<64x1xi32>
    %681 = vector.broadcast %680 : vector<64x1xi32> to vector<64x256xi32>
    %682 = arith.cmpi sge, %18, %681 : vector<64x256xi32>
    %683 = arith.extui %682 : vector<64x256xi1> to vector<64x256xi32>
    %684 = arith.sitofp %683 : vector<64x256xi32> to vector<64x256xf32>
    %cst_195 = arith.constant dense<0.000000e+00> : vector<64xf32>
    %685 = vector.multi_reduction <add>, %684, %cst_195 [1] : vector<64x256xf32> to vector<64xf32>
    %686 = vector.shape_cast %685 : vector<64xf32> to vector<64x1xf32>
    %cst_196 = arith.constant 4.000000e+01 : f32
    %687 = vector.broadcast %cst_196 : f32 to vector<64x1xf32>
    %688 = arith.cmpf oge, %686, %687 : vector<64x1xf32>
    %689 = arith.select %688, %680, %668 : vector<64x1xi1>, vector<64x1xi32>
    %690 = vector.broadcast %689 : vector<64x1xi32> to vector<64x256xi32>
    %691 = arith.cmpi sge, %18, %690 : vector<64x256xi32>
    %cst_197 = arith.constant 0.000000e+00 : f32
    %692 = vector.broadcast %cst_197 : f32 to vector<64x256xf32>
    %693 = arith.select %691, %5, %692 : vector<64x256xi1>, vector<64x256xf32>
    %cst_198 = arith.constant 0.000000e+00 : f32
    %694 = vector.broadcast %cst_198 : f32 to vector<64x256xf32>
    %695 = arith.cmpf ogt, %693, %694 : vector<64x256xf32>
    %696 = arith.extui %695 : vector<64x256xi1> to vector<64x256xi32>
    %697 = arith.sitofp %696 : vector<64x256xi32> to vector<64x256xf32>
    %cst_199 = arith.constant 0.000000e+00 : f32
    %698 = vector.broadcast %cst_199 : f32 to vector<64x256xf32>
    %699 = arith.cmpf oeq, %693, %698 : vector<64x256xf32>
    %700 = arith.extui %699 : vector<64x256xi1> to vector<64x256xi32>
    %701 = arith.sitofp %700 : vector<64x256xi32> to vector<64x256xf32>
    %cst_200 = arith.constant dense<0.000000e+00> : vector<256xf32>
    %702 = vector.multi_reduction <add>, %697, %cst_200 [0] : vector<64x256xf32> to vector<256xf32>
    %703 = vector.shape_cast %702 : vector<256xf32> to vector<1x256xf32>
    %704 = arith.mulf %697, %693 : vector<64x256xf32>
    %cst_201 = arith.constant dense<0.000000e+00> : vector<256xf32>
    %705 = vector.multi_reduction <add>, %704, %cst_201 [0] : vector<64x256xf32> to vector<256xf32>
    %706 = vector.shape_cast %705 : vector<256xf32> to vector<1x256xf32>
    %cst_202 = arith.constant dense<0.000000e+00> : vector<256xf32>
    %707 = vector.multi_reduction <add>, %701, %cst_202 [0] : vector<64x256xf32> to vector<256xf32>
    %708 = vector.shape_cast %707 : vector<256xf32> to vector<1x256xf32>
    %cst_203 = arith.constant 9.900000e-01 : f32
    %709 = vector.broadcast %cst_203 : f32 to vector<1x256xf32>
    %710 = arith.mulf %709, %2 : vector<1x256xf32>
    %711 = arith.mulf %710, %703 : vector<1x256xf32>
    %cst_204 = arith.constant 0.00999999977 : f32
    %712 = vector.broadcast %cst_204 : f32 to vector<1x256xf32>
    %713 = arith.mulf %712, %706 : vector<1x256xf32>
    %714 = arith.addf %711, %713 : vector<1x256xf32>
    %cst_205 = arith.constant 7.812500e-03 : f32
    %715 = vector.broadcast %cst_205 : f32 to vector<1x256xf32>
    %716 = arith.mulf %714, %715 : vector<1x256xf32>
    %717 = arith.mulf %2, %708 : vector<1x256xf32>
    %cst_206 = arith.constant dense<0.000000e+00> : vector<1xf32>
    %718 = vector.multi_reduction <add>, %717, %cst_206 [1] : vector<1x256xf32> to vector<1xf32>
    %719 = vector.shape_cast %718 : vector<1xf32> to vector<1x1xf32>
    %cst_207 = arith.constant 7.812500e-03 : f32
    %720 = vector.broadcast %cst_207 : f32 to vector<1x1xf32>
    %721 = arith.mulf %719, %720 : vector<1x1xf32>
    %722 = vector.broadcast %721 : vector<1x1xf32> to vector<1x256xf32>
    %723 = arith.addf %716, %722 : vector<1x256xf32>
    %724 = vector.shape_cast %723 : vector<1x256xf32> to vector<1x1x256xf32>
    %c0_208 = arith.constant 0 : index
    %c0_209 = arith.constant 0 : index
    %c0_210 = arith.constant 0 : index
    %725 = vector.load %arg9[%c0_208, %c0_209, %c0_210] : memref<1x1x256xf32, #tpu.memory_space<vmem>>, vector<1x1x256xf32>
    tpu.vector_store %arg9[%c0_208, %c0_209, %c0_210], %724 {strides = array<i32>} : memref<1x1x256xf32, #tpu.memory_space<vmem>>, vector<1x1x256xf32>,
    %c0_211 = arith.constant 0 : index
    %c0_212 = arith.constant 0 : index
    %726 = vector.load %arg3[%c0_211, %c0_212] : memref<256x128xbf16, #tpu.memory_space<vmem>>, vector<256x128xbf16>
    %c0_213 = arith.constant 0 : index
    %c0_214 = arith.constant 0 : index
    %727 = vector.load %arg6[%c0_213, %c0_214] : memref<1x128xf32, #tpu.memory_space<vmem>>, vector<1x128xf32>
    %728 = arith.truncf %693 : vector<64x256xf32> to vector<64x256xbf16>
    %cst_215 = arith.constant dense<0.000000e+00> : vector<64x128xf32>
    %729 = tpu.matmul %728, %726, %cst_215 {dimension_numbers = #tpu.dot_dimension_numbers<[1], [0], [0], [1], [0, 0, 1, 1], [], []>} : vector<64x256xbf16>, vector<256x128xbf16>, vector<64x128xf32> -> vector<64x128xf32>
    %730 = math.tanh %729 : vector<64x128xf32>
    %731 = tpu.iota {dimensions = array<i32: 1>} : vector<64x128xi32>
    %c64_i32 = arith.constant 64 : i32
    %732 = vector.broadcast %c64_i32 : i32 to vector<64x128xi32>
    %733 = arith.cmpi slt, %731, %732 : vector<64x128xi32>
    %734 = vector.broadcast %727 : vector<1x128xf32> to vector<64x128xf32>
    %735 = arith.subf %730, %734 : vector<64x128xf32>
    %cst_216 = arith.constant 0xFF800000 : f32
    %736 = vector.broadcast %cst_216 : f32 to vector<64x128xf32>
    %737 = arith.select %733, %735, %736 : vector<64x128xi1>, vector<64x128xf32>
    %738 = tpu.iota {dimensions = array<i32: 1>} : vector<64x128xi32>
    %739 = arith.sitofp %738 : vector<64x128xi32> to vector<64x128xf32>
    %cst_217 = arith.constant dense<0xFF800000> : vector<64xf32>
    %740 = vector.multi_reduction <maximumf>, %737, %cst_217 [1] : vector<64x128xf32> to vector<64xf32>
    %741 = vector.shape_cast %740 : vector<64xf32> to vector<64x1xf32>
    %742 = vector.broadcast %741 : vector<64x1xf32> to vector<64x128xf32>
    %743 = arith.cmpf oeq, %737, %742 : vector<64x128xf32>
    %cst_218 = arith.constant 1.280000e+02 : f32
    %744 = vector.broadcast %cst_218 : f32 to vector<64x128xf32>
    %745 = arith.select %743, %739, %744 : vector<64x128xi1>, vector<64x128xf32>
    %cst_219 = arith.constant dense<0x7F800000> : vector<64xf32>
    %746 = vector.multi_reduction <minimumf>, %745, %cst_219 [1] : vector<64x128xf32> to vector<64xf32>
    %747 = vector.shape_cast %746 : vector<64xf32> to vector<64x1xf32>
    %748 = vector.broadcast %747 : vector<64x1xf32> to vector<64x128xf32>
    %749 = arith.cmpf oeq, %739, %748 : vector<64x128xf32>
    %cst_220 = arith.constant 0xFF800000 : f32
    %750 = vector.broadcast %cst_220 : f32 to vector<64x128xf32>
    %751 = arith.select %749, %750, %737 : vector<64x128xi1>, vector<64x128xf32>
    %cst_221 = arith.constant dense<0xFF800000> : vector<64xf32>
    %752 = vector.multi_reduction <maximumf>, %751, %cst_221 [1] : vector<64x128xf32> to vector<64xf32>
    %753 = vector.shape_cast %752 : vector<64xf32> to vector<64x1xf32>
    %754 = vector.broadcast %753 : vector<64x1xf32> to vector<64x128xf32>
    %755 = arith.cmpf oeq, %751, %754 : vector<64x128xf32>
    %cst_222 = arith.constant 1.280000e+02 : f32
    %756 = vector.broadcast %cst_222 : f32 to vector<64x128xf32>
    %757 = arith.select %755, %739, %756 : vector<64x128xi1>, vector<64x128xf32>
    %cst_223 = arith.constant dense<0x7F800000> : vector<64xf32>
    %758 = vector.multi_reduction <minimumf>, %757, %cst_223 [1] : vector<64x128xf32> to vector<64xf32>
    %759 = vector.shape_cast %758 : vector<64xf32> to vector<64x1xf32>
    %760 = vector.broadcast %759 : vector<64x1xf32> to vector<64x128xf32>
    %761 = arith.cmpf oeq, %739, %760 : vector<64x128xf32>
    %cst_224 = arith.constant 0xFF800000 : f32
    %762 = vector.broadcast %cst_224 : f32 to vector<64x128xf32>
    %763 = arith.select %761, %762, %751 : vector<64x128xi1>, vector<64x128xf32>
    %cst_225 = arith.constant dense<0xFF800000> : vector<64xf32>
    %764 = vector.multi_reduction <maximumf>, %763, %cst_225 [1] : vector<64x128xf32> to vector<64xf32>
    %765 = vector.shape_cast %764 : vector<64xf32> to vector<64x1xf32>
    %766 = vector.broadcast %765 : vector<64x1xf32> to vector<64x128xf32>
    %767 = arith.cmpf oeq, %763, %766 : vector<64x128xf32>
    %cst_226 = arith.constant 1.280000e+02 : f32
    %768 = vector.broadcast %cst_226 : f32 to vector<64x128xf32>
    %769 = arith.select %767, %739, %768 : vector<64x128xi1>, vector<64x128xf32>
    %cst_227 = arith.constant dense<0x7F800000> : vector<64xf32>
    %770 = vector.multi_reduction <minimumf>, %769, %cst_227 [1] : vector<64x128xf32> to vector<64xf32>
    %771 = vector.shape_cast %770 : vector<64xf32> to vector<64x1xf32>
    %772 = vector.broadcast %771 : vector<64x1xf32> to vector<64x128xf32>
    %773 = arith.cmpf oeq, %739, %772 : vector<64x128xf32>
    %cst_228 = arith.constant 0xFF800000 : f32
    %774 = vector.broadcast %cst_228 : f32 to vector<64x128xf32>
    %775 = arith.select %773, %774, %763 : vector<64x128xi1>, vector<64x128xf32>
    %cst_229 = arith.constant dense<0xFF800000> : vector<64xf32>
    %776 = vector.multi_reduction <maximumf>, %775, %cst_229 [1] : vector<64x128xf32> to vector<64xf32>
    %777 = vector.shape_cast %776 : vector<64xf32> to vector<64x1xf32>
    %778 = vector.broadcast %777 : vector<64x1xf32> to vector<64x128xf32>
    %779 = arith.cmpf oeq, %775, %778 : vector<64x128xf32>
    %cst_230 = arith.constant 1.280000e+02 : f32
    %780 = vector.broadcast %cst_230 : f32 to vector<64x128xf32>
    %781 = arith.select %779, %739, %780 : vector<64x128xi1>, vector<64x128xf32>
    %cst_231 = arith.constant dense<0x7F800000> : vector<64xf32>
    %782 = vector.multi_reduction <minimumf>, %781, %cst_231 [1] : vector<64x128xf32> to vector<64xf32>
    %783 = vector.shape_cast %782 : vector<64xf32> to vector<64x1xf32>
    %784 = vector.broadcast %783 : vector<64x1xf32> to vector<64x128xf32>
    %785 = arith.cmpf oeq, %739, %784 : vector<64x128xf32>
    %cst_232 = arith.constant 0xFF800000 : f32
    %786 = vector.broadcast %cst_232 : f32 to vector<64x128xf32>
    %787 = arith.select %785, %786, %775 : vector<64x128xi1>, vector<64x128xf32>
    %cst_233 = arith.constant dense<0xFF800000> : vector<64xf32>
    %788 = vector.multi_reduction <maximumf>, %787, %cst_233 [1] : vector<64x128xf32> to vector<64xf32>
    %789 = vector.shape_cast %788 : vector<64xf32> to vector<64x1xf32>
    %790 = vector.broadcast %789 : vector<64x1xf32> to vector<64x128xf32>
    %791 = arith.cmpf oeq, %787, %790 : vector<64x128xf32>
    %cst_234 = arith.constant 1.280000e+02 : f32
    %792 = vector.broadcast %cst_234 : f32 to vector<64x128xf32>
    %793 = arith.select %791, %739, %792 : vector<64x128xi1>, vector<64x128xf32>
    %cst_235 = arith.constant dense<0x7F800000> : vector<64xf32>
    %794 = vector.multi_reduction <minimumf>, %793, %cst_235 [1] : vector<64x128xf32> to vector<64xf32>
    %795 = vector.shape_cast %794 : vector<64xf32> to vector<64x1xf32>
    %796 = vector.broadcast %795 : vector<64x1xf32> to vector<64x128xf32>
    %797 = arith.cmpf oeq, %739, %796 : vector<64x128xf32>
    %cst_236 = arith.constant 0xFF800000 : f32
    %798 = vector.broadcast %cst_236 : f32 to vector<64x128xf32>
    %799 = arith.select %797, %798, %787 : vector<64x128xi1>, vector<64x128xf32>
    %cst_237 = arith.constant dense<0xFF800000> : vector<64xf32>
    %800 = vector.multi_reduction <maximumf>, %799, %cst_237 [1] : vector<64x128xf32> to vector<64xf32>
    %801 = vector.shape_cast %800 : vector<64xf32> to vector<64x1xf32>
    %802 = vector.broadcast %801 : vector<64x1xf32> to vector<64x128xf32>
    %803 = arith.cmpf oeq, %799, %802 : vector<64x128xf32>
    %cst_238 = arith.constant 1.280000e+02 : f32
    %804 = vector.broadcast %cst_238 : f32 to vector<64x128xf32>
    %805 = arith.select %803, %739, %804 : vector<64x128xi1>, vector<64x128xf32>
    %cst_239 = arith.constant dense<0x7F800000> : vector<64xf32>
    %806 = vector.multi_reduction <minimumf>, %805, %cst_239 [1] : vector<64x128xf32> to vector<64xf32>
    %807 = vector.shape_cast %806 : vector<64xf32> to vector<64x1xf32>
    %808 = vector.broadcast %807 : vector<64x1xf32> to vector<64x128xf32>
    %809 = arith.cmpf oeq, %739, %808 : vector<64x128xf32>
    %cst_240 = arith.constant 0xFF800000 : f32
    %810 = vector.broadcast %cst_240 : f32 to vector<64x128xf32>
    %811 = arith.select %809, %810, %799 : vector<64x128xi1>, vector<64x128xf32>
    %cst_241 = arith.constant dense<0xFF800000> : vector<64xf32>
    %812 = vector.multi_reduction <maximumf>, %811, %cst_241 [1] : vector<64x128xf32> to vector<64xf32>
    %813 = vector.shape_cast %812 : vector<64xf32> to vector<64x1xf32>
    %814 = vector.broadcast %813 : vector<64x1xf32> to vector<64x128xf32>
    %815 = arith.cmpf oeq, %811, %814 : vector<64x128xf32>
    %cst_242 = arith.constant 1.280000e+02 : f32
    %816 = vector.broadcast %cst_242 : f32 to vector<64x128xf32>
    %817 = arith.select %815, %739, %816 : vector<64x128xi1>, vector<64x128xf32>
    %cst_243 = arith.constant dense<0x7F800000> : vector<64xf32>
    %818 = vector.multi_reduction <minimumf>, %817, %cst_243 [1] : vector<64x128xf32> to vector<64xf32>
    %819 = vector.shape_cast %818 : vector<64xf32> to vector<64x1xf32>
    %820 = vector.broadcast %819 : vector<64x1xf32> to vector<64x128xf32>
    %821 = arith.cmpf oeq, %739, %820 : vector<64x128xf32>
    %cst_244 = arith.constant 0xFF800000 : f32
    %822 = vector.broadcast %cst_244 : f32 to vector<64x128xf32>
    %823 = arith.select %821, %822, %811 : vector<64x128xi1>, vector<64x128xf32>
    %cst_245 = arith.constant dense<0xFF800000> : vector<64xf32>
    %824 = vector.multi_reduction <maximumf>, %823, %cst_245 [1] : vector<64x128xf32> to vector<64xf32>
    %825 = vector.shape_cast %824 : vector<64xf32> to vector<64x1xf32>
    %826 = vector.broadcast %825 : vector<64x1xf32> to vector<64x128xf32>
    %827 = arith.cmpf oeq, %823, %826 : vector<64x128xf32>
    %cst_246 = arith.constant 1.280000e+02 : f32
    %828 = vector.broadcast %cst_246 : f32 to vector<64x128xf32>
    %829 = arith.select %827, %739, %828 : vector<64x128xi1>, vector<64x128xf32>
    %cst_247 = arith.constant dense<0x7F800000> : vector<64xf32>
    %830 = vector.multi_reduction <minimumf>, %829, %cst_247 [1] : vector<64x128xf32> to vector<64xf32>
    %831 = vector.shape_cast %830 : vector<64xf32> to vector<64x1xf32>
    %832 = vector.broadcast %831 : vector<64x1xf32> to vector<64x128xf32>
    %833 = arith.cmpf oeq, %739, %832 : vector<64x128xf32>
    %cst_248 = arith.constant 0xFF800000 : f32
    %834 = vector.broadcast %cst_248 : f32 to vector<64x128xf32>
    %835 = arith.select %833, %834, %823 : vector<64x128xi1>, vector<64x128xf32>
    %cst_249 = arith.constant dense<0xFF800000> : vector<64xf32>
    %836 = vector.multi_reduction <maximumf>, %835, %cst_249 [1] : vector<64x128xf32> to vector<64xf32>
    %837 = vector.shape_cast %836 : vector<64xf32> to vector<64x1xf32>
    %838 = vector.broadcast %837 : vector<64x1xf32> to vector<64x128xf32>
    %839 = arith.cmpf oeq, %835, %838 : vector<64x128xf32>
    %cst_250 = arith.constant 1.280000e+02 : f32
    %840 = vector.broadcast %cst_250 : f32 to vector<64x128xf32>
    %841 = arith.select %839, %739, %840 : vector<64x128xi1>, vector<64x128xf32>
    %cst_251 = arith.constant dense<0x7F800000> : vector<64xf32>
    %842 = vector.multi_reduction <minimumf>, %841, %cst_251 [1] : vector<64x128xf32> to vector<64xf32>
    %843 = vector.shape_cast %842 : vector<64xf32> to vector<64x1xf32>
    %844 = vector.broadcast %843 : vector<64x1xf32> to vector<64x128xf32>
    %845 = arith.cmpf oeq, %739, %844 : vector<64x128xf32>
    %cst_252 = arith.constant 0xFF800000 : f32
    %846 = vector.broadcast %cst_252 : f32 to vector<64x128xf32>
    %847 = arith.select %845, %846, %835 : vector<64x128xi1>, vector<64x128xf32>
    %cst_253 = arith.constant dense<0xFF800000> : vector<64xf32>
    %848 = vector.multi_reduction <maximumf>, %847, %cst_253 [1] : vector<64x128xf32> to vector<64xf32>
    %849 = vector.shape_cast %848 : vector<64xf32> to vector<64x1xf32>
    %850 = vector.broadcast %849 : vector<64x1xf32> to vector<64x128xf32>
    %851 = arith.cmpf oeq, %847, %850 : vector<64x128xf32>
    %cst_254 = arith.constant 1.280000e+02 : f32
    %852 = vector.broadcast %cst_254 : f32 to vector<64x128xf32>
    %853 = arith.select %851, %739, %852 : vector<64x128xi1>, vector<64x128xf32>
    %cst_255 = arith.constant dense<0x7F800000> : vector<64xf32>
    %854 = vector.multi_reduction <minimumf>, %853, %cst_255 [1] : vector<64x128xf32> to vector<64xf32>
    %855 = vector.shape_cast %854 : vector<64xf32> to vector<64x1xf32>
    %856 = vector.broadcast %855 : vector<64x1xf32> to vector<64x128xf32>
    %857 = arith.cmpf oeq, %739, %856 : vector<64x128xf32>
    %cst_256 = arith.constant 0xFF800000 : f32
    %858 = vector.broadcast %cst_256 : f32 to vector<64x128xf32>
    %859 = arith.select %857, %858, %847 : vector<64x128xi1>, vector<64x128xf32>
    %cst_257 = arith.constant dense<0xFF800000> : vector<64xf32>
    %860 = vector.multi_reduction <maximumf>, %859, %cst_257 [1] : vector<64x128xf32> to vector<64xf32>
    %861 = vector.shape_cast %860 : vector<64xf32> to vector<64x1xf32>
    %862 = vector.broadcast %861 : vector<64x1xf32> to vector<64x128xf32>
    %863 = arith.cmpf oeq, %859, %862 : vector<64x128xf32>
    %cst_258 = arith.constant 1.280000e+02 : f32
    %864 = vector.broadcast %cst_258 : f32 to vector<64x128xf32>
    %865 = arith.select %863, %739, %864 : vector<64x128xi1>, vector<64x128xf32>
    %cst_259 = arith.constant dense<0x7F800000> : vector<64xf32>
    %866 = vector.multi_reduction <minimumf>, %865, %cst_259 [1] : vector<64x128xf32> to vector<64xf32>
    %867 = vector.shape_cast %866 : vector<64xf32> to vector<64x1xf32>
    %868 = vector.broadcast %867 : vector<64x1xf32> to vector<64x128xf32>
    %869 = arith.cmpf oeq, %739, %868 : vector<64x128xf32>
    %cst_260 = arith.constant 0xFF800000 : f32
    %870 = vector.broadcast %cst_260 : f32 to vector<64x128xf32>
    %871 = arith.select %869, %870, %859 : vector<64x128xi1>, vector<64x128xf32>
    %cst_261 = arith.constant dense<0xFF800000> : vector<64xf32>
    %872 = vector.multi_reduction <maximumf>, %871, %cst_261 [1] : vector<64x128xf32> to vector<64xf32>
    %873 = vector.shape_cast %872 : vector<64xf32> to vector<64x1xf32>
    %874 = vector.broadcast %873 : vector<64x1xf32> to vector<64x128xf32>
    %875 = arith.cmpf oeq, %871, %874 : vector<64x128xf32>
    %cst_262 = arith.constant 1.280000e+02 : f32
    %876 = vector.broadcast %cst_262 : f32 to vector<64x128xf32>
    %877 = arith.select %875, %739, %876 : vector<64x128xi1>, vector<64x128xf32>
    %cst_263 = arith.constant dense<0x7F800000> : vector<64xf32>
    %878 = vector.multi_reduction <minimumf>, %877, %cst_263 [1] : vector<64x128xf32> to vector<64xf32>
    %879 = vector.shape_cast %878 : vector<64xf32> to vector<64x1xf32>
    %880 = vector.broadcast %879 : vector<64x1xf32> to vector<64x128xf32>
    %881 = arith.cmpf oeq, %739, %880 : vector<64x128xf32>
    %cst_264 = arith.constant 0xFF800000 : f32
    %882 = vector.broadcast %cst_264 : f32 to vector<64x128xf32>
    %883 = arith.select %881, %882, %871 : vector<64x128xi1>, vector<64x128xf32>
    %cst_265 = arith.constant dense<0xFF800000> : vector<64xf32>
    %884 = vector.multi_reduction <maximumf>, %883, %cst_265 [1] : vector<64x128xf32> to vector<64xf32>
    %885 = vector.shape_cast %884 : vector<64xf32> to vector<64x1xf32>
    %886 = vector.broadcast %885 : vector<64x1xf32> to vector<64x128xf32>
    %887 = arith.cmpf oeq, %883, %886 : vector<64x128xf32>
    %cst_266 = arith.constant 1.280000e+02 : f32
    %888 = vector.broadcast %cst_266 : f32 to vector<64x128xf32>
    %889 = arith.select %887, %739, %888 : vector<64x128xi1>, vector<64x128xf32>
    %cst_267 = arith.constant dense<0x7F800000> : vector<64xf32>
    %890 = vector.multi_reduction <minimumf>, %889, %cst_267 [1] : vector<64x128xf32> to vector<64xf32>
    %891 = vector.shape_cast %890 : vector<64xf32> to vector<64x1xf32>
    %892 = vector.broadcast %891 : vector<64x1xf32> to vector<64x128xf32>
    %893 = arith.cmpf oeq, %739, %892 : vector<64x128xf32>
    %cst_268 = arith.constant 0xFF800000 : f32
    %894 = vector.broadcast %cst_268 : f32 to vector<64x128xf32>
    %895 = arith.select %893, %894, %883 : vector<64x128xi1>, vector<64x128xf32>
    %cst_269 = arith.constant dense<0xFF800000> : vector<64xf32>
    %896 = vector.multi_reduction <maximumf>, %895, %cst_269 [1] : vector<64x128xf32> to vector<64xf32>
    %897 = vector.shape_cast %896 : vector<64xf32> to vector<64x1xf32>
    %898 = vector.broadcast %897 : vector<64x1xf32> to vector<64x128xf32>
    %899 = arith.cmpf oeq, %895, %898 : vector<64x128xf32>
    %cst_270 = arith.constant 1.280000e+02 : f32
    %900 = vector.broadcast %cst_270 : f32 to vector<64x128xf32>
    %901 = arith.select %899, %739, %900 : vector<64x128xi1>, vector<64x128xf32>
    %cst_271 = arith.constant dense<0x7F800000> : vector<64xf32>
    %902 = vector.multi_reduction <minimumf>, %901, %cst_271 [1] : vector<64x128xf32> to vector<64xf32>
    %903 = vector.shape_cast %902 : vector<64xf32> to vector<64x1xf32>
    %904 = vector.broadcast %903 : vector<64x1xf32> to vector<64x128xf32>
    %905 = arith.cmpf oeq, %739, %904 : vector<64x128xf32>
    %cst_272 = arith.constant 0xFF800000 : f32
    %906 = vector.broadcast %cst_272 : f32 to vector<64x128xf32>
    %907 = arith.select %905, %906, %895 : vector<64x128xi1>, vector<64x128xf32>
    %cst_273 = arith.constant dense<0xFF800000> : vector<64xf32>
    %908 = vector.multi_reduction <maximumf>, %907, %cst_273 [1] : vector<64x128xf32> to vector<64xf32>
    %909 = vector.shape_cast %908 : vector<64xf32> to vector<64x1xf32>
    %910 = vector.broadcast %909 : vector<64x1xf32> to vector<64x128xf32>
    %911 = arith.cmpf oeq, %907, %910 : vector<64x128xf32>
    %cst_274 = arith.constant 1.280000e+02 : f32
    %912 = vector.broadcast %cst_274 : f32 to vector<64x128xf32>
    %913 = arith.select %911, %739, %912 : vector<64x128xi1>, vector<64x128xf32>
    %cst_275 = arith.constant dense<0x7F800000> : vector<64xf32>
    %914 = vector.multi_reduction <minimumf>, %913, %cst_275 [1] : vector<64x128xf32> to vector<64xf32>
    %915 = vector.shape_cast %914 : vector<64xf32> to vector<64x1xf32>
    %916 = vector.broadcast %915 : vector<64x1xf32> to vector<64x128xf32>
    %917 = arith.cmpf oeq, %739, %916 : vector<64x128xf32>
    %cst_276 = arith.constant 0xFF800000 : f32
    %918 = vector.broadcast %cst_276 : f32 to vector<64x128xf32>
    %919 = arith.select %917, %918, %907 : vector<64x128xi1>, vector<64x128xf32>
    %cst_277 = arith.constant dense<0xFF800000> : vector<64xf32>
    %920 = vector.multi_reduction <maximumf>, %919, %cst_277 [1] : vector<64x128xf32> to vector<64xf32>
    %921 = vector.shape_cast %920 : vector<64xf32> to vector<64x1xf32>
    %922 = vector.broadcast %921 : vector<64x1xf32> to vector<64x128xf32>
    %923 = arith.cmpf oge, %737, %922 : vector<64x128xf32>
    %cst_278 = arith.constant 0.000000e+00 : f32
    %924 = vector.broadcast %cst_278 : f32 to vector<64x128xf32>
    %925 = arith.select %923, %730, %924 : vector<64x128xi1>, vector<64x128xf32>
    %cst_279 = arith.constant 0.000000e+00 : f32
    %926 = vector.broadcast %cst_279 : f32 to vector<64x128xf32>
    %927 = arith.cmpf ogt, %925, %926 : vector<64x128xf32>
    %928 = arith.extui %927 : vector<64x128xi1> to vector<64x128xi32>
    %929 = arith.sitofp %928 : vector<64x128xi32> to vector<64x128xf32>
    %cst_280 = arith.constant 0.000000e+00 : f32
    %930 = vector.broadcast %cst_280 : f32 to vector<64x128xf32>
    %931 = arith.cmpf oeq, %925, %930 : vector<64x128xf32>
    %932 = arith.extui %931 : vector<64x128xi1> to vector<64x128xi32>
    %933 = arith.sitofp %932 : vector<64x128xi32> to vector<64x128xf32>
    %cst_281 = arith.constant dense<0.000000e+00> : vector<128xf32>
    %934 = vector.multi_reduction <add>, %929, %cst_281 [0] : vector<64x128xf32> to vector<128xf32>
    %935 = vector.shape_cast %934 : vector<128xf32> to vector<1x128xf32>
    %936 = arith.mulf %929, %925 : vector<64x128xf32>
    %cst_282 = arith.constant dense<0.000000e+00> : vector<128xf32>
    %937 = vector.multi_reduction <add>, %936, %cst_282 [0] : vector<64x128xf32> to vector<128xf32>
    %938 = vector.shape_cast %937 : vector<128xf32> to vector<1x128xf32>
    %cst_283 = arith.constant dense<0.000000e+00> : vector<128xf32>
    %939 = vector.multi_reduction <add>, %933, %cst_283 [0] : vector<64x128xf32> to vector<128xf32>
    %940 = vector.shape_cast %939 : vector<128xf32> to vector<1x128xf32>
    %cst_284 = arith.constant 9.900000e-01 : f32
    %941 = vector.broadcast %cst_284 : f32 to vector<1x128xf32>
    %942 = arith.mulf %941, %727 : vector<1x128xf32>
    %943 = arith.mulf %942, %935 : vector<1x128xf32>
    %cst_285 = arith.constant 0.00999999977 : f32
    %944 = vector.broadcast %cst_285 : f32 to vector<1x128xf32>
    %945 = arith.mulf %944, %938 : vector<1x128xf32>
    %946 = arith.addf %943, %945 : vector<1x128xf32>
    %cst_286 = arith.constant 7.812500e-03 : f32
    %947 = vector.broadcast %cst_286 : f32 to vector<1x128xf32>
    %948 = arith.mulf %946, %947 : vector<1x128xf32>
    %949 = arith.mulf %727, %940 : vector<1x128xf32>
    %cst_287 = arith.constant dense<0.000000e+00> : vector<1xf32>
    %950 = vector.multi_reduction <add>, %949, %cst_287 [1] : vector<1x128xf32> to vector<1xf32>
    %951 = vector.shape_cast %950 : vector<1xf32> to vector<1x1xf32>
    %cst_288 = arith.constant 7.812500e-03 : f32
    %952 = vector.broadcast %cst_288 : f32 to vector<1x1xf32>
    %953 = arith.mulf %951, %952 : vector<1x1xf32>
    %954 = vector.broadcast %953 : vector<1x1xf32> to vector<1x128xf32>
    %955 = arith.addf %948, %954 : vector<1x128xf32>
    %956 = vector.shape_cast %955 : vector<1x128xf32> to vector<1x1x128xf32>
    %c0_289 = arith.constant 0 : index
    %c0_290 = arith.constant 0 : index
    %c0_291 = arith.constant 0 : index
    %957 = vector.load %arg10[%c0_289, %c0_290, %c0_291] : memref<1x1x128xf32, #tpu.memory_space<vmem>>, vector<1x1x128xf32>
    tpu.vector_store %arg10[%c0_289, %c0_290, %c0_291], %956 {strides = array<i32>} : memref<1x1x128xf32, #tpu.memory_space<vmem>>, vector<1x1x128xf32>,
    %c0_292 = arith.constant 0 : index
    %c0_293 = arith.constant 0 : index
    %958 = vector.load %arg4[%c0_292, %c0_293] : memref<128x128xbf16, #tpu.memory_space<vmem>>, vector<128x128xbf16>
    %c0_294 = arith.constant 0 : index
    %c0_295 = arith.constant 0 : index
    %959 = vector.load %arg7[%c0_294, %c0_295] : memref<1x128xf32, #tpu.memory_space<vmem>>, vector<1x128xf32>
    %960 = arith.truncf %925 : vector<64x128xf32> to vector<64x128xbf16>
    %cst_296 = arith.constant dense<0.000000e+00> : vector<64x128xf32>
    %961 = tpu.matmul %960, %958, %cst_296 {dimension_numbers = #tpu.dot_dimension_numbers<[1], [0], [0], [1], [0, 0, 1, 1], [], []>} : vector<64x128xbf16>, vector<128x128xbf16>, vector<64x128xf32> -> vector<64x128xf32>
    %962 = tpu.iota {dimensions = array<i32: 1>} : vector<64x128xi32>
    %c32_i32 = arith.constant 32 : i32
    %963 = vector.broadcast %c32_i32 : i32 to vector<64x128xi32>
    %964 = arith.cmpi slt, %962, %963 : vector<64x128xi32>
    %965 = vector.broadcast %959 : vector<1x128xf32> to vector<64x128xf32>
    %966 = arith.subf %961, %965 : vector<64x128xf32>
    %cst_297 = arith.constant 0xFF800000 : f32
    %967 = vector.broadcast %cst_297 : f32 to vector<64x128xf32>
    %968 = arith.select %964, %966, %967 : vector<64x128xi1>, vector<64x128xf32>
    %969 = tpu.iota {dimensions = array<i32: 1>} : vector<64x128xi32>
    %970 = arith.sitofp %969 : vector<64x128xi32> to vector<64x128xf32>
    %cst_298 = arith.constant dense<0xFF800000> : vector<64xf32>
    %971 = vector.multi_reduction <maximumf>, %968, %cst_298 [1] : vector<64x128xf32> to vector<64xf32>
    %972 = vector.shape_cast %971 : vector<64xf32> to vector<64x1xf32>
    %973 = vector.broadcast %972 : vector<64x1xf32> to vector<64x128xf32>
    %974 = arith.cmpf oeq, %968, %973 : vector<64x128xf32>
    %cst_299 = arith.constant 1.280000e+02 : f32
    %975 = vector.broadcast %cst_299 : f32 to vector<64x128xf32>
    %976 = arith.select %974, %970, %975 : vector<64x128xi1>, vector<64x128xf32>
    %cst_300 = arith.constant dense<0x7F800000> : vector<64xf32>
    %977 = vector.multi_reduction <minimumf>, %976, %cst_300 [1] : vector<64x128xf32> to vector<64xf32>
    %978 = vector.shape_cast %977 : vector<64xf32> to vector<64x1xf32>
    %979 = vector.broadcast %978 : vector<64x1xf32> to vector<64x128xf32>
    %980 = arith.cmpf oeq, %970, %979 : vector<64x128xf32>
    %cst_301 = arith.constant 0xFF800000 : f32
    %981 = vector.broadcast %cst_301 : f32 to vector<64x128xf32>
    %982 = arith.select %980, %981, %968 : vector<64x128xi1>, vector<64x128xf32>
    %cst_302 = arith.constant dense<0xFF800000> : vector<64xf32>
    %983 = vector.multi_reduction <maximumf>, %982, %cst_302 [1] : vector<64x128xf32> to vector<64xf32>
    %984 = vector.shape_cast %983 : vector<64xf32> to vector<64x1xf32>
    %985 = vector.broadcast %984 : vector<64x1xf32> to vector<64x128xf32>
    %986 = arith.cmpf oeq, %982, %985 : vector<64x128xf32>
    %cst_303 = arith.constant 1.280000e+02 : f32
    %987 = vector.broadcast %cst_303 : f32 to vector<64x128xf32>
    %988 = arith.select %986, %970, %987 : vector<64x128xi1>, vector<64x128xf32>
    %cst_304 = arith.constant dense<0x7F800000> : vector<64xf32>
    %989 = vector.multi_reduction <minimumf>, %988, %cst_304 [1] : vector<64x128xf32> to vector<64xf32>
    %990 = vector.shape_cast %989 : vector<64xf32> to vector<64x1xf32>
    %991 = vector.broadcast %990 : vector<64x1xf32> to vector<64x128xf32>
    %992 = arith.cmpf oeq, %970, %991 : vector<64x128xf32>
    %cst_305 = arith.constant 0xFF800000 : f32
    %993 = vector.broadcast %cst_305 : f32 to vector<64x128xf32>
    %994 = arith.select %992, %993, %982 : vector<64x128xi1>, vector<64x128xf32>
    %cst_306 = arith.constant dense<0xFF800000> : vector<64xf32>
    %995 = vector.multi_reduction <maximumf>, %994, %cst_306 [1] : vector<64x128xf32> to vector<64xf32>
    %996 = vector.shape_cast %995 : vector<64xf32> to vector<64x1xf32>
    %997 = vector.broadcast %996 : vector<64x1xf32> to vector<64x128xf32>
    %998 = arith.cmpf oeq, %994, %997 : vector<64x128xf32>
    %cst_307 = arith.constant 1.280000e+02 : f32
    %999 = vector.broadcast %cst_307 : f32 to vector<64x128xf32>
    %1000 = arith.select %998, %970, %999 : vector<64x128xi1>, vector<64x128xf32>
    %cst_308 = arith.constant dense<0x7F800000> : vector<64xf32>
    %1001 = vector.multi_reduction <minimumf>, %1000, %cst_308 [1] : vector<64x128xf32> to vector<64xf32>
    %1002 = vector.shape_cast %1001 : vector<64xf32> to vector<64x1xf32>
    %1003 = vector.broadcast %1002 : vector<64x1xf32> to vector<64x128xf32>
    %1004 = arith.cmpf oeq, %970, %1003 : vector<64x128xf32>
    %cst_309 = arith.constant 0xFF800000 : f32
    %1005 = vector.broadcast %cst_309 : f32 to vector<64x128xf32>
    %1006 = arith.select %1004, %1005, %994 : vector<64x128xi1>, vector<64x128xf32>
    %cst_310 = arith.constant dense<0xFF800000> : vector<64xf32>
    %1007 = vector.multi_reduction <maximumf>, %1006, %cst_310 [1] : vector<64x128xf32> to vector<64xf32>
    %1008 = vector.shape_cast %1007 : vector<64xf32> to vector<64x1xf32>
    %1009 = vector.broadcast %1008 : vector<64x1xf32> to vector<64x128xf32>
    %1010 = arith.cmpf oeq, %1006, %1009 : vector<64x128xf32>
    %cst_311 = arith.constant 1.280000e+02 : f32
    %1011 = vector.broadcast %cst_311 : f32 to vector<64x128xf32>
    %1012 = arith.select %1010, %970, %1011 : vector<64x128xi1>, vector<64x128xf32>
    %cst_312 = arith.constant dense<0x7F800000> : vector<64xf32>
    %1013 = vector.multi_reduction <minimumf>, %1012, %cst_312 [1] : vector<64x128xf32> to vector<64xf32>
    %1014 = vector.shape_cast %1013 : vector<64xf32> to vector<64x1xf32>
    %1015 = vector.broadcast %1014 : vector<64x1xf32> to vector<64x128xf32>
    %1016 = arith.cmpf oeq, %970, %1015 : vector<64x128xf32>
    %cst_313 = arith.constant 0xFF800000 : f32
    %1017 = vector.broadcast %cst_313 : f32 to vector<64x128xf32>
    %1018 = arith.select %1016, %1017, %1006 : vector<64x128xi1>, vector<64x128xf32>
    %cst_314 = arith.constant dense<0xFF800000> : vector<64xf32>
    %1019 = vector.multi_reduction <maximumf>, %1018, %cst_314 [1] : vector<64x128xf32> to vector<64xf32>
    %1020 = vector.shape_cast %1019 : vector<64xf32> to vector<64x1xf32>
    %1021 = vector.broadcast %1020 : vector<64x1xf32> to vector<64x128xf32>
    %1022 = arith.cmpf oeq, %1018, %1021 : vector<64x128xf32>
    %cst_315 = arith.constant 1.280000e+02 : f32
    %1023 = vector.broadcast %cst_315 : f32 to vector<64x128xf32>
    %1024 = arith.select %1022, %970, %1023 : vector<64x128xi1>, vector<64x128xf32>
    %cst_316 = arith.constant dense<0x7F800000> : vector<64xf32>
    %1025 = vector.multi_reduction <minimumf>, %1024, %cst_316 [1] : vector<64x128xf32> to vector<64xf32>
    %1026 = vector.shape_cast %1025 : vector<64xf32> to vector<64x1xf32>
    %1027 = vector.broadcast %1026 : vector<64x1xf32> to vector<64x128xf32>
    %1028 = arith.cmpf oeq, %970, %1027 : vector<64x128xf32>
    %cst_317 = arith.constant 0xFF800000 : f32
    %1029 = vector.broadcast %cst_317 : f32 to vector<64x128xf32>
    %1030 = arith.select %1028, %1029, %1018 : vector<64x128xi1>, vector<64x128xf32>
    %cst_318 = arith.constant dense<0xFF800000> : vector<64xf32>
    %1031 = vector.multi_reduction <maximumf>, %1030, %cst_318 [1] : vector<64x128xf32> to vector<64xf32>
    %1032 = vector.shape_cast %1031 : vector<64xf32> to vector<64x1xf32>
    %1033 = vector.broadcast %1032 : vector<64x1xf32> to vector<64x128xf32>
    %1034 = arith.cmpf oeq, %1030, %1033 : vector<64x128xf32>
    %cst_319 = arith.constant 1.280000e+02 : f32
    %1035 = vector.broadcast %cst_319 : f32 to vector<64x128xf32>
    %1036 = arith.select %1034, %970, %1035 : vector<64x128xi1>, vector<64x128xf32>
    %cst_320 = arith.constant dense<0x7F800000> : vector<64xf32>
    %1037 = vector.multi_reduction <minimumf>, %1036, %cst_320 [1] : vector<64x128xf32> to vector<64xf32>
    %1038 = vector.shape_cast %1037 : vector<64xf32> to vector<64x1xf32>
    %1039 = vector.broadcast %1038 : vector<64x1xf32> to vector<64x128xf32>
    %1040 = arith.cmpf oeq, %970, %1039 : vector<64x128xf32>
    %cst_321 = arith.constant 0xFF800000 : f32
    %1041 = vector.broadcast %cst_321 : f32 to vector<64x128xf32>
    %1042 = arith.select %1040, %1041, %1030 : vector<64x128xi1>, vector<64x128xf32>
    %cst_322 = arith.constant dense<0xFF800000> : vector<64xf32>
    %1043 = vector.multi_reduction <maximumf>, %1042, %cst_322 [1] : vector<64x128xf32> to vector<64xf32>
    %1044 = vector.shape_cast %1043 : vector<64xf32> to vector<64x1xf32>
    %1045 = vector.broadcast %1044 : vector<64x1xf32> to vector<64x128xf32>
    %1046 = arith.cmpf oeq, %1042, %1045 : vector<64x128xf32>
    %cst_323 = arith.constant 1.280000e+02 : f32
    %1047 = vector.broadcast %cst_323 : f32 to vector<64x128xf32>
    %1048 = arith.select %1046, %970, %1047 : vector<64x128xi1>, vector<64x128xf32>
    %cst_324 = arith.constant dense<0x7F800000> : vector<64xf32>
    %1049 = vector.multi_reduction <minimumf>, %1048, %cst_324 [1] : vector<64x128xf32> to vector<64xf32>
    %1050 = vector.shape_cast %1049 : vector<64xf32> to vector<64x1xf32>
    %1051 = vector.broadcast %1050 : vector<64x1xf32> to vector<64x128xf32>
    %1052 = arith.cmpf oeq, %970, %1051 : vector<64x128xf32>
    %cst_325 = arith.constant 0xFF800000 : f32
    %1053 = vector.broadcast %cst_325 : f32 to vector<64x128xf32>
    %1054 = arith.select %1052, %1053, %1042 : vector<64x128xi1>, vector<64x128xf32>
    %cst_326 = arith.constant dense<0xFF800000> : vector<64xf32>
    %1055 = vector.multi_reduction <maximumf>, %1054, %cst_326 [1] : vector<64x128xf32> to vector<64xf32>
    %1056 = vector.shape_cast %1055 : vector<64xf32> to vector<64x1xf32>
    %1057 = vector.broadcast %1056 : vector<64x1xf32> to vector<64x128xf32>
    %1058 = arith.cmpf oge, %968, %1057 : vector<64x128xf32>
    %cst_327 = arith.constant 0.000000e+00 : f32
    %1059 = vector.broadcast %cst_327 : f32 to vector<64x128xf32>
    %1060 = arith.select %1058, %961, %1059 : vector<64x128xi1>, vector<64x128xf32>
    %cst_328 = arith.constant 0xFF800000 : f32
    %1061 = vector.broadcast %cst_328 : f32 to vector<64x128xf32>
    %1062 = arith.select %964, %1060, %1061 : vector<64x128xi1>, vector<64x128xf32>
    %cst_329 = arith.constant dense<0xFF800000> : vector<64xf32>
    %1063 = vector.multi_reduction <maximumf>, %1062, %cst_329 [1] : vector<64x128xf32> to vector<64xf32>
    %1064 = vector.shape_cast %1063 : vector<64xf32> to vector<64x1xf32>
    %1065 = vector.broadcast %1064 : vector<64x1xf32> to vector<64x128xf32>
    %1066 = arith.subf %1062, %1065 : vector<64x128xf32>
    %1067 = math.exp %1066 : vector<64x128xf32>
    %cst_330 = arith.constant dense<0.000000e+00> : vector<64xf32>
    %1068 = vector.multi_reduction <add>, %1067, %cst_330 [1] : vector<64x128xf32> to vector<64xf32>
    %1069 = vector.shape_cast %1068 : vector<64xf32> to vector<64x1xf32>
    %1070 = tpu.reciprocal %1069 {approx = true} : vector<64x1xf32> -> vector<64x1xf32>
    %1071 = arith.mulf %1069, %1070 : vector<64x1xf32>
    %cst_331 = arith.constant 2.000000e+00 : f32
    %1072 = vector.broadcast %cst_331 : f32 to vector<64x1xf32>
    %1073 = arith.subf %1072, %1071 : vector<64x1xf32>
    %1074 = arith.mulf %1070, %1073 : vector<64x1xf32>
    %1075 = vector.broadcast %1074 : vector<64x1xf32> to vector<64x128xf32>
    %1076 = arith.mulf %1067, %1075 : vector<64x128xf32>
    %c0_332 = arith.constant 0 : index
    %c0_333 = arith.constant 0 : index
    %1077 = vector.load %arg8[%c0_332, %c0_333] : memref<64x128xf32, #tpu.memory_space<vmem>>, vector<64x128xf32>
    tpu.vector_store %arg8[%c0_332, %c0_333], %1076 {strides = array<i32>} : memref<64x128xf32, #tpu.memory_space<vmem>>, vector<64x128xf32>,
    %cst_334 = arith.constant 0.000000e+00 : f32
    %1078 = vector.broadcast %cst_334 : f32 to vector<64x128xf32>
    %1079 = arith.cmpf ogt, %1076, %1078 : vector<64x128xf32>
    %1080 = arith.extui %1079 : vector<64x128xi1> to vector<64x128xi32>
    %1081 = arith.sitofp %1080 : vector<64x128xi32> to vector<64x128xf32>
    %cst_335 = arith.constant 0.000000e+00 : f32
    %1082 = vector.broadcast %cst_335 : f32 to vector<64x128xf32>
    %1083 = arith.cmpf oeq, %1076, %1082 : vector<64x128xf32>
    %1084 = arith.extui %1083 : vector<64x128xi1> to vector<64x128xi32>
    %1085 = arith.sitofp %1084 : vector<64x128xi32> to vector<64x128xf32>
    %cst_336 = arith.constant dense<0.000000e+00> : vector<128xf32>
    %1086 = vector.multi_reduction <add>, %1081, %cst_336 [0] : vector<64x128xf32> to vector<128xf32>
    %1087 = vector.shape_cast %1086 : vector<128xf32> to vector<1x128xf32>
    %1088 = arith.mulf %1081, %1076 : vector<64x128xf32>
    %cst_337 = arith.constant dense<0.000000e+00> : vector<128xf32>
    %1089 = vector.multi_reduction <add>, %1088, %cst_337 [0] : vector<64x128xf32> to vector<128xf32>
    %1090 = vector.shape_cast %1089 : vector<128xf32> to vector<1x128xf32>
    %cst_338 = arith.constant dense<0.000000e+00> : vector<128xf32>
    %1091 = vector.multi_reduction <add>, %1085, %cst_338 [0] : vector<64x128xf32> to vector<128xf32>
    %1092 = vector.shape_cast %1091 : vector<128xf32> to vector<1x128xf32>
    %cst_339 = arith.constant 9.900000e-01 : f32
    %1093 = vector.broadcast %cst_339 : f32 to vector<1x128xf32>
    %1094 = arith.mulf %1093, %959 : vector<1x128xf32>
    %1095 = arith.mulf %1094, %1087 : vector<1x128xf32>
    %cst_340 = arith.constant 0.00999999977 : f32
    %1096 = vector.broadcast %cst_340 : f32 to vector<1x128xf32>
    %1097 = arith.mulf %1096, %1090 : vector<1x128xf32>
    %1098 = arith.addf %1095, %1097 : vector<1x128xf32>
    %cst_341 = arith.constant 7.812500e-03 : f32
    %1099 = vector.broadcast %cst_341 : f32 to vector<1x128xf32>
    %1100 = arith.mulf %1098, %1099 : vector<1x128xf32>
    %1101 = arith.mulf %959, %1092 : vector<1x128xf32>
    %cst_342 = arith.constant dense<0.000000e+00> : vector<1xf32>
    %1102 = vector.multi_reduction <add>, %1101, %cst_342 [1] : vector<1x128xf32> to vector<1xf32>
    %1103 = vector.shape_cast %1102 : vector<1xf32> to vector<1x1xf32>
    %cst_343 = arith.constant 7.812500e-03 : f32
    %1104 = vector.broadcast %cst_343 : f32 to vector<1x1xf32>
    %1105 = arith.mulf %1103, %1104 : vector<1x1xf32>
    %1106 = vector.broadcast %1105 : vector<1x1xf32> to vector<1x128xf32>
    %1107 = arith.addf %1100, %1106 : vector<1x128xf32>
    %1108 = vector.shape_cast %1107 : vector<1x128xf32> to vector<1x1x128xf32>
    %c0_344 = arith.constant 0 : index
    %c0_345 = arith.constant 0 : index
    %c0_346 = arith.constant 0 : index
    %1109 = vector.load %arg11[%c0_344, %c0_345, %c0_346] : memref<1x1x128xf32, #tpu.memory_space<vmem>>, vector<1x1x128xf32>
    tpu.vector_store %arg11[%c0_344, %c0_345, %c0_346], %1108 {strides = array<i32>} : memref<1x1x128xf32, #tpu.memory_space<vmem>>, vector<1x1x128xf32>,
    return
  }
  func.func @transform_0(%arg0: i32) -> (i32, i32) {
    %c0_i32 = arith.constant 0 : i32
    %c0_i32_0 = arith.constant 0 : i32
    return %arg0, %c0_i32 : i32, i32
  }
  func.func @transform_1(%arg0: i32) -> (i32, i32) {
    %c0_i32 = arith.constant 0 : i32
    %c0_i32_0 = arith.constant 0 : i32
    %c0_i32_1 = arith.constant 0 : i32
    return %c0_i32, %c0_i32_0 : i32, i32
  }
  func.func @transform_2(%arg0: i32) -> (i32, i32) {
    %c0_i32 = arith.constant 0 : i32
    %c0_i32_0 = arith.constant 0 : i32
    %c0_i32_1 = arith.constant 0 : i32
    return %c0_i32, %c0_i32_0 : i32, i32
  }
  func.func @transform_3(%arg0: i32) -> (i32, i32) {
    %c0_i32 = arith.constant 0 : i32
    %c0_i32_0 = arith.constant 0 : i32
    %c0_i32_1 = arith.constant 0 : i32
    return %c0_i32, %c0_i32_0 : i32, i32
  }
  func.func @transform_4(%arg0: i32) -> (i32, i32) {
    %c0_i32 = arith.constant 0 : i32
    %c0_i32_0 = arith.constant 0 : i32
    %c0_i32_1 = arith.constant 0 : i32
    return %c0_i32, %c0_i32_0 : i32, i32
  }
  func.func @transform_5(%arg0: i32) -> (i32, i32) {
    %c0_i32 = arith.constant 0 : i32
    %c0_i32_0 = arith.constant 0 : i32
    %c0_i32_1 = arith.constant 0 : i32
    return %c0_i32, %c0_i32_0 : i32, i32
  }
  func.func @transform_6(%arg0: i32) -> (i32, i32) {
    %c0_i32 = arith.constant 0 : i32
    %c0_i32_0 = arith.constant 0 : i32
    %c0_i32_1 = arith.constant 0 : i32
    return %c0_i32, %c0_i32_0 : i32, i32
  }
  func.func @transform_7(%arg0: i32) -> (i32, i32) {
    %c0_i32 = arith.constant 0 : i32
    %c0_i32_0 = arith.constant 0 : i32
    return %arg0, %c0_i32 : i32, i32
  }
  func.func @transform_8(%arg0: i32) -> (i32, i32, i32) {
    %c0_i32 = arith.constant 0 : i32
    %c0_i32_0 = arith.constant 0 : i32
    %c0_i32_1 = arith.constant 0 : i32
    return %arg0, %c0_i32, %c0_i32_0 : i32, i32, i32
  }
  func.func @transform_9(%arg0: i32) -> (i32, i32, i32) {
    %c0_i32 = arith.constant 0 : i32
    %c0_i32_0 = arith.constant 0 : i32
    %c0_i32_1 = arith.constant 0 : i32
    return %arg0, %c0_i32, %c0_i32_0 : i32, i32, i32
  }
  func.func @transform_10(%arg0: i32) -> (i32, i32, i32) {
    %c0_i32 = arith.constant 0 : i32
    %c0_i32_0 = arith.constant 0 : i32
    %c0_i32_1 = arith.constant 0 : i32
    return %arg0, %c0_i32, %c0_i32_0 : i32, i32, i32
  }
}

</mosaic_0001>

<llo_original>
// kernel: tpu_custom_call.1
$region0: #{tpu_custom_call.1}
  #allocation0 [shape = 'u32[]', space=smem, size = 0x4, offset = 0x4, fixed_abs, tag = 'smem constant byte address 0x4 - core index']
  #allocation1 [shape = 'u32[72,128]{1,0:T(1,128)}', space=vmem, size = 0x9000, scoped, tag = 'internal scratch']
  %s0 = inlined_call_operand.hbm [shape: f32[128,128], index: 0, kind: input, shape index: {}]
  %s1 = inlined_call_operand.hbm [shape: bf16[128,256], index: 1, kind: input, shape index: {}]
  %s2 = inlined_call_operand.hbm [shape: bf16[256,128], index: 2, kind: input, shape index: {}]
  %s3 = inlined_call_operand.hbm [shape: bf16[128,128], index: 3, kind: input, shape index: {}]
  %s4 = inlined_call_operand.vmem [shape: f32[1,256], index: 4, kind: input, shape index: {}]
  %s5 = inlined_call_operand.vmem [shape: f32[1,128], index: 5, kind: input, shape index: {}]
  %s6 = inlined_call_operand.vmem [shape: f32[1,128], index: 6, kind: input, shape index: {}]
  %s7 = inlined_call_operand.hbm [shape: f32[128,128], index: 7, kind: output, shape index: {0}]
  %s8 = inlined_call_operand.hbm [shape: f32[2,1,256], index: 8, kind: output, shape index: {1}]
  %s9 = inlined_call_operand.hbm [shape: f32[2,1,128], index: 9, kind: output, shape index: {2}]
  %s10 = inlined_call_operand.hbm [shape: f32[2,1,128], index: 10, kind: output, shape index: {3}]
  %11 = xla_tuple %s7, %s8, %s9, %s10
  %s12 = sld [smem:[#allocation0]]
  $region101: #{tpu_custom_call.1} parent=0
    _
  %s14 = ssub.s32 1, %s12
  %s15 = scalar_select 0, %s14, %s12
  $region1: #{tpu_custom_call.1} parent=0
    #allocation2 [shape = 'u8[65536]{0}', space=vmem, size = 0x10000, scoped, tag = 'input window, operand 0']
    #allocation3 [shape = 's32[2]{0}', space=sflag, size = 0x8, scoped, tag = 'scoped memory for tpu_custom_call.1']
    #allocation4 [shape = 's32[2]{0}', space=sflag, size = 0x8, scoped, tag = 'scoped memory for tpu_custom_call.1']
    #allocation5 [shape = 'u8[65536]{0}', space=vmem, size = 0x10000, scoped, tag = 'input window, operand 1, single buffered']
    #allocation6 [shape = 's32[1]{0}', space=sflag, size = 0x4, scoped, tag = 'scoped memory for tpu_custom_call.1']
    #allocation7 [shape = 'u8[65536]{0}', space=vmem, size = 0x10000, scoped, tag = 'input window, operand 2, single buffered']
    #allocation8 [shape = 'u8[32768]{0}', space=vmem, size = 0x8000, scoped, tag = 'input window, operand 3, single buffered']
    #allocation9 [shape = 's32[1]{0}', space=sflag, size = 0x4, scoped, tag = 'scoped memory for tpu_custom_call.1']
    #allocation10 [shape = 'u8[65536]{0}', space=vmem, size = 0x10000, scoped, tag = 'output window, operand 0']
    #allocation11 [shape = 'u8[2048]{0}', space=vmem, size = 0x800, scoped, tag = 'output window, operand 1']
    #allocation12 [shape = 's32[2]{0}', space=sflag, size = 0x8, scoped, tag = 'scoped memory for tpu_custom_call.1']
    #allocation13 [shape = 'u8[1024]{0}', space=vmem, size = 0x400, scoped, tag = 'output window, operand 2']
    #allocation14 [shape = 'u8[1024]{0}', space=vmem, size = 0x400, scoped, tag = 'output window, operand 3']
    #allocation15 [shape = 's32[2]{0}', space=sflag, size = 0x8, scoped, tag = 'scoped memory for tpu_custom_call.1']
    %16 = vsyncpa [#allocation3], 0
    %s17 = scalar_lea.sflag [#allocation3], 1
    %18 = vsyncpa %s17, 0
    %19 = vsyncpa [#allocation6], 0
    %20 = vsyncpa [#allocation9], 0
    %21 = vsyncpa [#allocation4], 0
    %s22 = scalar_lea.sflag [#allocation4], 1
    %23 = vsyncpa %s22, 0
    %24 = vsyncpa [#allocation12], 0
    %s25 = scalar_lea.sflag [#allocation12], 1
    %26 = vsyncpa %s25, 0
    %27 = vsyncpa [#allocation15], 0
    %s28 = scalar_lea.sflag [#allocation15], 1
    %29 = vsyncpa %s28, 0
    loop: start=0, step=1, limit=4
    $region2: #{tpu_custom_call.1} parent=1 // loop_pre_header
      _
    $region3: #{tpu_custom_call.1} parent=1 // loop_header
      %s31 = sphi 0, %s35
      %p32 = scmp.ge.s32.totalorder %s31, 4
      %s41 = sphi 0, %s43
      %s44 = sphi 0, %s41
      %s45 = sphi 0, %s44
      %s61 = sphi 0, %s45
      %s65 = sphi 0, %s65
      %s67 = sphi 0, %s65
      %s68 = sphi 0, %s67
      %s82 = sphi 0, %s68
      %s86 = sphi 0, %s86
      %s88 = sphi 0, %s86
      %s89 = sphi 0, %s88
      %s103 = sphi 0, %s89
      %s107 = sphi 0, %s107
      %s109 = sphi 0, %s107
      %s110 = sphi 0, %s109
      %s124 = sphi 0, %s110
      %s128 = sphi 0, %s128
      %s130 = sphi 0, %s128
      %s131 = sphi 0, %s130
      %s145 = sphi 0, %s131
      %s149 = sphi 0, %s149
      %s151 = sphi 0, %s149
      %s152 = sphi 0, %s151
      %s166 = sphi 0, %s152
      %s170 = sphi 0, %s170
      %s172 = sphi 0, %s170
      %s173 = sphi 0, %s172
      %s187 = sphi 0, %s173
      %s193 = sphi 0, %s195
      %s196 = sphi 0, %s193
      %s197 = sphi 0, %s196
      %s213 = sphi 0, %s197
      %s219 = sphi 0, %s221
      %s222 = sphi 0, %s219
      %s223 = sphi 0, %s222
      %s239 = sphi 0, %s223
      %s245 = sphi 0, %s247
      %s248 = sphi 0, %s245
      %s249 = sphi 0, %s248
      %s265 = sphi 0, %s249
      %s271 = sphi 0, %s273
      %s274 = sphi 0, %s271
      %s275 = sphi 0, %s274
      %s291 = sphi 0, %s275
    $region4: #{tpu_custom_call.1} parent=1 // loop_header_branch
      %34 = sbr.rel (%p32) target = $region8
    $region5: #{tpu_custom_call.1} parent=1 // loop_body
      %s36 = ssub.s32 %s31, 1
      %s37 = ssub.s32 %s31, 2
      %s38 = sadd.s32 %s31, 1
      %s39 = ssub.s32 %s31, %s38
      %p40 = scmp.eq.s32.totalorder %s39, 0
      %s42 = sadd.s32 %s41, 1
      %s43 = scalar_select %p40, %s41, %s42
      %p46 = pneg %p40
      %p47 = scmp.eq.s32.totalorder %s31, 1
      %p48 = por %p46, %p47
      %p49 = scmp.ne.s32.totalorder %s41, %s44
      %p50 = scmp.eq.s32.totalorder %s31, 0
      %p51 = por %p49, %p50
      %p52 = scmp.ne.s32.totalorder %s41, %s44
      %p53 = scmp.eq.s32.totalorder %s36, 1
      %p54 = por %p52, %p53
      %p55 = scmp.ne.s32.totalorder %s44, %s45
      %p56 = scmp.eq.s32.totalorder %s36, 0
      %p57 = por %p55, %p56
      %p58 = scmp.ne.s32.totalorder %s44, %s45
      %p59 = scmp.eq.s32.totalorder %s37, 1
      %p60 = por %p58, %p59
      %p62 = scmp.ne.s32.totalorder %s45, %s61
      %p63 = scmp.eq.s32.totalorder %s37, 0
      %p64 = por %p62, %p63
      %s66 = sadd.s32 %s65, 1
      %p69 = scmp.eq.s32.totalorder %s31, 1
      %p70 = scmp.ne.s32.totalorder %s65, %s67
      %p71 = scmp.eq.s32.totalorder %s31, 0
      %p72 = por %p70, %p71
      %p73 = scmp.ne.s32.totalorder %s65, %s67
      %p74 = scmp.eq.s32.totalorder %s36, 1
      %p75 = por %p73, %p74
      %p76 = scmp.ne.s32.totalorder %s67, %s68
      %p77 = scmp.eq.s32.totalorder %s36, 0
      %p78 = por %p76, %p77
      %p79 = scmp.ne.s32.totalorder %s67, %s68
      %p80 = scmp.eq.s32.totalorder %s37, 1
      %p81 = por %p79, %p80
      %p83 = scmp.ne.s32.totalorder %s68, %s82
      %p84 = scmp.eq.s32.totalorder %s37, 0
      %p85 = por %p83, %p84
      %s87 = sadd.s32 %s86, 1
      %p90 = scmp.eq.s32.totalorder %s31, 1
      %p91 = scmp.ne.s32.totalorder %s86, %s88
      %p92 = scmp.eq.s32.totalorder %s31, 0
      %p93 = por %p91, %p92
      %p94 = scmp.ne.s32.totalorder %s86, %s88
      %p95 = scmp.eq.s32.totalorder %s36, 1
      %p96 = por %p94, %p95
      %p97 = scmp.ne.s32.totalorder %s88, %s89
      %p98 = scmp.eq.s32.totalorder %s36, 0
      %p99 = por %p97, %p98
      %p100 = scmp.ne.s32.totalorder %s88, %s89
      %p101 = scmp.eq.s32.totalorder %s37, 1
      %p102 = por %p100, %p101
      %p104 = scmp.ne.s32.totalorder %s89, %s103
      %p105 = scmp.eq.s32.totalorder %s37, 0
      %p106 = por %p104, %p105
      %s108 = sadd.s32 %s107, 1
      %p111 = scmp.eq.s32.totalorder %s31, 1
      %p112 = scmp.ne.s32.totalorder %s107, %s109
      %p113 = scmp.eq.s32.totalorder %s31, 0
      %p114 = por %p112, %p113
      %p115 = scmp.ne.s32.totalorder %s107, %s109
      %p116 = scmp.eq.s32.totalorder %s36, 1
      %p117 = por %p115, %p116
      %p118 = scmp.ne.s32.totalorder %s109, %s110
      %p119 = scmp.eq.s32.totalorder %s36, 0
      %p120 = por %p118, %p119
      %p121 = scmp.ne.s32.totalorder %s109, %s110
      %p122 = scmp.eq.s32.totalorder %s37, 1
      %p123 = por %p121, %p122
      %p125 = scmp.ne.s32.totalorder %s110, %s124
      %p126 = scmp.eq.s32.totalorder %s37, 0
      %p127 = por %p125, %p126
      %s129 = sadd.s32 %s128, 1
      %p132 = scmp.eq.s32.totalorder %s31, 1
      %p133 = scmp.ne.s32.totalorder %s128, %s130
      %p134 = scmp.eq.s32.totalorder %s31, 0
      %p135 = por %p133, %p134
      %p136 = scmp.ne.s32.totalorder %s128, %s130
      %p137 = scmp.eq.s32.totalorder %s36, 1
      %p138 = por %p136, %p137
      %p139 = scmp.ne.s32.totalorder %s130, %s131
      %p140 = scmp.eq.s32.totalorder %s36, 0
      %p141 = por %p139, %p140
      %p142 = scmp.ne.s32.totalorder %s130, %s131
      %p143 = scmp.eq.s32.totalorder %s37, 1
      %p144 = por %p142, %p143
      %p146 = scmp.ne.s32.totalorder %s131, %s145
      %p147 = scmp.eq.s32.totalorder %s37, 0
      %p148 = por %p146, %p147
      %s150 = sadd.s32 %s149, 1
      %p153 = scmp.eq.s32.totalorder %s31, 1
      %p154 = scmp.ne.s32.totalorder %s149, %s151
      %p155 = scmp.eq.s32.totalorder %s31, 0
      %p156 = por %p154, %p155
      %p157 = scmp.ne.s32.totalorder %s149, %s151
      %p158 = scmp.eq.s32.totalorder %s36, 1
      %p159 = por %p157, %p158
      %p160 = scmp.ne.s32.totalorder %s151, %s152
      %p161 = scmp.eq.s32.totalorder %s36, 0
      %p162 = por %p160, %p161
      %p163 = scmp.ne.s32.totalorder %s151, %s152
      %p164 = scmp.eq.s32.totalorder %s37, 1
      %p165 = por %p163, %p164
      %p167 = scmp.ne.s32.totalorder %s152, %s166
      %p168 = scmp.eq.s32.totalorder %s37, 0
      %p169 = por %p167, %p168
      %s171 = sadd.s32 %s170, 1
      %p174 = scmp.eq.s32.totalorder %s31, 1
      %p175 = scmp.ne.s32.totalorder %s170, %s172
      %p176 = scmp.eq.s32.totalorder %s31, 0
      %p177 = por %p175, %p176
      %p178 = scmp.ne.s32.totalorder %s170, %s172
      %p179 = scmp.eq.s32.totalorder %s36, 1
      %p180 = por %p178, %p179
      %p181 = scmp.ne.s32.totalorder %s172, %s173
      %p182 = scmp.eq.s32.totalorder %s36, 0
      %p183 = por %p181, %p182
      %p184 = scmp.ne.s32.totalorder %s172, %s173
      %p185 = scmp.eq.s32.totalorder %s37, 1
      %p186 = por %p184, %p185
      %p188 = scmp.ne.s32.totalorder %s173, %s187
      %p189 = scmp.eq.s32.totalorder %s37, 0
      %p190 = por %p188, %p189
      %s191 = ssub.s32 %s31, %s38
      %p192 = scmp.eq.s32.totalorder %s191, 0
      %s194 = sadd.s32 %s193, 1
      %s195 = scalar_select %p192, %s193, %s194
      %p198 = pneg %p192
      %p199 = scmp.eq.s32.totalorder %s31, 1
      %p200 = por %p198, %p199
      %p201 = scmp.ne.s32.totalorder %s193, %s196
      %p202 = scmp.eq.s32.totalorder %s31, 0
      %p203 = por %p201, %p202
      %p204 = scmp.ne.s32.totalorder %s193, %s196
      %p205 = scmp.eq.s32.totalorder %s36, 1
      %p206 = por %p204, %p205
      %p207 = scmp.ne.s32.totalorder %s196, %s197
      %p208 = scmp.eq.s32.totalorder %s36, 0
      %p209 = por %p207, %p208
      %p210 = scmp.ne.s32.totalorder %s196, %s197
      %p211 = scmp.eq.s32.totalorder %s37, 1
      %p212 = por %p210, %p211
      %p214 = scmp.ne.s32.totalorder %s197, %s213
      %p215 = scmp.eq.s32.totalorder %s37, 0
      %p216 = por %p214, %p215
      %s217 = ssub.s32 %s31, %s38
      %p218 = scmp.eq.s32.totalorder %s217, 0
      %s220 = sadd.s32 %s219, 1
      %s221 = scalar_select %p218, %s219, %s220
      %p224 = pneg %p218
      %p225 = scmp.eq.s32.totalorder %s31, 1
      %p226 = por %p224, %p225
      %p227 = scmp.ne.s32.totalorder %s219, %s222
      %p228 = scmp.eq.s32.totalorder %s31, 0
      %p229 = por %p227, %p228
      %p230 = scmp.ne.s32.totalorder %s219, %s222
      %p231 = scmp.eq.s32.totalorder %s36, 1
      %p232 = por %p230, %p231
      %p233 = scmp.ne.s32.totalorder %s222, %s223
      %p234 = scmp.eq.s32.totalorder %s36, 0
      %p235 = por %p233, %p234
      %p236 = scmp.ne.s32.totalorder %s222, %s223
      %p237 = scmp.eq.s32.totalorder %s37, 1
      %p238 = por %p236, %p237
      %p240 = scmp.ne.s32.totalorder %s223, %s239
      %p241 = scmp.eq.s32.totalorder %s37, 0
      %p242 = por %p240, %p241
      %s243 = ssub.s32 %s31, %s38
      %p244 = scmp.eq.s32.totalorder %s243, 0
      %s246 = sadd.s32 %s245, 1
      %s247 = scalar_select %p244, %s245, %s246
      %p250 = pneg %p244
      %p251 = scmp.eq.s32.totalorder %s31, 1
      %p252 = por %p250, %p251
      %p253 = scmp.ne.s32.totalorder %s245, %s248
      %p254 = scmp.eq.s32.totalorder %s31, 0
      %p255 = por %p253, %p254
      %p256 = scmp.ne.s32.totalorder %s245, %s248
      %p257 = scmp.eq.s32.totalorder %s36, 1
      %p258 = por %p256, %p257
      %p259 = scmp.ne.s32.totalorder %s248, %s249
      %p260 = scmp.eq.s32.totalorder %s36, 0
      %p261 = por %p259, %p260
      %p262 = scmp.ne.s32.totalorder %s248, %s249
      %p263 = scmp.eq.s32.totalorder %s37, 1
      %p264 = por %p262, %p263
      %p266 = scmp.ne.s32.totalorder %s249, %s265
      %p267 = scmp.eq.s32.totalorder %s37, 0
      %p268 = por %p266, %p267
      %s269 = ssub.s32 %s31, %s38
      %p270 = scmp.eq.s32.totalorder %s269, 0
      %s272 = sadd.s32 %s271, 1
      %s273 = scalar_select %p270, %s271, %s272
      %p276 = pneg %p270
      %p277 = scmp.eq.s32.totalorder %s31, 1
      %p278 = por %p276, %p277
      %p279 = scmp.ne.s32.totalorder %s271, %s274
      %p280 = scmp.eq.s32.totalorder %s31, 0
      %p281 = por %p279, %p280
      %p282 = scmp.ne.s32.totalorder %s271, %s274
      %p283 = scmp.eq.s32.totalorder %s36, 1
      %p284 = por %p282, %p283
      %p285 = scmp.ne.s32.totalorder %s274, %s275
      %p286 = scmp.eq.s32.totalorder %s36, 0
      %p287 = por %p285, %p286
      %p288 = scmp.ne.s32.totalorder %s274, %s275
      %p289 = scmp.eq.s32.totalorder %s37, 1
      %p290 = por %p288, %p289
      %p292 = scmp.ne.s32.totalorder %s275, %s291
      %p293 = scmp.eq.s32.totalorder %s37, 0
      %p294 = por %p292, %p293
      %p295 = scmp.le.s32.totalorder 1, %s31
      %p296 = scmp.lt.s32.totalorder %s31, 3
      %p297 = pnand %p295, %p296
      %p298 = pneg %p297
      // Predicated region
      $region9: #{tpu_custom_call.1} parent=5 // pred_check
        _
      $region10: #{tpu_custom_call.1} parent=5 // pred_check_branch
        %300 = sbr.rel (%p297) target = $region12
      $region11: #{tpu_custom_call.1} parent=5 // pred_region
        %s301 = ssub.s32 %s31, 1
        // Predicated region
        $region13: #{tpu_custom_call.1} parent=11 // pred_check
          %p302 = pneg %p78
        $region14: #{tpu_custom_call.1} parent=11 // pred_check_branch
          %304 = sbr.rel (%p302) target = $region16
        $region15: #{tpu_custom_call.1} parent=11 // pred_region
          %306 = vsyncadd [#allocation6], 0
          %s307 = sshll.u32 %s1, 4
          %s308 = int_to_ptr.hbm [resolvable:$true] %s307
          %s309 = sshll.u32 [#allocation5], 4
          %s310 = int_to_ptr.vmem [resolvable:$true] %s309
          %315 = dma.hbm_to_vmem [thread:$0]  %s308, 2048, %s310, [#allocation6], 128, 128, 8
        $region16: #{tpu_custom_call.1} parent=11 // pred_fallthru
          _
        // Predicated region
        $region17: #{tpu_custom_call.1} parent=11 // pred_check
          %p316 = pneg %p99
        $region18: #{tpu_custom_call.1} parent=11 // pred_check_branch
          %318 = sbr.rel (%p316) target = $region20
        $region19: #{tpu_custom_call.1} parent=11 // pred_region
          %320 = vsyncadd [#allocation6], 0
          %s321 = sshll.u32 %s2, 4
          %s322 = int_to_ptr.hbm [resolvable:$true] %s321
          %s323 = sshll.u32 [#allocation7], 4
          %s324 = int_to_ptr.vmem [resolvable:$true] %s323
          %329 = dma.hbm_to_vmem [thread:$0]  %s322, 2048, %s324, [#allocation6], 64, 64, 4
        $region20: #{tpu_custom_call.1} parent=11 // pred_fallthru
          _
        // Predicated region
        $region21: #{tpu_custom_call.1} parent=11 // pred_check
          %p330 = pneg %p120
        $region22: #{tpu_custom_call.1} parent=11 // pred_check_branch
          %332 = sbr.rel (%p330) target = $region24
        $region23: #{tpu_custom_call.1} parent=11 // pred_region
          %334 = vsyncadd [#allocation9], 0
          %s335 = sshll.u32 %s3, 4
          %s336 = int_to_ptr.hbm [resolvable:$true] %s335
          %s337 = sshll.u32 [#allocation8], 4
          %s338 = int_to_ptr.vmem [resolvable:$true] %s337
          %343 = dma.hbm_to_vmem [thread:$0]  %s336, 1024, %s338, [#allocation9], 64, 64, 4
        $region24: #{tpu_custom_call.1} parent=11 // pred_fallthru
          _
        // Predicated region
        $region25: #{tpu_custom_call.1} parent=11 // pred_check
          %p344 = pneg %p141
        $region26: #{tpu_custom_call.1} parent=11 // pred_check_branch
          %346 = sbr.rel (%p344) target = $region28
        $region27: #{tpu_custom_call.1} parent=11 // pred_region
          _
        $region28: #{tpu_custom_call.1} parent=11 // pred_fallthru
          _
        // Predicated region
        $region29: #{tpu_custom_call.1} parent=11 // pred_check
          %p347 = pneg %p162
        $region30: #{tpu_custom_call.1} parent=11 // pred_check_branch
          %349 = sbr.rel (%p347) target = $region32
        $region31: #{tpu_custom_call.1} parent=11 // pred_region
          _
        $region32: #{tpu_custom_call.1} parent=11 // pred_fallthru
          _
        // Predicated region
        $region33: #{tpu_custom_call.1} parent=11 // pred_check
          %p350 = pneg %p183
        $region34: #{tpu_custom_call.1} parent=11 // pred_check_branch
          %352 = sbr.rel (%p350) target = $region36
        $region35: #{tpu_custom_call.1} parent=11 // pred_region
          _
        $region36: #{tpu_custom_call.1} parent=11 // pred_fallthru
          _
      $region12: #{tpu_custom_call.1} parent=5 // pred_fallthru
        _
      %p353 = scmp.lt.s32.totalorder %s31, 2
      // Predicated region
      $region37: #{tpu_custom_call.1} parent=5 // pred_check
        %p354 = pneg %p353
      $region38: #{tpu_custom_call.1} parent=5 // pred_check_branch
        %356 = sbr.rel (%p354) target = $region40
      $region39: #{tpu_custom_call.1} parent=5 // pred_region
        // Predicated region
        $region41: #{tpu_custom_call.1} parent=39 // pred_check
          %p357 = pneg %p51
        $region42: #{tpu_custom_call.1} parent=39 // pred_check_branch
          %359 = sbr.rel (%p357) target = $region44
        $region43: #{tpu_custom_call.1} parent=39 // pred_region
          %s360 = sand.u32 %s41, 1
          %s361 = scalar_lea.sflag [#allocation3], %s360
          %s362 = sand.u32 %s41, 1
          %s363 = smul.addr %s362, 64
          %s364 = scalar_lea.vmem [#allocation2], %s363
          %s365 = smul.u32 8, %s31
          %367 = vsyncadd %s361, 0
          %s368 = smul.addr %s365, 8
          %s369 = scalar_lea.hbm %s0, %s368
          %s370 = sshll.u32 %s369, 4
          %s371 = int_to_ptr.hbm [resolvable:$true] %s370
          %s372 = sshll.u32 %s364, 4
          %s373 = int_to_ptr.vmem [resolvable:$true] %s372
          %378 = dma.hbm_to_vmem [thread:$0]  %s371, 1024, %s373, %s361, 128, 128, 8
        $region44: #{tpu_custom_call.1} parent=39 // pred_fallthru
          _
      $region40: #{tpu_custom_call.1} parent=5 // pred_fallthru
        _
      %p379 = scmp.le.s32.totalorder 1, %s31
      %p380 = scmp.lt.s32.totalorder %s31, 3
      %p381 = pnand %p379, %p380
      %p382 = pneg %p381
      // Predicated region
      $region45: #{tpu_custom_call.1} parent=5 // pred_check
        _
      $region46: #{tpu_custom_call.1} parent=5 // pred_check_branch
        %384 = sbr.rel (%p381) target = $region48
      $region47: #{tpu_custom_call.1} parent=5 // pred_region
        %s385 = ssub.s32 %s31, 1
        %s386 = sand.u32 %s44, 1
        %s387 = scalar_lea.sflag [#allocation3], %s386
        %s388 = sand.u32 %s44, 1
        %s389 = smul.addr %s388, 64
        %s390 = scalar_lea.vmem [#allocation2], %s389
        // Predicated region
        $region49: #{tpu_custom_call.1} parent=47 // pred_check
          %p391 = pneg %p57
        $region50: #{tpu_custom_call.1} parent=47 // pred_check_branch
          %393 = sbr.rel (%p391) target = $region52
        $region51: #{tpu_custom_call.1} parent=47 // pred_region
          %395 = dma.done %s387, 1024
        $region52: #{tpu_custom_call.1} parent=47 // pred_fallthru
          _
        // Predicated region
        $region53: #{tpu_custom_call.1} parent=47 // pred_check
          %p396 = pneg %p78
        $region54: #{tpu_custom_call.1} parent=47 // pred_check_branch
          %398 = sbr.rel (%p396) target = $region56
        $region55: #{tpu_custom_call.1} parent=47 // pred_region
          %400 = dma.done [#allocation6], 2048
        $region56: #{tpu_custom_call.1} parent=47 // pred_fallthru
          _
        // Predicated region
        $region57: #{tpu_custom_call.1} parent=47 // pred_check
          %p401 = pneg %p99
        $region58: #{tpu_custom_call.1} parent=47 // pred_check_branch
          %403 = sbr.rel (%p401) target = $region60
        $region59: #{tpu_custom_call.1} parent=47 // pred_region
          %405 = dma.done [#allocation6], 2048
        $region60: #{tpu_custom_call.1} parent=47 // pred_fallthru
          _
        // Predicated region
        $region61: #{tpu_custom_call.1} parent=47 // pred_check
          %p406 = pneg %p120
        $region62: #{tpu_custom_call.1} parent=47 // pred_check_branch
          %408 = sbr.rel (%p406) target = $region64
        $region63: #{tpu_custom_call.1} parent=47 // pred_region
          %410 = dma.done [#allocation9], 1024
        $region64: #{tpu_custom_call.1} parent=47 // pred_fallthru
          _
        %s411 = sand.u32 %s44, 1
        %s412 = scalar_lea.sflag [#allocation3], %s411
        %s413 = sand.u32 %s44, 1
        %s414 = smul.addr %s413, 64
        %s415 = scalar_lea.vmem [#allocation2], %s414
        %p416 = pneg %p57
        %p417 = pneg %p54
        %p418 = pneg %p78
        %p419 = pneg %p75
        %p420 = pneg %p99
        %p421 = pneg %p96
        %p422 = pneg %p120
        %p423 = pneg %p117
        %p424 = pneg %p141
        %p425 = pneg %p138
        %p426 = pneg %p162
        %p427 = pneg %p159
        %p428 = pneg %p183
        %p429 = pneg %p180
        %p430 = pneg %p209
        %p431 = pneg %p206
        %s432 = sand.u32 %s196, 1
        %s433 = scalar_lea.sflag [#allocation4], %s432
        %s434 = sand.u32 %s196, 1
        %s435 = smul.addr %s434, 64
        %s436 = scalar_lea.vmem [#allocation10], %s435
        %p437 = pneg %p235
        %p438 = pneg %p232
        %s439 = sand.u32 %s36, 1
        %s440 = scalar_lea.sflag [#allocation12], %s439
        %s441 = sand.u32 %s222, 1
        %s442 = smul.addr %s441, 2
        %s443 = scalar_lea.vmem [#allocation11], %s442
        %p444 = pneg %p261
        %p445 = pneg %p258
        %s446 = sand.u32 %s36, 1
        %s447 = scalar_lea.sflag [#allocation12], %s446
        %s448 = sand.u32 %s248, 1
        %s449 = scalar_lea.vmem [#allocation13], %s448
        %p450 = pneg %p287
        %p451 = pneg %p284
        %s452 = sand.u32 %s274, 1
        %s453 = scalar_lea.sflag [#allocation15], %s452
        %s454 = sand.u32 %s274, 1
        %s455 = scalar_lea.vmem [#allocation14], %s454
        %s456 = smul.u32 8, %s36
        %s457 = smul.u32 8, %s36
        %v458 = vld [vmem:[%s390] sm:$0xff]
        %v459 = vld [vmem:[%s390 + $0x8] sm:$0xff]
        %v460 = vld [vmem:[%s390 + $0x10] sm:$0xff]
        %v461 = vld [vmem:[%s390 + $0x18] sm:$0xff]
        %v462 = vld [vmem:[%s390 + $0x20] sm:$0xff]
        %v463 = vld [vmem:[%s390 + $0x28] sm:$0xff]
        %v464 = vld [vmem:[%s390 + $0x30] sm:$0xff]
        %v465 = vld [vmem:[%s390 + $0x38] sm:$0xff]
        %v466 = vld [vmem:[#allocation5] sm:$0xff]
        %v467 = vld [vmem:[#allocation5 + $0x8] sm:$0xff]
        %v468 = vld [vmem:[#allocation5 + $0x10] sm:$0xff]
        %v469 = vld [vmem:[#allocation5 + $0x18] sm:$0xff]
        %v470 = vld [vmem:[#allocation5 + $0x20] sm:$0xff]
        %v471 = vld [vmem:[#allocation5 + $0x28] sm:$0xff]
        %v472 = vld [vmem:[#allocation5 + $0x30] sm:$0xff]
        %v473 = vld [vmem:[#allocation5 + $0x38] sm:$0xff]
        %v474 = vld [vmem:[#allocation5 + $0x40] sm:$0xff]
        %v475 = vld [vmem:[#allocation5 + $0x48] sm:$0xff]
        %v476 = vld [vmem:[#allocation5 + $0x50] sm:$0xff]
        %v477 = vld [vmem:[#allocation5 + $0x58] sm:$0xff]
        %v478 = vld [vmem:[#allocation5 + $0x60] sm:$0xff]
        %v479 = vld [vmem:[#allocation5 + $0x68] sm:$0xff]
        %v480 = vld [vmem:[#allocation5 + $0x70] sm:$0xff]
        %v481 = vld [vmem:[#allocation5 + $0x78] sm:$0xff]
        %v482 = vld [vmem:[%s4] sm:$0x3]
        %v483 = vpack.c.bf16 %v459, %v458
        %v484 = vpack.c.bf16 %v461, %v460
        %v485 = vpack.c.bf16 %v463, %v462
        %v486 = vpack.c.bf16 %v465, %v464
        %v503 = vunpack.c.l.b16 %v466
        %v504 = vunpack.c.h.b16 %v466
        %v505 = vunpack.c.l.b16 %v467
        %v506 = vunpack.c.h.b16 %v467
        %v507 = vunpack.c.l.b16 %v468
        %v508 = vunpack.c.h.b16 %v468
        %v509 = vunpack.c.l.b16 %v469
        %v510 = vunpack.c.h.b16 %v469
        %v511 = vunpack.c.l.b16 %v470
        %v512 = vunpack.c.h.b16 %v470
        %v513 = vunpack.c.l.b16 %v471
        %v514 = vunpack.c.h.b16 %v471
        %v515 = vunpack.c.l.b16 %v472
        %v516 = vunpack.c.h.b16 %v472
        %v517 = vunpack.c.l.b16 %v473
        %v518 = vunpack.c.h.b16 %v473
        %v519 = vunpack.c.l.b16 %v474
        %v520 = vunpack.c.h.b16 %v474
        %v521 = vunpack.c.l.b16 %v475
        %v522 = vunpack.c.h.b16 %v475
        %v523 = vunpack.c.l.b16 %v476
        %v524 = vunpack.c.h.b16 %v476
        %v525 = vunpack.c.l.b16 %v477
        %v526 = vunpack.c.h.b16 %v477
        %v527 = vunpack.c.l.b16 %v478
        %v528 = vunpack.c.h.b16 %v478
        %v529 = vunpack.c.l.b16 %v479
        %v530 = vunpack.c.h.b16 %v479
        %v531 = vunpack.c.l.b16 %v480
        %v532 = vunpack.c.h.b16 %v480
        %v533 = vunpack.c.l.b16 %v481
        %v534 = vunpack.c.h.b16 %v481
        %v535 = vpack.c.b16 %v505, %v503
        %v536 = vpack.c.b16 %v506, %v504
        %v537 = vpack.c.b16 %v509, %v507
        %v538 = vpack.c.b16 %v510, %v508
        %v539 = vpack.c.b16 %v513, %v511
        %v540 = vpack.c.b16 %v514, %v512
        %v541 = vpack.c.b16 %v517, %v515
        %v542 = vpack.c.b16 %v518, %v516
        %v543 = vpack.c.b16 %v521, %v519
        %v544 = vpack.c.b16 %v522, %v520
        %v545 = vpack.c.b16 %v525, %v523
        %v546 = vpack.c.b16 %v526, %v524
        %v547 = vpack.c.b16 %v529, %v527
        %v548 = vpack.c.b16 %v530, %v528
        %v549 = vpack.c.b16 %v533, %v531
        %v550 = vpack.c.b16 %v534, %v532
        %567 = vmatpush.bf16.msra.mxu0 %v549
        %568 = vmatpush.bf16.msra.mxu0 %v547
        %569 = vmatpush.bf16.msra.mxu0 %v545
        %570 = vmatpush.bf16.msra.mxu0 %v543
        %571 = vmatpush.bf16.msra.mxu0 %v541
        %572 = vmatpush.bf16.msra.mxu0 %v539
        %573 = vmatpush.bf16.msra.mxu0 %v537
        %574 = vmatpush.bf16.msra.mxu0 %v535
        %575 = vmatmul.bf16.gmra.mxu0 %v483
        %v576 = vpop.f32.mrf.mxu0
        %v577 = vadd.f32 0.0, %v576
        %v578 = vpop.f32.mrf.mxu0
        %v579 = vadd.f32 0.0, %v578
        %580 = vmatmul.bf16.gmra.mxu0 %v484
        %v581 = vpop.f32.mrf.mxu0
        %v582 = vadd.f32 0.0, %v581
        %v583 = vpop.f32.mrf.mxu0
        %v584 = vadd.f32 0.0, %v583
        %585 = vmatmul.bf16.gmra.mxu0 %v485
        %v586 = vpop.f32.mrf.mxu0
        %v587 = vadd.f32 0.0, %v586
        %v588 = vpop.f32.mrf.mxu0
        %v589 = vadd.f32 0.0, %v588
        %590 = vmatmul.bf16.gmra.mxu0 %v486
        %v591 = vpop.f32.mrf.mxu0
        %v592 = vadd.f32 0.0, %v591
        %v593 = vpop.f32.mrf.mxu0
        %v594 = vadd.f32 0.0, %v593
        %595 = vdwg.mxu0
        %596 = vmatpush.bf16.msra.mxu0 %v550
        %597 = vmatpush.bf16.msra.mxu0 %v548
        %598 = vmatpush.bf16.msra.mxu0 %v546
        %599 = vmatpush.bf16.msra.mxu0 %v544
        %600 = vmatpush.bf16.msra.mxu0 %v542
        %601 = vmatpush.bf16.msra.mxu0 %v540
        %602 = vmatpush.bf16.msra.mxu0 %v538
        %603 = vmatpush.bf16.msra.mxu0 %v536
        %604 = vmatmul.bf16.gmra.mxu0 %v483
        %v605 = vpop.f32.mrf.mxu0
        %v606 = vadd.f32 0.0, %v605
        %v607 = vpop.f32.mrf.mxu0
        %v608 = vadd.f32 0.0, %v607
        %609 = vmatmul.bf16.gmra.mxu0 %v484
        %v610 = vpop.f32.mrf.mxu0
        %v611 = vadd.f32 0.0, %v610
        %v612 = vpop.f32.mrf.mxu0
        %v613 = vadd.f32 0.0, %v612
        %614 = vmatmul.bf16.gmra.mxu0 %v485
        %v615 = vpop.f32.mrf.mxu0
        %v616 = vadd.f32 0.0, %v615
        %v617 = vpop.f32.mrf.mxu0
        %v618 = vadd.f32 0.0, %v617
        %619 = vmatmul.bf16.gmra.mxu0 %v486
        %v620 = vpop.f32.mrf.mxu0
        %v621 = vadd.f32 0.0, %v620
        %v622 = vpop.f32.mrf.mxu0
        %v623 = vadd.f32 0.0, %v622
        %624 = vdwg.mxu0
        %v625 = vtanh.pop %v577
        %v626 = vtanh.pop %v606
        %v627 = vtanh.pop %v579
        %v628 = vtanh.pop %v608
        %v629 = vtanh.pop %v582
        %v630 = vtanh.pop %v611
        %v631 = vtanh.pop %v584
        %v632 = vtanh.pop %v613
        %v633 = vtanh.pop %v587
        %v634 = vtanh.pop %v616
        %v635 = vtanh.pop %v589
        %v636 = vtanh.pop %v618
        %v637 = vtanh.pop %v592
        %v638 = vtanh.pop %v621
        %v639 = vtanh.pop %v594
        %v640 = vtanh.pop %v623
        %v641 = vlaneseq
        %v642 = vand.u32 %v641, 127
        %v643 = vadd.s32 %v642, 128
        %vm644 = vcmp.lt.s32.totalorder %v642, 160
        %vm645 = vcmp.lt.s32.totalorder %v643, 160
        %v647 = vperm.slane %v482, 0
        %v648 = vperm.slane %v482, 1
        %v651 = vsub.f32 %v625, %v647
        %v652 = vsub.f32 %v626, %v648
        %v653 = vsub.f32 %v627, %v647
        %v654 = vsub.f32 %v628, %v648
        %v655 = vsub.f32 %v629, %v647
        %v656 = vsub.f32 %v630, %v648
        %v657 = vsub.f32 %v631, %v647
        %v658 = vsub.f32 %v632, %v648
        %v659 = vsub.f32 %v633, %v647
        %v660 = vsub.f32 %v634, %v648
        %v661 = vsub.f32 %v635, %v647
        %v662 = vsub.f32 %v636, %v648
        %v663 = vsub.f32 %v637, %v647
        %v664 = vsub.f32 %v638, %v648
        %v665 = vsub.f32 %v639, %v647
        %v666 = vsub.f32 %v640, %v648
        %v667 = vsel %vm644, %v651, -inf
        %v668 = vsel %vm645, %v652, -inf
        %v669 = vsel %vm644, %v653, -inf
        %v670 = vsel %vm645, %v654, -inf
        %v671 = vsel %vm644, %v655, -inf
        %v672 = vsel %vm645, %v656, -inf
        %v673 = vsel %vm644, %v657, -inf
        %v674 = vsel %vm645, %v658, -inf
        %v675 = vsel %vm644, %v659, -inf
        %v676 = vsel %vm645, %v660, -inf
        %v677 = vsel %vm644, %v661, -inf
        %v678 = vsel %vm645, %v662, -inf
        %v679 = vsel %vm644, %v663, -inf
        %v680 = vsel %vm645, %v664, -inf
        %v681 = vsel %vm644, %v665, -inf
        %v682 = vsel %vm645, %v666, -inf
        %vm699 = vcmp.ge.s32.totalorder %v667, 0
        %vm700 = vcmp.ge.s32.totalorder %v668, 0
        %vm701 = vcmp.ge.s32.totalorder %v669, 0
        %vm702 = vcmp.ge.s32.totalorder %v670, 0
        %vm703 = vcmp.ge.s32.totalorder %v671, 0
        %vm704 = vcmp.ge.s32.totalorder %v672, 0
        %vm705 = vcmp.ge.s32.totalorder %v673, 0
        %vm706 = vcmp.ge.s32.totalorder %v674, 0
        %vm707 = vcmp.ge.s32.totalorder %v675, 0
        %vm708 = vcmp.ge.s32.totalorder %v676, 0
        %vm709 = vcmp.ge.s32.totalorder %v677, 0
        %vm710 = vcmp.ge.s32.totalorder %v678, 0
        %vm711 = vcmp.ge.s32.totalorder %v679, 0
        %vm712 = vcmp.ge.s32.totalorder %v680, 0
        %vm713 = vcmp.ge.s32.totalorder %v681, 0
        %vm714 = vcmp.ge.s32.totalorder %v682, 0
        %v715 = vsub.s32 2147483648, %v667
        %v716 = vsub.s32 2147483648, %v668
        %v717 = vsub.s32 2147483648, %v669
        %v718 = vsub.s32 2147483648, %v670
        %v719 = vsub.s32 2147483648, %v671
        %v720 = vsub.s32 2147483648, %v672
        %v721 = vsub.s32 2147483648, %v673
        %v722 = vsub.s32 2147483648, %v674
        %v723 = vsub.s32 2147483648, %v675
        %v724 = vsub.s32 2147483648, %v676
        %v725 = vsub.s32 2147483648, %v677
        %v726 = vsub.s32 2147483648, %v678
        %v727 = vsub.s32 2147483648, %v679
        %v728 = vsub.s32 2147483648, %v680
        %v729 = vsub.s32 2147483648, %v681
        %v730 = vsub.s32 2147483648, %v682
        %v731 = vsel %vm699, %v667, %v715
        %v732 = vsel %vm700, %v668, %v716
        %v733 = vsel %vm701, %v669, %v717
        %v734 = vsel %vm702, %v670, %v718
        %v735 = vsel %vm703, %v671, %v719
        %v736 = vsel %vm704, %v672, %v720
        %v737 = vsel %vm705, %v673, %v721
        %v738 = vsel %vm706, %v674, %v722
        %v739 = vsel %vm707, %v675, %v723
        %v740 = vsel %vm708, %v676, %v724
        %v741 = vsel %vm709, %v677, %v725
        %v742 = vsel %vm710, %v678, %v726
        %v743 = vsel %vm711, %v679, %v727
        %v744 = vsel %vm712, %v680, %v728
        %v745 = vsel %vm713, %v681, %v729
        %v746 = vsel %vm714, %v682, %v730
        %vm747 = vcmp.ge.s32.totalorder %v731, 0
        %vm748 = vcmp.ge.s32.totalorder %v732, 0
        %vm749 = vcmp.ge.s32.totalorder %v733, 0
        %vm750 = vcmp.ge.s32.totalorder %v734, 0
        %vm751 = vcmp.ge.s32.totalorder %v735, 0
        %vm752 = vcmp.ge.s32.totalorder %v736, 0
        %vm753 = vcmp.ge.s32.totalorder %v737, 0
        %vm754 = vcmp.ge.s32.totalorder %v738, 0
        %vm755 = vcmp.ge.s32.totalorder %v739, 0
        %vm756 = vcmp.ge.s32.totalorder %v740, 0
        %vm757 = vcmp.ge.s32.totalorder %v741, 0
        %vm758 = vcmp.ge.s32.totalorder %v742, 0
        %vm759 = vcmp.ge.s32.totalorder %v743, 0
        %vm760 = vcmp.ge.s32.totalorder %v744, 0
        %vm761 = vcmp.ge.s32.totalorder %v745, 0
        %vm762 = vcmp.ge.s32.totalorder %v746, 0
        %v763 = vsel %vm747, 1, 0
        %v764 = vsel %vm748, 1, 0
        %v765 = vsel %vm749, 1, 0
        %v766 = vsel %vm750, 1, 0
        %v767 = vsel %vm751, 1, 0
        %v768 = vsel %vm752, 1, 0
        %v769 = vsel %vm753, 1, 0
        %v770 = vsel %vm754, 1, 0
        %v771 = vsel %vm755, 1, 0
        %v772 = vsel %vm756, 1, 0
        %v773 = vsel %vm757, 1, 0
        %v774 = vsel %vm758, 1, 0
        %v775 = vsel %vm759, 1, 0
        %v776 = vsel %vm760, 1, 0
        %v777 = vsel %vm761, 1, 0
        %v778 = vsel %vm762, 1, 0
        %v779 = vcvt.s32.f32 %v763
        %v780 = vcvt.s32.f32 %v764
        %v781 = vcvt.s32.f32 %v765
        %v782 = vcvt.s32.f32 %v766
        %v783 = vcvt.s32.f32 %v767
        %v784 = vcvt.s32.f32 %v768
        %v785 = vcvt.s32.f32 %v769
        %v786 = vcvt.s32.f32 %v770
        %v787 = vcvt.s32.f32 %v771
        %v788 = vcvt.s32.f32 %v772
        %v789 = vcvt.s32.f32 %v773
        %v790 = vcvt.s32.f32 %v774
        %v791 = vcvt.s32.f32 %v775
        %v792 = vcvt.s32.f32 %v776
        %v793 = vcvt.s32.f32 %v777
        %v794 = vcvt.s32.f32 %v778
        %v795 = vadd.f32 %v779, %v780
        %796 = vadd.xlane.f32.xlu0 %v795
        %v797 = vpop.xlane.xlu0 %796
        %v798 = vadd.f32 %v781, %v782
        %799 = vadd.xlane.f32.xlu0 %v798
        %v800 = vpop.xlane.xlu0 %799
        %v801 = vadd.f32 %v783, %v784
        %802 = vadd.xlane.f32.xlu0 %v801
        %v803 = vpop.xlane.xlu0 %802
        %v804 = vadd.f32 %v785, %v786
        %805 = vadd.xlane.f32.xlu0 %v804
        %v806 = vpop.xlane.xlu0 %805
        %v807 = vadd.f32 %v787, %v788
        %808 = vadd.xlane.f32.xlu0 %v807
        %v809 = vpop.xlane.xlu0 %808
        %v810 = vadd.f32 %v789, %v790
        %811 = vadd.xlane.f32.xlu0 %v810
        %v812 = vpop.xlane.xlu0 %811
        %v813 = vadd.f32 %v791, %v792
        %814 = vadd.xlane.f32.xlu0 %v813
        %v815 = vpop.xlane.xlu0 %814
        %v816 = vadd.f32 %v793, %v794
        %817 = vadd.xlane.f32.xlu0 %v816
        %v818 = vpop.xlane.xlu0 %817
        %vm819 = vcmp.ge.f32.partialorder %v797, 40.0
        %vm820 = vcmp.ge.f32.partialorder %v800, 40.0
        %vm821 = vcmp.ge.f32.partialorder %v803, 40.0
        %vm822 = vcmp.ge.f32.partialorder %v806, 40.0
        %vm823 = vcmp.ge.f32.partialorder %v809, 40.0
        %vm824 = vcmp.ge.f32.partialorder %v812, 40.0
        %vm825 = vcmp.ge.f32.partialorder %v815, 40.0
        %vm826 = vcmp.ge.f32.partialorder %v818, 40.0
        %v827 = vsel %vm819, 0, 2147483648
        %v828 = vsel %vm820, 0, 2147483648
        %v829 = vsel %vm821, 0, 2147483648
        %v830 = vsel %vm822, 0, 2147483648
        %v831 = vsel %vm823, 0, 2147483648
        %v832 = vsel %vm824, 0, 2147483648
        %v833 = vsel %vm825, 0, 2147483648
        %v834 = vsel %vm826, 0, 2147483648
        %v835 = vsel %vm819, 2147483647, 4294967295
        %v836 = vsel %vm820, 2147483647, 4294967295
        %v837 = vsel %vm821, 2147483647, 4294967295
        %v838 = vsel %vm822, 2147483647, 4294967295
        %v839 = vsel %vm823, 2147483647, 4294967295
        %v840 = vsel %vm824, 2147483647, 4294967295
        %v841 = vsel %vm825, 2147483647, 4294967295
        %v842 = vsel %vm826, 2147483647, 4294967295
        %v843 = vshra.s32 %v827, 1
        %v844 = vshra.s32 %v828, 1
        %v845 = vshra.s32 %v829, 1
        %v846 = vshra.s32 %v830, 1
        %v847 = vshra.s32 %v831, 1
        %v848 = vshra.s32 %v832, 1
        %v849 = vshra.s32 %v833, 1
        %v850 = vshra.s32 %v834, 1
        %v851 = vshra.s32 %v835, 1
        %v852 = vshra.s32 %v836, 1
        %v853 = vshra.s32 %v837, 1
        %v854 = vshra.s32 %v838, 1
        %v855 = vshra.s32 %v839, 1
        %v856 = vshra.s32 %v840, 1
        %v857 = vshra.s32 %v841, 1
        %v858 = vshra.s32 %v842, 1
        %v859 = vadd.s32 %v843, %v851
        %v860 = vadd.s32 %v844, %v852
        %v861 = vadd.s32 %v845, %v853
        %v862 = vadd.s32 %v846, %v854
        %v863 = vadd.s32 %v847, %v855
        %v864 = vadd.s32 %v848, %v856
        %v865 = vadd.s32 %v849, %v857
        %v866 = vadd.s32 %v850, %v858
        %v867 = vor.u32 %v827, %v835
        %v868 = vor.u32 %v828, %v836
        %v869 = vor.u32 %v829, %v837
        %v870 = vor.u32 %v830, %v838
        %v871 = vor.u32 %v831, %v839
        %v872 = vor.u32 %v832, %v840
        %v873 = vor.u32 %v833, %v841
        %v874 = vor.u32 %v834, %v842
        %v875 = vand.u32 %v867, 1
        %v876 = vand.u32 %v868, 1
        %v877 = vand.u32 %v869, 1
        %v878 = vand.u32 %v870, 1
        %v879 = vand.u32 %v871, 1
        %v880 = vand.u32 %v872, 1
        %v881 = vand.u32 %v873, 1
        %v882 = vand.u32 %v874, 1
        %v883 = vadd.s32 %v859, %v875
        %v884 = vadd.s32 %v860, %v876
        %v885 = vadd.s32 %v861, %v877
        %v886 = vadd.s32 %v862, %v878
        %v887 = vadd.s32 %v863, %v879
        %v888 = vadd.s32 %v864, %v880
        %v889 = vadd.s32 %v865, %v881
        %v890 = vadd.s32 %v866, %v882
        %vm891 = vcmp.ge.s32.totalorder %v731, %v883
        %vm892 = vcmp.ge.s32.totalorder %v732, %v883
        %vm893 = vcmp.ge.s32.totalorder %v733, %v884
        %vm894 = vcmp.ge.s32.totalorder %v734, %v884
        %vm895 = vcmp.ge.s32.totalorder %v735, %v885
        %vm896 = vcmp.ge.s32.totalorder %v736, %v885
        %vm897 = vcmp.ge.s32.totalorder %v737, %v886
        %vm898 = vcmp.ge.s32.totalorder %v738, %v886
        %vm899 = vcmp.ge.s32.totalorder %v739, %v887
        %vm900 = vcmp.ge.s32.totalorder %v740, %v887
        %vm901 = vcmp.ge.s32.totalorder %v741, %v888
        %vm902 = vcmp.ge.s32.totalorder %v742, %v888
        %vm903 = vcmp.ge.s32.totalorder %v743, %v889
        %vm904 = vcmp.ge.s32.totalorder %v744, %v889
        %vm905 = vcmp.ge.s32.totalorder %v745, %v890
        %vm906 = vcmp.ge.s32.totalorder %v746, %v890
        %v907 = vsel %vm891, 1, 0
        %v908 = vsel %vm892, 1, 0
        %v909 = vsel %vm893, 1, 0
        %v910 = vsel %vm894, 1, 0
        %v911 = vsel %vm895, 1, 0
        %v912 = vsel %vm896, 1, 0
        %v913 = vsel %vm897, 1, 0
        %v914 = vsel %vm898, 1, 0
        %v915 = vsel %vm899, 1, 0
        %v916 = vsel %vm900, 1, 0
        %v917 = vsel %vm901, 1, 0
        %v918 = vsel %vm902, 1, 0
        %v919 = vsel %vm903, 1, 0
        %v920 = vsel %vm904, 1, 0
        %v921 = vsel %vm905, 1, 0
        %v922 = vsel %vm906, 1, 0
        %v923 = vcvt.s32.f32 %v907
        %v924 = vcvt.s32.f32 %v908
        %v925 = vcvt.s32.f32 %v909
        %v926 = vcvt.s32.f32 %v910
        %v927 = vcvt.s32.f32 %v911
        %v928 = vcvt.s32.f32 %v912
        %v929 = vcvt.s32.f32 %v913
        %v930 = vcvt.s32.f32 %v914
        %v931 = vcvt.s32.f32 %v915
        %v932 = vcvt.s32.f32 %v916
        %v933 = vcvt.s32.f32 %v917
        %v934 = vcvt.s32.f32 %v918
        %v935 = vcvt.s32.f32 %v919
        %v936 = vcvt.s32.f32 %v920
        %v937 = vcvt.s32.f32 %v921
        %v938 = vcvt.s32.f32 %v922
        %v939 = vadd.f32 %v923, %v924
        %940 = vadd.xlane.f32.xlu0 %v939
        %v941 = vpop.xlane.xlu0 %940
        %v942 = vadd.f32 %v925, %v926
        %943 = vadd.xlane.f32.xlu0 %v942
        %v944 = vpop.xlane.xlu0 %943
        %v945 = vadd.f32 %v927, %v928
        %946 = vadd.xlane.f32.xlu0 %v945
        %v947 = vpop.xlane.xlu0 %946
        %v948 = vadd.f32 %v929, %v930
        %949 = vadd.xlane.f32.xlu0 %v948
        %v950 = vpop.xlane.xlu0 %949
        %v951 = vadd.f32 %v931, %v932
        %952 = vadd.xlane.f32.xlu0 %v951
        %v953 = vpop.xlane.xlu0 %952
        %v954 = vadd.f32 %v933, %v934
        %955 = vadd.xlane.f32.xlu0 %v954
        %v956 = vpop.xlane.xlu0 %955
        %v957 = vadd.f32 %v935, %v936
        %958 = vadd.xlane.f32.xlu0 %v957
        %v959 = vpop.xlane.xlu0 %958
        %v960 = vadd.f32 %v937, %v938
        %961 = vadd.xlane.f32.xlu0 %v960
        %v962 = vpop.xlane.xlu0 %961
        %vm963 = vcmp.ge.f32.partialorder %v941, 40.0
        %vm964 = vcmp.ge.f32.partialorder %v944, 40.0
        %vm965 = vcmp.ge.f32.partialorder %v947, 40.0
        %vm966 = vcmp.ge.f32.partialorder %v950, 40.0
        %vm967 = vcmp.ge.f32.partialorder %v953, 40.0
        %vm968 = vcmp.ge.f32.partialorder %v956, 40.0
        %vm969 = vcmp.ge.f32.partialorder %v959, 40.0
        %vm970 = vcmp.ge.f32.partialorder %v962, 40.0
        %v971 = vsel %vm963, %v883, %v827
        %v972 = vsel %vm964, %v884, %v828
        %v973 = vsel %vm965, %v885, %v829
        %v974 = vsel %vm966, %v886, %v830
        %v975 = vsel %vm967, %v887, %v831
        %v976 = vsel %vm968, %v888, %v832
        %v977 = vsel %vm969, %v889, %v833
        %v978 = vsel %vm970, %v890, %v834
        %v979 = vsub.s32 %v883, 1
        %v980 = vsub.s32 %v884, 1
        %v981 = vsub.s32 %v885, 1
        %v982 = vsub.s32 %v886, 1
        %v983 = vsub.s32 %v887, 1
        %v984 = vsub.s32 %v888, 1
        %v985 = vsub.s32 %v889, 1
        %v986 = vsub.s32 %v890, 1
        %v987 = vsel %vm963, %v835, %v979
        %v988 = vsel %vm964, %v836, %v980
        %v989 = vsel %vm965, %v837, %v981
        %v990 = vsel %vm966, %v838, %v982
        %v991 = vsel %vm967, %v839, %v983
        %v992 = vsel %vm968, %v840, %v984
        %v993 = vsel %vm969, %v841, %v985
        %v994 = vsel %vm970, %v842, %v986
        %v995 = vshra.s32 %v971, 1
        %v996 = vshra.s32 %v972, 1
        %v997 = vshra.s32 %v973, 1
        %v998 = vshra.s32 %v974, 1
        %v999 = vshra.s32 %v975, 1
        %v1000 = vshra.s32 %v976, 1
        %v1001 = vshra.s32 %v977, 1
        %v1002 = vshra.s32 %v978, 1
        %v1003 = vshra.s32 %v987, 1
        %v1004 = vshra.s32 %v988, 1
        %v1005 = vshra.s32 %v989, 1
        %v1006 = vshra.s32 %v990, 1
        %v1007 = vshra.s32 %v991, 1
        %v1008 = vshra.s32 %v992, 1
        %v1009 = vshra.s32 %v993, 1
        %v1010 = vshra.s32 %v994, 1
        %v1011 = vadd.s32 %v995, %v1003
        %v1012 = vadd.s32 %v996, %v1004
        %v1013 = vadd.s32 %v997, %v1005
        %v1014 = vadd.s32 %v998, %v1006
        %v1015 = vadd.s32 %v999, %v1007
        %v1016 = vadd.s32 %v1000, %v1008
        %v1017 = vadd.s32 %v1001, %v1009
        %v1018 = vadd.s32 %v1002, %v1010
        %v1019 = vor.u32 %v971, %v987
        %v1020 = vor.u32 %v972, %v988
        %v1021 = vor.u32 %v973, %v989
        %v1022 = vor.u32 %v974, %v990
        %v1023 = vor.u32 %v975, %v991
        %v1024 = vor.u32 %v976, %v992
        %v1025 = vor.u32 %v977, %v993
        %v1026 = vor.u32 %v978, %v994
        %v1027 = vand.u32 %v1019, 1
        %v1028 = vand.u32 %v1020, 1
        %v1029 = vand.u32 %v1021, 1
        %v1030 = vand.u32 %v1022, 1
        %v1031 = vand.u32 %v1023, 1
        %v1032 = vand.u32 %v1024, 1
        %v1033 = vand.u32 %v1025, 1
        %v1034 = vand.u32 %v1026, 1
        %v1035 = vadd.s32 %v1011, %v1027
        %v1036 = vadd.s32 %v1012, %v1028
        %v1037 = vadd.s32 %v1013, %v1029
        %v1038 = vadd.s32 %v1014, %v1030
        %v1039 = vadd.s32 %v1015, %v1031
        %v1040 = vadd.s32 %v1016, %v1032
        %v1041 = vadd.s32 %v1017, %v1033
        %v1042 = vadd.s32 %v1018, %v1034
        %vm1043 = vcmp.ge.s32.totalorder %v731, %v1035
        %vm1044 = vcmp.ge.s32.totalorder %v732, %v1035
        %vm1045 = vcmp.ge.s32.totalorder %v733, %v1036
        %vm1046 = vcmp.ge.s32.totalorder %v734, %v1036
        %vm1047 = vcmp.ge.s32.totalorder %v735, %v1037
        %vm1048 = vcmp.ge.s32.totalorder %v736, %v1037
        %vm1049 = vcmp.ge.s32.totalorder %v737, %v1038
        %vm1050 = vcmp.ge.s32.totalorder %v738, %v1038
        %vm1051 = vcmp.ge.s32.totalorder %v739, %v1039
        %vm1052 = vcmp.ge.s32.totalorder %v740, %v1039
        %vm1053 = vcmp.ge.s32.totalorder %v741, %v1040
        %vm1054 = vcmp.ge.s32.totalorder %v742, %v1040
        %vm1055 = vcmp.ge.s32.totalorder %v743, %v1041
        %vm1056 = vcmp.ge.s32.totalorder %v744, %v1041
        %vm1057 = vcmp.ge.s32.totalorder %v745, %v1042
        %vm1058 = vcmp.ge.s32.totalorder %v746, %v1042
        %v1059 = vsel %vm1043, 1, 0
        %v1060 = vsel %vm1044, 1, 0
        %v1061 = vsel %vm1045, 1, 0
        %v1062 = vsel %vm1046, 1, 0
        %v1063 = vsel %vm1047, 1, 0
        %v1064 = vsel %vm1048, 1, 0
        %v1065 = vsel %vm1049, 1, 0
        %v1066 = vsel %vm1050, 1, 0
        %v1067 = vsel %vm1051, 1, 0
        %v1068 = vsel %vm1052, 1, 0
        %v1069 = vsel %vm1053, 1, 0
        %v1070 = vsel %vm1054, 1, 0
        %v1071 = vsel %vm1055, 1, 0
        %v1072 = vsel %vm1056, 1, 0
        %v1073 = vsel %vm1057, 1, 0
        %v1074 = vsel %vm1058, 1, 0
        %v1075 = vcvt.s32.f32 %v1059
        %v1076 = vcvt.s32.f32 %v1060
        %v1077 = vcvt.s32.f32 %v1061
        %v1078 = vcvt.s32.f32 %v1062
        %v1079 = vcvt.s32.f32 %v1063
        %v1080 = vcvt.s32.f32 %v1064
        %v1081 = vcvt.s32.f32 %v1065
        %v1082 = vcvt.s32.f32 %v1066
        %v1083 = vcvt.s32.f32 %v1067
        %v1084 = vcvt.s32.f32 %v1068
        %v1085 = vcvt.s32.f32 %v1069
        %v1086 = vcvt.s32.f32 %v1070
        %v1087 = vcvt.s32.f32 %v1071
        %v1088 = vcvt.s32.f32 %v1072
        %v1089 = vcvt.s32.f32 %v1073
        %v1090 = vcvt.s32.f32 %v1074
        %v1091 = vadd.f32 %v1075, %v1076
        %1092 = vadd.xlane.f32.xlu0 %v1091
        %v1093 = vpop.xlane.xlu0 %1092
        %v1094 = vadd.f32 %v1077, %v1078
        %1095 = vadd.xlane.f32.xlu0 %v1094
        %v1096 = vpop.xlane.xlu0 %1095
        %v1097 = vadd.f32 %v1079, %v1080
        %1098 = vadd.xlane.f32.xlu0 %v1097
        %v1099 = vpop.xlane.xlu0 %1098
        %v1100 = vadd.f32 %v1081, %v1082
        %1101 = vadd.xlane.f32.xlu0 %v1100
        %v1102 = vpop.xlane.xlu0 %1101
        %v1103 = vadd.f32 %v1083, %v1084
        %1104 = vadd.xlane.f32.xlu0 %v1103
        %v1105 = vpop.xlane.xlu0 %1104
        %v1106 = vadd.f32 %v1085, %v1086
        %1107 = vadd.xlane.f32.xlu0 %v1106
        %v1108 = vpop.xlane.xlu0 %1107
        %v1109 = vadd.f32 %v1087, %v1088
        %1110 = vadd.xlane.f32.xlu0 %v1109
        %v1111 = vpop.xlane.xlu0 %1110
        %v1112 = vadd.f32 %v1089, %v1090
        %1113 = vadd.xlane.f32.xlu0 %v1112
        %v1114 = vpop.xlane.xlu0 %1113
        %vm1115 = vcmp.ge.f32.partialorder %v1093, 40.0
        %vm1116 = vcmp.ge.f32.partialorder %v1096, 40.0
        %vm1117 = vcmp.ge.f32.partialorder %v1099, 40.0
        %vm1118 = vcmp.ge.f32.partialorder %v1102, 40.0
        %vm1119 = vcmp.ge.f32.partialorder %v1105, 40.0
        %vm1120 = vcmp.ge.f32.partialorder %v1108, 40.0
        %vm1121 = vcmp.ge.f32.partialorder %v1111, 40.0
        %vm1122 = vcmp.ge.f32.partialorder %v1114, 40.0
        %v1123 = vsel %vm1115, %v1035, %v971
        %v1124 = vsel %vm1116, %v1036, %v972
        %v1125 = vsel %vm1117, %v1037, %v973
        %v1126 = vsel %vm1118, %v1038, %v974
        %v1127 = vsel %vm1119, %v1039, %v975
        %v1128 = vsel %vm1120, %v1040, %v976
        %v1129 = vsel %vm1121, %v1041, %v977
        %v1130 = vsel %vm1122, %v1042, %v978
        %v1131 = vsub.s32 %v1035, 1
        %v1132 = vsub.s32 %v1036, 1
        %v1133 = vsub.s32 %v1037, 1
        %v1134 = vsub.s32 %v1038, 1
        %v1135 = vsub.s32 %v1039, 1
        %v1136 = vsub.s32 %v1040, 1
        %v1137 = vsub.s32 %v1041, 1
        %v1138 = vsub.s32 %v1042, 1
        %v1139 = vsel %vm1115, %v987, %v1131
        %v1140 = vsel %vm1116, %v988, %v1132
        %v1141 = vsel %vm1117, %v989, %v1133
        %v1142 = vsel %vm1118, %v990, %v1134
        %v1143 = vsel %vm1119, %v991, %v1135
        %v1144 = vsel %vm1120, %v992, %v1136
        %v1145 = vsel %vm1121, %v993, %v1137
        %v1146 = vsel %vm1122, %v994, %v1138
        %v1147 = vshra.s32 %v1123, 1
        %v1148 = vshra.s32 %v1124, 1
        %v1149 = vshra.s32 %v1125, 1
        %v1150 = vshra.s32 %v1126, 1
        %v1151 = vshra.s32 %v1127, 1
        %v1152 = vshra.s32 %v1128, 1
        %v1153 = vshra.s32 %v1129, 1
        %v1154 = vshra.s32 %v1130, 1
        %v1155 = vshra.s32 %v1139, 1
        %v1156 = vshra.s32 %v1140, 1
        %v1157 = vshra.s32 %v1141, 1
        %v1158 = vshra.s32 %v1142, 1
        %v1159 = vshra.s32 %v1143, 1
        %v1160 = vshra.s32 %v1144, 1
        %v1161 = vshra.s32 %v1145, 1
        %v1162 = vshra.s32 %v1146, 1
        %v1163 = vadd.s32 %v1147, %v1155
        %v1164 = vadd.s32 %v1148, %v1156
        %v1165 = vadd.s32 %v1149, %v1157
        %v1166 = vadd.s32 %v1150, %v1158
        %v1167 = vadd.s32 %v1151, %v1159
        %v1168 = vadd.s32 %v1152, %v1160
        %v1169 = vadd.s32 %v1153, %v1161
        %v1170 = vadd.s32 %v1154, %v1162
        %v1171 = vor.u32 %v1123, %v1139
        %v1172 = vor.u32 %v1124, %v1140
        %v1173 = vor.u32 %v1125, %v1141
        %v1174 = vor.u32 %v1126, %v1142
        %v1175 = vor.u32 %v1127, %v1143
        %v1176 = vor.u32 %v1128, %v1144
        %v1177 = vor.u32 %v1129, %v1145
        %v1178 = vor.u32 %v1130, %v1146
        %v1179 = vand.u32 %v1171, 1
        %v1180 = vand.u32 %v1172, 1
        %v1181 = vand.u32 %v1173, 1
        %v1182 = vand.u32 %v1174, 1
        %v1183 = vand.u32 %v1175, 1
        %v1184 = vand.u32 %v1176, 1
        %v1185 = vand.u32 %v1177, 1
        %v1186 = vand.u32 %v1178, 1
        %v1187 = vadd.s32 %v1163, %v1179
        %v1188 = vadd.s32 %v1164, %v1180
        %v1189 = vadd.s32 %v1165, %v1181
        %v1190 = vadd.s32 %v1166, %v1182
        %v1191 = vadd.s32 %v1167, %v1183
        %v1192 = vadd.s32 %v1168, %v1184
        %v1193 = vadd.s32 %v1169, %v1185
        %v1194 = vadd.s32 %v1170, %v1186
        %vm1195 = vcmp.ge.s32.totalorder %v731, %v1187
        %vm1196 = vcmp.ge.s32.totalorder %v732, %v1187
        %vm1197 = vcmp.ge.s32.totalorder %v733, %v1188
        %vm1198 = vcmp.ge.s32.totalorder %v734, %v1188
        %vm1199 = vcmp.ge.s32.totalorder %v735, %v1189
        %vm1200 = vcmp.ge.s32.totalorder %v736, %v1189
        %vm1201 = vcmp.ge.s32.totalorder %v737, %v1190
        %vm1202 = vcmp.ge.s32.totalorder %v738, %v1190
        %vm1203 = vcmp.ge.s32.totalorder %v739, %v1191
        %vm1204 = vcmp.ge.s32.totalorder %v740, %v1191
        %vm1205 = vcmp.ge.s32.totalorder %v741, %v1192
        %vm1206 = vcmp.ge.s32.totalorder %v742, %v1192
        %vm1207 = vcmp.ge.s32.totalorder %v743, %v1193
        %vm1208 = vcmp.ge.s32.totalorder %v744, %v1193
        %vm1209 = vcmp.ge.s32.totalorder %v745, %v1194
        %vm1210 = vcmp.ge.s32.totalorder %v746, %v1194
        %v1211 = vsel %vm1195, 1, 0
        %v1212 = vsel %vm1196, 1, 0
        %v1213 = vsel %vm1197, 1, 0
        %v1214 = vsel %vm1198, 1, 0
        %v1215 = vsel %vm1199, 1, 0
        %v1216 = vsel %vm1200, 1, 0
        %v1217 = vsel %vm1201, 1, 0
        %v1218 = vsel %vm1202, 1, 0
        %v1219 = vsel %vm1203, 1, 0
        %v1220 = vsel %vm1204, 1, 0
        %v1221 = vsel %vm1205, 1, 0
        %v1222 = vsel %vm1206, 1, 0
        %v1223 = vsel %vm1207, 1, 0
        %v1224 = vsel %vm1208, 1, 0
        %v1225 = vsel %vm1209, 1, 0
        %v1226 = vsel %vm1210, 1, 0
        %v1227 = vcvt.s32.f32 %v1211
        %v1228 = vcvt.s32.f32 %v1212
        %v1229 = vcvt.s32.f32 %v1213
        %v1230 = vcvt.s32.f32 %v1214
        %v1231 = vcvt.s32.f32 %v1215
        %v1232 = vcvt.s32.f32 %v1216
        %v1233 = vcvt.s32.f32 %v1217
        %v1234 = vcvt.s32.f32 %v1218
        %v1235 = vcvt.s32.f32 %v1219
        %v1236 = vcvt.s32.f32 %v1220
        %v1237 = vcvt.s32.f32 %v1221
        %v1238 = vcvt.s32.f32 %v1222
        %v1239 = vcvt.s32.f32 %v1223
        %v1240 = vcvt.s32.f32 %v1224
        %v1241 = vcvt.s32.f32 %v1225
        %v1242 = vcvt.s32.f32 %v1226
        %v1243 = vadd.f32 %v1227, %v1228
        %1244 = vadd.xlane.f32.xlu0 %v1243
        %v1245 = vpop.xlane.xlu0 %1244
        %v1246 = vadd.f32 %v1229, %v1230
        %1247 = vadd.xlane.f32.xlu0 %v1246
        %v1248 = vpop.xlane.xlu0 %1247
        %v1249 = vadd.f32 %v1231, %v1232
        %1250 = vadd.xlane.f32.xlu0 %v1249
        %v1251 = vpop.xlane.xlu0 %1250
        %v1252 = vadd.f32 %v1233, %v1234
        %1253 = vadd.xlane.f32.xlu0 %v1252
        %v1254 = vpop.xlane.xlu0 %1253
        %v1255 = vadd.f32 %v1235, %v1236
        %1256 = vadd.xlane.f32.xlu0 %v1255
        %v1257 = vpop.xlane.xlu0 %1256
        %v1258 = vadd.f32 %v1237, %v1238
        %1259 = vadd.xlane.f32.xlu0 %v1258
        %v1260 = vpop.xlane.xlu0 %1259
        %v1261 = vadd.f32 %v1239, %v1240
        %1262 = vadd.xlane.f32.xlu0 %v1261
        %v1263 = vpop.xlane.xlu0 %1262
        %v1264 = vadd.f32 %v1241, %v1242
        %1265 = vadd.xlane.f32.xlu0 %v1264
        %v1266 = vpop.xlane.xlu0 %1265
        %vm1267 = vcmp.ge.f32.partialorder %v1245, 40.0
        %vm1268 = vcmp.ge.f32.partialorder %v1248, 40.0
        %vm1269 = vcmp.ge.f32.partialorder %v1251, 40.0
        %vm1270 = vcmp.ge.f32.partialorder %v1254, 40.0
        %vm1271 = vcmp.ge.f32.partialorder %v1257, 40.0
        %vm1272 = vcmp.ge.f32.partialorder %v1260, 40.0
        %vm1273 = vcmp.ge.f32.partialorder %v1263, 40.0
        %vm1274 = vcmp.ge.f32.partialorder %v1266, 40.0
        %v1275 = vsel %vm1267, %v1187, %v1123
        %v1276 = vsel %vm1268, %v1188, %v1124
        %v1277 = vsel %vm1269, %v1189, %v1125
        %v1278 = vsel %vm1270, %v1190, %v1126
        %v1279 = vsel %vm1271, %v1191, %v1127
        %v1280 = vsel %vm1272, %v1192, %v1128
        %v1281 = vsel %vm1273, %v1193, %v1129
        %v1282 = vsel %vm1274, %v1194, %v1130
        %v1283 = vsub.s32 %v1187, 1
        %v1284 = vsub.s32 %v1188, 1
        %v1285 = vsub.s32 %v1189, 1
        %v1286 = vsub.s32 %v1190, 1
        %v1287 = vsub.s32 %v1191, 1
        %v1288 = vsub.s32 %v1192, 1
        %v1289 = vsub.s32 %v1193, 1
        %v1290 = vsub.s32 %v1194, 1
        %v1291 = vsel %vm1267, %v1139, %v1283
        %v1292 = vsel %vm1268, %v1140, %v1284
        %v1293 = vsel %vm1269, %v1141, %v1285
        %v1294 = vsel %vm1270, %v1142, %v1286
        %v1295 = vsel %vm1271, %v1143, %v1287
        %v1296 = vsel %vm1272, %v1144, %v1288
        %v1297 = vsel %vm1273, %v1145, %v1289
        %v1298 = vsel %vm1274, %v1146, %v1290
        %v1299 = vshra.s32 %v1275, 1
        %v1300 = vshra.s32 %v1276, 1
        %v1301 = vshra.s32 %v1277, 1
        %v1302 = vshra.s32 %v1278, 1
        %v1303 = vshra.s32 %v1279, 1
        %v1304 = vshra.s32 %v1280, 1
        %v1305 = vshra.s32 %v1281, 1
        %v1306 = vshra.s32 %v1282, 1
        %v1307 = vshra.s32 %v1291, 1
        %v1308 = vshra.s32 %v1292, 1
        %v1309 = vshra.s32 %v1293, 1
        %v1310 = vshra.s32 %v1294, 1
        %v1311 = vshra.s32 %v1295, 1
        %v1312 = vshra.s32 %v1296, 1
        %v1313 = vshra.s32 %v1297, 1
        %v1314 = vshra.s32 %v1298, 1
        %v1315 = vadd.s32 %v1299, %v1307
        %v1316 = vadd.s32 %v1300, %v1308
        %v1317 = vadd.s32 %v1301, %v1309
        %v1318 = vadd.s32 %v1302, %v1310
        %v1319 = vadd.s32 %v1303, %v1311
        %v1320 = vadd.s32 %v1304, %v1312
        %v1321 = vadd.s32 %v1305, %v1313
        %v1322 = vadd.s32 %v1306, %v1314
        %v1323 = vor.u32 %v1275, %v1291
        %v1324 = vor.u32 %v1276, %v1292
        %v1325 = vor.u32 %v1277, %v1293
        %v1326 = vor.u32 %v1278, %v1294
        %v1327 = vor.u32 %v1279, %v1295
        %v1328 = vor.u32 %v1280, %v1296
        %v1329 = vor.u32 %v1281, %v1297
        %v1330 = vor.u32 %v1282, %v1298
        %v1331 = vand.u32 %v1323, 1
        %v1332 = vand.u32 %v1324, 1
        %v1333 = vand.u32 %v1325, 1
        %v1334 = vand.u32 %v1326, 1
        %v1335 = vand.u32 %v1327, 1
        %v1336 = vand.u32 %v1328, 1
        %v1337 = vand.u32 %v1329, 1
        %v1338 = vand.u32 %v1330, 1
        %v1339 = vadd.s32 %v1315, %v1331
        %v1340 = vadd.s32 %v1316, %v1332
        %v1341 = vadd.s32 %v1317, %v1333
        %v1342 = vadd.s32 %v1318, %v1334
        %v1343 = vadd.s32 %v1319, %v1335
        %v1344 = vadd.s32 %v1320, %v1336
        %v1345 = vadd.s32 %v1321, %v1337
        %v1346 = vadd.s32 %v1322, %v1338
        %vm1347 = vcmp.ge.s32.totalorder %v731, %v1339
        %vm1348 = vcmp.ge.s32.totalorder %v732, %v1339
        %vm1349 = vcmp.ge.s32.totalorder %v733, %v1340
        %vm1350 = vcmp.ge.s32.totalorder %v734, %v1340
        %vm1351 = vcmp.ge.s32.totalorder %v735, %v1341
        %vm1352 = vcmp.ge.s32.totalorder %v736, %v1341
        %vm1353 = vcmp.ge.s32.totalorder %v737, %v1342
        %vm1354 = vcmp.ge.s32.totalorder %v738, %v1342
        %vm1355 = vcmp.ge.s32.totalorder %v739, %v1343
        %vm1356 = vcmp.ge.s32.totalorder %v740, %v1343
        %vm1357 = vcmp.ge.s32.totalorder %v741, %v1344
        %vm1358 = vcmp.ge.s32.totalorder %v742, %v1344
        %vm1359 = vcmp.ge.s32.totalorder %v743, %v1345
        %vm1360 = vcmp.ge.s32.totalorder %v744, %v1345
        %vm1361 = vcmp.ge.s32.totalorder %v745, %v1346
        %vm1362 = vcmp.ge.s32.totalorder %v746, %v1346
        %v1363 = vsel %vm1347, 1, 0
        %v1364 = vsel %vm1348, 1, 0
        %v1365 = vsel %vm1349, 1, 0
        %v1366 = vsel %vm1350, 1, 0
        %v1367 = vsel %vm1351, 1, 0
        %v1368 = vsel %vm1352, 1, 0
        %v1369 = vsel %vm1353, 1, 0
        %v1370 = vsel %vm1354, 1, 0
        %v1371 = vsel %vm1355, 1, 0
        %v1372 = vsel %vm1356, 1, 0
        %v1373 = vsel %vm1357, 1, 0
        %v1374 = vsel %vm1358, 1, 0
        %v1375 = vsel %vm1359, 1, 0
        %v1376 = vsel %vm1360, 1, 0
        %v1377 = vsel %vm1361, 1, 0
        %v1378 = vsel %vm1362, 1, 0
        %v1379 = vcvt.s32.f32 %v1363
        %v1380 = vcvt.s32.f32 %v1364
        %v1381 = vcvt.s32.f32 %v1365
        %v1382 = vcvt.s32.f32 %v1366
        %v1383 = vcvt.s32.f32 %v1367
        %v1384 = vcvt.s32.f32 %v1368
        %v1385 = vcvt.s32.f32 %v1369
        %v1386 = vcvt.s32.f32 %v1370
        %v1387 = vcvt.s32.f32 %v1371
        %v1388 = vcvt.s32.f32 %v1372
        %v1389 = vcvt.s32.f32 %v1373
        %v1390 = vcvt.s32.f32 %v1374
        %v1391 = vcvt.s32.f32 %v1375
        %v1392 = vcvt.s32.f32 %v1376
        %v1393 = vcvt.s32.f32 %v1377
        %v1394 = vcvt.s32.f32 %v1378
        %v1395 = vadd.f32 %v1379, %v1380
        %1396 = vadd.xlane.f32.xlu0 %v1395
        %v1397 = vpop.xlane.xlu0 %1396
        %v1398 = vadd.f32 %v1381, %v1382
        %1399 = vadd.xlane.f32.xlu0 %v1398
        %v1400 = vpop.xlane.xlu0 %1399
        %v1401 = vadd.f32 %v1383, %v1384
        %1402 = vadd.xlane.f32.xlu0 %v1401
        %v1403 = vpop.xlane.xlu0 %1402
        %v1404 = vadd.f32 %v1385, %v1386
        %1405 = vadd.xlane.f32.xlu0 %v1404
        %v1406 = vpop.xlane.xlu0 %1405
        %v1407 = vadd.f32 %v1387, %v1388
        %1408 = vadd.xlane.f32.xlu0 %v1407
        %v1409 = vpop.xlane.xlu0 %1408
        %v1410 = vadd.f32 %v1389, %v1390
        %1411 = vadd.xlane.f32.xlu0 %v1410
        %v1412 = vpop.xlane.xlu0 %1411
        %v1413 = vadd.f32 %v1391, %v1392
        %1414 = vadd.xlane.f32.xlu0 %v1413
        %v1415 = vpop.xlane.xlu0 %1414
        %v1416 = vadd.f32 %v1393, %v1394
        %1417 = vadd.xlane.f32.xlu0 %v1416
        %v1418 = vpop.xlane.xlu0 %1417
        %vm1419 = vcmp.ge.f32.partialorder %v1397, 40.0
        %vm1420 = vcmp.ge.f32.partialorder %v1400, 40.0
        %vm1421 = vcmp.ge.f32.partialorder %v1403, 40.0
        %vm1422 = vcmp.ge.f32.partialorder %v1406, 40.0
        %vm1423 = vcmp.ge.f32.partialorder %v1409, 40.0
        %vm1424 = vcmp.ge.f32.partialorder %v1412, 40.0
        %vm1425 = vcmp.ge.f32.partialorder %v1415, 40.0
        %vm1426 = vcmp.ge.f32.partialorder %v1418, 40.0
        %v1427 = vsel %vm1419, %v1339, %v1275
        %v1428 = vsel %vm1420, %v1340, %v1276
        %v1429 = vsel %vm1421, %v1341, %v1277
        %v1430 = vsel %vm1422, %v1342, %v1278
        %v1431 = vsel %vm1423, %v1343, %v1279
        %v1432 = vsel %vm1424, %v1344, %v1280
        %v1433 = vsel %vm1425, %v1345, %v1281
        %v1434 = vsel %vm1426, %v1346, %v1282
        %v1435 = vsub.s32 %v1339, 1
        %v1436 = vsub.s32 %v1340, 1
        %v1437 = vsub.s32 %v1341, 1
        %v1438 = vsub.s32 %v1342, 1
        %v1439 = vsub.s32 %v1343, 1
        %v1440 = vsub.s32 %v1344, 1
        %v1441 = vsub.s32 %v1345, 1
        %v1442 = vsub.s32 %v1346, 1
        %v1443 = vsel %vm1419, %v1291, %v1435
        %v1444 = vsel %vm1420, %v1292, %v1436
        %v1445 = vsel %vm1421, %v1293, %v1437
        %v1446 = vsel %vm1422, %v1294, %v1438
        %v1447 = vsel %vm1423, %v1295, %v1439
        %v1448 = vsel %vm1424, %v1296, %v1440
        %v1449 = vsel %vm1425, %v1297, %v1441
        %v1450 = vsel %vm1426, %v1298, %v1442
        %v1451 = vshra.s32 %v1427, 1
        %v1452 = vshra.s32 %v1428, 1
        %v1453 = vshra.s32 %v1429, 1
        %v1454 = vshra.s32 %v1430, 1
        %v1455 = vshra.s32 %v1431, 1
        %v1456 = vshra.s32 %v1432, 1
        %v1457 = vshra.s32 %v1433, 1
        %v1458 = vshra.s32 %v1434, 1
        %v1459 = vshra.s32 %v1443, 1
        %v1460 = vshra.s32 %v1444, 1
        %v1461 = vshra.s32 %v1445, 1
        %v1462 = vshra.s32 %v1446, 1
        %v1463 = vshra.s32 %v1447, 1
        %v1464 = vshra.s32 %v1448, 1
        %v1465 = vshra.s32 %v1449, 1
        %v1466 = vshra.s32 %v1450, 1
        %v1467 = vadd.s32 %v1451, %v1459
        %v1468 = vadd.s32 %v1452, %v1460
        %v1469 = vadd.s32 %v1453, %v1461
        %v1470 = vadd.s32 %v1454, %v1462
        %v1471 = vadd.s32 %v1455, %v1463
        %v1472 = vadd.s32 %v1456, %v1464
        %v1473 = vadd.s32 %v1457, %v1465
        %v1474 = vadd.s32 %v1458, %v1466
        %v1475 = vor.u32 %v1427, %v1443
        %v1476 = vor.u32 %v1428, %v1444
        %v1477 = vor.u32 %v1429, %v1445
        %v1478 = vor.u32 %v1430, %v1446
        %v1479 = vor.u32 %v1431, %v1447
        %v1480 = vor.u32 %v1432, %v1448
        %v1481 = vor.u32 %v1433, %v1449
        %v1482 = vor.u32 %v1434, %v1450
        %v1483 = vand.u32 %v1475, 1
        %v1484 = vand.u32 %v1476, 1
        %v1485 = vand.u32 %v1477, 1
        %v1486 = vand.u32 %v1478, 1
        %v1487 = vand.u32 %v1479, 1
        %v1488 = vand.u32 %v1480, 1
        %v1489 = vand.u32 %v1481, 1
        %v1490 = vand.u32 %v1482, 1
        %v1491 = vadd.s32 %v1467, %v1483
        %v1492 = vadd.s32 %v1468, %v1484
        %v1493 = vadd.s32 %v1469, %v1485
        %v1494 = vadd.s32 %v1470, %v1486
        %v1495 = vadd.s32 %v1471, %v1487
        %v1496 = vadd.s32 %v1472, %v1488
        %v1497 = vadd.s32 %v1473, %v1489
        %v1498 = vadd.s32 %v1474, %v1490
        %vm1499 = vcmp.ge.s32.totalorder %v731, %v1491
        %vm1500 = vcmp.ge.s32.totalorder %v732, %v1491
        %vm1501 = vcmp.ge.s32.totalorder %v733, %v1492
        %vm1502 = vcmp.ge.s32.totalorder %v734, %v1492
        %vm1503 = vcmp.ge.s32.totalorder %v735, %v1493
        %vm1504 = vcmp.ge.s32.totalorder %v736, %v1493
        %vm1505 = vcmp.ge.s32.totalorder %v737, %v1494
        %vm1506 = vcmp.ge.s32.totalorder %v738, %v1494
        %vm1507 = vcmp.ge.s32.totalorder %v739, %v1495
        %vm1508 = vcmp.ge.s32.totalorder %v740, %v1495
        %vm1509 = vcmp.ge.s32.totalorder %v741, %v1496
        %vm1510 = vcmp.ge.s32.totalorder %v742, %v1496
        %vm1511 = vcmp.ge.s32.totalorder %v743, %v1497
        %vm1512 = vcmp.ge.s32.totalorder %v744, %v1497
        %vm1513 = vcmp.ge.s32.totalorder %v745, %v1498
        %vm1514 = vcmp.ge.s32.totalorder %v746, %v1498
        %v1515 = vsel %vm1499, 1, 0
        %v1516 = vsel %vm1500, 1, 0
        %v1517 = vsel %vm1501, 1, 0
        %v1518 = vsel %vm1502, 1, 0
        %v1519 = vsel %vm1503, 1, 0
        %v1520 = vsel %vm1504, 1, 0
        %v1521 = vsel %vm1505, 1, 0
        %v1522 = vsel %vm1506, 1, 0
        %v1523 = vsel %vm1507, 1, 0
        %v1524 = vsel %vm1508, 1, 0
        %v1525 = vsel %vm1509, 1, 0
        %v1526 = vsel %vm1510, 1, 0
        %v1527 = vsel %vm1511, 1, 0
        %v1528 = vsel %vm1512, 1, 0
        %v1529 = vsel %vm1513, 1, 0
        %v1530 = vsel %vm1514, 1, 0
        %v1531 = vcvt.s32.f32 %v1515
        %v1532 = vcvt.s32.f32 %v1516
        %v1533 = vcvt.s32.f32 %v1517
        %v1534 = vcvt.s32.f32 %v1518
        %v1535 = vcvt.s32.f32 %v1519
        %v1536 = vcvt.s32.f32 %v1520
        %v1537 = vcvt.s32.f32 %v1521
        %v1538 = vcvt.s32.f32 %v1522
        %v1539 = vcvt.s32.f32 %v1523
        %v1540 = vcvt.s32.f32 %v1524
        %v1541 = vcvt.s32.f32 %v1525
        %v1542 = vcvt.s32.f32 %v1526
        %v1543 = vcvt.s32.f32 %v1527
        %v1544 = vcvt.s32.f32 %v1528
        %v1545 = vcvt.s32.f32 %v1529
        %v1546 = vcvt.s32.f32 %v1530
        %v1547 = vadd.f32 %v1531, %v1532
        %1548 = vadd.xlane.f32.xlu0 %v1547
        %v1549 = vpop.xlane.xlu0 %1548
        %v1550 = vadd.f32 %v1533, %v1534
        %1551 = vadd.xlane.f32.xlu0 %v1550
        %v1552 = vpop.xlane.xlu0 %1551
        %v1553 = vadd.f32 %v1535, %v1536
        %1554 = vadd.xlane.f32.xlu0 %v1553
        %v1555 = vpop.xlane.xlu0 %1554
        %v1556 = vadd.f32 %v1537, %v1538
        %1557 = vadd.xlane.f32.xlu0 %v1556
        %v1558 = vpop.xlane.xlu0 %1557
        %v1559 = vadd.f32 %v1539, %v1540
        %1560 = vadd.xlane.f32.xlu0 %v1559
        %v1561 = vpop.xlane.xlu0 %1560
        %v1562 = vadd.f32 %v1541, %v1542
        %1563 = vadd.xlane.f32.xlu0 %v1562
        %v1564 = vpop.xlane.xlu0 %1563
        %v1565 = vadd.f32 %v1543, %v1544
        %1566 = vadd.xlane.f32.xlu0 %v1565
        %v1567 = vpop.xlane.xlu0 %1566
        %v1568 = vadd.f32 %v1545, %v1546
        %1569 = vadd.xlane.f32.xlu0 %v1568
        %v1570 = vpop.xlane.xlu0 %1569
        %vm1571 = vcmp.ge.f32.partialorder %v1549, 40.0
        %vm1572 = vcmp.ge.f32.partialorder %v1552, 40.0
        %vm1573 = vcmp.ge.f32.partialorder %v1555, 40.0
        %vm1574 = vcmp.ge.f32.partialorder %v1558, 40.0
        %vm1575 = vcmp.ge.f32.partialorder %v1561, 40.0
        %vm1576 = vcmp.ge.f32.partialorder %v1564, 40.0
        %vm1577 = vcmp.ge.f32.partialorder %v1567, 40.0
        %vm1578 = vcmp.ge.f32.partialorder %v1570, 40.0
        %v1579 = vsel %vm1571, %v1491, %v1427
        %v1580 = vsel %vm1572, %v1492, %v1428
        %v1581 = vsel %vm1573, %v1493, %v1429
        %v1582 = vsel %vm1574, %v1494, %v1430
        %v1583 = vsel %vm1575, %v1495, %v1431
        %v1584 = vsel %vm1576, %v1496, %v1432
        %v1585 = vsel %vm1577, %v1497, %v1433
        %v1586 = vsel %vm1578, %v1498, %v1434
        %v1587 = vsub.s32 %v1491, 1
        %v1588 = vsub.s32 %v1492, 1
        %v1589 = vsub.s32 %v1493, 1
        %v1590 = vsub.s32 %v1494, 1
        %v1591 = vsub.s32 %v1495, 1
        %v1592 = vsub.s32 %v1496, 1
        %v1593 = vsub.s32 %v1497, 1
        %v1594 = vsub.s32 %v1498, 1
        %v1595 = vsel %vm1571, %v1443, %v1587
        %v1596 = vsel %vm1572, %v1444, %v1588
        %v1597 = vsel %vm1573, %v1445, %v1589
        %v1598 = vsel %vm1574, %v1446, %v1590
        %v1599 = vsel %vm1575, %v1447, %v1591
        %v1600 = vsel %vm1576, %v1448, %v1592
        %v1601 = vsel %vm1577, %v1449, %v1593
        %v1602 = vsel %vm1578, %v1450, %v1594
        %v1603 = vshra.s32 %v1579, 1
        %v1604 = vshra.s32 %v1580, 1
        %v1605 = vshra.s32 %v1581, 1
        %v1606 = vshra.s32 %v1582, 1
        %v1607 = vshra.s32 %v1583, 1
        %v1608 = vshra.s32 %v1584, 1
        %v1609 = vshra.s32 %v1585, 1
        %v1610 = vshra.s32 %v1586, 1
        %v1611 = vshra.s32 %v1595, 1
        %v1612 = vshra.s32 %v1596, 1
        %v1613 = vshra.s32 %v1597, 1
        %v1614 = vshra.s32 %v1598, 1
        %v1615 = vshra.s32 %v1599, 1
        %v1616 = vshra.s32 %v1600, 1
        %v1617 = vshra.s32 %v1601, 1
        %v1618 = vshra.s32 %v1602, 1
        %v1619 = vadd.s32 %v1603, %v1611
        %v1620 = vadd.s32 %v1604, %v1612
        %v1621 = vadd.s32 %v1605, %v1613
        %v1622 = vadd.s32 %v1606, %v1614
        %v1623 = vadd.s32 %v1607, %v1615
        %v1624 = vadd.s32 %v1608, %v1616
        %v1625 = vadd.s32 %v1609, %v1617
        %v1626 = vadd.s32 %v1610, %v1618
        %v1627 = vor.u32 %v1579, %v1595
        %v1628 = vor.u32 %v1580, %v1596
        %v1629 = vor.u32 %v1581, %v1597
        %v1630 = vor.u32 %v1582, %v1598
        %v1631 = vor.u32 %v1583, %v1599
        %v1632 = vor.u32 %v1584, %v1600
        %v1633 = vor.u32 %v1585, %v1601
        %v1634 = vor.u32 %v1586, %v1602
        %v1635 = vand.u32 %v1627, 1
        %v1636 = vand.u32 %v1628, 1
        %v1637 = vand.u32 %v1629, 1
        %v1638 = vand.u32 %v1630, 1
        %v1639 = vand.u32 %v1631, 1
        %v1640 = vand.u32 %v1632, 1
        %v1641 = vand.u32 %v1633, 1
        %v1642 = vand.u32 %v1634, 1
        %v1643 = vadd.s32 %v1619, %v1635
        %v1644 = vadd.s32 %v1620, %v1636
        %v1645 = vadd.s32 %v1621, %v1637
        %v1646 = vadd.s32 %v1622, %v1638
        %v1647 = vadd.s32 %v1623, %v1639
        %v1648 = vadd.s32 %v1624, %v1640
        %v1649 = vadd.s32 %v1625, %v1641
        %v1650 = vadd.s32 %v1626, %v1642
        %vm1651 = vcmp.ge.s32.totalorder %v731, %v1643
        %vm1652 = vcmp.ge.s32.totalorder %v732, %v1643
        %vm1653 = vcmp.ge.s32.totalorder %v733, %v1644
        %vm1654 = vcmp.ge.s32.totalorder %v734, %v1644
        %vm1655 = vcmp.ge.s32.totalorder %v735, %v1645
        %vm1656 = vcmp.ge.s32.totalorder %v736, %v1645
        %vm1657 = vcmp.ge.s32.totalorder %v737, %v1646
        %vm1658 = vcmp.ge.s32.totalorder %v738, %v1646
        %vm1659 = vcmp.ge.s32.totalorder %v739, %v1647
        %vm1660 = vcmp.ge.s32.totalorder %v740, %v1647
        %vm1661 = vcmp.ge.s32.totalorder %v741, %v1648
        %vm1662 = vcmp.ge.s32.totalorder %v742, %v1648
        %vm1663 = vcmp.ge.s32.totalorder %v743, %v1649
        %vm1664 = vcmp.ge.s32.totalorder %v744, %v1649
        %vm1665 = vcmp.ge.s32.totalorder %v745, %v1650
        %vm1666 = vcmp.ge.s32.totalorder %v746, %v1650
        %v1667 = vsel %vm1651, 1, 0
        %v1668 = vsel %vm1652, 1, 0
        %v1669 = vsel %vm1653, 1, 0
        %v1670 = vsel %vm1654, 1, 0
        %v1671 = vsel %vm1655, 1, 0
        %v1672 = vsel %vm1656, 1, 0
        %v1673 = vsel %vm1657, 1, 0
        %v1674 = vsel %vm1658, 1, 0
        %v1675 = vsel %vm1659, 1, 0
        %v1676 = vsel %vm1660, 1, 0
        %v1677 = vsel %vm1661, 1, 0
        %v1678 = vsel %vm1662, 1, 0
        %v1679 = vsel %vm1663, 1, 0
        %v1680 = vsel %vm1664, 1, 0
        %v1681 = vsel %vm1665, 1, 0
        %v1682 = vsel %vm1666, 1, 0
        %v1683 = vcvt.s32.f32 %v1667
        %v1684 = vcvt.s32.f32 %v1668
        %v1685 = vcvt.s32.f32 %v1669
        %v1686 = vcvt.s32.f32 %v1670
        %v1687 = vcvt.s32.f32 %v1671
        %v1688 = vcvt.s32.f32 %v1672
        %v1689 = vcvt.s32.f32 %v1673
        %v1690 = vcvt.s32.f32 %v1674
        %v1691 = vcvt.s32.f32 %v1675
        %v1692 = vcvt.s32.f32 %v1676
        %v1693 = vcvt.s32.f32 %v1677
        %v1694 = vcvt.s32.f32 %v1678
        %v1695 = vcvt.s32.f32 %v1679
        %v1696 = vcvt.s32.f32 %v1680
        %v1697 = vcvt.s32.f32 %v1681
        %v1698 = vcvt.s32.f32 %v1682
        %v1699 = vadd.f32 %v1683, %v1684
        %1700 = vadd.xlane.f32.xlu0 %v1699
        %v1701 = vpop.xlane.xlu0 %1700
        %v1702 = vadd.f32 %v1685, %v1686
        %1703 = vadd.xlane.f32.xlu0 %v1702
        %v1704 = vpop.xlane.xlu0 %1703
        %v1705 = vadd.f32 %v1687, %v1688
        %1706 = vadd.xlane.f32.xlu0 %v1705
        %v1707 = vpop.xlane.xlu0 %1706
        %v1708 = vadd.f32 %v1689, %v1690
        %1709 = vadd.xlane.f32.xlu0 %v1708
        %v1710 = vpop.xlane.xlu0 %1709
        %v1711 = vadd.f32 %v1691, %v1692
        %1712 = vadd.xlane.f32.xlu0 %v1711
        %v1713 = vpop.xlane.xlu0 %1712
        %v1714 = vadd.f32 %v1693, %v1694
        %1715 = vadd.xlane.f32.xlu0 %v1714
        %v1716 = vpop.xlane.xlu0 %1715
        %v1717 = vadd.f32 %v1695, %v1696
        %1718 = vadd.xlane.f32.xlu0 %v1717
        %v1719 = vpop.xlane.xlu0 %1718
        %v1720 = vadd.f32 %v1697, %v1698
        %1721 = vadd.xlane.f32.xlu0 %v1720
        %v1722 = vpop.xlane.xlu0 %1721
        %vm1723 = vcmp.ge.f32.partialorder %v1701, 40.0
        %vm1724 = vcmp.ge.f32.partialorder %v1704, 40.0
        %vm1725 = vcmp.ge.f32.partialorder %v1707, 40.0
        %vm1726 = vcmp.ge.f32.partialorder %v1710, 40.0
        %vm1727 = vcmp.ge.f32.partialorder %v1713, 40.0
        %vm1728 = vcmp.ge.f32.partialorder %v1716, 40.0
        %vm1729 = vcmp.ge.f32.partialorder %v1719, 40.0
        %vm1730 = vcmp.ge.f32.partialorder %v1722, 40.0
        %v1731 = vsel %vm1723, %v1643, %v1579
        %v1732 = vsel %vm1724, %v1644, %v1580
        %v1733 = vsel %vm1725, %v1645, %v1581
        %v1734 = vsel %vm1726, %v1646, %v1582
        %v1735 = vsel %vm1727, %v1647, %v1583
        %v1736 = vsel %vm1728, %v1648, %v1584
        %v1737 = vsel %vm1729, %v1649, %v1585
        %v1738 = vsel %vm1730, %v1650, %v1586
        %v1739 = vsub.s32 %v1643, 1
        %v1740 = vsub.s32 %v1644, 1
        %v1741 = vsub.s32 %v1645, 1
        %v1742 = vsub.s32 %v1646, 1
        %v1743 = vsub.s32 %v1647, 1
        %v1744 = vsub.s32 %v1648, 1
        %v1745 = vsub.s32 %v1649, 1
        %v1746 = vsub.s32 %v1650, 1
        %v1747 = vsel %vm1723, %v1595, %v1739
        %v1748 = vsel %vm1724, %v1596, %v1740
        %v1749 = vsel %vm1725, %v1597, %v1741
        %v1750 = vsel %vm1726, %v1598, %v1742
        %v1751 = vsel %vm1727, %v1599, %v1743
        %v1752 = vsel %vm1728, %v1600, %v1744
        %v1753 = vsel %vm1729, %v1601, %v1745
        %v1754 = vsel %vm1730, %v1602, %v1746
        %v1755 = vshra.s32 %v1731, 1
        %v1756 = vshra.s32 %v1732, 1
        %v1757 = vshra.s32 %v1733, 1
        %v1758 = vshra.s32 %v1734, 1
        %v1759 = vshra.s32 %v1735, 1
        %v1760 = vshra.s32 %v1736, 1
        %v1761 = vshra.s32 %v1737, 1
        %v1762 = vshra.s32 %v1738, 1
        %v1763 = vshra.s32 %v1747, 1
        %v1764 = vshra.s32 %v1748, 1
        %v1765 = vshra.s32 %v1749, 1
        %v1766 = vshra.s32 %v1750, 1
        %v1767 = vshra.s32 %v1751, 1
        %v1768 = vshra.s32 %v1752, 1
        %v1769 = vshra.s32 %v1753, 1
        %v1770 = vshra.s32 %v1754, 1
        %v1771 = vadd.s32 %v1755, %v1763
        %v1772 = vadd.s32 %v1756, %v1764
        %v1773 = vadd.s32 %v1757, %v1765
        %v1774 = vadd.s32 %v1758, %v1766
        %v1775 = vadd.s32 %v1759, %v1767
        %v1776 = vadd.s32 %v1760, %v1768
        %v1777 = vadd.s32 %v1761, %v1769
        %v1778 = vadd.s32 %v1762, %v1770
        %v1779 = vor.u32 %v1731, %v1747
        %v1780 = vor.u32 %v1732, %v1748
        %v1781 = vor.u32 %v1733, %v1749
        %v1782 = vor.u32 %v1734, %v1750
        %v1783 = vor.u32 %v1735, %v1751
        %v1784 = vor.u32 %v1736, %v1752
        %v1785 = vor.u32 %v1737, %v1753
        %v1786 = vor.u32 %v1738, %v1754
        %v1787 = vand.u32 %v1779, 1
        %v1788 = vand.u32 %v1780, 1
        %v1789 = vand.u32 %v1781, 1
        %v1790 = vand.u32 %v1782, 1
        %v1791 = vand.u32 %v1783, 1
        %v1792 = vand.u32 %v1784, 1
        %v1793 = vand.u32 %v1785, 1
        %v1794 = vand.u32 %v1786, 1
        %v1795 = vadd.s32 %v1771, %v1787
        %v1796 = vadd.s32 %v1772, %v1788
        %v1797 = vadd.s32 %v1773, %v1789
        %v1798 = vadd.s32 %v1774, %v1790
        %v1799 = vadd.s32 %v1775, %v1791
        %v1800 = vadd.s32 %v1776, %v1792
        %v1801 = vadd.s32 %v1777, %v1793
        %v1802 = vadd.s32 %v1778, %v1794
        %vm1803 = vcmp.ge.s32.totalorder %v731, %v1795
        %vm1804 = vcmp.ge.s32.totalorder %v732, %v1795
        %vm1805 = vcmp.ge.s32.totalorder %v733, %v1796
        %vm1806 = vcmp.ge.s32.totalorder %v734, %v1796
        %vm1807 = vcmp.ge.s32.totalorder %v735, %v1797
        %vm1808 = vcmp.ge.s32.totalorder %v736, %v1797
        %vm1809 = vcmp.ge.s32.totalorder %v737, %v1798
        %vm1810 = vcmp.ge.s32.totalorder %v738, %v1798
        %vm1811 = vcmp.ge.s32.totalorder %v739, %v1799
        %vm1812 = vcmp.ge.s32.totalorder %v740, %v1799
        %vm1813 = vcmp.ge.s32.totalorder %v741, %v1800
        %vm1814 = vcmp.ge.s32.totalorder %v742, %v1800
        %vm1815 = vcmp.ge.s32.totalorder %v743, %v1801
        %vm1816 = vcmp.ge.s32.totalorder %v744, %v1801
        %vm1817 = vcmp.ge.s32.totalorder %v745, %v1802
        %vm1818 = vcmp.ge.s32.totalorder %v746, %v1802
        %v1819 = vsel %vm1803, 1, 0
        %v1820 = vsel %vm1804, 1, 0
        %v1821 = vsel %vm1805, 1, 0
        %v1822 = vsel %vm1806, 1, 0
        %v1823 = vsel %vm1807, 1, 0
        %v1824 = vsel %vm1808, 1, 0
        %v1825 = vsel %vm1809, 1, 0
        %v1826 = vsel %vm1810, 1, 0
        %v1827 = vsel %vm1811, 1, 0
        %v1828 = vsel %vm1812, 1, 0
        %v1829 = vsel %vm1813, 1, 0
        %v1830 = vsel %vm1814, 1, 0
        %v1831 = vsel %vm1815, 1, 0
        %v1832 = vsel %vm1816, 1, 0
        %v1833 = vsel %vm1817, 1, 0
        %v1834 = vsel %vm1818, 1, 0
        %v1835 = vcvt.s32.f32 %v1819
        %v1836 = vcvt.s32.f32 %v1820
        %v1837 = vcvt.s32.f32 %v1821
        %v1838 = vcvt.s32.f32 %v1822
        %v1839 = vcvt.s32.f32 %v1823
        %v1840 = vcvt.s32.f32 %v1824
        %v1841 = vcvt.s32.f32 %v1825
        %v1842 = vcvt.s32.f32 %v1826
        %v1843 = vcvt.s32.f32 %v1827
        %v1844 = vcvt.s32.f32 %v1828
        %v1845 = vcvt.s32.f32 %v1829
        %v1846 = vcvt.s32.f32 %v1830
        %v1847 = vcvt.s32.f32 %v1831
        %v1848 = vcvt.s32.f32 %v1832
        %v1849 = vcvt.s32.f32 %v1833
        %v1850 = vcvt.s32.f32 %v1834
        %v1851 = vadd.f32 %v1835, %v1836
        %1852 = vadd.xlane.f32.xlu0 %v1851
        %v1853 = vpop.xlane.xlu0 %1852
        %v1854 = vadd.f32 %v1837, %v1838
        %1855 = vadd.xlane.f32.xlu0 %v1854
        %v1856 = vpop.xlane.xlu0 %1855
        %v1857 = vadd.f32 %v1839, %v1840
        %1858 = vadd.xlane.f32.xlu0 %v1857
        %v1859 = vpop.xlane.xlu0 %1858
        %v1860 = vadd.f32 %v1841, %v1842
        %1861 = vadd.xlane.f32.xlu0 %v1860
        %v1862 = vpop.xlane.xlu0 %1861
        %v1863 = vadd.f32 %v1843, %v1844
        %1864 = vadd.xlane.f32.xlu0 %v1863
        %v1865 = vpop.xlane.xlu0 %1864
        %v1866 = vadd.f32 %v1845, %v1846
        %1867 = vadd.xlane.f32.xlu0 %v1866
        %v1868 = vpop.xlane.xlu0 %1867
        %v1869 = vadd.f32 %v1847, %v1848
        %1870 = vadd.xlane.f32.xlu0 %v1869
        %v1871 = vpop.xlane.xlu0 %1870
        %v1872 = vadd.f32 %v1849, %v1850
        %1873 = vadd.xlane.f32.xlu0 %v1872
        %v1874 = vpop.xlane.xlu0 %1873
        %vm1875 = vcmp.ge.f32.partialorder %v1853, 40.0
        %vm1876 = vcmp.ge.f32.partialorder %v1856, 40.0
        %vm1877 = vcmp.ge.f32.partialorder %v1859, 40.0
        %vm1878 = vcmp.ge.f32.partialorder %v1862, 40.0
        %vm1879 = vcmp.ge.f32.partialorder %v1865, 40.0
        %vm1880 = vcmp.ge.f32.partialorder %v1868, 40.0
        %vm1881 = vcmp.ge.f32.partialorder %v1871, 40.0
        %vm1882 = vcmp.ge.f32.partialorder %v1874, 40.0
        %v1883 = vsel %vm1875, %v1795, %v1731
        %v1884 = vsel %vm1876, %v1796, %v1732
        %v1885 = vsel %vm1877, %v1797, %v1733
        %v1886 = vsel %vm1878, %v1798, %v1734
        %v1887 = vsel %vm1879, %v1799, %v1735
        %v1888 = vsel %vm1880, %v1800, %v1736
        %v1889 = vsel %vm1881, %v1801, %v1737
        %v1890 = vsel %vm1882, %v1802, %v1738
        %v1891 = vsub.s32 %v1795, 1
        %v1892 = vsub.s32 %v1796, 1
        %v1893 = vsub.s32 %v1797, 1
        %v1894 = vsub.s32 %v1798, 1
        %v1895 = vsub.s32 %v1799, 1
        %v1896 = vsub.s32 %v1800, 1
        %v1897 = vsub.s32 %v1801, 1
        %v1898 = vsub.s32 %v1802, 1
        %v1899 = vsel %vm1875, %v1747, %v1891
        %v1900 = vsel %vm1876, %v1748, %v1892
        %v1901 = vsel %vm1877, %v1749, %v1893
        %v1902 = vsel %vm1878, %v1750, %v1894
        %v1903 = vsel %vm1879, %v1751, %v1895
        %v1904 = vsel %vm1880, %v1752, %v1896
        %v1905 = vsel %vm1881, %v1753, %v1897
        %v1906 = vsel %vm1882, %v1754, %v1898
        %v1907 = vshra.s32 %v1883, 1
        %v1908 = vshra.s32 %v1884, 1
        %v1909 = vshra.s32 %v1885, 1
        %v1910 = vshra.s32 %v1886, 1
        %v1911 = vshra.s32 %v1887, 1
        %v1912 = vshra.s32 %v1888, 1
        %v1913 = vshra.s32 %v1889, 1
        %v1914 = vshra.s32 %v1890, 1
        %v1915 = vshra.s32 %v1899, 1
        %v1916 = vshra.s32 %v1900, 1
        %v1917 = vshra.s32 %v1901, 1
        %v1918 = vshra.s32 %v1902, 1
        %v1919 = vshra.s32 %v1903, 1
        %v1920 = vshra.s32 %v1904, 1
        %v1921 = vshra.s32 %v1905, 1
        %v1922 = vshra.s32 %v1906, 1
        %v1923 = vadd.s32 %v1907, %v1915
        %v1924 = vadd.s32 %v1908, %v1916
        %v1925 = vadd.s32 %v1909, %v1917
        %v1926 = vadd.s32 %v1910, %v1918
        %v1927 = vadd.s32 %v1911, %v1919
        %v1928 = vadd.s32 %v1912, %v1920
        %v1929 = vadd.s32 %v1913, %v1921
        %v1930 = vadd.s32 %v1914, %v1922
        %v1931 = vor.u32 %v1883, %v1899
        %v1932 = vor.u32 %v1884, %v1900
        %v1933 = vor.u32 %v1885, %v1901
        %v1934 = vor.u32 %v1886, %v1902
        %v1935 = vor.u32 %v1887, %v1903
        %v1936 = vor.u32 %v1888, %v1904
        %v1937 = vor.u32 %v1889, %v1905
        %v1938 = vor.u32 %v1890, %v1906
        %v1939 = vand.u32 %v1931, 1
        %v1940 = vand.u32 %v1932, 1
        %v1941 = vand.u32 %v1933, 1
        %v1942 = vand.u32 %v1934, 1
        %v1943 = vand.u32 %v1935, 1
        %v1944 = vand.u32 %v1936, 1
        %v1945 = vand.u32 %v1937, 1
        %v1946 = vand.u32 %v1938, 1
        %v1947 = vadd.s32 %v1923, %v1939
        %v1948 = vadd.s32 %v1924, %v1940
        %v1949 = vadd.s32 %v1925, %v1941
        %v1950 = vadd.s32 %v1926, %v1942
        %v1951 = vadd.s32 %v1927, %v1943
        %v1952 = vadd.s32 %v1928, %v1944
        %v1953 = vadd.s32 %v1929, %v1945
        %v1954 = vadd.s32 %v1930, %v1946
        %vm1955 = vcmp.ge.s32.totalorder %v731, %v1947
        %vm1956 = vcmp.ge.s32.totalorder %v732, %v1947
        %vm1957 = vcmp.ge.s32.totalorder %v733, %v1948
        %vm1958 = vcmp.ge.s32.totalorder %v734, %v1948
        %vm1959 = vcmp.ge.s32.totalorder %v735, %v1949
        %vm1960 = vcmp.ge.s32.totalorder %v736, %v1949
        %vm1961 = vcmp.ge.s32.totalorder %v737, %v1950
        %vm1962 = vcmp.ge.s32.totalorder %v738, %v1950
        %vm1963 = vcmp.ge.s32.totalorder %v739, %v1951
        %vm1964 = vcmp.ge.s32.totalorder %v740, %v1951
        %vm1965 = vcmp.ge.s32.totalorder %v741, %v1952
        %vm1966 = vcmp.ge.s32.totalorder %v742, %v1952
        %vm1967 = vcmp.ge.s32.totalorder %v743, %v1953
        %vm1968 = vcmp.ge.s32.totalorder %v744, %v1953
        %vm1969 = vcmp.ge.s32.totalorder %v745, %v1954
        %vm1970 = vcmp.ge.s32.totalorder %v746, %v1954
        %v1971 = vsel %vm1955, 1, 0
        %v1972 = vsel %vm1956, 1, 0
        %v1973 = vsel %vm1957, 1, 0
        %v1974 = vsel %vm1958, 1, 0
        %v1975 = vsel %vm1959, 1, 0
        %v1976 = vsel %vm1960, 1, 0
        %v1977 = vsel %vm1961, 1, 0
        %v1978 = vsel %vm1962, 1, 0
        %v1979 = vsel %vm1963, 1, 0
        %v1980 = vsel %vm1964, 1, 0
        %v1981 = vsel %vm1965, 1, 0
        %v1982 = vsel %vm1966, 1, 0
        %v1983 = vsel %vm1967, 1, 0
        %v1984 = vsel %vm1968, 1, 0
        %v1985 = vsel %vm1969, 1, 0
        %v1986 = vsel %vm1970, 1, 0
        %v1987 = vcvt.s32.f32 %v1971
        %v1988 = vcvt.s32.f32 %v1972
        %v1989 = vcvt.s32.f32 %v1973
        %v1990 = vcvt.s32.f32 %v1974
        %v1991 = vcvt.s32.f32 %v1975
        %v1992 = vcvt.s32.f32 %v1976
        %v1993 = vcvt.s32.f32 %v1977
        %v1994 = vcvt.s32.f32 %v1978
        %v1995 = vcvt.s32.f32 %v1979
        %v1996 = vcvt.s32.f32 %v1980
        %v1997 = vcvt.s32.f32 %v1981
        %v1998 = vcvt.s32.f32 %v1982
        %v1999 = vcvt.s32.f32 %v1983
        %v2000 = vcvt.s32.f32 %v1984
        %v2001 = vcvt.s32.f32 %v1985
        %v2002 = vcvt.s32.f32 %v1986
        %v2003 = vadd.f32 %v1987, %v1988
        %2004 = vadd.xlane.f32.xlu0 %v2003
        %v2005 = vpop.xlane.xlu0 %2004
        %v2006 = vadd.f32 %v1989, %v1990
        %2007 = vadd.xlane.f32.xlu0 %v2006
        %v2008 = vpop.xlane.xlu0 %2007
        %v2009 = vadd.f32 %v1991, %v1992
        %2010 = vadd.xlane.f32.xlu0 %v2009
        %v2011 = vpop.xlane.xlu0 %2010
        %v2012 = vadd.f32 %v1993, %v1994
        %2013 = vadd.xlane.f32.xlu0 %v2012
        %v2014 = vpop.xlane.xlu0 %2013
        %v2015 = vadd.f32 %v1995, %v1996
        %2016 = vadd.xlane.f32.xlu0 %v2015
        %v2017 = vpop.xlane.xlu0 %2016
        %v2018 = vadd.f32 %v1997, %v1998
        %2019 = vadd.xlane.f32.xlu0 %v2018
        %v2020 = vpop.xlane.xlu0 %2019
        %v2021 = vadd.f32 %v1999, %v2000
        %2022 = vadd.xlane.f32.xlu0 %v2021
        %v2023 = vpop.xlane.xlu0 %2022
        %v2024 = vadd.f32 %v2001, %v2002
        %2025 = vadd.xlane.f32.xlu0 %v2024
        %v2026 = vpop.xlane.xlu0 %2025
        %vm2027 = vcmp.ge.f32.partialorder %v2005, 40.0
        %vm2028 = vcmp.ge.f32.partialorder %v2008, 40.0
        %vm2029 = vcmp.ge.f32.partialorder %v2011, 40.0
        %vm2030 = vcmp.ge.f32.partialorder %v2014, 40.0
        %vm2031 = vcmp.ge.f32.partialorder %v2017, 40.0
        %vm2032 = vcmp.ge.f32.partialorder %v2020, 40.0
        %vm2033 = vcmp.ge.f32.partialorder %v2023, 40.0
        %vm2034 = vcmp.ge.f32.partialorder %v2026, 40.0
        %v2035 = vsel %vm2027, %v1947, %v1883
        %v2036 = vsel %vm2028, %v1948, %v1884
        %v2037 = vsel %vm2029, %v1949, %v1885
        %v2038 = vsel %vm2030, %v1950, %v1886
        %v2039 = vsel %vm2031, %v1951, %v1887
        %v2040 = vsel %vm2032, %v1952, %v1888
        %v2041 = vsel %vm2033, %v1953, %v1889
        %v2042 = vsel %vm2034, %v1954, %v1890
        %v2043 = vsub.s32 %v1947, 1
        %v2044 = vsub.s32 %v1948, 1
        %v2045 = vsub.s32 %v1949, 1
        %v2046 = vsub.s32 %v1950, 1
        %v2047 = vsub.s32 %v1951, 1
        %v2048 = vsub.s32 %v1952, 1
        %v2049 = vsub.s32 %v1953, 1
        %v2050 = vsub.s32 %v1954, 1
        %v2051 = vsel %vm2027, %v1899, %v2043
        %v2052 = vsel %vm2028, %v1900, %v2044
        %v2053 = vsel %vm2029, %v1901, %v2045
        %v2054 = vsel %vm2030, %v1902, %v2046
        %v2055 = vsel %vm2031, %v1903, %v2047
        %v2056 = vsel %vm2032, %v1904, %v2048
        %v2057 = vsel %vm2033, %v1905, %v2049
        %v2058 = vsel %vm2034, %v1906, %v2050
        %v2059 = vshra.s32 %v2035, 1
        %v2060 = vshra.s32 %v2036, 1
        %v2061 = vshra.s32 %v2037, 1
        %v2062 = vshra.s32 %v2038, 1
        %v2063 = vshra.s32 %v2039, 1
        %v2064 = vshra.s32 %v2040, 1
        %v2065 = vshra.s32 %v2041, 1
        %v2066 = vshra.s32 %v2042, 1
        %v2067 = vshra.s32 %v2051, 1
        %v2068 = vshra.s32 %v2052, 1
        %v2069 = vshra.s32 %v2053, 1
        %v2070 = vshra.s32 %v2054, 1
        %v2071 = vshra.s32 %v2055, 1
        %v2072 = vshra.s32 %v2056, 1
        %v2073 = vshra.s32 %v2057, 1
        %v2074 = vshra.s32 %v2058, 1
        %v2075 = vadd.s32 %v2059, %v2067
        %v2076 = vadd.s32 %v2060, %v2068
        %v2077 = vadd.s32 %v2061, %v2069
        %v2078 = vadd.s32 %v2062, %v2070
        %v2079 = vadd.s32 %v2063, %v2071
        %v2080 = vadd.s32 %v2064, %v2072
        %v2081 = vadd.s32 %v2065, %v2073
        %v2082 = vadd.s32 %v2066, %v2074
        %v2083 = vor.u32 %v2035, %v2051
        %v2084 = vor.u32 %v2036, %v2052
        %v2085 = vor.u32 %v2037, %v2053
        %v2086 = vor.u32 %v2038, %v2054
        %v2087 = vor.u32 %v2039, %v2055
        %v2088 = vor.u32 %v2040, %v2056
        %v2089 = vor.u32 %v2041, %v2057
        %v2090 = vor.u32 %v2042, %v2058
        %v2091 = vand.u32 %v2083, 1
        %v2092 = vand.u32 %v2084, 1
        %v2093 = vand.u32 %v2085, 1
        %v2094 = vand.u32 %v2086, 1
        %v2095 = vand.u32 %v2087, 1
        %v2096 = vand.u32 %v2088, 1
        %v2097 = vand.u32 %v2089, 1
        %v2098 = vand.u32 %v2090, 1
        %v2099 = vadd.s32 %v2075, %v2091
        %v2100 = vadd.s32 %v2076, %v2092
        %v2101 = vadd.s32 %v2077, %v2093
        %v2102 = vadd.s32 %v2078, %v2094
        %v2103 = vadd.s32 %v2079, %v2095
        %v2104 = vadd.s32 %v2080, %v2096
        %v2105 = vadd.s32 %v2081, %v2097
        %v2106 = vadd.s32 %v2082, %v2098
        %vm2107 = vcmp.ge.s32.totalorder %v731, %v2099
        %vm2108 = vcmp.ge.s32.totalorder %v732, %v2099
        %vm2109 = vcmp.ge.s32.totalorder %v733, %v2100
        %vm2110 = vcmp.ge.s32.totalorder %v734, %v2100
        %vm2111 = vcmp.ge.s32.totalorder %v735, %v2101
        %vm2112 = vcmp.ge.s32.totalorder %v736, %v2101
        %vm2113 = vcmp.ge.s32.totalorder %v737, %v2102
        %vm2114 = vcmp.ge.s32.totalorder %v738, %v2102
        %vm2115 = vcmp.ge.s32.totalorder %v739, %v2103
        %vm2116 = vcmp.ge.s32.totalorder %v740, %v2103
        %vm2117 = vcmp.ge.s32.totalorder %v741, %v2104
        %vm2118 = vcmp.ge.s32.totalorder %v742, %v2104
        %vm2119 = vcmp.ge.s32.totalorder %v743, %v2105
        %vm2120 = vcmp.ge.s32.totalorder %v744, %v2105
        %vm2121 = vcmp.ge.s32.totalorder %v745, %v2106
        %vm2122 = vcmp.ge.s32.totalorder %v746, %v2106
        %v2123 = vsel %vm2107, 1, 0
        %v2124 = vsel %vm2108, 1, 0
        %v2125 = vsel %vm2109, 1, 0
        %v2126 = vsel %vm2110, 1, 0
        %v2127 = vsel %vm2111, 1, 0
        %v2128 = vsel %vm2112, 1, 0
        %v2129 = vsel %vm2113, 1, 0
        %v2130 = vsel %vm2114, 1, 0
        %v2131 = vsel %vm2115, 1, 0
        %v2132 = vsel %vm2116, 1, 0
        %v2133 = vsel %vm2117, 1, 0
        %v2134 = vsel %vm2118, 1, 0
        %v2135 = vsel %vm2119, 1, 0
        %v2136 = vsel %vm2120, 1, 0
        %v2137 = vsel %vm2121, 1, 0
        %v2138 = vsel %vm2122, 1, 0
        %v2139 = vcvt.s32.f32 %v2123
        %v2140 = vcvt.s32.f32 %v2124
        %v2141 = vcvt.s32.f32 %v2125
        %v2142 = vcvt.s32.f32 %v2126
        %v2143 = vcvt.s32.f32 %v2127
        %v2144 = vcvt.s32.f32 %v2128
        %v2145 = vcvt.s32.f32 %v2129
        %v2146 = vcvt.s32.f32 %v2130
        %v2147 = vcvt.s32.f32 %v2131
        %v2148 = vcvt.s32.f32 %v2132
        %v2149 = vcvt.s32.f32 %v2133
        %v2150 = vcvt.s32.f32 %v2134
        %v2151 = vcvt.s32.f32 %v2135
        %v2152 = vcvt.s32.f32 %v2136
        %v2153 = vcvt.s32.f32 %v2137
        %v2154 = vcvt.s32.f32 %v2138
        %v2155 = vadd.f32 %v2139, %v2140
        %2156 = vadd.xlane.f32.xlu0 %v2155
        %v2157 = vpop.xlane.xlu0 %2156
        %v2158 = vadd.f32 %v2141, %v2142
        %2159 = vadd.xlane.f32.xlu0 %v2158
        %v2160 = vpop.xlane.xlu0 %2159
        %v2161 = vadd.f32 %v2143, %v2144
        %2162 = vadd.xlane.f32.xlu0 %v2161
        %v2163 = vpop.xlane.xlu0 %2162
        %v2164 = vadd.f32 %v2145, %v2146
        %2165 = vadd.xlane.f32.xlu0 %v2164
        %v2166 = vpop.xlane.xlu0 %2165
        %v2167 = vadd.f32 %v2147, %v2148
        %2168 = vadd.xlane.f32.xlu0 %v2167
        %v2169 = vpop.xlane.xlu0 %2168
        %v2170 = vadd.f32 %v2149, %v2150
        %2171 = vadd.xlane.f32.xlu0 %v2170
        %v2172 = vpop.xlane.xlu0 %2171
        %v2173 = vadd.f32 %v2151, %v2152
        %2174 = vadd.xlane.f32.xlu0 %v2173
        %v2175 = vpop.xlane.xlu0 %2174
        %v2176 = vadd.f32 %v2153, %v2154
        %2177 = vadd.xlane.f32.xlu0 %v2176
        %v2178 = vpop.xlane.xlu0 %2177
        %vm2179 = vcmp.ge.f32.partialorder %v2157, 40.0
        %vm2180 = vcmp.ge.f32.partialorder %v2160, 40.0
        %vm2181 = vcmp.ge.f32.partialorder %v2163, 40.0
        %vm2182 = vcmp.ge.f32.partialorder %v2166, 40.0
        %vm2183 = vcmp.ge.f32.partialorder %v2169, 40.0
        %vm2184 = vcmp.ge.f32.partialorder %v2172, 40.0
        %vm2185 = vcmp.ge.f32.partialorder %v2175, 40.0
        %vm2186 = vcmp.ge.f32.partialorder %v2178, 40.0
        %v2187 = vsel %vm2179, %v2099, %v2035
        %v2188 = vsel %vm2180, %v2100, %v2036
        %v2189 = vsel %vm2181, %v2101, %v2037
        %v2190 = vsel %vm2182, %v2102, %v2038
        %v2191 = vsel %vm2183, %v2103, %v2039
        %v2192 = vsel %vm2184, %v2104, %v2040
        %v2193 = vsel %vm2185, %v2105, %v2041
        %v2194 = vsel %vm2186, %v2106, %v2042
        %v2195 = vsub.s32 %v2099, 1
        %v2196 = vsub.s32 %v2100, 1
        %v2197 = vsub.s32 %v2101, 1
        %v2198 = vsub.s32 %v2102, 1
        %v2199 = vsub.s32 %v2103, 1
        %v2200 = vsub.s32 %v2104, 1
        %v2201 = vsub.s32 %v2105, 1
        %v2202 = vsub.s32 %v2106, 1
        %v2203 = vsel %vm2179, %v2051, %v2195
        %v2204 = vsel %vm2180, %v2052, %v2196
        %v2205 = vsel %vm2181, %v2053, %v2197
        %v2206 = vsel %vm2182, %v2054, %v2198
        %v2207 = vsel %vm2183, %v2055, %v2199
        %v2208 = vsel %vm2184, %v2056, %v2200
        %v2209 = vsel %vm2185, %v2057, %v2201
        %v2210 = vsel %vm2186, %v2058, %v2202
        %v2211 = vshra.s32 %v2187, 1
        %v2212 = vshra.s32 %v2188, 1
        %v2213 = vshra.s32 %v2189, 1
        %v2214 = vshra.s32 %v2190, 1
        %v2215 = vshra.s32 %v2191, 1
        %v2216 = vshra.s32 %v2192, 1
        %v2217 = vshra.s32 %v2193, 1
        %v2218 = vshra.s32 %v2194, 1
        %v2219 = vshra.s32 %v2203, 1
        %v2220 = vshra.s32 %v2204, 1
        %v2221 = vshra.s32 %v2205, 1
        %v2222 = vshra.s32 %v2206, 1
        %v2223 = vshra.s32 %v2207, 1
        %v2224 = vshra.s32 %v2208, 1
        %v2225 = vshra.s32 %v2209, 1
        %v2226 = vshra.s32 %v2210, 1
        %v2227 = vadd.s32 %v2211, %v2219
        %v2228 = vadd.s32 %v2212, %v2220
        %v2229 = vadd.s32 %v2213, %v2221
        %v2230 = vadd.s32 %v2214, %v2222
        %v2231 = vadd.s32 %v2215, %v2223
        %v2232 = vadd.s32 %v2216, %v2224
        %v2233 = vadd.s32 %v2217, %v2225
        %v2234 = vadd.s32 %v2218, %v2226
        %v2235 = vor.u32 %v2187, %v2203
        %v2236 = vor.u32 %v2188, %v2204
        %v2237 = vor.u32 %v2189, %v2205
        %v2238 = vor.u32 %v2190, %v2206
        %v2239 = vor.u32 %v2191, %v2207
        %v2240 = vor.u32 %v2192, %v2208
        %v2241 = vor.u32 %v2193, %v2209
        %v2242 = vor.u32 %v2194, %v2210
        %v2243 = vand.u32 %v2235, 1
        %v2244 = vand.u32 %v2236, 1
        %v2245 = vand.u32 %v2237, 1
        %v2246 = vand.u32 %v2238, 1
        %v2247 = vand.u32 %v2239, 1
        %v2248 = vand.u32 %v2240, 1
        %v2249 = vand.u32 %v2241, 1
        %v2250 = vand.u32 %v2242, 1
        %v2251 = vadd.s32 %v2227, %v2243
        %v2252 = vadd.s32 %v2228, %v2244
        %v2253 = vadd.s32 %v2229, %v2245
        %v2254 = vadd.s32 %v2230, %v2246
        %v2255 = vadd.s32 %v2231, %v2247
        %v2256 = vadd.s32 %v2232, %v2248
        %v2257 = vadd.s32 %v2233, %v2249
        %v2258 = vadd.s32 %v2234, %v2250
        %vm2259 = vcmp.ge.s32.totalorder %v731, %v2251
        %vm2260 = vcmp.ge.s32.totalorder %v732, %v2251
        %vm2261 = vcmp.ge.s32.totalorder %v733, %v2252
        %vm2262 = vcmp.ge.s32.totalorder %v734, %v2252
        %vm2263 = vcmp.ge.s32.totalorder %v735, %v2253
        %vm2264 = vcmp.ge.s32.totalorder %v736, %v2253
        %vm2265 = vcmp.ge.s32.totalorder %v737, %v2254
        %vm2266 = vcmp.ge.s32.totalorder %v738, %v2254
        %vm2267 = vcmp.ge.s32.totalorder %v739, %v2255
        %vm2268 = vcmp.ge.s32.totalorder %v740, %v2255
        %vm2269 = vcmp.ge.s32.totalorder %v741, %v2256
        %vm2270 = vcmp.ge.s32.totalorder %v742, %v2256
        %vm2271 = vcmp.ge.s32.totalorder %v743, %v2257
        %vm2272 = vcmp.ge.s32.totalorder %v744, %v2257
        %vm2273 = vcmp.ge.s32.totalorder %v745, %v2258
        %vm2274 = vcmp.ge.s32.totalorder %v746, %v2258
        %v2275 = vsel %vm2259, 1, 0
        %v2276 = vsel %vm2260, 1, 0
        %v2277 = vsel %vm2261, 1, 0
        %v2278 = vsel %vm2262, 1, 0
        %v2279 = vsel %vm2263, 1, 0
        %v2280 = vsel %vm2264, 1, 0
        %v2281 = vsel %vm2265, 1, 0
        %v2282 = vsel %vm2266, 1, 0
        %v2283 = vsel %vm2267, 1, 0
        %v2284 = vsel %vm2268, 1, 0
        %v2285 = vsel %vm2269, 1, 0
        %v2286 = vsel %vm2270, 1, 0
        %v2287 = vsel %vm2271, 1, 0
        %v2288 = vsel %vm2272, 1, 0
        %v2289 = vsel %vm2273, 1, 0
        %v2290 = vsel %vm2274, 1, 0
        %v2291 = vcvt.s32.f32 %v2275
        %v2292 = vcvt.s32.f32 %v2276
        %v2293 = vcvt.s32.f32 %v2277
        %v2294 = vcvt.s32.f32 %v2278
        %v2295 = vcvt.s32.f32 %v2279
        %v2296 = vcvt.s32.f32 %v2280
        %v2297 = vcvt.s32.f32 %v2281
        %v2298 = vcvt.s32.f32 %v2282
        %v2299 = vcvt.s32.f32 %v2283
        %v2300 = vcvt.s32.f32 %v2284
        %v2301 = vcvt.s32.f32 %v2285
        %v2302 = vcvt.s32.f32 %v2286
        %v2303 = vcvt.s32.f32 %v2287
        %v2304 = vcvt.s32.f32 %v2288
        %v2305 = vcvt.s32.f32 %v2289
        %v2306 = vcvt.s32.f32 %v2290
        %v2307 = vadd.f32 %v2291, %v2292
        %2308 = vadd.xlane.f32.xlu0 %v2307
        %v2309 = vpop.xlane.xlu0 %2308
        %v2310 = vadd.f32 %v2293, %v2294
        %2311 = vadd.xlane.f32.xlu0 %v2310
        %v2312 = vpop.xlane.xlu0 %2311
        %v2313 = vadd.f32 %v2295, %v2296
        %2314 = vadd.xlane.f32.xlu0 %v2313
        %v2315 = vpop.xlane.xlu0 %2314
        %v2316 = vadd.f32 %v2297, %v2298
        %2317 = vadd.xlane.f32.xlu0 %v2316
        %v2318 = vpop.xlane.xlu0 %2317
        %v2319 = vadd.f32 %v2299, %v2300
        %2320 = vadd.xlane.f32.xlu0 %v2319
        %v2321 = vpop.xlane.xlu0 %2320
        %v2322 = vadd.f32 %v2301, %v2302
        %2323 = vadd.xlane.f32.xlu0 %v2322
        %v2324 = vpop.xlane.xlu0 %2323
        %v2325 = vadd.f32 %v2303, %v2304
        %2326 = vadd.xlane.f32.xlu0 %v2325
        %v2327 = vpop.xlane.xlu0 %2326
        %v2328 = vadd.f32 %v2305, %v2306
        %2329 = vadd.xlane.f32.xlu0 %v2328
        %v2330 = vpop.xlane.xlu0 %2329
        %vm2331 = vcmp.ge.f32.partialorder %v2309, 40.0
        %vm2332 = vcmp.ge.f32.partialorder %v2312, 40.0
        %vm2333 = vcmp.ge.f32.partialorder %v2315, 40.0
        %vm2334 = vcmp.ge.f32.partialorder %v2318, 40.0
        %vm2335 = vcmp.ge.f32.partialorder %v2321, 40.0
        %vm2336 = vcmp.ge.f32.partialorder %v2324, 40.0
        %vm2337 = vcmp.ge.f32.partialorder %v2327, 40.0
        %vm2338 = vcmp.ge.f32.partialorder %v2330, 40.0
        %v2339 = vsel %vm2331, %v2251, %v2187
        %v2340 = vsel %vm2332, %v2252, %v2188
        %v2341 = vsel %vm2333, %v2253, %v2189
        %v2342 = vsel %vm2334, %v2254, %v2190
        %v2343 = vsel %vm2335, %v2255, %v2191
        %v2344 = vsel %vm2336, %v2256, %v2192
        %v2345 = vsel %vm2337, %v2257, %v2193
        %v2346 = vsel %vm2338, %v2258, %v2194
        %v2347 = vsub.s32 %v2251, 1
        %v2348 = vsub.s32 %v2252, 1
        %v2349 = vsub.s32 %v2253, 1
        %v2350 = vsub.s32 %v2254, 1
        %v2351 = vsub.s32 %v2255, 1
        %v2352 = vsub.s32 %v2256, 1
        %v2353 = vsub.s32 %v2257, 1
        %v2354 = vsub.s32 %v2258, 1
        %v2355 = vsel %vm2331, %v2203, %v2347
        %v2356 = vsel %vm2332, %v2204, %v2348
        %v2357 = vsel %vm2333, %v2205, %v2349
        %v2358 = vsel %vm2334, %v2206, %v2350
        %v2359 = vsel %vm2335, %v2207, %v2351
        %v2360 = vsel %vm2336, %v2208, %v2352
        %v2361 = vsel %vm2337, %v2209, %v2353
        %v2362 = vsel %vm2338, %v2210, %v2354
        %v2363 = vshra.s32 %v2339, 1
        %v2364 = vshra.s32 %v2340, 1
        %v2365 = vshra.s32 %v2341, 1
        %v2366 = vshra.s32 %v2342, 1
        %v2367 = vshra.s32 %v2343, 1
        %v2368 = vshra.s32 %v2344, 1
        %v2369 = vshra.s32 %v2345, 1
        %v2370 = vshra.s32 %v2346, 1
        %v2371 = vshra.s32 %v2355, 1
        %v2372 = vshra.s32 %v2356, 1
        %v2373 = vshra.s32 %v2357, 1
        %v2374 = vshra.s32 %v2358, 1
        %v2375 = vshra.s32 %v2359, 1
        %v2376 = vshra.s32 %v2360, 1
        %v2377 = vshra.s32 %v2361, 1
        %v2378 = vshra.s32 %v2362, 1
        %v2379 = vadd.s32 %v2363, %v2371
        %v2380 = vadd.s32 %v2364, %v2372
        %v2381 = vadd.s32 %v2365, %v2373
        %v2382 = vadd.s32 %v2366, %v2374
        %v2383 = vadd.s32 %v2367, %v2375
        %v2384 = vadd.s32 %v2368, %v2376
        %v2385 = vadd.s32 %v2369, %v2377
        %v2386 = vadd.s32 %v2370, %v2378
        %v2387 = vor.u32 %v2339, %v2355
        %v2388 = vor.u32 %v2340, %v2356
        %v2389 = vor.u32 %v2341, %v2357
        %v2390 = vor.u32 %v2342, %v2358
        %v2391 = vor.u32 %v2343, %v2359
        %v2392 = vor.u32 %v2344, %v2360
        %v2393 = vor.u32 %v2345, %v2361
        %v2394 = vor.u32 %v2346, %v2362
        %v2395 = vand.u32 %v2387, 1
        %v2396 = vand.u32 %v2388, 1
        %v2397 = vand.u32 %v2389, 1
        %v2398 = vand.u32 %v2390, 1
        %v2399 = vand.u32 %v2391, 1
        %v2400 = vand.u32 %v2392, 1
        %v2401 = vand.u32 %v2393, 1
        %v2402 = vand.u32 %v2394, 1
        %v2403 = vadd.s32 %v2379, %v2395
        %v2404 = vadd.s32 %v2380, %v2396
        %v2405 = vadd.s32 %v2381, %v2397
        %v2406 = vadd.s32 %v2382, %v2398
        %v2407 = vadd.s32 %v2383, %v2399
        %v2408 = vadd.s32 %v2384, %v2400
        %v2409 = vadd.s32 %v2385, %v2401
        %v2410 = vadd.s32 %v2386, %v2402
        %vm2411 = vcmp.ge.s32.totalorder %v731, %v2403
        %vm2412 = vcmp.ge.s32.totalorder %v732, %v2403
        %vm2413 = vcmp.ge.s32.totalorder %v733, %v2404
        %vm2414 = vcmp.ge.s32.totalorder %v734, %v2404
        %vm2415 = vcmp.ge.s32.totalorder %v735, %v2405
        %vm2416 = vcmp.ge.s32.totalorder %v736, %v2405
        %vm2417 = vcmp.ge.s32.totalorder %v737, %v2406
        %vm2418 = vcmp.ge.s32.totalorder %v738, %v2406
        %vm2419 = vcmp.ge.s32.totalorder %v739, %v2407
        %vm2420 = vcmp.ge.s32.totalorder %v740, %v2407
        %vm2421 = vcmp.ge.s32.totalorder %v741, %v2408
        %vm2422 = vcmp.ge.s32.totalorder %v742, %v2408
        %vm2423 = vcmp.ge.s32.totalorder %v743, %v2409
        %vm2424 = vcmp.ge.s32.totalorder %v744, %v2409
        %vm2425 = vcmp.ge.s32.totalorder %v745, %v2410
        %vm2426 = vcmp.ge.s32.totalorder %v746, %v2410
        %v2427 = vsel %vm2411, 1, 0
        %v2428 = vsel %vm2412, 1, 0
        %v2429 = vsel %vm2413, 1, 0
        %v2430 = vsel %vm2414, 1, 0
        %v2431 = vsel %vm2415, 1, 0
        %v2432 = vsel %vm2416, 1, 0
        %v2433 = vsel %vm2417, 1, 0
        %v2434 = vsel %vm2418, 1, 0
        %v2435 = vsel %vm2419, 1, 0
        %v2436 = vsel %vm2420, 1, 0
        %v2437 = vsel %vm2421, 1, 0
        %v2438 = vsel %vm2422, 1, 0
        %v2439 = vsel %vm2423, 1, 0
        %v2440 = vsel %vm2424, 1, 0
        %v2441 = vsel %vm2425, 1, 0
        %v2442 = vsel %vm2426, 1, 0
        %v2443 = vcvt.s32.f32 %v2427
        %v2444 = vcvt.s32.f32 %v2428
        %v2445 = vcvt.s32.f32 %v2429
        %v2446 = vcvt.s32.f32 %v2430
        %v2447 = vcvt.s32.f32 %v2431
        %v2448 = vcvt.s32.f32 %v2432
        %v2449 = vcvt.s32.f32 %v2433
        %v2450 = vcvt.s32.f32 %v2434
        %v2451 = vcvt.s32.f32 %v2435
        %v2452 = vcvt.s32.f32 %v2436
        %v2453 = vcvt.s32.f32 %v2437
        %v2454 = vcvt.s32.f32 %v2438
        %v2455 = vcvt.s32.f32 %v2439
        %v2456 = vcvt.s32.f32 %v2440
        %v2457 = vcvt.s32.f32 %v2441
        %v2458 = vcvt.s32.f32 %v2442
        %v2459 = vadd.f32 %v2443, %v2444
        %2460 = vadd.xlane.f32.xlu0 %v2459
        %v2461 = vpop.xlane.xlu0 %2460
        %v2462 = vadd.f32 %v2445, %v2446
        %2463 = vadd.xlane.f32.xlu0 %v2462
        %v2464 = vpop.xlane.xlu0 %2463
        %v2465 = vadd.f32 %v2447, %v2448
        %2466 = vadd.xlane.f32.xlu0 %v2465
        %v2467 = vpop.xlane.xlu0 %2466
        %v2468 = vadd.f32 %v2449, %v2450
        %2469 = vadd.xlane.f32.xlu0 %v2468
        %v2470 = vpop.xlane.xlu0 %2469
        %v2471 = vadd.f32 %v2451, %v2452
        %2472 = vadd.xlane.f32.xlu0 %v2471
        %v2473 = vpop.xlane.xlu0 %2472
        %v2474 = vadd.f32 %v2453, %v2454
        %2475 = vadd.xlane.f32.xlu0 %v2474
        %v2476 = vpop.xlane.xlu0 %2475
        %v2477 = vadd.f32 %v2455, %v2456
        %2478 = vadd.xlane.f32.xlu0 %v2477
        %v2479 = vpop.xlane.xlu0 %2478
        %v2480 = vadd.f32 %v2457, %v2458
        %2481 = vadd.xlane.f32.xlu0 %v2480
        %v2482 = vpop.xlane.xlu0 %2481
        %vm2483 = vcmp.ge.f32.partialorder %v2461, 40.0
        %vm2484 = vcmp.ge.f32.partialorder %v2464, 40.0
        %vm2485 = vcmp.ge.f32.partialorder %v2467, 40.0
        %vm2486 = vcmp.ge.f32.partialorder %v2470, 40.0
        %vm2487 = vcmp.ge.f32.partialorder %v2473, 40.0
        %vm2488 = vcmp.ge.f32.partialorder %v2476, 40.0
        %vm2489 = vcmp.ge.f32.partialorder %v2479, 40.0
        %vm2490 = vcmp.ge.f32.partialorder %v2482, 40.0
        %v2491 = vsel %vm2483, %v2403, %v2339
        %v2492 = vsel %vm2484, %v2404, %v2340
        %v2493 = vsel %vm2485, %v2405, %v2341
        %v2494 = vsel %vm2486, %v2406, %v2342
        %v2495 = vsel %vm2487, %v2407, %v2343
        %v2496 = vsel %vm2488, %v2408, %v2344
        %v2497 = vsel %vm2489, %v2409, %v2345
        %v2498 = vsel %vm2490, %v2410, %v2346
        %v2499 = vsub.s32 %v2403, 1
        %v2500 = vsub.s32 %v2404, 1
        %v2501 = vsub.s32 %v2405, 1
        %v2502 = vsub.s32 %v2406, 1
        %v2503 = vsub.s32 %v2407, 1
        %v2504 = vsub.s32 %v2408, 1
        %v2505 = vsub.s32 %v2409, 1
        %v2506 = vsub.s32 %v2410, 1
        %v2507 = vsel %vm2483, %v2355, %v2499
        %v2508 = vsel %vm2484, %v2356, %v2500
        %v2509 = vsel %vm2485, %v2357, %v2501
        %v2510 = vsel %vm2486, %v2358, %v2502
        %v2511 = vsel %vm2487, %v2359, %v2503
        %v2512 = vsel %vm2488, %v2360, %v2504
        %v2513 = vsel %vm2489, %v2361, %v2505
        %v2514 = vsel %vm2490, %v2362, %v2506
        %v2515 = vshra.s32 %v2491, 1
        %v2516 = vshra.s32 %v2492, 1
        %v2517 = vshra.s32 %v2493, 1
        %v2518 = vshra.s32 %v2494, 1
        %v2519 = vshra.s32 %v2495, 1
        %v2520 = vshra.s32 %v2496, 1
        %v2521 = vshra.s32 %v2497, 1
        %v2522 = vshra.s32 %v2498, 1
        %v2523 = vshra.s32 %v2507, 1
        %v2524 = vshra.s32 %v2508, 1
        %v2525 = vshra.s32 %v2509, 1
        %v2526 = vshra.s32 %v2510, 1
        %v2527 = vshra.s32 %v2511, 1
        %v2528 = vshra.s32 %v2512, 1
        %v2529 = vshra.s32 %v2513, 1
        %v2530 = vshra.s32 %v2514, 1
        %v2531 = vadd.s32 %v2515, %v2523
        %v2532 = vadd.s32 %v2516, %v2524
        %v2533 = vadd.s32 %v2517, %v2525
        %v2534 = vadd.s32 %v2518, %v2526
        %v2535 = vadd.s32 %v2519, %v2527
        %v2536 = vadd.s32 %v2520, %v2528
        %v2537 = vadd.s32 %v2521, %v2529
        %v2538 = vadd.s32 %v2522, %v2530
        %v2539 = vor.u32 %v2491, %v2507
        %v2540 = vor.u32 %v2492, %v2508
        %v2541 = vor.u32 %v2493, %v2509
        %v2542 = vor.u32 %v2494, %v2510
        %v2543 = vor.u32 %v2495, %v2511
        %v2544 = vor.u32 %v2496, %v2512
        %v2545 = vor.u32 %v2497, %v2513
        %v2546 = vor.u32 %v2498, %v2514
        %v2547 = vand.u32 %v2539, 1
        %v2548 = vand.u32 %v2540, 1
        %v2549 = vand.u32 %v2541, 1
        %v2550 = vand.u32 %v2542, 1
        %v2551 = vand.u32 %v2543, 1
        %v2552 = vand.u32 %v2544, 1
        %v2553 = vand.u32 %v2545, 1
        %v2554 = vand.u32 %v2546, 1
        %v2555 = vadd.s32 %v2531, %v2547
        %v2556 = vadd.s32 %v2532, %v2548
        %v2557 = vadd.s32 %v2533, %v2549
        %v2558 = vadd.s32 %v2534, %v2550
        %v2559 = vadd.s32 %v2535, %v2551
        %v2560 = vadd.s32 %v2536, %v2552
        %v2561 = vadd.s32 %v2537, %v2553
        %v2562 = vadd.s32 %v2538, %v2554
        %vm2563 = vcmp.ge.s32.totalorder %v731, %v2555
        %vm2564 = vcmp.ge.s32.totalorder %v732, %v2555
        %vm2565 = vcmp.ge.s32.totalorder %v733, %v2556
        %vm2566 = vcmp.ge.s32.totalorder %v734, %v2556
        %vm2567 = vcmp.ge.s32.totalorder %v735, %v2557
        %vm2568 = vcmp.ge.s32.totalorder %v736, %v2557
        %vm2569 = vcmp.ge.s32.totalorder %v737, %v2558
        %vm2570 = vcmp.ge.s32.totalorder %v738, %v2558
        %vm2571 = vcmp.ge.s32.totalorder %v739, %v2559
        %vm2572 = vcmp.ge.s32.totalorder %v740, %v2559
        %vm2573 = vcmp.ge.s32.totalorder %v741, %v2560
        %vm2574 = vcmp.ge.s32.totalorder %v742, %v2560
        %vm2575 = vcmp.ge.s32.totalorder %v743, %v2561
        %vm2576 = vcmp.ge.s32.totalorder %v744, %v2561
        %vm2577 = vcmp.ge.s32.totalorder %v745, %v2562
        %vm2578 = vcmp.ge.s32.totalorder %v746, %v2562
        %v2579 = vsel %vm2563, 1, 0
        %v2580 = vsel %vm2564, 1, 0
        %v2581 = vsel %vm2565, 1, 0
        %v2582 = vsel %vm2566, 1, 0
        %v2583 = vsel %vm2567, 1, 0
        %v2584 = vsel %vm2568, 1, 0
        %v2585 = vsel %vm2569, 1, 0
        %v2586 = vsel %vm2570, 1, 0
        %v2587 = vsel %vm2571, 1, 0
        %v2588 = vsel %vm2572, 1, 0
        %v2589 = vsel %vm2573, 1, 0
        %v2590 = vsel %vm2574, 1, 0
        %v2591 = vsel %vm2575, 1, 0
        %v2592 = vsel %vm2576, 1, 0
        %v2593 = vsel %vm2577, 1, 0
        %v2594 = vsel %vm2578, 1, 0
        %v2595 = vcvt.s32.f32 %v2579
        %v2596 = vcvt.s32.f32 %v2580
        %v2597 = vcvt.s32.f32 %v2581
        %v2598 = vcvt.s32.f32 %v2582
        %v2599 = vcvt.s32.f32 %v2583
        %v2600 = vcvt.s32.f32 %v2584
        %v2601 = vcvt.s32.f32 %v2585
        %v2602 = vcvt.s32.f32 %v2586
        %v2603 = vcvt.s32.f32 %v2587
        %v2604 = vcvt.s32.f32 %v2588
        %v2605 = vcvt.s32.f32 %v2589
        %v2606 = vcvt.s32.f32 %v2590
        %v2607 = vcvt.s32.f32 %v2591
        %v2608 = vcvt.s32.f32 %v2592
        %v2609 = vcvt.s32.f32 %v2593
        %v2610 = vcvt.s32.f32 %v2594
        %v2611 = vadd.f32 %v2595, %v2596
        %2612 = vadd.xlane.f32.xlu0 %v2611
        %v2613 = vpop.xlane.xlu0 %2612
        %v2614 = vadd.f32 %v2597, %v2598
        %2615 = vadd.xlane.f32.xlu0 %v2614
        %v2616 = vpop.xlane.xlu0 %2615
        %v2617 = vadd.f32 %v2599, %v2600
        %2618 = vadd.xlane.f32.xlu0 %v2617
        %v2619 = vpop.xlane.xlu0 %2618
        %v2620 = vadd.f32 %v2601, %v2602
        %2621 = vadd.xlane.f32.xlu0 %v2620
        %v2622 = vpop.xlane.xlu0 %2621
        %v2623 = vadd.f32 %v2603, %v2604
        %2624 = vadd.xlane.f32.xlu0 %v2623
        %v2625 = vpop.xlane.xlu0 %2624
        %v2626 = vadd.f32 %v2605, %v2606
        %2627 = vadd.xlane.f32.xlu0 %v2626
        %v2628 = vpop.xlane.xlu0 %2627
        %v2629 = vadd.f32 %v2607, %v2608
        %2630 = vadd.xlane.f32.xlu0 %v2629
        %v2631 = vpop.xlane.xlu0 %2630
        %v2632 = vadd.f32 %v2609, %v2610
        %2633 = vadd.xlane.f32.xlu0 %v2632
        %v2634 = vpop.xlane.xlu0 %2633
        %vm2635 = vcmp.ge.f32.partialorder %v2613, 40.0
        %vm2636 = vcmp.ge.f32.partialorder %v2616, 40.0
        %vm2637 = vcmp.ge.f32.partialorder %v2619, 40.0
        %vm2638 = vcmp.ge.f32.partialorder %v2622, 40.0
        %vm2639 = vcmp.ge.f32.partialorder %v2625, 40.0
        %vm2640 = vcmp.ge.f32.partialorder %v2628, 40.0
        %vm2641 = vcmp.ge.f32.partialorder %v2631, 40.0
        %vm2642 = vcmp.ge.f32.partialorder %v2634, 40.0
        %v2643 = vsel %vm2635, %v2555, %v2491
        %v2644 = vsel %vm2636, %v2556, %v2492
        %v2645 = vsel %vm2637, %v2557, %v2493
        %v2646 = vsel %vm2638, %v2558, %v2494
        %v2647 = vsel %vm2639, %v2559, %v2495
        %v2648 = vsel %vm2640, %v2560, %v2496
        %v2649 = vsel %vm2641, %v2561, %v2497
        %v2650 = vsel %vm2642, %v2562, %v2498
        %v2651 = vsub.s32 %v2555, 1
        %v2652 = vsub.s32 %v2556, 1
        %v2653 = vsub.s32 %v2557, 1
        %v2654 = vsub.s32 %v2558, 1
        %v2655 = vsub.s32 %v2559, 1
        %v2656 = vsub.s32 %v2560, 1
        %v2657 = vsub.s32 %v2561, 1
        %v2658 = vsub.s32 %v2562, 1
        %v2659 = vsel %vm2635, %v2507, %v2651
        %v2660 = vsel %vm2636, %v2508, %v2652
        %v2661 = vsel %vm2637, %v2509, %v2653
        %v2662 = vsel %vm2638, %v2510, %v2654
        %v2663 = vsel %vm2639, %v2511, %v2655
        %v2664 = vsel %vm2640, %v2512, %v2656
        %v2665 = vsel %vm2641, %v2513, %v2657
        %v2666 = vsel %vm2642, %v2514, %v2658
        %v2667 = vshra.s32 %v2643, 1
        %v2668 = vshra.s32 %v2644, 1
        %v2669 = vshra.s32 %v2645, 1
        %v2670 = vshra.s32 %v2646, 1
        %v2671 = vshra.s32 %v2647, 1
        %v2672 = vshra.s32 %v2648, 1
        %v2673 = vshra.s32 %v2649, 1
        %v2674 = vshra.s32 %v2650, 1
        %v2675 = vshra.s32 %v2659, 1
        %v2676 = vshra.s32 %v2660, 1
        %v2677 = vshra.s32 %v2661, 1
        %v2678 = vshra.s32 %v2662, 1
        %v2679 = vshra.s32 %v2663, 1
        %v2680 = vshra.s32 %v2664, 1
        %v2681 = vshra.s32 %v2665, 1
        %v2682 = vshra.s32 %v2666, 1
        %v2683 = vadd.s32 %v2667, %v2675
        %v2684 = vadd.s32 %v2668, %v2676
        %v2685 = vadd.s32 %v2669, %v2677
        %v2686 = vadd.s32 %v2670, %v2678
        %v2687 = vadd.s32 %v2671, %v2679
        %v2688 = vadd.s32 %v2672, %v2680
        %v2689 = vadd.s32 %v2673, %v2681
        %v2690 = vadd.s32 %v2674, %v2682
        %v2691 = vor.u32 %v2643, %v2659
        %v2692 = vor.u32 %v2644, %v2660
        %v2693 = vor.u32 %v2645, %v2661
        %v2694 = vor.u32 %v2646, %v2662
        %v2695 = vor.u32 %v2647, %v2663
        %v2696 = vor.u32 %v2648, %v2664
        %v2697 = vor.u32 %v2649, %v2665
        %v2698 = vor.u32 %v2650, %v2666
        %v2699 = vand.u32 %v2691, 1
        %v2700 = vand.u32 %v2692, 1
        %v2701 = vand.u32 %v2693, 1
        %v2702 = vand.u32 %v2694, 1
        %v2703 = vand.u32 %v2695, 1
        %v2704 = vand.u32 %v2696, 1
        %v2705 = vand.u32 %v2697, 1
        %v2706 = vand.u32 %v2698, 1
        %v2707 = vadd.s32 %v2683, %v2699
        %v2708 = vadd.s32 %v2684, %v2700
        %v2709 = vadd.s32 %v2685, %v2701
        %v2710 = vadd.s32 %v2686, %v2702
        %v2711 = vadd.s32 %v2687, %v2703
        %v2712 = vadd.s32 %v2688, %v2704
        %v2713 = vadd.s32 %v2689, %v2705
        %v2714 = vadd.s32 %v2690, %v2706
        %vm2715 = vcmp.ge.s32.totalorder %v731, %v2707
        %vm2716 = vcmp.ge.s32.totalorder %v732, %v2707
        %vm2717 = vcmp.ge.s32.totalorder %v733, %v2708
        %vm2718 = vcmp.ge.s32.totalorder %v734, %v2708
        %vm2719 = vcmp.ge.s32.totalorder %v735, %v2709
        %vm2720 = vcmp.ge.s32.totalorder %v736, %v2709
        %vm2721 = vcmp.ge.s32.totalorder %v737, %v2710
        %vm2722 = vcmp.ge.s32.totalorder %v738, %v2710
        %vm2723 = vcmp.ge.s32.totalorder %v739, %v2711
        %vm2724 = vcmp.ge.s32.totalorder %v740, %v2711
        %vm2725 = vcmp.ge.s32.totalorder %v741, %v2712
        %vm2726 = vcmp.ge.s32.totalorder %v742, %v2712
        %vm2727 = vcmp.ge.s32.totalorder %v743, %v2713
        %vm2728 = vcmp.ge.s32.totalorder %v744, %v2713
        %vm2729 = vcmp.ge.s32.totalorder %v745, %v2714
        %vm2730 = vcmp.ge.s32.totalorder %v746, %v2714
        %v2731 = vsel %vm2715, 1, 0
        %v2732 = vsel %vm2716, 1, 0
        %v2733 = vsel %vm2717, 1, 0
        %v2734 = vsel %vm2718, 1, 0
        %v2735 = vsel %vm2719, 1, 0
        %v2736 = vsel %vm2720, 1, 0
        %v2737 = vsel %vm2721, 1, 0
        %v2738 = vsel %vm2722, 1, 0
        %v2739 = vsel %vm2723, 1, 0
        %v2740 = vsel %vm2724, 1, 0
        %v2741 = vsel %vm2725, 1, 0
        %v2742 = vsel %vm2726, 1, 0
        %v2743 = vsel %vm2727, 1, 0
        %v2744 = vsel %vm2728, 1, 0
        %v2745 = vsel %vm2729, 1, 0
        %v2746 = vsel %vm2730, 1, 0
        %v2747 = vcvt.s32.f32 %v2731
        %v2748 = vcvt.s32.f32 %v2732
        %v2749 = vcvt.s32.f32 %v2733
        %v2750 = vcvt.s32.f32 %v2734
        %v2751 = vcvt.s32.f32 %v2735
        %v2752 = vcvt.s32.f32 %v2736
        %v2753 = vcvt.s32.f32 %v2737
        %v2754 = vcvt.s32.f32 %v2738
        %v2755 = vcvt.s32.f32 %v2739
        %v2756 = vcvt.s32.f32 %v2740
        %v2757 = vcvt.s32.f32 %v2741
        %v2758 = vcvt.s32.f32 %v2742
        %v2759 = vcvt.s32.f32 %v2743
        %v2760 = vcvt.s32.f32 %v2744
        %v2761 = vcvt.s32.f32 %v2745
        %v2762 = vcvt.s32.f32 %v2746
        %v2763 = vadd.f32 %v2747, %v2748
        %2764 = vadd.xlane.f32.xlu0 %v2763
        %v2765 = vpop.xlane.xlu0 %2764
        %v2766 = vadd.f32 %v2749, %v2750
        %2767 = vadd.xlane.f32.xlu0 %v2766
        %v2768 = vpop.xlane.xlu0 %2767
        %v2769 = vadd.f32 %v2751, %v2752
        %2770 = vadd.xlane.f32.xlu0 %v2769
        %v2771 = vpop.xlane.xlu0 %2770
        %v2772 = vadd.f32 %v2753, %v2754
        %2773 = vadd.xlane.f32.xlu0 %v2772
        %v2774 = vpop.xlane.xlu0 %2773
        %v2775 = vadd.f32 %v2755, %v2756
        %2776 = vadd.xlane.f32.xlu0 %v2775
        %v2777 = vpop.xlane.xlu0 %2776
        %v2778 = vadd.f32 %v2757, %v2758
        %2779 = vadd.xlane.f32.xlu0 %v2778
        %v2780 = vpop.xlane.xlu0 %2779
        %v2781 = vadd.f32 %v2759, %v2760
        %2782 = vadd.xlane.f32.xlu0 %v2781
        %v2783 = vpop.xlane.xlu0 %2782
        %v2784 = vadd.f32 %v2761, %v2762
        %2785 = vadd.xlane.f32.xlu0 %v2784
        %v2786 = vpop.xlane.xlu0 %2785
        %vm2787 = vcmp.ge.f32.partialorder %v2765, 40.0
        %vm2788 = vcmp.ge.f32.partialorder %v2768, 40.0
        %vm2789 = vcmp.ge.f32.partialorder %v2771, 40.0
        %vm2790 = vcmp.ge.f32.partialorder %v2774, 40.0
        %vm2791 = vcmp.ge.f32.partialorder %v2777, 40.0
        %vm2792 = vcmp.ge.f32.partialorder %v2780, 40.0
        %vm2793 = vcmp.ge.f32.partialorder %v2783, 40.0
        %vm2794 = vcmp.ge.f32.partialorder %v2786, 40.0
        %v2795 = vsel %vm2787, %v2707, %v2643
        %v2796 = vsel %vm2788, %v2708, %v2644
        %v2797 = vsel %vm2789, %v2709, %v2645
        %v2798 = vsel %vm2790, %v2710, %v2646
        %v2799 = vsel %vm2791, %v2711, %v2647
        %v2800 = vsel %vm2792, %v2712, %v2648
        %v2801 = vsel %vm2793, %v2713, %v2649
        %v2802 = vsel %vm2794, %v2714, %v2650
        %v2803 = vsub.s32 %v2707, 1
        %v2804 = vsub.s32 %v2708, 1
        %v2805 = vsub.s32 %v2709, 1
        %v2806 = vsub.s32 %v2710, 1
        %v2807 = vsub.s32 %v2711, 1
        %v2808 = vsub.s32 %v2712, 1
        %v2809 = vsub.s32 %v2713, 1
        %v2810 = vsub.s32 %v2714, 1
        %v2811 = vsel %vm2787, %v2659, %v2803
        %v2812 = vsel %vm2788, %v2660, %v2804
        %v2813 = vsel %vm2789, %v2661, %v2805
        %v2814 = vsel %vm2790, %v2662, %v2806
        %v2815 = vsel %vm2791, %v2663, %v2807
        %v2816 = vsel %vm2792, %v2664, %v2808
        %v2817 = vsel %vm2793, %v2665, %v2809
        %v2818 = vsel %vm2794, %v2666, %v2810
        %v2819 = vshra.s32 %v2795, 1
        %v2820 = vshra.s32 %v2796, 1
        %v2821 = vshra.s32 %v2797, 1
        %v2822 = vshra.s32 %v2798, 1
        %v2823 = vshra.s32 %v2799, 1
        %v2824 = vshra.s32 %v2800, 1
        %v2825 = vshra.s32 %v2801, 1
        %v2826 = vshra.s32 %v2802, 1
        %v2827 = vshra.s32 %v2811, 1
        %v2828 = vshra.s32 %v2812, 1
        %v2829 = vshra.s32 %v2813, 1
        %v2830 = vshra.s32 %v2814, 1
        %v2831 = vshra.s32 %v2815, 1
        %v2832 = vshra.s32 %v2816, 1
        %v2833 = vshra.s32 %v2817, 1
        %v2834 = vshra.s32 %v2818, 1
        %v2835 = vadd.s32 %v2819, %v2827
        %v2836 = vadd.s32 %v2820, %v2828
        %v2837 = vadd.s32 %v2821, %v2829
        %v2838 = vadd.s32 %v2822, %v2830
        %v2839 = vadd.s32 %v2823, %v2831
        %v2840 = vadd.s32 %v2824, %v2832
        %v2841 = vadd.s32 %v2825, %v2833
        %v2842 = vadd.s32 %v2826, %v2834
        %v2843 = vor.u32 %v2795, %v2811
        %v2844 = vor.u32 %v2796, %v2812
        %v2845 = vor.u32 %v2797, %v2813
        %v2846 = vor.u32 %v2798, %v2814
        %v2847 = vor.u32 %v2799, %v2815
        %v2848 = vor.u32 %v2800, %v2816
        %v2849 = vor.u32 %v2801, %v2817
        %v2850 = vor.u32 %v2802, %v2818
        %v2851 = vand.u32 %v2843, 1
        %v2852 = vand.u32 %v2844, 1
        %v2853 = vand.u32 %v2845, 1
        %v2854 = vand.u32 %v2846, 1
        %v2855 = vand.u32 %v2847, 1
        %v2856 = vand.u32 %v2848, 1
        %v2857 = vand.u32 %v2849, 1
        %v2858 = vand.u32 %v2850, 1
        %v2859 = vadd.s32 %v2835, %v2851
        %v2860 = vadd.s32 %v2836, %v2852
        %v2861 = vadd.s32 %v2837, %v2853
        %v2862 = vadd.s32 %v2838, %v2854
        %v2863 = vadd.s32 %v2839, %v2855
        %v2864 = vadd.s32 %v2840, %v2856
        %v2865 = vadd.s32 %v2841, %v2857
        %v2866 = vadd.s32 %v2842, %v2858
        %vm2867 = vcmp.ge.s32.totalorder %v731, %v2859
        %vm2868 = vcmp.ge.s32.totalorder %v732, %v2859
        %vm2869 = vcmp.ge.s32.totalorder %v733, %v2860
        %vm2870 = vcmp.ge.s32.totalorder %v734, %v2860
        %vm2871 = vcmp.ge.s32.totalorder %v735, %v2861
        %vm2872 = vcmp.ge.s32.totalorder %v736, %v2861
        %vm2873 = vcmp.ge.s32.totalorder %v737, %v2862
        %vm2874 = vcmp.ge.s32.totalorder %v738, %v2862
        %vm2875 = vcmp.ge.s32.totalorder %v739, %v2863
        %vm2876 = vcmp.ge.s32.totalorder %v740, %v2863
        %vm2877 = vcmp.ge.s32.totalorder %v741, %v2864
        %vm2878 = vcmp.ge.s32.totalorder %v742, %v2864
        %vm2879 = vcmp.ge.s32.totalorder %v743, %v2865
        %vm2880 = vcmp.ge.s32.totalorder %v744, %v2865
        %vm2881 = vcmp.ge.s32.totalorder %v745, %v2866
        %vm2882 = vcmp.ge.s32.totalorder %v746, %v2866
        %v2883 = vsel %vm2867, 1, 0
        %v2884 = vsel %vm2868, 1, 0
        %v2885 = vsel %vm2869, 1, 0
        %v2886 = vsel %vm2870, 1, 0
        %v2887 = vsel %vm2871, 1, 0
        %v2888 = vsel %vm2872, 1, 0
        %v2889 = vsel %vm2873, 1, 0
        %v2890 = vsel %vm2874, 1, 0
        %v2891 = vsel %vm2875, 1, 0
        %v2892 = vsel %vm2876, 1, 0
        %v2893 = vsel %vm2877, 1, 0
        %v2894 = vsel %vm2878, 1, 0
        %v2895 = vsel %vm2879, 1, 0
        %v2896 = vsel %vm2880, 1, 0
        %v2897 = vsel %vm2881, 1, 0
        %v2898 = vsel %vm2882, 1, 0
        %v2899 = vcvt.s32.f32 %v2883
        %v2900 = vcvt.s32.f32 %v2884
        %v2901 = vcvt.s32.f32 %v2885
        %v2902 = vcvt.s32.f32 %v2886
        %v2903 = vcvt.s32.f32 %v2887
        %v2904 = vcvt.s32.f32 %v2888
        %v2905 = vcvt.s32.f32 %v2889
        %v2906 = vcvt.s32.f32 %v2890
        %v2907 = vcvt.s32.f32 %v2891
        %v2908 = vcvt.s32.f32 %v2892
        %v2909 = vcvt.s32.f32 %v2893
        %v2910 = vcvt.s32.f32 %v2894
        %v2911 = vcvt.s32.f32 %v2895
        %v2912 = vcvt.s32.f32 %v2896
        %v2913 = vcvt.s32.f32 %v2897
        %v2914 = vcvt.s32.f32 %v2898
        %v2915 = vadd.f32 %v2899, %v2900
        %2916 = vadd.xlane.f32.xlu0 %v2915
        %v2917 = vpop.xlane.xlu0 %2916
        %v2918 = vadd.f32 %v2901, %v2902
        %2919 = vadd.xlane.f32.xlu0 %v2918
        %v2920 = vpop.xlane.xlu0 %2919
        %v2921 = vadd.f32 %v2903, %v2904
        %2922 = vadd.xlane.f32.xlu0 %v2921
        %v2923 = vpop.xlane.xlu0 %2922
        %v2924 = vadd.f32 %v2905, %v2906
        %2925 = vadd.xlane.f32.xlu0 %v2924
        %v2926 = vpop.xlane.xlu0 %2925
        %v2927 = vadd.f32 %v2907, %v2908
        %2928 = vadd.xlane.f32.xlu0 %v2927
        %v2929 = vpop.xlane.xlu0 %2928
        %v2930 = vadd.f32 %v2909, %v2910
        %2931 = vadd.xlane.f32.xlu0 %v2930
        %v2932 = vpop.xlane.xlu0 %2931
        %v2933 = vadd.f32 %v2911, %v2912
        %2934 = vadd.xlane.f32.xlu0 %v2933
        %v2935 = vpop.xlane.xlu0 %2934
        %v2936 = vadd.f32 %v2913, %v2914
        %2937 = vadd.xlane.f32.xlu0 %v2936
        %v2938 = vpop.xlane.xlu0 %2937
        %vm2939 = vcmp.ge.f32.partialorder %v2917, 40.0
        %vm2940 = vcmp.ge.f32.partialorder %v2920, 40.0
        %vm2941 = vcmp.ge.f32.partialorder %v2923, 40.0
        %vm2942 = vcmp.ge.f32.partialorder %v2926, 40.0
        %vm2943 = vcmp.ge.f32.partialorder %v2929, 40.0
        %vm2944 = vcmp.ge.f32.partialorder %v2932, 40.0
        %vm2945 = vcmp.ge.f32.partialorder %v2935, 40.0
        %vm2946 = vcmp.ge.f32.partialorder %v2938, 40.0
        %v2947 = vsel %vm2939, %v2859, %v2795
        %v2948 = vsel %vm2940, %v2860, %v2796
        %v2949 = vsel %vm2941, %v2861, %v2797
        %v2950 = vsel %vm2942, %v2862, %v2798
        %v2951 = vsel %vm2943, %v2863, %v2799
        %v2952 = vsel %vm2944, %v2864, %v2800
        %v2953 = vsel %vm2945, %v2865, %v2801
        %v2954 = vsel %vm2946, %v2866, %v2802
        %v2955 = vsub.s32 %v2859, 1
        %v2956 = vsub.s32 %v2860, 1
        %v2957 = vsub.s32 %v2861, 1
        %v2958 = vsub.s32 %v2862, 1
        %v2959 = vsub.s32 %v2863, 1
        %v2960 = vsub.s32 %v2864, 1
        %v2961 = vsub.s32 %v2865, 1
        %v2962 = vsub.s32 %v2866, 1
        %v2963 = vsel %vm2939, %v2811, %v2955
        %v2964 = vsel %vm2940, %v2812, %v2956
        %v2965 = vsel %vm2941, %v2813, %v2957
        %v2966 = vsel %vm2942, %v2814, %v2958
        %v2967 = vsel %vm2943, %v2815, %v2959
        %v2968 = vsel %vm2944, %v2816, %v2960
        %v2969 = vsel %vm2945, %v2817, %v2961
        %v2970 = vsel %vm2946, %v2818, %v2962
        %v2971 = vshra.s32 %v2947, 1
        %v2972 = vshra.s32 %v2948, 1
        %v2973 = vshra.s32 %v2949, 1
        %v2974 = vshra.s32 %v2950, 1
        %v2975 = vshra.s32 %v2951, 1
        %v2976 = vshra.s32 %v2952, 1
        %v2977 = vshra.s32 %v2953, 1
        %v2978 = vshra.s32 %v2954, 1
        %v2979 = vshra.s32 %v2963, 1
        %v2980 = vshra.s32 %v2964, 1
        %v2981 = vshra.s32 %v2965, 1
        %v2982 = vshra.s32 %v2966, 1
        %v2983 = vshra.s32 %v2967, 1
        %v2984 = vshra.s32 %v2968, 1
        %v2985 = vshra.s32 %v2969, 1
        %v2986 = vshra.s32 %v2970, 1
        %v2987 = vadd.s32 %v2971, %v2979
        %v2988 = vadd.s32 %v2972, %v2980
        %v2989 = vadd.s32 %v2973, %v2981
        %v2990 = vadd.s32 %v2974, %v2982
        %v2991 = vadd.s32 %v2975, %v2983
        %v2992 = vadd.s32 %v2976, %v2984
        %v2993 = vadd.s32 %v2977, %v2985
        %v2994 = vadd.s32 %v2978, %v2986
        %v2995 = vor.u32 %v2947, %v2963
        %v2996 = vor.u32 %v2948, %v2964
        %v2997 = vor.u32 %v2949, %v2965
        %v2998 = vor.u32 %v2950, %v2966
        %v2999 = vor.u32 %v2951, %v2967
        %v3000 = vor.u32 %v2952, %v2968
        %v3001 = vor.u32 %v2953, %v2969
        %v3002 = vor.u32 %v2954, %v2970
        %v3003 = vand.u32 %v2995, 1
        %v3004 = vand.u32 %v2996, 1
        %v3005 = vand.u32 %v2997, 1
        %v3006 = vand.u32 %v2998, 1
        %v3007 = vand.u32 %v2999, 1
        %v3008 = vand.u32 %v3000, 1
        %v3009 = vand.u32 %v3001, 1
        %v3010 = vand.u32 %v3002, 1
        %v3011 = vadd.s32 %v2987, %v3003
        %v3012 = vadd.s32 %v2988, %v3004
        %v3013 = vadd.s32 %v2989, %v3005
        %v3014 = vadd.s32 %v2990, %v3006
        %v3015 = vadd.s32 %v2991, %v3007
        %v3016 = vadd.s32 %v2992, %v3008
        %v3017 = vadd.s32 %v2993, %v3009
        %v3018 = vadd.s32 %v2994, %v3010
        %vm3019 = vcmp.ge.s32.totalorder %v731, %v3011
        %vm3020 = vcmp.ge.s32.totalorder %v732, %v3011
        %vm3021 = vcmp.ge.s32.totalorder %v733, %v3012
        %vm3022 = vcmp.ge.s32.totalorder %v734, %v3012
        %vm3023 = vcmp.ge.s32.totalorder %v735, %v3013
        %vm3024 = vcmp.ge.s32.totalorder %v736, %v3013
        %vm3025 = vcmp.ge.s32.totalorder %v737, %v3014
        %vm3026 = vcmp.ge.s32.totalorder %v738, %v3014
        %vm3027 = vcmp.ge.s32.totalorder %v739, %v3015
        %vm3028 = vcmp.ge.s32.totalorder %v740, %v3015
        %vm3029 = vcmp.ge.s32.totalorder %v741, %v3016
        %vm3030 = vcmp.ge.s32.totalorder %v742, %v3016
        %vm3031 = vcmp.ge.s32.totalorder %v743, %v3017
        %vm3032 = vcmp.ge.s32.totalorder %v744, %v3017
        %vm3033 = vcmp.ge.s32.totalorder %v745, %v3018
        %vm3034 = vcmp.ge.s32.totalorder %v746, %v3018
        %v3035 = vsel %vm3019, 1, 0
        %v3036 = vsel %vm3020, 1, 0
        %v3037 = vsel %vm3021, 1, 0
        %v3038 = vsel %vm3022, 1, 0
        %v3039 = vsel %vm3023, 1, 0
        %v3040 = vsel %vm3024, 1, 0
        %v3041 = vsel %vm3025, 1, 0
        %v3042 = vsel %vm3026, 1, 0
        %v3043 = vsel %vm3027, 1, 0
        %v3044 = vsel %vm3028, 1, 0
        %v3045 = vsel %vm3029, 1, 0
        %v3046 = vsel %vm3030, 1, 0
        %v3047 = vsel %vm3031, 1, 0
        %v3048 = vsel %vm3032, 1, 0
        %v3049 = vsel %vm3033, 1, 0
        %v3050 = vsel %vm3034, 1, 0
        %v3051 = vcvt.s32.f32 %v3035
        %v3052 = vcvt.s32.f32 %v3036
        %v3053 = vcvt.s32.f32 %v3037
        %v3054 = vcvt.s32.f32 %v3038
        %v3055 = vcvt.s32.f32 %v3039
        %v3056 = vcvt.s32.f32 %v3040
        %v3057 = vcvt.s32.f32 %v3041
        %v3058 = vcvt.s32.f32 %v3042
        %v3059 = vcvt.s32.f32 %v3043
        %v3060 = vcvt.s32.f32 %v3044
        %v3061 = vcvt.s32.f32 %v3045
        %v3062 = vcvt.s32.f32 %v3046
        %v3063 = vcvt.s32.f32 %v3047
        %v3064 = vcvt.s32.f32 %v3048
        %v3065 = vcvt.s32.f32 %v3049
        %v3066 = vcvt.s32.f32 %v3050
        %v3067 = vadd.f32 %v3051, %v3052
        %3068 = vadd.xlane.f32.xlu0 %v3067
        %v3069 = vpop.xlane.xlu0 %3068
        %v3070 = vadd.f32 %v3053, %v3054
        %3071 = vadd.xlane.f32.xlu0 %v3070
        %v3072 = vpop.xlane.xlu0 %3071
        %v3073 = vadd.f32 %v3055, %v3056
        %3074 = vadd.xlane.f32.xlu0 %v3073
        %v3075 = vpop.xlane.xlu0 %3074
        %v3076 = vadd.f32 %v3057, %v3058
        %3077 = vadd.xlane.f32.xlu0 %v3076
        %v3078 = vpop.xlane.xlu0 %3077
        %v3079 = vadd.f32 %v3059, %v3060
        %3080 = vadd.xlane.f32.xlu0 %v3079
        %v3081 = vpop.xlane.xlu0 %3080
        %v3082 = vadd.f32 %v3061, %v3062
        %3083 = vadd.xlane.f32.xlu0 %v3082
        %v3084 = vpop.xlane.xlu0 %3083
        %v3085 = vadd.f32 %v3063, %v3064
        %3086 = vadd.xlane.f32.xlu0 %v3085
        %v3087 = vpop.xlane.xlu0 %3086
        %v3088 = vadd.f32 %v3065, %v3066
        %3089 = vadd.xlane.f32.xlu0 %v3088
        %v3090 = vpop.xlane.xlu0 %3089
        %vm3091 = vcmp.ge.f32.partialorder %v3069, 40.0
        %vm3092 = vcmp.ge.f32.partialorder %v3072, 40.0
        %vm3093 = vcmp.ge.f32.partialorder %v3075, 40.0
        %vm3094 = vcmp.ge.f32.partialorder %v3078, 40.0
        %vm3095 = vcmp.ge.f32.partialorder %v3081, 40.0
        %vm3096 = vcmp.ge.f32.partialorder %v3084, 40.0
        %vm3097 = vcmp.ge.f32.partialorder %v3087, 40.0
        %vm3098 = vcmp.ge.f32.partialorder %v3090, 40.0
        %v3099 = vsel %vm3091, %v3011, %v2947
        %v3100 = vsel %vm3092, %v3012, %v2948
        %v3101 = vsel %vm3093, %v3013, %v2949
        %v3102 = vsel %vm3094, %v3014, %v2950
        %v3103 = vsel %vm3095, %v3015, %v2951
        %v3104 = vsel %vm3096, %v3016, %v2952
        %v3105 = vsel %vm3097, %v3017, %v2953
        %v3106 = vsel %vm3098, %v3018, %v2954
        %v3107 = vsub.s32 %v3011, 1
        %v3108 = vsub.s32 %v3012, 1
        %v3109 = vsub.s32 %v3013, 1
        %v3110 = vsub.s32 %v3014, 1
        %v3111 = vsub.s32 %v3015, 1
        %v3112 = vsub.s32 %v3016, 1
        %v3113 = vsub.s32 %v3017, 1
        %v3114 = vsub.s32 %v3018, 1
        %v3115 = vsel %vm3091, %v2963, %v3107
        %v3116 = vsel %vm3092, %v2964, %v3108
        %v3117 = vsel %vm3093, %v2965, %v3109
        %v3118 = vsel %vm3094, %v2966, %v3110
        %v3119 = vsel %vm3095, %v2967, %v3111
        %v3120 = vsel %vm3096, %v2968, %v3112
        %v3121 = vsel %vm3097, %v2969, %v3113
        %v3122 = vsel %vm3098, %v2970, %v3114
        %v3123 = vshra.s32 %v3099, 1
        %v3124 = vshra.s32 %v3100, 1
        %v3125 = vshra.s32 %v3101, 1
        %v3126 = vshra.s32 %v3102, 1
        %v3127 = vshra.s32 %v3103, 1
        %v3128 = vshra.s32 %v3104, 1
        %v3129 = vshra.s32 %v3105, 1
        %v3130 = vshra.s32 %v3106, 1
        %v3131 = vshra.s32 %v3115, 1
        %v3132 = vshra.s32 %v3116, 1
        %v3133 = vshra.s32 %v3117, 1
        %v3134 = vshra.s32 %v3118, 1
        %v3135 = vshra.s32 %v3119, 1
        %v3136 = vshra.s32 %v3120, 1
        %v3137 = vshra.s32 %v3121, 1
        %v3138 = vshra.s32 %v3122, 1
        %v3139 = vadd.s32 %v3123, %v3131
        %v3140 = vadd.s32 %v3124, %v3132
        %v3141 = vadd.s32 %v3125, %v3133
        %v3142 = vadd.s32 %v3126, %v3134
        %v3143 = vadd.s32 %v3127, %v3135
        %v3144 = vadd.s32 %v3128, %v3136
        %v3145 = vadd.s32 %v3129, %v3137
        %v3146 = vadd.s32 %v3130, %v3138
        %v3147 = vor.u32 %v3099, %v3115
        %v3148 = vor.u32 %v3100, %v3116
        %v3149 = vor.u32 %v3101, %v3117
        %v3150 = vor.u32 %v3102, %v3118
        %v3151 = vor.u32 %v3103, %v3119
        %v3152 = vor.u32 %v3104, %v3120
        %v3153 = vor.u32 %v3105, %v3121
        %v3154 = vor.u32 %v3106, %v3122
        %v3155 = vand.u32 %v3147, 1
        %v3156 = vand.u32 %v3148, 1
        %v3157 = vand.u32 %v3149, 1
        %v3158 = vand.u32 %v3150, 1
        %v3159 = vand.u32 %v3151, 1
        %v3160 = vand.u32 %v3152, 1
        %v3161 = vand.u32 %v3153, 1
        %v3162 = vand.u32 %v3154, 1
        %v3163 = vadd.s32 %v3139, %v3155
        %v3164 = vadd.s32 %v3140, %v3156
        %v3165 = vadd.s32 %v3141, %v3157
        %v3166 = vadd.s32 %v3142, %v3158
        %v3167 = vadd.s32 %v3143, %v3159
        %v3168 = vadd.s32 %v3144, %v3160
        %v3169 = vadd.s32 %v3145, %v3161
        %v3170 = vadd.s32 %v3146, %v3162
        %vm3171 = vcmp.ge.s32.totalorder %v731, %v3163
        %vm3172 = vcmp.ge.s32.totalorder %v732, %v3163
        %vm3173 = vcmp.ge.s32.totalorder %v733, %v3164
        %vm3174 = vcmp.ge.s32.totalorder %v734, %v3164
        %vm3175 = vcmp.ge.s32.totalorder %v735, %v3165
        %vm3176 = vcmp.ge.s32.totalorder %v736, %v3165
        %vm3177 = vcmp.ge.s32.totalorder %v737, %v3166
        %vm3178 = vcmp.ge.s32.totalorder %v738, %v3166
        %vm3179 = vcmp.ge.s32.totalorder %v739, %v3167
        %vm3180 = vcmp.ge.s32.totalorder %v740, %v3167
        %vm3181 = vcmp.ge.s32.totalorder %v741, %v3168
        %vm3182 = vcmp.ge.s32.totalorder %v742, %v3168
        %vm3183 = vcmp.ge.s32.totalorder %v743, %v3169
        %vm3184 = vcmp.ge.s32.totalorder %v744, %v3169
        %vm3185 = vcmp.ge.s32.totalorder %v745, %v3170
        %vm3186 = vcmp.ge.s32.totalorder %v746, %v3170
        %v3187 = vsel %vm3171, 1, 0
        %v3188 = vsel %vm3172, 1, 0
        %v3189 = vsel %vm3173, 1, 0
        %v3190 = vsel %vm3174, 1, 0
        %v3191 = vsel %vm3175, 1, 0
        %v3192 = vsel %vm3176, 1, 0
        %v3193 = vsel %vm3177, 1, 0
        %v3194 = vsel %vm3178, 1, 0
        %v3195 = vsel %vm3179, 1, 0
        %v3196 = vsel %vm3180, 1, 0
        %v3197 = vsel %vm3181, 1, 0
        %v3198 = vsel %vm3182, 1, 0
        %v3199 = vsel %vm3183, 1, 0
        %v3200 = vsel %vm3184, 1, 0
        %v3201 = vsel %vm3185, 1, 0
        %v3202 = vsel %vm3186, 1, 0
        %v3203 = vcvt.s32.f32 %v3187
        %v3204 = vcvt.s32.f32 %v3188
        %v3205 = vcvt.s32.f32 %v3189
        %v3206 = vcvt.s32.f32 %v3190
        %v3207 = vcvt.s32.f32 %v3191
        %v3208 = vcvt.s32.f32 %v3192
        %v3209 = vcvt.s32.f32 %v3193
        %v3210 = vcvt.s32.f32 %v3194
        %v3211 = vcvt.s32.f32 %v3195
        %v3212 = vcvt.s32.f32 %v3196
        %v3213 = vcvt.s32.f32 %v3197
        %v3214 = vcvt.s32.f32 %v3198
        %v3215 = vcvt.s32.f32 %v3199
        %v3216 = vcvt.s32.f32 %v3200
        %v3217 = vcvt.s32.f32 %v3201
        %v3218 = vcvt.s32.f32 %v3202
        %v3219 = vadd.f32 %v3203, %v3204
        %3220 = vadd.xlane.f32.xlu0 %v3219
        %v3221 = vpop.xlane.xlu0 %3220
        %v3222 = vadd.f32 %v3205, %v3206
        %3223 = vadd.xlane.f32.xlu0 %v3222
        %v3224 = vpop.xlane.xlu0 %3223
        %v3225 = vadd.f32 %v3207, %v3208
        %3226 = vadd.xlane.f32.xlu0 %v3225
        %v3227 = vpop.xlane.xlu0 %3226
        %v3228 = vadd.f32 %v3209, %v3210
        %3229 = vadd.xlane.f32.xlu0 %v3228
        %v3230 = vpop.xlane.xlu0 %3229
        %v3231 = vadd.f32 %v3211, %v3212
        %3232 = vadd.xlane.f32.xlu0 %v3231
        %v3233 = vpop.xlane.xlu0 %3232
        %v3234 = vadd.f32 %v3213, %v3214
        %3235 = vadd.xlane.f32.xlu0 %v3234
        %v3236 = vpop.xlane.xlu0 %3235
        %v3237 = vadd.f32 %v3215, %v3216
        %3238 = vadd.xlane.f32.xlu0 %v3237
        %v3239 = vpop.xlane.xlu0 %3238
        %v3240 = vadd.f32 %v3217, %v3218
        %3241 = vadd.xlane.f32.xlu0 %v3240
        %v3242 = vpop.xlane.xlu0 %3241
        %vm3243 = vcmp.ge.f32.partialorder %v3221, 40.0
        %vm3244 = vcmp.ge.f32.partialorder %v3224, 40.0
        %vm3245 = vcmp.ge.f32.partialorder %v3227, 40.0
        %vm3246 = vcmp.ge.f32.partialorder %v3230, 40.0
        %vm3247 = vcmp.ge.f32.partialorder %v3233, 40.0
        %vm3248 = vcmp.ge.f32.partialorder %v3236, 40.0
        %vm3249 = vcmp.ge.f32.partialorder %v3239, 40.0
        %vm3250 = vcmp.ge.f32.partialorder %v3242, 40.0
        %v3251 = vsel %vm3243, %v3163, %v3099
        %v3252 = vsel %vm3244, %v3164, %v3100
        %v3253 = vsel %vm3245, %v3165, %v3101
        %v3254 = vsel %vm3246, %v3166, %v3102
        %v3255 = vsel %vm3247, %v3167, %v3103
        %v3256 = vsel %vm3248, %v3168, %v3104
        %v3257 = vsel %vm3249, %v3169, %v3105
        %v3258 = vsel %vm3250, %v3170, %v3106
        %v3259 = vsub.s32 %v3163, 1
        %v3260 = vsub.s32 %v3164, 1
        %v3261 = vsub.s32 %v3165, 1
        %v3262 = vsub.s32 %v3166, 1
        %v3263 = vsub.s32 %v3167, 1
        %v3264 = vsub.s32 %v3168, 1
        %v3265 = vsub.s32 %v3169, 1
        %v3266 = vsub.s32 %v3170, 1
        %v3267 = vsel %vm3243, %v3115, %v3259
        %v3268 = vsel %vm3244, %v3116, %v3260
        %v3269 = vsel %vm3245, %v3117, %v3261
        %v3270 = vsel %vm3246, %v3118, %v3262
        %v3271 = vsel %vm3247, %v3119, %v3263
        %v3272 = vsel %vm3248, %v3120, %v3264
        %v3273 = vsel %vm3249, %v3121, %v3265
        %v3274 = vsel %vm3250, %v3122, %v3266
        %v3275 = vshra.s32 %v3251, 1
        %v3276 = vshra.s32 %v3252, 1
        %v3277 = vshra.s32 %v3253, 1
        %v3278 = vshra.s32 %v3254, 1
        %v3279 = vshra.s32 %v3255, 1
        %v3280 = vshra.s32 %v3256, 1
        %v3281 = vshra.s32 %v3257, 1
        %v3282 = vshra.s32 %v3258, 1
        %v3283 = vshra.s32 %v3267, 1
        %v3284 = vshra.s32 %v3268, 1
        %v3285 = vshra.s32 %v3269, 1
        %v3286 = vshra.s32 %v3270, 1
        %v3287 = vshra.s32 %v3271, 1
        %v3288 = vshra.s32 %v3272, 1
        %v3289 = vshra.s32 %v3273, 1
        %v3290 = vshra.s32 %v3274, 1
        %v3291 = vadd.s32 %v3275, %v3283
        %v3292 = vadd.s32 %v3276, %v3284
        %v3293 = vadd.s32 %v3277, %v3285
        %v3294 = vadd.s32 %v3278, %v3286
        %v3295 = vadd.s32 %v3279, %v3287
        %v3296 = vadd.s32 %v3280, %v3288
        %v3297 = vadd.s32 %v3281, %v3289
        %v3298 = vadd.s32 %v3282, %v3290
        %v3299 = vor.u32 %v3251, %v3267
        %v3300 = vor.u32 %v3252, %v3268
        %v3301 = vor.u32 %v3253, %v3269
        %v3302 = vor.u32 %v3254, %v3270
        %v3303 = vor.u32 %v3255, %v3271
        %v3304 = vor.u32 %v3256, %v3272
        %v3305 = vor.u32 %v3257, %v3273
        %v3306 = vor.u32 %v3258, %v3274
        %v3307 = vand.u32 %v3299, 1
        %v3308 = vand.u32 %v3300, 1
        %v3309 = vand.u32 %v3301, 1
        %v3310 = vand.u32 %v3302, 1
        %v3311 = vand.u32 %v3303, 1
        %v3312 = vand.u32 %v3304, 1
        %v3313 = vand.u32 %v3305, 1
        %v3314 = vand.u32 %v3306, 1
        %v3315 = vadd.s32 %v3291, %v3307
        %v3316 = vadd.s32 %v3292, %v3308
        %v3317 = vadd.s32 %v3293, %v3309
        %v3318 = vadd.s32 %v3294, %v3310
        %v3319 = vadd.s32 %v3295, %v3311
        %v3320 = vadd.s32 %v3296, %v3312
        %v3321 = vadd.s32 %v3297, %v3313
        %v3322 = vadd.s32 %v3298, %v3314
        %vm3323 = vcmp.ge.s32.totalorder %v731, %v3315
        %vm3324 = vcmp.ge.s32.totalorder %v732, %v3315
        %vm3325 = vcmp.ge.s32.totalorder %v733, %v3316
        %vm3326 = vcmp.ge.s32.totalorder %v734, %v3316
        %vm3327 = vcmp.ge.s32.totalorder %v735, %v3317
        %vm3328 = vcmp.ge.s32.totalorder %v736, %v3317
        %vm3329 = vcmp.ge.s32.totalorder %v737, %v3318
        %vm3330 = vcmp.ge.s32.totalorder %v738, %v3318
        %vm3331 = vcmp.ge.s32.totalorder %v739, %v3319
        %vm3332 = vcmp.ge.s32.totalorder %v740, %v3319
        %vm3333 = vcmp.ge.s32.totalorder %v741, %v3320
        %vm3334 = vcmp.ge.s32.totalorder %v742, %v3320
        %vm3335 = vcmp.ge.s32.totalorder %v743, %v3321
        %vm3336 = vcmp.ge.s32.totalorder %v744, %v3321
        %vm3337 = vcmp.ge.s32.totalorder %v745, %v3322
        %vm3338 = vcmp.ge.s32.totalorder %v746, %v3322
        %v3339 = vsel %vm3323, 1, 0
        %v3340 = vsel %vm3324, 1, 0
        %v3341 = vsel %vm3325, 1, 0
        %v3342 = vsel %vm3326, 1, 0
        %v3343 = vsel %vm3327, 1, 0
        %v3344 = vsel %vm3328, 1, 0
        %v3345 = vsel %vm3329, 1, 0
        %v3346 = vsel %vm3330, 1, 0
        %v3347 = vsel %vm3331, 1, 0
        %v3348 = vsel %vm3332, 1, 0
        %v3349 = vsel %vm3333, 1, 0
        %v3350 = vsel %vm3334, 1, 0
        %v3351 = vsel %vm3335, 1, 0
        %v3352 = vsel %vm3336, 1, 0
        %v3353 = vsel %vm3337, 1, 0
        %v3354 = vsel %vm3338, 1, 0
        %v3355 = vcvt.s32.f32 %v3339
        %v3356 = vcvt.s32.f32 %v3340
        %v3357 = vcvt.s32.f32 %v3341
        %v3358 = vcvt.s32.f32 %v3342
        %v3359 = vcvt.s32.f32 %v3343
        %v3360 = vcvt.s32.f32 %v3344
        %v3361 = vcvt.s32.f32 %v3345
        %v3362 = vcvt.s32.f32 %v3346
        %v3363 = vcvt.s32.f32 %v3347
        %v3364 = vcvt.s32.f32 %v3348
        %v3365 = vcvt.s32.f32 %v3349
        %v3366 = vcvt.s32.f32 %v3350
        %v3367 = vcvt.s32.f32 %v3351
        %v3368 = vcvt.s32.f32 %v3352
        %v3369 = vcvt.s32.f32 %v3353
        %v3370 = vcvt.s32.f32 %v3354
        %v3371 = vadd.f32 %v3355, %v3356
        %3372 = vadd.xlane.f32.xlu0 %v3371
        %v3373 = vpop.xlane.xlu0 %3372
        %v3374 = vadd.f32 %v3357, %v3358
        %3375 = vadd.xlane.f32.xlu0 %v3374
        %v3376 = vpop.xlane.xlu0 %3375
        %v3377 = vadd.f32 %v3359, %v3360
        %3378 = vadd.xlane.f32.xlu0 %v3377
        %v3379 = vpop.xlane.xlu0 %3378
        %v3380 = vadd.f32 %v3361, %v3362
        %3381 = vadd.xlane.f32.xlu0 %v3380
        %v3382 = vpop.xlane.xlu0 %3381
        %v3383 = vadd.f32 %v3363, %v3364
        %3384 = vadd.xlane.f32.xlu0 %v3383
        %v3385 = vpop.xlane.xlu0 %3384
        %v3386 = vadd.f32 %v3365, %v3366
        %3387 = vadd.xlane.f32.xlu0 %v3386
        %v3388 = vpop.xlane.xlu0 %3387
        %v3389 = vadd.f32 %v3367, %v3368
        %3390 = vadd.xlane.f32.xlu0 %v3389
        %v3391 = vpop.xlane.xlu0 %3390
        %v3392 = vadd.f32 %v3369, %v3370
        %3393 = vadd.xlane.f32.xlu0 %v3392
        %v3394 = vpop.xlane.xlu0 %3393
        %vm3395 = vcmp.ge.f32.partialorder %v3373, 40.0
        %vm3396 = vcmp.ge.f32.partialorder %v3376, 40.0
        %vm3397 = vcmp.ge.f32.partialorder %v3379, 40.0
        %vm3398 = vcmp.ge.f32.partialorder %v3382, 40.0
        %vm3399 = vcmp.ge.f32.partialorder %v3385, 40.0
        %vm3400 = vcmp.ge.f32.partialorder %v3388, 40.0
        %vm3401 = vcmp.ge.f32.partialorder %v3391, 40.0
        %vm3402 = vcmp.ge.f32.partialorder %v3394, 40.0
        %v3403 = vsel %vm3395, %v3315, %v3251
        %v3404 = vsel %vm3396, %v3316, %v3252
        %v3405 = vsel %vm3397, %v3317, %v3253
        %v3406 = vsel %vm3398, %v3318, %v3254
        %v3407 = vsel %vm3399, %v3319, %v3255
        %v3408 = vsel %vm3400, %v3320, %v3256
        %v3409 = vsel %vm3401, %v3321, %v3257
        %v3410 = vsel %vm3402, %v3322, %v3258
        %v3411 = vsub.s32 %v3315, 1
        %v3412 = vsub.s32 %v3316, 1
        %v3413 = vsub.s32 %v3317, 1
        %v3414 = vsub.s32 %v3318, 1
        %v3415 = vsub.s32 %v3319, 1
        %v3416 = vsub.s32 %v3320, 1
        %v3417 = vsub.s32 %v3321, 1
        %v3418 = vsub.s32 %v3322, 1
        %v3419 = vsel %vm3395, %v3267, %v3411
        %v3420 = vsel %vm3396, %v3268, %v3412
        %v3421 = vsel %vm3397, %v3269, %v3413
        %v3422 = vsel %vm3398, %v3270, %v3414
        %v3423 = vsel %vm3399, %v3271, %v3415
        %v3424 = vsel %vm3400, %v3272, %v3416
        %v3425 = vsel %vm3401, %v3273, %v3417
        %v3426 = vsel %vm3402, %v3274, %v3418
        %v3427 = vshra.s32 %v3403, 1
        %v3428 = vshra.s32 %v3404, 1
        %v3429 = vshra.s32 %v3405, 1
        %v3430 = vshra.s32 %v3406, 1
        %v3431 = vshra.s32 %v3407, 1
        %v3432 = vshra.s32 %v3408, 1
        %v3433 = vshra.s32 %v3409, 1
        %v3434 = vshra.s32 %v3410, 1
        %v3435 = vshra.s32 %v3419, 1
        %v3436 = vshra.s32 %v3420, 1
        %v3437 = vshra.s32 %v3421, 1
        %v3438 = vshra.s32 %v3422, 1
        %v3439 = vshra.s32 %v3423, 1
        %v3440 = vshra.s32 %v3424, 1
        %v3441 = vshra.s32 %v3425, 1
        %v3442 = vshra.s32 %v3426, 1
        %v3443 = vadd.s32 %v3427, %v3435
        %v3444 = vadd.s32 %v3428, %v3436
        %v3445 = vadd.s32 %v3429, %v3437
        %v3446 = vadd.s32 %v3430, %v3438
        %v3447 = vadd.s32 %v3431, %v3439
        %v3448 = vadd.s32 %v3432, %v3440
        %v3449 = vadd.s32 %v3433, %v3441
        %v3450 = vadd.s32 %v3434, %v3442
        %v3451 = vor.u32 %v3403, %v3419
        %v3452 = vor.u32 %v3404, %v3420
        %v3453 = vor.u32 %v3405, %v3421
        %v3454 = vor.u32 %v3406, %v3422
        %v3455 = vor.u32 %v3407, %v3423
        %v3456 = vor.u32 %v3408, %v3424
        %v3457 = vor.u32 %v3409, %v3425
        %v3458 = vor.u32 %v3410, %v3426
        %v3459 = vand.u32 %v3451, 1
        %v3460 = vand.u32 %v3452, 1
        %v3461 = vand.u32 %v3453, 1
        %v3462 = vand.u32 %v3454, 1
        %v3463 = vand.u32 %v3455, 1
        %v3464 = vand.u32 %v3456, 1
        %v3465 = vand.u32 %v3457, 1
        %v3466 = vand.u32 %v3458, 1
        %v3467 = vadd.s32 %v3443, %v3459
        %v3468 = vadd.s32 %v3444, %v3460
        %v3469 = vadd.s32 %v3445, %v3461
        %v3470 = vadd.s32 %v3446, %v3462
        %v3471 = vadd.s32 %v3447, %v3463
        %v3472 = vadd.s32 %v3448, %v3464
        %v3473 = vadd.s32 %v3449, %v3465
        %v3474 = vadd.s32 %v3450, %v3466
        %vm3475 = vcmp.ge.s32.totalorder %v731, %v3467
        %vm3476 = vcmp.ge.s32.totalorder %v732, %v3467
        %vm3477 = vcmp.ge.s32.totalorder %v733, %v3468
        %vm3478 = vcmp.ge.s32.totalorder %v734, %v3468
        %vm3479 = vcmp.ge.s32.totalorder %v735, %v3469
        %vm3480 = vcmp.ge.s32.totalorder %v736, %v3469
        %vm3481 = vcmp.ge.s32.totalorder %v737, %v3470
        %vm3482 = vcmp.ge.s32.totalorder %v738, %v3470
        %vm3483 = vcmp.ge.s32.totalorder %v739, %v3471
        %vm3484 = vcmp.ge.s32.totalorder %v740, %v3471
        %vm3485 = vcmp.ge.s32.totalorder %v741, %v3472
        %vm3486 = vcmp.ge.s32.totalorder %v742, %v3472
        %vm3487 = vcmp.ge.s32.totalorder %v743, %v3473
        %vm3488 = vcmp.ge.s32.totalorder %v744, %v3473
        %vm3489 = vcmp.ge.s32.totalorder %v745, %v3474
        %vm3490 = vcmp.ge.s32.totalorder %v746, %v3474
        %v3491 = vsel %vm3475, 1, 0
        %v3492 = vsel %vm3476, 1, 0
        %v3493 = vsel %vm3477, 1, 0
        %v3494 = vsel %vm3478, 1, 0
        %v3495 = vsel %vm3479, 1, 0
        %v3496 = vsel %vm3480, 1, 0
        %v3497 = vsel %vm3481, 1, 0
        %v3498 = vsel %vm3482, 1, 0
        %v3499 = vsel %vm3483, 1, 0
        %v3500 = vsel %vm3484, 1, 0
        %v3501 = vsel %vm3485, 1, 0
        %v3502 = vsel %vm3486, 1, 0
        %v3503 = vsel %vm3487, 1, 0
        %v3504 = vsel %vm3488, 1, 0
        %v3505 = vsel %vm3489, 1, 0
        %v3506 = vsel %vm3490, 1, 0
        %v3507 = vcvt.s32.f32 %v3491
        %v3508 = vcvt.s32.f32 %v3492
        %v3509 = vcvt.s32.f32 %v3493
        %v3510 = vcvt.s32.f32 %v3494
        %v3511 = vcvt.s32.f32 %v3495
        %v3512 = vcvt.s32.f32 %v3496
        %v3513 = vcvt.s32.f32 %v3497
        %v3514 = vcvt.s32.f32 %v3498
        %v3515 = vcvt.s32.f32 %v3499
        %v3516 = vcvt.s32.f32 %v3500
        %v3517 = vcvt.s32.f32 %v3501
        %v3518 = vcvt.s32.f32 %v3502
        %v3519 = vcvt.s32.f32 %v3503
        %v3520 = vcvt.s32.f32 %v3504
        %v3521 = vcvt.s32.f32 %v3505
        %v3522 = vcvt.s32.f32 %v3506
        %v3523 = vadd.f32 %v3507, %v3508
        %3524 = vadd.xlane.f32.xlu0 %v3523
        %v3525 = vpop.xlane.xlu0 %3524
        %v3526 = vadd.f32 %v3509, %v3510
        %3527 = vadd.xlane.f32.xlu0 %v3526
        %v3528 = vpop.xlane.xlu0 %3527
        %v3529 = vadd.f32 %v3511, %v3512
        %3530 = vadd.xlane.f32.xlu0 %v3529
        %v3531 = vpop.xlane.xlu0 %3530
        %v3532 = vadd.f32 %v3513, %v3514
        %3533 = vadd.xlane.f32.xlu0 %v3532
        %v3534 = vpop.xlane.xlu0 %3533
        %v3535 = vadd.f32 %v3515, %v3516
        %3536 = vadd.xlane.f32.xlu0 %v3535
        %v3537 = vpop.xlane.xlu0 %3536
        %v3538 = vadd.f32 %v3517, %v3518
        %3539 = vadd.xlane.f32.xlu0 %v3538
        %v3540 = vpop.xlane.xlu0 %3539
        %v3541 = vadd.f32 %v3519, %v3520
        %3542 = vadd.xlane.f32.xlu0 %v3541
        %v3543 = vpop.xlane.xlu0 %3542
        %v3544 = vadd.f32 %v3521, %v3522
        %3545 = vadd.xlane.f32.xlu0 %v3544
        %v3546 = vpop.xlane.xlu0 %3545
        %vm3547 = vcmp.ge.f32.partialorder %v3525, 40.0
        %vm3548 = vcmp.ge.f32.partialorder %v3528, 40.0
        %vm3549 = vcmp.ge.f32.partialorder %v3531, 40.0
        %vm3550 = vcmp.ge.f32.partialorder %v3534, 40.0
        %vm3551 = vcmp.ge.f32.partialorder %v3537, 40.0
        %vm3552 = vcmp.ge.f32.partialorder %v3540, 40.0
        %vm3553 = vcmp.ge.f32.partialorder %v3543, 40.0
        %vm3554 = vcmp.ge.f32.partialorder %v3546, 40.0
        %v3555 = vsel %vm3547, %v3467, %v3403
        %v3556 = vsel %vm3548, %v3468, %v3404
        %v3557 = vsel %vm3549, %v3469, %v3405
        %v3558 = vsel %vm3550, %v3470, %v3406
        %v3559 = vsel %vm3551, %v3471, %v3407
        %v3560 = vsel %vm3552, %v3472, %v3408
        %v3561 = vsel %vm3553, %v3473, %v3409
        %v3562 = vsel %vm3554, %v3474, %v3410
        %v3563 = vsub.s32 %v3467, 1
        %v3564 = vsub.s32 %v3468, 1
        %v3565 = vsub.s32 %v3469, 1
        %v3566 = vsub.s32 %v3470, 1
        %v3567 = vsub.s32 %v3471, 1
        %v3568 = vsub.s32 %v3472, 1
        %v3569 = vsub.s32 %v3473, 1
        %v3570 = vsub.s32 %v3474, 1
        %v3571 = vsel %vm3547, %v3419, %v3563
        %v3572 = vsel %vm3548, %v3420, %v3564
        %v3573 = vsel %vm3549, %v3421, %v3565
        %v3574 = vsel %vm3550, %v3422, %v3566
        %v3575 = vsel %vm3551, %v3423, %v3567
        %v3576 = vsel %vm3552, %v3424, %v3568
        %v3577 = vsel %vm3553, %v3425, %v3569
        %v3578 = vsel %vm3554, %v3426, %v3570
        %v3579 = vshra.s32 %v3555, 1
        %v3580 = vshra.s32 %v3556, 1
        %v3581 = vshra.s32 %v3557, 1
        %v3582 = vshra.s32 %v3558, 1
        %v3583 = vshra.s32 %v3559, 1
        %v3584 = vshra.s32 %v3560, 1
        %v3585 = vshra.s32 %v3561, 1
        %v3586 = vshra.s32 %v3562, 1
        %v3587 = vshra.s32 %v3571, 1
        %v3588 = vshra.s32 %v3572, 1
        %v3589 = vshra.s32 %v3573, 1
        %v3590 = vshra.s32 %v3574, 1
        %v3591 = vshra.s32 %v3575, 1
        %v3592 = vshra.s32 %v3576, 1
        %v3593 = vshra.s32 %v3577, 1
        %v3594 = vshra.s32 %v3578, 1
        %v3595 = vadd.s32 %v3579, %v3587
        %v3596 = vadd.s32 %v3580, %v3588
        %v3597 = vadd.s32 %v3581, %v3589
        %v3598 = vadd.s32 %v3582, %v3590
        %v3599 = vadd.s32 %v3583, %v3591
        %v3600 = vadd.s32 %v3584, %v3592
        %v3601 = vadd.s32 %v3585, %v3593
        %v3602 = vadd.s32 %v3586, %v3594
        %v3603 = vor.u32 %v3555, %v3571
        %v3604 = vor.u32 %v3556, %v3572
        %v3605 = vor.u32 %v3557, %v3573
        %v3606 = vor.u32 %v3558, %v3574
        %v3607 = vor.u32 %v3559, %v3575
        %v3608 = vor.u32 %v3560, %v3576
        %v3609 = vor.u32 %v3561, %v3577
        %v3610 = vor.u32 %v3562, %v3578
        %v3611 = vand.u32 %v3603, 1
        %v3612 = vand.u32 %v3604, 1
        %v3613 = vand.u32 %v3605, 1
        %v3614 = vand.u32 %v3606, 1
        %v3615 = vand.u32 %v3607, 1
        %v3616 = vand.u32 %v3608, 1
        %v3617 = vand.u32 %v3609, 1
        %v3618 = vand.u32 %v3610, 1
        %v3619 = vadd.s32 %v3595, %v3611
        %v3620 = vadd.s32 %v3596, %v3612
        %v3621 = vadd.s32 %v3597, %v3613
        %v3622 = vadd.s32 %v3598, %v3614
        %v3623 = vadd.s32 %v3599, %v3615
        %v3624 = vadd.s32 %v3600, %v3616
        %v3625 = vadd.s32 %v3601, %v3617
        %v3626 = vadd.s32 %v3602, %v3618
        %vm3627 = vcmp.ge.s32.totalorder %v731, %v3619
        %vm3628 = vcmp.ge.s32.totalorder %v732, %v3619
        %vm3629 = vcmp.ge.s32.totalorder %v733, %v3620
        %vm3630 = vcmp.ge.s32.totalorder %v734, %v3620
        %vm3631 = vcmp.ge.s32.totalorder %v735, %v3621
        %vm3632 = vcmp.ge.s32.totalorder %v736, %v3621
        %vm3633 = vcmp.ge.s32.totalorder %v737, %v3622
        %vm3634 = vcmp.ge.s32.totalorder %v738, %v3622
        %vm3635 = vcmp.ge.s32.totalorder %v739, %v3623
        %vm3636 = vcmp.ge.s32.totalorder %v740, %v3623
        %vm3637 = vcmp.ge.s32.totalorder %v741, %v3624
        %vm3638 = vcmp.ge.s32.totalorder %v742, %v3624
        %vm3639 = vcmp.ge.s32.totalorder %v743, %v3625
        %vm3640 = vcmp.ge.s32.totalorder %v744, %v3625
        %vm3641 = vcmp.ge.s32.totalorder %v745, %v3626
        %vm3642 = vcmp.ge.s32.totalorder %v746, %v3626
        %v3643 = vsel %vm3627, 1, 0
        %v3644 = vsel %vm3628, 1, 0
        %v3645 = vsel %vm3629, 1, 0
        %v3646 = vsel %vm3630, 1, 0
        %v3647 = vsel %vm3631, 1, 0
        %v3648 = vsel %vm3632, 1, 0
        %v3649 = vsel %vm3633, 1, 0
        %v3650 = vsel %vm3634, 1, 0
        %v3651 = vsel %vm3635, 1, 0
        %v3652 = vsel %vm3636, 1, 0
        %v3653 = vsel %vm3637, 1, 0
        %v3654 = vsel %vm3638, 1, 0
        %v3655 = vsel %vm3639, 1, 0
        %v3656 = vsel %vm3640, 1, 0
        %v3657 = vsel %vm3641, 1, 0
        %v3658 = vsel %vm3642, 1, 0
        %v3659 = vcvt.s32.f32 %v3643
        %v3660 = vcvt.s32.f32 %v3644
        %v3661 = vcvt.s32.f32 %v3645
        %v3662 = vcvt.s32.f32 %v3646
        %v3663 = vcvt.s32.f32 %v3647
        %v3664 = vcvt.s32.f32 %v3648
        %v3665 = vcvt.s32.f32 %v3649
        %v3666 = vcvt.s32.f32 %v3650
        %v3667 = vcvt.s32.f32 %v3651
        %v3668 = vcvt.s32.f32 %v3652
        %v3669 = vcvt.s32.f32 %v3653
        %v3670 = vcvt.s32.f32 %v3654
        %v3671 = vcvt.s32.f32 %v3655
        %v3672 = vcvt.s32.f32 %v3656
        %v3673 = vcvt.s32.f32 %v3657
        %v3674 = vcvt.s32.f32 %v3658
        %v3675 = vadd.f32 %v3659, %v3660
        %3676 = vadd.xlane.f32.xlu0 %v3675
        %v3677 = vpop.xlane.xlu0 %3676
        %v3678 = vadd.f32 %v3661, %v3662
        %3679 = vadd.xlane.f32.xlu0 %v3678
        %v3680 = vpop.xlane.xlu0 %3679
        %v3681 = vadd.f32 %v3663, %v3664
        %3682 = vadd.xlane.f32.xlu0 %v3681
        %v3683 = vpop.xlane.xlu0 %3682
        %v3684 = vadd.f32 %v3665, %v3666
        %3685 = vadd.xlane.f32.xlu0 %v3684
        %v3686 = vpop.xlane.xlu0 %3685
        %v3687 = vadd.f32 %v3667, %v3668
        %3688 = vadd.xlane.f32.xlu0 %v3687
        %v3689 = vpop.xlane.xlu0 %3688
        %v3690 = vadd.f32 %v3669, %v3670
        %3691 = vadd.xlane.f32.xlu0 %v3690
        %v3692 = vpop.xlane.xlu0 %3691
        %v3693 = vadd.f32 %v3671, %v3672
        %3694 = vadd.xlane.f32.xlu0 %v3693
        %v3695 = vpop.xlane.xlu0 %3694
        %v3696 = vadd.f32 %v3673, %v3674
        %3697 = vadd.xlane.f32.xlu0 %v3696
        %v3698 = vpop.xlane.xlu0 %3697
        %vm3699 = vcmp.ge.f32.partialorder %v3677, 40.0
        %vm3700 = vcmp.ge.f32.partialorder %v3680, 40.0
        %vm3701 = vcmp.ge.f32.partialorder %v3683, 40.0
        %vm3702 = vcmp.ge.f32.partialorder %v3686, 40.0
        %vm3703 = vcmp.ge.f32.partialorder %v3689, 40.0
        %vm3704 = vcmp.ge.f32.partialorder %v3692, 40.0
        %vm3705 = vcmp.ge.f32.partialorder %v3695, 40.0
        %vm3706 = vcmp.ge.f32.partialorder %v3698, 40.0
        %v3707 = vsel %vm3699, %v3619, %v3555
        %v3708 = vsel %vm3700, %v3620, %v3556
        %v3709 = vsel %vm3701, %v3621, %v3557
        %v3710 = vsel %vm3702, %v3622, %v3558
        %v3711 = vsel %vm3703, %v3623, %v3559
        %v3712 = vsel %vm3704, %v3624, %v3560
        %v3713 = vsel %vm3705, %v3625, %v3561
        %v3714 = vsel %vm3706, %v3626, %v3562
        %v3715 = vsub.s32 %v3619, 1
        %v3716 = vsub.s32 %v3620, 1
        %v3717 = vsub.s32 %v3621, 1
        %v3718 = vsub.s32 %v3622, 1
        %v3719 = vsub.s32 %v3623, 1
        %v3720 = vsub.s32 %v3624, 1
        %v3721 = vsub.s32 %v3625, 1
        %v3722 = vsub.s32 %v3626, 1
        %v3723 = vsel %vm3699, %v3571, %v3715
        %v3724 = vsel %vm3700, %v3572, %v3716
        %v3725 = vsel %vm3701, %v3573, %v3717
        %v3726 = vsel %vm3702, %v3574, %v3718
        %v3727 = vsel %vm3703, %v3575, %v3719
        %v3728 = vsel %vm3704, %v3576, %v3720
        %v3729 = vsel %vm3705, %v3577, %v3721
        %v3730 = vsel %vm3706, %v3578, %v3722
        %v3731 = vshra.s32 %v3707, 1
        %v3732 = vshra.s32 %v3708, 1
        %v3733 = vshra.s32 %v3709, 1
        %v3734 = vshra.s32 %v3710, 1
        %v3735 = vshra.s32 %v3711, 1
        %v3736 = vshra.s32 %v3712, 1
        %v3737 = vshra.s32 %v3713, 1
        %v3738 = vshra.s32 %v3714, 1
        %v3739 = vshra.s32 %v3723, 1
        %v3740 = vshra.s32 %v3724, 1
        %v3741 = vshra.s32 %v3725, 1
        %v3742 = vshra.s32 %v3726, 1
        %v3743 = vshra.s32 %v3727, 1
        %v3744 = vshra.s32 %v3728, 1
        %v3745 = vshra.s32 %v3729, 1
        %v3746 = vshra.s32 %v3730, 1
        %v3747 = vadd.s32 %v3731, %v3739
        %v3748 = vadd.s32 %v3732, %v3740
        %v3749 = vadd.s32 %v3733, %v3741
        %v3750 = vadd.s32 %v3734, %v3742
        %v3751 = vadd.s32 %v3735, %v3743
        %v3752 = vadd.s32 %v3736, %v3744
        %v3753 = vadd.s32 %v3737, %v3745
        %v3754 = vadd.s32 %v3738, %v3746
        %v3755 = vor.u32 %v3707, %v3723
        %v3756 = vor.u32 %v3708, %v3724
        %v3757 = vor.u32 %v3709, %v3725
        %v3758 = vor.u32 %v3710, %v3726
        %v3759 = vor.u32 %v3711, %v3727
        %v3760 = vor.u32 %v3712, %v3728
        %v3761 = vor.u32 %v3713, %v3729
        %v3762 = vor.u32 %v3714, %v3730
        %v3763 = vand.u32 %v3755, 1
        %v3764 = vand.u32 %v3756, 1
        %v3765 = vand.u32 %v3757, 1
        %v3766 = vand.u32 %v3758, 1
        %v3767 = vand.u32 %v3759, 1
        %v3768 = vand.u32 %v3760, 1
        %v3769 = vand.u32 %v3761, 1
        %v3770 = vand.u32 %v3762, 1
        %v3771 = vadd.s32 %v3747, %v3763
        %v3772 = vadd.s32 %v3748, %v3764
        %v3773 = vadd.s32 %v3749, %v3765
        %v3774 = vadd.s32 %v3750, %v3766
        %v3775 = vadd.s32 %v3751, %v3767
        %v3776 = vadd.s32 %v3752, %v3768
        %v3777 = vadd.s32 %v3753, %v3769
        %v3778 = vadd.s32 %v3754, %v3770
        %vm3779 = vcmp.ge.s32.totalorder %v731, %v3771
        %vm3780 = vcmp.ge.s32.totalorder %v732, %v3771
        %vm3781 = vcmp.ge.s32.totalorder %v733, %v3772
        %vm3782 = vcmp.ge.s32.totalorder %v734, %v3772
        %vm3783 = vcmp.ge.s32.totalorder %v735, %v3773
        %vm3784 = vcmp.ge.s32.totalorder %v736, %v3773
        %vm3785 = vcmp.ge.s32.totalorder %v737, %v3774
        %vm3786 = vcmp.ge.s32.totalorder %v738, %v3774
        %vm3787 = vcmp.ge.s32.totalorder %v739, %v3775
        %vm3788 = vcmp.ge.s32.totalorder %v740, %v3775
        %vm3789 = vcmp.ge.s32.totalorder %v741, %v3776
        %vm3790 = vcmp.ge.s32.totalorder %v742, %v3776
        %vm3791 = vcmp.ge.s32.totalorder %v743, %v3777
        %vm3792 = vcmp.ge.s32.totalorder %v744, %v3777
        %vm3793 = vcmp.ge.s32.totalorder %v745, %v3778
        %vm3794 = vcmp.ge.s32.totalorder %v746, %v3778
        %v3795 = vsel %vm3779, 1, 0
        %v3796 = vsel %vm3780, 1, 0
        %v3797 = vsel %vm3781, 1, 0
        %v3798 = vsel %vm3782, 1, 0
        %v3799 = vsel %vm3783, 1, 0
        %v3800 = vsel %vm3784, 1, 0
        %v3801 = vsel %vm3785, 1, 0
        %v3802 = vsel %vm3786, 1, 0
        %v3803 = vsel %vm3787, 1, 0
        %v3804 = vsel %vm3788, 1, 0
        %v3805 = vsel %vm3789, 1, 0
        %v3806 = vsel %vm3790, 1, 0
        %v3807 = vsel %vm3791, 1, 0
        %v3808 = vsel %vm3792, 1, 0
        %v3809 = vsel %vm3793, 1, 0
        %v3810 = vsel %vm3794, 1, 0
        %v3811 = vcvt.s32.f32 %v3795
        %v3812 = vcvt.s32.f32 %v3796
        %v3813 = vcvt.s32.f32 %v3797
        %v3814 = vcvt.s32.f32 %v3798
        %v3815 = vcvt.s32.f32 %v3799
        %v3816 = vcvt.s32.f32 %v3800
        %v3817 = vcvt.s32.f32 %v3801
        %v3818 = vcvt.s32.f32 %v3802
        %v3819 = vcvt.s32.f32 %v3803
        %v3820 = vcvt.s32.f32 %v3804
        %v3821 = vcvt.s32.f32 %v3805
        %v3822 = vcvt.s32.f32 %v3806
        %v3823 = vcvt.s32.f32 %v3807
        %v3824 = vcvt.s32.f32 %v3808
        %v3825 = vcvt.s32.f32 %v3809
        %v3826 = vcvt.s32.f32 %v3810
        %v3827 = vadd.f32 %v3811, %v3812
        %3828 = vadd.xlane.f32.xlu0 %v3827
        %v3829 = vpop.xlane.xlu0 %3828
        %v3830 = vadd.f32 %v3813, %v3814
        %3831 = vadd.xlane.f32.xlu0 %v3830
        %v3832 = vpop.xlane.xlu0 %3831
        %v3833 = vadd.f32 %v3815, %v3816
        %3834 = vadd.xlane.f32.xlu0 %v3833
        %v3835 = vpop.xlane.xlu0 %3834
        %v3836 = vadd.f32 %v3817, %v3818
        %3837 = vadd.xlane.f32.xlu0 %v3836
        %v3838 = vpop.xlane.xlu0 %3837
        %v3839 = vadd.f32 %v3819, %v3820
        %3840 = vadd.xlane.f32.xlu0 %v3839
        %v3841 = vpop.xlane.xlu0 %3840
        %v3842 = vadd.f32 %v3821, %v3822
        %3843 = vadd.xlane.f32.xlu0 %v3842
        %v3844 = vpop.xlane.xlu0 %3843
        %v3845 = vadd.f32 %v3823, %v3824
        %3846 = vadd.xlane.f32.xlu0 %v3845
        %v3847 = vpop.xlane.xlu0 %3846
        %v3848 = vadd.f32 %v3825, %v3826
        %3849 = vadd.xlane.f32.xlu0 %v3848
        %v3850 = vpop.xlane.xlu0 %3849
        %vm3851 = vcmp.ge.f32.partialorder %v3829, 40.0
        %vm3852 = vcmp.ge.f32.partialorder %v3832, 40.0
        %vm3853 = vcmp.ge.f32.partialorder %v3835, 40.0
        %vm3854 = vcmp.ge.f32.partialorder %v3838, 40.0
        %vm3855 = vcmp.ge.f32.partialorder %v3841, 40.0
        %vm3856 = vcmp.ge.f32.partialorder %v3844, 40.0
        %vm3857 = vcmp.ge.f32.partialorder %v3847, 40.0
        %vm3858 = vcmp.ge.f32.partialorder %v3850, 40.0
        %v3859 = vsel %vm3851, %v3771, %v3707
        %v3860 = vsel %vm3852, %v3772, %v3708
        %v3861 = vsel %vm3853, %v3773, %v3709
        %v3862 = vsel %vm3854, %v3774, %v3710
        %v3863 = vsel %vm3855, %v3775, %v3711
        %v3864 = vsel %vm3856, %v3776, %v3712
        %v3865 = vsel %vm3857, %v3777, %v3713
        %v3866 = vsel %vm3858, %v3778, %v3714
        %v3867 = vsub.s32 %v3771, 1
        %v3868 = vsub.s32 %v3772, 1
        %v3869 = vsub.s32 %v3773, 1
        %v3870 = vsub.s32 %v3774, 1
        %v3871 = vsub.s32 %v3775, 1
        %v3872 = vsub.s32 %v3776, 1
        %v3873 = vsub.s32 %v3777, 1
        %v3874 = vsub.s32 %v3778, 1
        %v3875 = vsel %vm3851, %v3723, %v3867
        %v3876 = vsel %vm3852, %v3724, %v3868
        %v3877 = vsel %vm3853, %v3725, %v3869
        %v3878 = vsel %vm3854, %v3726, %v3870
        %v3879 = vsel %vm3855, %v3727, %v3871
        %v3880 = vsel %vm3856, %v3728, %v3872
        %v3881 = vsel %vm3857, %v3729, %v3873
        %v3882 = vsel %vm3858, %v3730, %v3874
        %v3883 = vshra.s32 %v3859, 1
        %v3884 = vshra.s32 %v3860, 1
        %v3885 = vshra.s32 %v3861, 1
        %v3886 = vshra.s32 %v3862, 1
        %v3887 = vshra.s32 %v3863, 1
        %v3888 = vshra.s32 %v3864, 1
        %v3889 = vshra.s32 %v3865, 1
        %v3890 = vshra.s32 %v3866, 1
        %v3891 = vshra.s32 %v3875, 1
        %v3892 = vshra.s32 %v3876, 1
        %v3893 = vshra.s32 %v3877, 1
        %v3894 = vshra.s32 %v3878, 1
        %v3895 = vshra.s32 %v3879, 1
        %v3896 = vshra.s32 %v3880, 1
        %v3897 = vshra.s32 %v3881, 1
        %v3898 = vshra.s32 %v3882, 1
        %v3899 = vadd.s32 %v3883, %v3891
        %v3900 = vadd.s32 %v3884, %v3892
        %v3901 = vadd.s32 %v3885, %v3893
        %v3902 = vadd.s32 %v3886, %v3894
        %v3903 = vadd.s32 %v3887, %v3895
        %v3904 = vadd.s32 %v3888, %v3896
        %v3905 = vadd.s32 %v3889, %v3897
        %v3906 = vadd.s32 %v3890, %v3898
        %v3907 = vor.u32 %v3859, %v3875
        %v3908 = vor.u32 %v3860, %v3876
        %v3909 = vor.u32 %v3861, %v3877
        %v3910 = vor.u32 %v3862, %v3878
        %v3911 = vor.u32 %v3863, %v3879
        %v3912 = vor.u32 %v3864, %v3880
        %v3913 = vor.u32 %v3865, %v3881
        %v3914 = vor.u32 %v3866, %v3882
        %v3915 = vand.u32 %v3907, 1
        %v3916 = vand.u32 %v3908, 1
        %v3917 = vand.u32 %v3909, 1
        %v3918 = vand.u32 %v3910, 1
        %v3919 = vand.u32 %v3911, 1
        %v3920 = vand.u32 %v3912, 1
        %v3921 = vand.u32 %v3913, 1
        %v3922 = vand.u32 %v3914, 1
        %v3923 = vadd.s32 %v3899, %v3915
        %v3924 = vadd.s32 %v3900, %v3916
        %v3925 = vadd.s32 %v3901, %v3917
        %v3926 = vadd.s32 %v3902, %v3918
        %v3927 = vadd.s32 %v3903, %v3919
        %v3928 = vadd.s32 %v3904, %v3920
        %v3929 = vadd.s32 %v3905, %v3921
        %v3930 = vadd.s32 %v3906, %v3922
        %vm3931 = vcmp.ge.s32.totalorder %v731, %v3923
        %vm3932 = vcmp.ge.s32.totalorder %v732, %v3923
        %vm3933 = vcmp.ge.s32.totalorder %v733, %v3924
        %vm3934 = vcmp.ge.s32.totalorder %v734, %v3924
        %vm3935 = vcmp.ge.s32.totalorder %v735, %v3925
        %vm3936 = vcmp.ge.s32.totalorder %v736, %v3925
        %vm3937 = vcmp.ge.s32.totalorder %v737, %v3926
        %vm3938 = vcmp.ge.s32.totalorder %v738, %v3926
        %vm3939 = vcmp.ge.s32.totalorder %v739, %v3927
        %vm3940 = vcmp.ge.s32.totalorder %v740, %v3927
        %vm3941 = vcmp.ge.s32.totalorder %v741, %v3928
        %vm3942 = vcmp.ge.s32.totalorder %v742, %v3928
        %vm3943 = vcmp.ge.s32.totalorder %v743, %v3929
        %vm3944 = vcmp.ge.s32.totalorder %v744, %v3929
        %vm3945 = vcmp.ge.s32.totalorder %v745, %v3930
        %vm3946 = vcmp.ge.s32.totalorder %v746, %v3930
        %v3947 = vsel %vm3931, 1, 0
        %v3948 = vsel %vm3932, 1, 0
        %v3949 = vsel %vm3933, 1, 0
        %v3950 = vsel %vm3934, 1, 0
        %v3951 = vsel %vm3935, 1, 0
        %v3952 = vsel %vm3936, 1, 0
        %v3953 = vsel %vm3937, 1, 0
        %v3954 = vsel %vm3938, 1, 0
        %v3955 = vsel %vm3939, 1, 0
        %v3956 = vsel %vm3940, 1, 0
        %v3957 = vsel %vm3941, 1, 0
        %v3958 = vsel %vm3942, 1, 0
        %v3959 = vsel %vm3943, 1, 0
        %v3960 = vsel %vm3944, 1, 0
        %v3961 = vsel %vm3945, 1, 0
        %v3962 = vsel %vm3946, 1, 0
        %v3963 = vcvt.s32.f32 %v3947
        %v3964 = vcvt.s32.f32 %v3948
        %v3965 = vcvt.s32.f32 %v3949
        %v3966 = vcvt.s32.f32 %v3950
        %v3967 = vcvt.s32.f32 %v3951
        %v3968 = vcvt.s32.f32 %v3952
        %v3969 = vcvt.s32.f32 %v3953
        %v3970 = vcvt.s32.f32 %v3954
        %v3971 = vcvt.s32.f32 %v3955
        %v3972 = vcvt.s32.f32 %v3956
        %v3973 = vcvt.s32.f32 %v3957
        %v3974 = vcvt.s32.f32 %v3958
        %v3975 = vcvt.s32.f32 %v3959
        %v3976 = vcvt.s32.f32 %v3960
        %v3977 = vcvt.s32.f32 %v3961
        %v3978 = vcvt.s32.f32 %v3962
        %v3979 = vadd.f32 %v3963, %v3964
        %3980 = vadd.xlane.f32.xlu0 %v3979
        %v3981 = vpop.xlane.xlu0 %3980
        %v3982 = vadd.f32 %v3965, %v3966
        %3983 = vadd.xlane.f32.xlu0 %v3982
        %v3984 = vpop.xlane.xlu0 %3983
        %v3985 = vadd.f32 %v3967, %v3968
        %3986 = vadd.xlane.f32.xlu0 %v3985
        %v3987 = vpop.xlane.xlu0 %3986
        %v3988 = vadd.f32 %v3969, %v3970
        %3989 = vadd.xlane.f32.xlu0 %v3988
        %v3990 = vpop.xlane.xlu0 %3989
        %v3991 = vadd.f32 %v3971, %v3972
        %3992 = vadd.xlane.f32.xlu0 %v3991
        %v3993 = vpop.xlane.xlu0 %3992
        %v3994 = vadd.f32 %v3973, %v3974
        %3995 = vadd.xlane.f32.xlu0 %v3994
        %v3996 = vpop.xlane.xlu0 %3995
        %v3997 = vadd.f32 %v3975, %v3976
        %3998 = vadd.xlane.f32.xlu0 %v3997
        %v3999 = vpop.xlane.xlu0 %3998
        %v4000 = vadd.f32 %v3977, %v3978
        %4001 = vadd.xlane.f32.xlu0 %v4000
        %v4002 = vpop.xlane.xlu0 %4001
        %vm4003 = vcmp.ge.f32.partialorder %v3981, 40.0
        %vm4004 = vcmp.ge.f32.partialorder %v3984, 40.0
        %vm4005 = vcmp.ge.f32.partialorder %v3987, 40.0
        %vm4006 = vcmp.ge.f32.partialorder %v3990, 40.0
        %vm4007 = vcmp.ge.f32.partialorder %v3993, 40.0
        %vm4008 = vcmp.ge.f32.partialorder %v3996, 40.0
        %vm4009 = vcmp.ge.f32.partialorder %v3999, 40.0
        %vm4010 = vcmp.ge.f32.partialorder %v4002, 40.0
        %v4011 = vsel %vm4003, %v3923, %v3859
        %v4012 = vsel %vm4004, %v3924, %v3860
        %v4013 = vsel %vm4005, %v3925, %v3861
        %v4014 = vsel %vm4006, %v3926, %v3862
        %v4015 = vsel %vm4007, %v3927, %v3863
        %v4016 = vsel %vm4008, %v3928, %v3864
        %v4017 = vsel %vm4009, %v3929, %v3865
        %v4018 = vsel %vm4010, %v3930, %v3866
        %v4019 = vsub.s32 %v3923, 1
        %v4020 = vsub.s32 %v3924, 1
        %v4021 = vsub.s32 %v3925, 1
        %v4022 = vsub.s32 %v3926, 1
        %v4023 = vsub.s32 %v3927, 1
        %v4024 = vsub.s32 %v3928, 1
        %v4025 = vsub.s32 %v3929, 1
        %v4026 = vsub.s32 %v3930, 1
        %v4027 = vsel %vm4003, %v3875, %v4019
        %v4028 = vsel %vm4004, %v3876, %v4020
        %v4029 = vsel %vm4005, %v3877, %v4021
        %v4030 = vsel %vm4006, %v3878, %v4022
        %v4031 = vsel %vm4007, %v3879, %v4023
        %v4032 = vsel %vm4008, %v3880, %v4024
        %v4033 = vsel %vm4009, %v3881, %v4025
        %v4034 = vsel %vm4010, %v3882, %v4026
        %v4035 = vshra.s32 %v4011, 1
        %v4036 = vshra.s32 %v4012, 1
        %v4037 = vshra.s32 %v4013, 1
        %v4038 = vshra.s32 %v4014, 1
        %v4039 = vshra.s32 %v4015, 1
        %v4040 = vshra.s32 %v4016, 1
        %v4041 = vshra.s32 %v4017, 1
        %v4042 = vshra.s32 %v4018, 1
        %v4043 = vshra.s32 %v4027, 1
        %v4044 = vshra.s32 %v4028, 1
        %v4045 = vshra.s32 %v4029, 1
        %v4046 = vshra.s32 %v4030, 1
        %v4047 = vshra.s32 %v4031, 1
        %v4048 = vshra.s32 %v4032, 1
        %v4049 = vshra.s32 %v4033, 1
        %v4050 = vshra.s32 %v4034, 1
        %v4051 = vadd.s32 %v4035, %v4043
        %v4052 = vadd.s32 %v4036, %v4044
        %v4053 = vadd.s32 %v4037, %v4045
        %v4054 = vadd.s32 %v4038, %v4046
        %v4055 = vadd.s32 %v4039, %v4047
        %v4056 = vadd.s32 %v4040, %v4048
        %v4057 = vadd.s32 %v4041, %v4049
        %v4058 = vadd.s32 %v4042, %v4050
        %v4059 = vor.u32 %v4011, %v4027
        %v4060 = vor.u32 %v4012, %v4028
        %v4061 = vor.u32 %v4013, %v4029
        %v4062 = vor.u32 %v4014, %v4030
        %v4063 = vor.u32 %v4015, %v4031
        %v4064 = vor.u32 %v4016, %v4032
        %v4065 = vor.u32 %v4017, %v4033
        %v4066 = vor.u32 %v4018, %v4034
        %v4067 = vand.u32 %v4059, 1
        %v4068 = vand.u32 %v4060, 1
        %v4069 = vand.u32 %v4061, 1
        %v4070 = vand.u32 %v4062, 1
        %v4071 = vand.u32 %v4063, 1
        %v4072 = vand.u32 %v4064, 1
        %v4073 = vand.u32 %v4065, 1
        %v4074 = vand.u32 %v4066, 1
        %v4075 = vadd.s32 %v4051, %v4067
        %v4076 = vadd.s32 %v4052, %v4068
        %v4077 = vadd.s32 %v4053, %v4069
        %v4078 = vadd.s32 %v4054, %v4070
        %v4079 = vadd.s32 %v4055, %v4071
        %v4080 = vadd.s32 %v4056, %v4072
        %v4081 = vadd.s32 %v4057, %v4073
        %v4082 = vadd.s32 %v4058, %v4074
        %vm4083 = vcmp.ge.s32.totalorder %v731, %v4075
        %vm4084 = vcmp.ge.s32.totalorder %v732, %v4075
        %vm4085 = vcmp.ge.s32.totalorder %v733, %v4076
        %vm4086 = vcmp.ge.s32.totalorder %v734, %v4076
        %vm4087 = vcmp.ge.s32.totalorder %v735, %v4077
        %vm4088 = vcmp.ge.s32.totalorder %v736, %v4077
        %vm4089 = vcmp.ge.s32.totalorder %v737, %v4078
        %vm4090 = vcmp.ge.s32.totalorder %v738, %v4078
        %vm4091 = vcmp.ge.s32.totalorder %v739, %v4079
        %vm4092 = vcmp.ge.s32.totalorder %v740, %v4079
        %vm4093 = vcmp.ge.s32.totalorder %v741, %v4080
        %vm4094 = vcmp.ge.s32.totalorder %v742, %v4080
        %vm4095 = vcmp.ge.s32.totalorder %v743, %v4081
        %vm4096 = vcmp.ge.s32.totalorder %v744, %v4081
        %vm4097 = vcmp.ge.s32.totalorder %v745, %v4082
        %vm4098 = vcmp.ge.s32.totalorder %v746, %v4082
        %v4099 = vsel %vm4083, 1, 0
        %v4100 = vsel %vm4084, 1, 0
        %v4101 = vsel %vm4085, 1, 0
        %v4102 = vsel %vm4086, 1, 0
        %v4103 = vsel %vm4087, 1, 0
        %v4104 = vsel %vm4088, 1, 0
        %v4105 = vsel %vm4089, 1, 0
        %v4106 = vsel %vm4090, 1, 0
        %v4107 = vsel %vm4091, 1, 0
        %v4108 = vsel %vm4092, 1, 0
        %v4109 = vsel %vm4093, 1, 0
        %v4110 = vsel %vm4094, 1, 0
        %v4111 = vsel %vm4095, 1, 0
        %v4112 = vsel %vm4096, 1, 0
        %v4113 = vsel %vm4097, 1, 0
        %v4114 = vsel %vm4098, 1, 0
        %v4115 = vcvt.s32.f32 %v4099
        %v4116 = vcvt.s32.f32 %v4100
        %v4117 = vcvt.s32.f32 %v4101
        %v4118 = vcvt.s32.f32 %v4102
        %v4119 = vcvt.s32.f32 %v4103
        %v4120 = vcvt.s32.f32 %v4104
        %v4121 = vcvt.s32.f32 %v4105
        %v4122 = vcvt.s32.f32 %v4106
        %v4123 = vcvt.s32.f32 %v4107
        %v4124 = vcvt.s32.f32 %v4108
        %v4125 = vcvt.s32.f32 %v4109
        %v4126 = vcvt.s32.f32 %v4110
        %v4127 = vcvt.s32.f32 %v4111
        %v4128 = vcvt.s32.f32 %v4112
        %v4129 = vcvt.s32.f32 %v4113
        %v4130 = vcvt.s32.f32 %v4114
        %v4131 = vadd.f32 %v4115, %v4116
        %4132 = vadd.xlane.f32.xlu0 %v4131
        %v4133 = vpop.xlane.xlu0 %4132
        %v4134 = vadd.f32 %v4117, %v4118
        %4135 = vadd.xlane.f32.xlu0 %v4134
        %v4136 = vpop.xlane.xlu0 %4135
        %v4137 = vadd.f32 %v4119, %v4120
        %4138 = vadd.xlane.f32.xlu0 %v4137
        %v4139 = vpop.xlane.xlu0 %4138
        %v4140 = vadd.f32 %v4121, %v4122
        %4141 = vadd.xlane.f32.xlu0 %v4140
        %v4142 = vpop.xlane.xlu0 %4141
        %v4143 = vadd.f32 %v4123, %v4124
        %4144 = vadd.xlane.f32.xlu0 %v4143
        %v4145 = vpop.xlane.xlu0 %4144
        %v4146 = vadd.f32 %v4125, %v4126
        %4147 = vadd.xlane.f32.xlu0 %v4146
        %v4148 = vpop.xlane.xlu0 %4147
        %v4149 = vadd.f32 %v4127, %v4128
        %4150 = vadd.xlane.f32.xlu0 %v4149
        %v4151 = vpop.xlane.xlu0 %4150
        %v4152 = vadd.f32 %v4129, %v4130
        %4153 = vadd.xlane.f32.xlu0 %v4152
        %v4154 = vpop.xlane.xlu0 %4153
        %vm4155 = vcmp.ge.f32.partialorder %v4133, 40.0
        %vm4156 = vcmp.ge.f32.partialorder %v4136, 40.0
        %vm4157 = vcmp.ge.f32.partialorder %v4139, 40.0
        %vm4158 = vcmp.ge.f32.partialorder %v4142, 40.0
        %vm4159 = vcmp.ge.f32.partialorder %v4145, 40.0
        %vm4160 = vcmp.ge.f32.partialorder %v4148, 40.0
        %vm4161 = vcmp.ge.f32.partialorder %v4151, 40.0
        %vm4162 = vcmp.ge.f32.partialorder %v4154, 40.0
        %v4163 = vsel %vm4155, %v4075, %v4011
        %v4164 = vsel %vm4156, %v4076, %v4012
        %v4165 = vsel %vm4157, %v4077, %v4013
        %v4166 = vsel %vm4158, %v4078, %v4014
        %v4167 = vsel %vm4159, %v4079, %v4015
        %v4168 = vsel %vm4160, %v4080, %v4016
        %v4169 = vsel %vm4161, %v4081, %v4017
        %v4170 = vsel %vm4162, %v4082, %v4018
        %v4171 = vsub.s32 %v4075, 1
        %v4172 = vsub.s32 %v4076, 1
        %v4173 = vsub.s32 %v4077, 1
        %v4174 = vsub.s32 %v4078, 1
        %v4175 = vsub.s32 %v4079, 1
        %v4176 = vsub.s32 %v4080, 1
        %v4177 = vsub.s32 %v4081, 1
        %v4178 = vsub.s32 %v4082, 1
        %v4179 = vsel %vm4155, %v4027, %v4171
        %v4180 = vsel %vm4156, %v4028, %v4172
        %v4181 = vsel %vm4157, %v4029, %v4173
        %v4182 = vsel %vm4158, %v4030, %v4174
        %v4183 = vsel %vm4159, %v4031, %v4175
        %v4184 = vsel %vm4160, %v4032, %v4176
        %v4185 = vsel %vm4161, %v4033, %v4177
        %v4186 = vsel %vm4162, %v4034, %v4178
        %v4187 = vshra.s32 %v4163, 1
        %v4188 = vshra.s32 %v4164, 1
        %v4189 = vshra.s32 %v4165, 1
        %v4190 = vshra.s32 %v4166, 1
        %v4191 = vshra.s32 %v4167, 1
        %v4192 = vshra.s32 %v4168, 1
        %v4193 = vshra.s32 %v4169, 1
        %v4194 = vshra.s32 %v4170, 1
        %v4195 = vshra.s32 %v4179, 1
        %v4196 = vshra.s32 %v4180, 1
        %v4197 = vshra.s32 %v4181, 1
        %v4198 = vshra.s32 %v4182, 1
        %v4199 = vshra.s32 %v4183, 1
        %v4200 = vshra.s32 %v4184, 1
        %v4201 = vshra.s32 %v4185, 1
        %v4202 = vshra.s32 %v4186, 1
        %v4203 = vadd.s32 %v4187, %v4195
        %v4204 = vadd.s32 %v4188, %v4196
        %v4205 = vadd.s32 %v4189, %v4197
        %v4206 = vadd.s32 %v4190, %v4198
        %v4207 = vadd.s32 %v4191, %v4199
        %v4208 = vadd.s32 %v4192, %v4200
        %v4209 = vadd.s32 %v4193, %v4201
        %v4210 = vadd.s32 %v4194, %v4202
        %v4211 = vor.u32 %v4163, %v4179
        %v4212 = vor.u32 %v4164, %v4180
        %v4213 = vor.u32 %v4165, %v4181
        %v4214 = vor.u32 %v4166, %v4182
        %v4215 = vor.u32 %v4167, %v4183
        %v4216 = vor.u32 %v4168, %v4184
        %v4217 = vor.u32 %v4169, %v4185
        %v4218 = vor.u32 %v4170, %v4186
        %v4219 = vand.u32 %v4211, 1
        %v4220 = vand.u32 %v4212, 1
        %v4221 = vand.u32 %v4213, 1
        %v4222 = vand.u32 %v4214, 1
        %v4223 = vand.u32 %v4215, 1
        %v4224 = vand.u32 %v4216, 1
        %v4225 = vand.u32 %v4217, 1
        %v4226 = vand.u32 %v4218, 1
        %v4227 = vadd.s32 %v4203, %v4219
        %v4228 = vadd.s32 %v4204, %v4220
        %v4229 = vadd.s32 %v4205, %v4221
        %v4230 = vadd.s32 %v4206, %v4222
        %v4231 = vadd.s32 %v4207, %v4223
        %v4232 = vadd.s32 %v4208, %v4224
        %v4233 = vadd.s32 %v4209, %v4225
        %v4234 = vadd.s32 %v4210, %v4226
        %vm4235 = vcmp.ge.s32.totalorder %v731, %v4227
        %vm4236 = vcmp.ge.s32.totalorder %v732, %v4227
        %vm4237 = vcmp.ge.s32.totalorder %v733, %v4228
        %vm4238 = vcmp.ge.s32.totalorder %v734, %v4228
        %vm4239 = vcmp.ge.s32.totalorder %v735, %v4229
        %vm4240 = vcmp.ge.s32.totalorder %v736, %v4229
        %vm4241 = vcmp.ge.s32.totalorder %v737, %v4230
        %vm4242 = vcmp.ge.s32.totalorder %v738, %v4230
        %vm4243 = vcmp.ge.s32.totalorder %v739, %v4231
        %vm4244 = vcmp.ge.s32.totalorder %v740, %v4231
        %vm4245 = vcmp.ge.s32.totalorder %v741, %v4232
        %vm4246 = vcmp.ge.s32.totalorder %v742, %v4232
        %vm4247 = vcmp.ge.s32.totalorder %v743, %v4233
        %vm4248 = vcmp.ge.s32.totalorder %v744, %v4233
        %vm4249 = vcmp.ge.s32.totalorder %v745, %v4234
        %vm4250 = vcmp.ge.s32.totalorder %v746, %v4234
        %v4251 = vsel %vm4235, 1, 0
        %v4252 = vsel %vm4236, 1, 0
        %v4253 = vsel %vm4237, 1, 0
        %v4254 = vsel %vm4238, 1, 0
        %v4255 = vsel %vm4239, 1, 0
        %v4256 = vsel %vm4240, 1, 0
        %v4257 = vsel %vm4241, 1, 0
        %v4258 = vsel %vm4242, 1, 0
        %v4259 = vsel %vm4243, 1, 0
        %v4260 = vsel %vm4244, 1, 0
        %v4261 = vsel %vm4245, 1, 0
        %v4262 = vsel %vm4246, 1, 0
        %v4263 = vsel %vm4247, 1, 0
        %v4264 = vsel %vm4248, 1, 0
        %v4265 = vsel %vm4249, 1, 0
        %v4266 = vsel %vm4250, 1, 0
        %v4267 = vcvt.s32.f32 %v4251
        %v4268 = vcvt.s32.f32 %v4252
        %v4269 = vcvt.s32.f32 %v4253
        %v4270 = vcvt.s32.f32 %v4254
        %v4271 = vcvt.s32.f32 %v4255
        %v4272 = vcvt.s32.f32 %v4256
        %v4273 = vcvt.s32.f32 %v4257
        %v4274 = vcvt.s32.f32 %v4258
        %v4275 = vcvt.s32.f32 %v4259
        %v4276 = vcvt.s32.f32 %v4260
        %v4277 = vcvt.s32.f32 %v4261
        %v4278 = vcvt.s32.f32 %v4262
        %v4279 = vcvt.s32.f32 %v4263
        %v4280 = vcvt.s32.f32 %v4264
        %v4281 = vcvt.s32.f32 %v4265
        %v4282 = vcvt.s32.f32 %v4266
        %v4283 = vadd.f32 %v4267, %v4268
        %4284 = vadd.xlane.f32.xlu0 %v4283
        %v4285 = vpop.xlane.xlu0 %4284
        %v4286 = vadd.f32 %v4269, %v4270
        %4287 = vadd.xlane.f32.xlu0 %v4286
        %v4288 = vpop.xlane.xlu0 %4287
        %v4289 = vadd.f32 %v4271, %v4272
        %4290 = vadd.xlane.f32.xlu0 %v4289
        %v4291 = vpop.xlane.xlu0 %4290
        %v4292 = vadd.f32 %v4273, %v4274
        %4293 = vadd.xlane.f32.xlu0 %v4292
        %v4294 = vpop.xlane.xlu0 %4293
        %v4295 = vadd.f32 %v4275, %v4276
        %4296 = vadd.xlane.f32.xlu0 %v4295
        %v4297 = vpop.xlane.xlu0 %4296
        %v4298 = vadd.f32 %v4277, %v4278
        %4299 = vadd.xlane.f32.xlu0 %v4298
        %v4300 = vpop.xlane.xlu0 %4299
        %v4301 = vadd.f32 %v4279, %v4280
        %4302 = vadd.xlane.f32.xlu0 %v4301
        %v4303 = vpop.xlane.xlu0 %4302
        %v4304 = vadd.f32 %v4281, %v4282
        %4305 = vadd.xlane.f32.xlu0 %v4304
        %v4306 = vpop.xlane.xlu0 %4305
        %vm4307 = vcmp.ge.f32.partialorder %v4285, 40.0
        %vm4308 = vcmp.ge.f32.partialorder %v4288, 40.0
        %vm4309 = vcmp.ge.f32.partialorder %v4291, 40.0
        %vm4310 = vcmp.ge.f32.partialorder %v4294, 40.0
        %vm4311 = vcmp.ge.f32.partialorder %v4297, 40.0
        %vm4312 = vcmp.ge.f32.partialorder %v4300, 40.0
        %vm4313 = vcmp.ge.f32.partialorder %v4303, 40.0
        %vm4314 = vcmp.ge.f32.partialorder %v4306, 40.0
        %v4315 = vsel %vm4307, %v4227, %v4163
        %v4316 = vsel %vm4308, %v4228, %v4164
        %v4317 = vsel %vm4309, %v4229, %v4165
        %v4318 = vsel %vm4310, %v4230, %v4166
        %v4319 = vsel %vm4311, %v4231, %v4167
        %v4320 = vsel %vm4312, %v4232, %v4168
        %v4321 = vsel %vm4313, %v4233, %v4169
        %v4322 = vsel %vm4314, %v4234, %v4170
        %v4323 = vsub.s32 %v4227, 1
        %v4324 = vsub.s32 %v4228, 1
        %v4325 = vsub.s32 %v4229, 1
        %v4326 = vsub.s32 %v4230, 1
        %v4327 = vsub.s32 %v4231, 1
        %v4328 = vsub.s32 %v4232, 1
        %v4329 = vsub.s32 %v4233, 1
        %v4330 = vsub.s32 %v4234, 1
        %v4331 = vsel %vm4307, %v4179, %v4323
        %v4332 = vsel %vm4308, %v4180, %v4324
        %v4333 = vsel %vm4309, %v4181, %v4325
        %v4334 = vsel %vm4310, %v4182, %v4326
        %v4335 = vsel %vm4311, %v4183, %v4327
        %v4336 = vsel %vm4312, %v4184, %v4328
        %v4337 = vsel %vm4313, %v4185, %v4329
        %v4338 = vsel %vm4314, %v4186, %v4330
        %v4339 = vshra.s32 %v4315, 1
        %v4340 = vshra.s32 %v4316, 1
        %v4341 = vshra.s32 %v4317, 1
        %v4342 = vshra.s32 %v4318, 1
        %v4343 = vshra.s32 %v4319, 1
        %v4344 = vshra.s32 %v4320, 1
        %v4345 = vshra.s32 %v4321, 1
        %v4346 = vshra.s32 %v4322, 1
        %v4347 = vshra.s32 %v4331, 1
        %v4348 = vshra.s32 %v4332, 1
        %v4349 = vshra.s32 %v4333, 1
        %v4350 = vshra.s32 %v4334, 1
        %v4351 = vshra.s32 %v4335, 1
        %v4352 = vshra.s32 %v4336, 1
        %v4353 = vshra.s32 %v4337, 1
        %v4354 = vshra.s32 %v4338, 1
        %v4355 = vadd.s32 %v4339, %v4347
        %v4356 = vadd.s32 %v4340, %v4348
        %v4357 = vadd.s32 %v4341, %v4349
        %v4358 = vadd.s32 %v4342, %v4350
        %v4359 = vadd.s32 %v4343, %v4351
        %v4360 = vadd.s32 %v4344, %v4352
        %v4361 = vadd.s32 %v4345, %v4353
        %v4362 = vadd.s32 %v4346, %v4354
        %v4363 = vor.u32 %v4315, %v4331
        %v4364 = vor.u32 %v4316, %v4332
        %v4365 = vor.u32 %v4317, %v4333
        %v4366 = vor.u32 %v4318, %v4334
        %v4367 = vor.u32 %v4319, %v4335
        %v4368 = vor.u32 %v4320, %v4336
        %v4369 = vor.u32 %v4321, %v4337
        %v4370 = vor.u32 %v4322, %v4338
        %v4371 = vand.u32 %v4363, 1
        %v4372 = vand.u32 %v4364, 1
        %v4373 = vand.u32 %v4365, 1
        %v4374 = vand.u32 %v4366, 1
        %v4375 = vand.u32 %v4367, 1
        %v4376 = vand.u32 %v4368, 1
        %v4377 = vand.u32 %v4369, 1
        %v4378 = vand.u32 %v4370, 1
        %v4379 = vadd.s32 %v4355, %v4371
        %v4380 = vadd.s32 %v4356, %v4372
        %v4381 = vadd.s32 %v4357, %v4373
        %v4382 = vadd.s32 %v4358, %v4374
        %v4383 = vadd.s32 %v4359, %v4375
        %v4384 = vadd.s32 %v4360, %v4376
        %v4385 = vadd.s32 %v4361, %v4377
        %v4386 = vadd.s32 %v4362, %v4378
        %vm4387 = vcmp.ge.s32.totalorder %v731, %v4379
        %vm4388 = vcmp.ge.s32.totalorder %v732, %v4379
        %vm4389 = vcmp.ge.s32.totalorder %v733, %v4380
        %vm4390 = vcmp.ge.s32.totalorder %v734, %v4380
        %vm4391 = vcmp.ge.s32.totalorder %v735, %v4381
        %vm4392 = vcmp.ge.s32.totalorder %v736, %v4381
        %vm4393 = vcmp.ge.s32.totalorder %v737, %v4382
        %vm4394 = vcmp.ge.s32.totalorder %v738, %v4382
        %vm4395 = vcmp.ge.s32.totalorder %v739, %v4383
        %vm4396 = vcmp.ge.s32.totalorder %v740, %v4383
        %vm4397 = vcmp.ge.s32.totalorder %v741, %v4384
        %vm4398 = vcmp.ge.s32.totalorder %v742, %v4384
        %vm4399 = vcmp.ge.s32.totalorder %v743, %v4385
        %vm4400 = vcmp.ge.s32.totalorder %v744, %v4385
        %vm4401 = vcmp.ge.s32.totalorder %v745, %v4386
        %vm4402 = vcmp.ge.s32.totalorder %v746, %v4386
        %v4403 = vsel %vm4387, 1, 0
        %v4404 = vsel %vm4388, 1, 0
        %v4405 = vsel %vm4389, 1, 0
        %v4406 = vsel %vm4390, 1, 0
        %v4407 = vsel %vm4391, 1, 0
        %v4408 = vsel %vm4392, 1, 0
        %v4409 = vsel %vm4393, 1, 0
        %v4410 = vsel %vm4394, 1, 0
        %v4411 = vsel %vm4395, 1, 0
        %v4412 = vsel %vm4396, 1, 0
        %v4413 = vsel %vm4397, 1, 0
        %v4414 = vsel %vm4398, 1, 0
        %v4415 = vsel %vm4399, 1, 0
        %v4416 = vsel %vm4400, 1, 0
        %v4417 = vsel %vm4401, 1, 0
        %v4418 = vsel %vm4402, 1, 0
        %v4419 = vcvt.s32.f32 %v4403
        %v4420 = vcvt.s32.f32 %v4404
        %v4421 = vcvt.s32.f32 %v4405
        %v4422 = vcvt.s32.f32 %v4406
        %v4423 = vcvt.s32.f32 %v4407
        %v4424 = vcvt.s32.f32 %v4408
        %v4425 = vcvt.s32.f32 %v4409
        %v4426 = vcvt.s32.f32 %v4410
        %v4427 = vcvt.s32.f32 %v4411
        %v4428 = vcvt.s32.f32 %v4412
        %v4429 = vcvt.s32.f32 %v4413
        %v4430 = vcvt.s32.f32 %v4414
        %v4431 = vcvt.s32.f32 %v4415
        %v4432 = vcvt.s32.f32 %v4416
        %v4433 = vcvt.s32.f32 %v4417
        %v4434 = vcvt.s32.f32 %v4418
        %v4435 = vadd.f32 %v4419, %v4420
        %4436 = vadd.xlane.f32.xlu0 %v4435
        %v4437 = vpop.xlane.xlu0 %4436
        %v4438 = vadd.f32 %v4421, %v4422
        %4439 = vadd.xlane.f32.xlu0 %v4438
        %v4440 = vpop.xlane.xlu0 %4439
        %v4441 = vadd.f32 %v4423, %v4424
        %4442 = vadd.xlane.f32.xlu0 %v4441
        %v4443 = vpop.xlane.xlu0 %4442
        %v4444 = vadd.f32 %v4425, %v4426
        %4445 = vadd.xlane.f32.xlu0 %v4444
        %v4446 = vpop.xlane.xlu0 %4445
        %v4447 = vadd.f32 %v4427, %v4428
        %4448 = vadd.xlane.f32.xlu0 %v4447
        %v4449 = vpop.xlane.xlu0 %4448
        %v4450 = vadd.f32 %v4429, %v4430
        %4451 = vadd.xlane.f32.xlu0 %v4450
        %v4452 = vpop.xlane.xlu0 %4451
        %v4453 = vadd.f32 %v4431, %v4432
        %4454 = vadd.xlane.f32.xlu0 %v4453
        %v4455 = vpop.xlane.xlu0 %4454
        %v4456 = vadd.f32 %v4433, %v4434
        %4457 = vadd.xlane.f32.xlu0 %v4456
        %v4458 = vpop.xlane.xlu0 %4457
        %vm4459 = vcmp.ge.f32.partialorder %v4437, 40.0
        %vm4460 = vcmp.ge.f32.partialorder %v4440, 40.0
        %vm4461 = vcmp.ge.f32.partialorder %v4443, 40.0
        %vm4462 = vcmp.ge.f32.partialorder %v4446, 40.0
        %vm4463 = vcmp.ge.f32.partialorder %v4449, 40.0
        %vm4464 = vcmp.ge.f32.partialorder %v4452, 40.0
        %vm4465 = vcmp.ge.f32.partialorder %v4455, 40.0
        %vm4466 = vcmp.ge.f32.partialorder %v4458, 40.0
        %v4467 = vsel %vm4459, %v4379, %v4315
        %v4468 = vsel %vm4460, %v4380, %v4316
        %v4469 = vsel %vm4461, %v4381, %v4317
        %v4470 = vsel %vm4462, %v4382, %v4318
        %v4471 = vsel %vm4463, %v4383, %v4319
        %v4472 = vsel %vm4464, %v4384, %v4320
        %v4473 = vsel %vm4465, %v4385, %v4321
        %v4474 = vsel %vm4466, %v4386, %v4322
        %v4475 = vsub.s32 %v4379, 1
        %v4476 = vsub.s32 %v4380, 1
        %v4477 = vsub.s32 %v4381, 1
        %v4478 = vsub.s32 %v4382, 1
        %v4479 = vsub.s32 %v4383, 1
        %v4480 = vsub.s32 %v4384, 1
        %v4481 = vsub.s32 %v4385, 1
        %v4482 = vsub.s32 %v4386, 1
        %v4483 = vsel %vm4459, %v4331, %v4475
        %v4484 = vsel %vm4460, %v4332, %v4476
        %v4485 = vsel %vm4461, %v4333, %v4477
        %v4486 = vsel %vm4462, %v4334, %v4478
        %v4487 = vsel %vm4463, %v4335, %v4479
        %v4488 = vsel %vm4464, %v4336, %v4480
        %v4489 = vsel %vm4465, %v4337, %v4481
        %v4490 = vsel %vm4466, %v4338, %v4482
        %v4491 = vshra.s32 %v4467, 1
        %v4492 = vshra.s32 %v4468, 1
        %v4493 = vshra.s32 %v4469, 1
        %v4494 = vshra.s32 %v4470, 1
        %v4495 = vshra.s32 %v4471, 1
        %v4496 = vshra.s32 %v4472, 1
        %v4497 = vshra.s32 %v4473, 1
        %v4498 = vshra.s32 %v4474, 1
        %v4499 = vshra.s32 %v4483, 1
        %v4500 = vshra.s32 %v4484, 1
        %v4501 = vshra.s32 %v4485, 1
        %v4502 = vshra.s32 %v4486, 1
        %v4503 = vshra.s32 %v4487, 1
        %v4504 = vshra.s32 %v4488, 1
        %v4505 = vshra.s32 %v4489, 1
        %v4506 = vshra.s32 %v4490, 1
        %v4507 = vadd.s32 %v4491, %v4499
        %v4508 = vadd.s32 %v4492, %v4500
        %v4509 = vadd.s32 %v4493, %v4501
        %v4510 = vadd.s32 %v4494, %v4502
        %v4511 = vadd.s32 %v4495, %v4503
        %v4512 = vadd.s32 %v4496, %v4504
        %v4513 = vadd.s32 %v4497, %v4505
        %v4514 = vadd.s32 %v4498, %v4506
        %v4515 = vor.u32 %v4467, %v4483
        %v4516 = vor.u32 %v4468, %v4484
        %v4517 = vor.u32 %v4469, %v4485
        %v4518 = vor.u32 %v4470, %v4486
        %v4519 = vor.u32 %v4471, %v4487
        %v4520 = vor.u32 %v4472, %v4488
        %v4521 = vor.u32 %v4473, %v4489
        %v4522 = vor.u32 %v4474, %v4490
        %v4523 = vand.u32 %v4515, 1
        %v4524 = vand.u32 %v4516, 1
        %v4525 = vand.u32 %v4517, 1
        %v4526 = vand.u32 %v4518, 1
        %v4527 = vand.u32 %v4519, 1
        %v4528 = vand.u32 %v4520, 1
        %v4529 = vand.u32 %v4521, 1
        %v4530 = vand.u32 %v4522, 1
        %v4531 = vadd.s32 %v4507, %v4523
        %v4532 = vadd.s32 %v4508, %v4524
        %v4533 = vadd.s32 %v4509, %v4525
        %v4534 = vadd.s32 %v4510, %v4526
        %v4535 = vadd.s32 %v4511, %v4527
        %v4536 = vadd.s32 %v4512, %v4528
        %v4537 = vadd.s32 %v4513, %v4529
        %v4538 = vadd.s32 %v4514, %v4530
        %vm4539 = vcmp.ge.s32.totalorder %v731, %v4531
        %vm4540 = vcmp.ge.s32.totalorder %v732, %v4531
        %vm4541 = vcmp.ge.s32.totalorder %v733, %v4532
        %vm4542 = vcmp.ge.s32.totalorder %v734, %v4532
        %vm4543 = vcmp.ge.s32.totalorder %v735, %v4533
        %vm4544 = vcmp.ge.s32.totalorder %v736, %v4533
        %vm4545 = vcmp.ge.s32.totalorder %v737, %v4534
        %vm4546 = vcmp.ge.s32.totalorder %v738, %v4534
        %vm4547 = vcmp.ge.s32.totalorder %v739, %v4535
        %vm4548 = vcmp.ge.s32.totalorder %v740, %v4535
        %vm4549 = vcmp.ge.s32.totalorder %v741, %v4536
        %vm4550 = vcmp.ge.s32.totalorder %v742, %v4536
        %vm4551 = vcmp.ge.s32.totalorder %v743, %v4537
        %vm4552 = vcmp.ge.s32.totalorder %v744, %v4537
        %vm4553 = vcmp.ge.s32.totalorder %v745, %v4538
        %vm4554 = vcmp.ge.s32.totalorder %v746, %v4538
        %v4555 = vsel %vm4539, 1, 0
        %v4556 = vsel %vm4540, 1, 0
        %v4557 = vsel %vm4541, 1, 0
        %v4558 = vsel %vm4542, 1, 0
        %v4559 = vsel %vm4543, 1, 0
        %v4560 = vsel %vm4544, 1, 0
        %v4561 = vsel %vm4545, 1, 0
        %v4562 = vsel %vm4546, 1, 0
        %v4563 = vsel %vm4547, 1, 0
        %v4564 = vsel %vm4548, 1, 0
        %v4565 = vsel %vm4549, 1, 0
        %v4566 = vsel %vm4550, 1, 0
        %v4567 = vsel %vm4551, 1, 0
        %v4568 = vsel %vm4552, 1, 0
        %v4569 = vsel %vm4553, 1, 0
        %v4570 = vsel %vm4554, 1, 0
        %v4571 = vcvt.s32.f32 %v4555
        %v4572 = vcvt.s32.f32 %v4556
        %v4573 = vcvt.s32.f32 %v4557
        %v4574 = vcvt.s32.f32 %v4558
        %v4575 = vcvt.s32.f32 %v4559
        %v4576 = vcvt.s32.f32 %v4560
        %v4577 = vcvt.s32.f32 %v4561
        %v4578 = vcvt.s32.f32 %v4562
        %v4579 = vcvt.s32.f32 %v4563
        %v4580 = vcvt.s32.f32 %v4564
        %v4581 = vcvt.s32.f32 %v4565
        %v4582 = vcvt.s32.f32 %v4566
        %v4583 = vcvt.s32.f32 %v4567
        %v4584 = vcvt.s32.f32 %v4568
        %v4585 = vcvt.s32.f32 %v4569
        %v4586 = vcvt.s32.f32 %v4570
        %v4587 = vadd.f32 %v4571, %v4572
        %4588 = vadd.xlane.f32.xlu0 %v4587
        %v4589 = vpop.xlane.xlu0 %4588
        %v4590 = vadd.f32 %v4573, %v4574
        %4591 = vadd.xlane.f32.xlu0 %v4590
        %v4592 = vpop.xlane.xlu0 %4591
        %v4593 = vadd.f32 %v4575, %v4576
        %4594 = vadd.xlane.f32.xlu0 %v4593
        %v4595 = vpop.xlane.xlu0 %4594
        %v4596 = vadd.f32 %v4577, %v4578
        %4597 = vadd.xlane.f32.xlu0 %v4596
        %v4598 = vpop.xlane.xlu0 %4597
        %v4599 = vadd.f32 %v4579, %v4580
        %4600 = vadd.xlane.f32.xlu0 %v4599
        %v4601 = vpop.xlane.xlu0 %4600
        %v4602 = vadd.f32 %v4581, %v4582
        %4603 = vadd.xlane.f32.xlu0 %v4602
        %v4604 = vpop.xlane.xlu0 %4603
        %v4605 = vadd.f32 %v4583, %v4584
        %4606 = vadd.xlane.f32.xlu0 %v4605
        %v4607 = vpop.xlane.xlu0 %4606
        %v4608 = vadd.f32 %v4585, %v4586
        %4609 = vadd.xlane.f32.xlu0 %v4608
        %v4610 = vpop.xlane.xlu0 %4609
        %vm4611 = vcmp.ge.f32.partialorder %v4589, 40.0
        %vm4612 = vcmp.ge.f32.partialorder %v4592, 40.0
        %vm4613 = vcmp.ge.f32.partialorder %v4595, 40.0
        %vm4614 = vcmp.ge.f32.partialorder %v4598, 40.0
        %vm4615 = vcmp.ge.f32.partialorder %v4601, 40.0
        %vm4616 = vcmp.ge.f32.partialorder %v4604, 40.0
        %vm4617 = vcmp.ge.f32.partialorder %v4607, 40.0
        %vm4618 = vcmp.ge.f32.partialorder %v4610, 40.0
        %v4619 = vsel %vm4611, %v4531, %v4467
        %v4620 = vsel %vm4612, %v4532, %v4468
        %v4621 = vsel %vm4613, %v4533, %v4469
        %v4622 = vsel %vm4614, %v4534, %v4470
        %v4623 = vsel %vm4615, %v4535, %v4471
        %v4624 = vsel %vm4616, %v4536, %v4472
        %v4625 = vsel %vm4617, %v4537, %v4473
        %v4626 = vsel %vm4618, %v4538, %v4474
        %v4627 = vsub.s32 %v4531, 1
        %v4628 = vsub.s32 %v4532, 1
        %v4629 = vsub.s32 %v4533, 1
        %v4630 = vsub.s32 %v4534, 1
        %v4631 = vsub.s32 %v4535, 1
        %v4632 = vsub.s32 %v4536, 1
        %v4633 = vsub.s32 %v4537, 1
        %v4634 = vsub.s32 %v4538, 1
        %v4635 = vsel %vm4611, %v4483, %v4627
        %v4636 = vsel %vm4612, %v4484, %v4628
        %v4637 = vsel %vm4613, %v4485, %v4629
        %v4638 = vsel %vm4614, %v4486, %v4630
        %v4639 = vsel %vm4615, %v4487, %v4631
        %v4640 = vsel %vm4616, %v4488, %v4632
        %v4641 = vsel %vm4617, %v4489, %v4633
        %v4642 = vsel %vm4618, %v4490, %v4634
        %v4643 = vshra.s32 %v4619, 1
        %v4644 = vshra.s32 %v4620, 1
        %v4645 = vshra.s32 %v4621, 1
        %v4646 = vshra.s32 %v4622, 1
        %v4647 = vshra.s32 %v4623, 1
        %v4648 = vshra.s32 %v4624, 1
        %v4649 = vshra.s32 %v4625, 1
        %v4650 = vshra.s32 %v4626, 1
        %v4651 = vshra.s32 %v4635, 1
        %v4652 = vshra.s32 %v4636, 1
        %v4653 = vshra.s32 %v4637, 1
        %v4654 = vshra.s32 %v4638, 1
        %v4655 = vshra.s32 %v4639, 1
        %v4656 = vshra.s32 %v4640, 1
        %v4657 = vshra.s32 %v4641, 1
        %v4658 = vshra.s32 %v4642, 1
        %v4659 = vadd.s32 %v4643, %v4651
        %v4660 = vadd.s32 %v4644, %v4652
        %v4661 = vadd.s32 %v4645, %v4653
        %v4662 = vadd.s32 %v4646, %v4654
        %v4663 = vadd.s32 %v4647, %v4655
        %v4664 = vadd.s32 %v4648, %v4656
        %v4665 = vadd.s32 %v4649, %v4657
        %v4666 = vadd.s32 %v4650, %v4658
        %v4667 = vor.u32 %v4619, %v4635
        %v4668 = vor.u32 %v4620, %v4636
        %v4669 = vor.u32 %v4621, %v4637
        %v4670 = vor.u32 %v4622, %v4638
        %v4671 = vor.u32 %v4623, %v4639
        %v4672 = vor.u32 %v4624, %v4640
        %v4673 = vor.u32 %v4625, %v4641
        %v4674 = vor.u32 %v4626, %v4642
        %v4675 = vand.u32 %v4667, 1
        %v4676 = vand.u32 %v4668, 1
        %v4677 = vand.u32 %v4669, 1
        %v4678 = vand.u32 %v4670, 1
        %v4679 = vand.u32 %v4671, 1
        %v4680 = vand.u32 %v4672, 1
        %v4681 = vand.u32 %v4673, 1
        %v4682 = vand.u32 %v4674, 1
        %v4683 = vadd.s32 %v4659, %v4675
        %v4684 = vadd.s32 %v4660, %v4676
        %v4685 = vadd.s32 %v4661, %v4677
        %v4686 = vadd.s32 %v4662, %v4678
        %v4687 = vadd.s32 %v4663, %v4679
        %v4688 = vadd.s32 %v4664, %v4680
        %v4689 = vadd.s32 %v4665, %v4681
        %v4690 = vadd.s32 %v4666, %v4682
        %vm4691 = vcmp.ge.s32.totalorder %v731, %v4683
        %vm4692 = vcmp.ge.s32.totalorder %v732, %v4683
        %vm4693 = vcmp.ge.s32.totalorder %v733, %v4684
        %vm4694 = vcmp.ge.s32.totalorder %v734, %v4684
        %vm4695 = vcmp.ge.s32.totalorder %v735, %v4685
        %vm4696 = vcmp.ge.s32.totalorder %v736, %v4685
        %vm4697 = vcmp.ge.s32.totalorder %v737, %v4686
        %vm4698 = vcmp.ge.s32.totalorder %v738, %v4686
        %vm4699 = vcmp.ge.s32.totalorder %v739, %v4687
        %vm4700 = vcmp.ge.s32.totalorder %v740, %v4687
        %vm4701 = vcmp.ge.s32.totalorder %v741, %v4688
        %vm4702 = vcmp.ge.s32.totalorder %v742, %v4688
        %vm4703 = vcmp.ge.s32.totalorder %v743, %v4689
        %vm4704 = vcmp.ge.s32.totalorder %v744, %v4689
        %vm4705 = vcmp.ge.s32.totalorder %v745, %v4690
        %vm4706 = vcmp.ge.s32.totalorder %v746, %v4690
        %v4707 = vsel %vm4691, 1, 0
        %v4708 = vsel %vm4692, 1, 0
        %v4709 = vsel %vm4693, 1, 0
        %v4710 = vsel %vm4694, 1, 0
        %v4711 = vsel %vm4695, 1, 0
        %v4712 = vsel %vm4696, 1, 0
        %v4713 = vsel %vm4697, 1, 0
        %v4714 = vsel %vm4698, 1, 0
        %v4715 = vsel %vm4699, 1, 0
        %v4716 = vsel %vm4700, 1, 0
        %v4717 = vsel %vm4701, 1, 0
        %v4718 = vsel %vm4702, 1, 0
        %v4719 = vsel %vm4703, 1, 0
        %v4720 = vsel %vm4704, 1, 0
        %v4721 = vsel %vm4705, 1, 0
        %v4722 = vsel %vm4706, 1, 0
        %v4723 = vcvt.s32.f32 %v4707
        %v4724 = vcvt.s32.f32 %v4708
        %v4725 = vcvt.s32.f32 %v4709
        %v4726 = vcvt.s32.f32 %v4710
        %v4727 = vcvt.s32.f32 %v4711
        %v4728 = vcvt.s32.f32 %v4712
        %v4729 = vcvt.s32.f32 %v4713
        %v4730 = vcvt.s32.f32 %v4714
        %v4731 = vcvt.s32.f32 %v4715
        %v4732 = vcvt.s32.f32 %v4716
        %v4733 = vcvt.s32.f32 %v4717
        %v4734 = vcvt.s32.f32 %v4718
        %v4735 = vcvt.s32.f32 %v4719
        %v4736 = vcvt.s32.f32 %v4720
        %v4737 = vcvt.s32.f32 %v4721
        %v4738 = vcvt.s32.f32 %v4722
        %v4739 = vadd.f32 %v4723, %v4724
        %4740 = vadd.xlane.f32.xlu0 %v4739
        %v4741 = vpop.xlane.xlu0 %4740
        %v4742 = vadd.f32 %v4725, %v4726
        %4743 = vadd.xlane.f32.xlu0 %v4742
        %v4744 = vpop.xlane.xlu0 %4743
        %v4745 = vadd.f32 %v4727, %v4728
        %4746 = vadd.xlane.f32.xlu0 %v4745
        %v4747 = vpop.xlane.xlu0 %4746
        %v4748 = vadd.f32 %v4729, %v4730
        %4749 = vadd.xlane.f32.xlu0 %v4748
        %v4750 = vpop.xlane.xlu0 %4749
        %v4751 = vadd.f32 %v4731, %v4732
        %4752 = vadd.xlane.f32.xlu0 %v4751
        %v4753 = vpop.xlane.xlu0 %4752
        %v4754 = vadd.f32 %v4733, %v4734
        %4755 = vadd.xlane.f32.xlu0 %v4754
        %v4756 = vpop.xlane.xlu0 %4755
        %v4757 = vadd.f32 %v4735, %v4736
        %4758 = vadd.xlane.f32.xlu0 %v4757
        %v4759 = vpop.xlane.xlu0 %4758
        %v4760 = vadd.f32 %v4737, %v4738
        %4761 = vadd.xlane.f32.xlu0 %v4760
        %v4762 = vpop.xlane.xlu0 %4761
        %vm4763 = vcmp.ge.f32.partialorder %v4741, 40.0
        %vm4764 = vcmp.ge.f32.partialorder %v4744, 40.0
        %vm4765 = vcmp.ge.f32.partialorder %v4747, 40.0
        %vm4766 = vcmp.ge.f32.partialorder %v4750, 40.0
        %vm4767 = vcmp.ge.f32.partialorder %v4753, 40.0
        %vm4768 = vcmp.ge.f32.partialorder %v4756, 40.0
        %vm4769 = vcmp.ge.f32.partialorder %v4759, 40.0
        %vm4770 = vcmp.ge.f32.partialorder %v4762, 40.0
        %v4771 = vsel %vm4763, %v4683, %v4619
        %v4772 = vsel %vm4764, %v4684, %v4620
        %v4773 = vsel %vm4765, %v4685, %v4621
        %v4774 = vsel %vm4766, %v4686, %v4622
        %v4775 = vsel %vm4767, %v4687, %v4623
        %v4776 = vsel %vm4768, %v4688, %v4624
        %v4777 = vsel %vm4769, %v4689, %v4625
        %v4778 = vsel %vm4770, %v4690, %v4626
        %v4779 = vsub.s32 %v4683, 1
        %v4780 = vsub.s32 %v4684, 1
        %v4781 = vsub.s32 %v4685, 1
        %v4782 = vsub.s32 %v4686, 1
        %v4783 = vsub.s32 %v4687, 1
        %v4784 = vsub.s32 %v4688, 1
        %v4785 = vsub.s32 %v4689, 1
        %v4786 = vsub.s32 %v4690, 1
        %v4787 = vsel %vm4763, %v4635, %v4779
        %v4788 = vsel %vm4764, %v4636, %v4780
        %v4789 = vsel %vm4765, %v4637, %v4781
        %v4790 = vsel %vm4766, %v4638, %v4782
        %v4791 = vsel %vm4767, %v4639, %v4783
        %v4792 = vsel %vm4768, %v4640, %v4784
        %v4793 = vsel %vm4769, %v4641, %v4785
        %v4794 = vsel %vm4770, %v4642, %v4786
        %v4795 = vshra.s32 %v4771, 1
        %v4796 = vshra.s32 %v4772, 1
        %v4797 = vshra.s32 %v4773, 1
        %v4798 = vshra.s32 %v4774, 1
        %v4799 = vshra.s32 %v4775, 1
        %v4800 = vshra.s32 %v4776, 1
        %v4801 = vshra.s32 %v4777, 1
        %v4802 = vshra.s32 %v4778, 1
        %v4803 = vshra.s32 %v4787, 1
        %v4804 = vshra.s32 %v4788, 1
        %v4805 = vshra.s32 %v4789, 1
        %v4806 = vshra.s32 %v4790, 1
        %v4807 = vshra.s32 %v4791, 1
        %v4808 = vshra.s32 %v4792, 1
        %v4809 = vshra.s32 %v4793, 1
        %v4810 = vshra.s32 %v4794, 1
        %v4811 = vadd.s32 %v4795, %v4803
        %v4812 = vadd.s32 %v4796, %v4804
        %v4813 = vadd.s32 %v4797, %v4805
        %v4814 = vadd.s32 %v4798, %v4806
        %v4815 = vadd.s32 %v4799, %v4807
        %v4816 = vadd.s32 %v4800, %v4808
        %v4817 = vadd.s32 %v4801, %v4809
        %v4818 = vadd.s32 %v4802, %v4810
        %v4819 = vor.u32 %v4771, %v4787
        %v4820 = vor.u32 %v4772, %v4788
        %v4821 = vor.u32 %v4773, %v4789
        %v4822 = vor.u32 %v4774, %v4790
        %v4823 = vor.u32 %v4775, %v4791
        %v4824 = vor.u32 %v4776, %v4792
        %v4825 = vor.u32 %v4777, %v4793
        %v4826 = vor.u32 %v4778, %v4794
        %v4827 = vand.u32 %v4819, 1
        %v4828 = vand.u32 %v4820, 1
        %v4829 = vand.u32 %v4821, 1
        %v4830 = vand.u32 %v4822, 1
        %v4831 = vand.u32 %v4823, 1
        %v4832 = vand.u32 %v4824, 1
        %v4833 = vand.u32 %v4825, 1
        %v4834 = vand.u32 %v4826, 1
        %v4835 = vadd.s32 %v4811, %v4827
        %v4836 = vadd.s32 %v4812, %v4828
        %v4837 = vadd.s32 %v4813, %v4829
        %v4838 = vadd.s32 %v4814, %v4830
        %v4839 = vadd.s32 %v4815, %v4831
        %v4840 = vadd.s32 %v4816, %v4832
        %v4841 = vadd.s32 %v4817, %v4833
        %v4842 = vadd.s32 %v4818, %v4834
        %vm4843 = vcmp.ge.s32.totalorder %v731, %v4835
        %vm4844 = vcmp.ge.s32.totalorder %v732, %v4835
        %vm4845 = vcmp.ge.s32.totalorder %v733, %v4836
        %vm4846 = vcmp.ge.s32.totalorder %v734, %v4836
        %vm4847 = vcmp.ge.s32.totalorder %v735, %v4837
        %vm4848 = vcmp.ge.s32.totalorder %v736, %v4837
        %vm4849 = vcmp.ge.s32.totalorder %v737, %v4838
        %vm4850 = vcmp.ge.s32.totalorder %v738, %v4838
        %vm4851 = vcmp.ge.s32.totalorder %v739, %v4839
        %vm4852 = vcmp.ge.s32.totalorder %v740, %v4839
        %vm4853 = vcmp.ge.s32.totalorder %v741, %v4840
        %vm4854 = vcmp.ge.s32.totalorder %v742, %v4840
        %vm4855 = vcmp.ge.s32.totalorder %v743, %v4841
        %vm4856 = vcmp.ge.s32.totalorder %v744, %v4841
        %vm4857 = vcmp.ge.s32.totalorder %v745, %v4842
        %vm4858 = vcmp.ge.s32.totalorder %v746, %v4842
        %v4859 = vsel %vm4843, 1, 0
        %v4860 = vsel %vm4844, 1, 0
        %v4861 = vsel %vm4845, 1, 0
        %v4862 = vsel %vm4846, 1, 0
        %v4863 = vsel %vm4847, 1, 0
        %v4864 = vsel %vm4848, 1, 0
        %v4865 = vsel %vm4849, 1, 0
        %v4866 = vsel %vm4850, 1, 0
        %v4867 = vsel %vm4851, 1, 0
        %v4868 = vsel %vm4852, 1, 0
        %v4869 = vsel %vm4853, 1, 0
        %v4870 = vsel %vm4854, 1, 0
        %v4871 = vsel %vm4855, 1, 0
        %v4872 = vsel %vm4856, 1, 0
        %v4873 = vsel %vm4857, 1, 0
        %v4874 = vsel %vm4858, 1, 0
        %v4875 = vcvt.s32.f32 %v4859
        %v4876 = vcvt.s32.f32 %v4860
        %v4877 = vcvt.s32.f32 %v4861
        %v4878 = vcvt.s32.f32 %v4862
        %v4879 = vcvt.s32.f32 %v4863
        %v4880 = vcvt.s32.f32 %v4864
        %v4881 = vcvt.s32.f32 %v4865
        %v4882 = vcvt.s32.f32 %v4866
        %v4883 = vcvt.s32.f32 %v4867
        %v4884 = vcvt.s32.f32 %v4868
        %v4885 = vcvt.s32.f32 %v4869
        %v4886 = vcvt.s32.f32 %v4870
        %v4887 = vcvt.s32.f32 %v4871
        %v4888 = vcvt.s32.f32 %v4872
        %v4889 = vcvt.s32.f32 %v4873
        %v4890 = vcvt.s32.f32 %v4874
        %v4891 = vadd.f32 %v4875, %v4876
        %4892 = vadd.xlane.f32.xlu0 %v4891
        %v4893 = vpop.xlane.xlu0 %4892
        %v4894 = vadd.f32 %v4877, %v4878
        %4895 = vadd.xlane.f32.xlu0 %v4894
        %v4896 = vpop.xlane.xlu0 %4895
        %v4897 = vadd.f32 %v4879, %v4880
        %4898 = vadd.xlane.f32.xlu0 %v4897
        %v4899 = vpop.xlane.xlu0 %4898
        %v4900 = vadd.f32 %v4881, %v4882
        %4901 = vadd.xlane.f32.xlu0 %v4900
        %v4902 = vpop.xlane.xlu0 %4901
        %v4903 = vadd.f32 %v4883, %v4884
        %4904 = vadd.xlane.f32.xlu0 %v4903
        %v4905 = vpop.xlane.xlu0 %4904
        %v4906 = vadd.f32 %v4885, %v4886
        %4907 = vadd.xlane.f32.xlu0 %v4906
        %v4908 = vpop.xlane.xlu0 %4907
        %v4909 = vadd.f32 %v4887, %v4888
        %4910 = vadd.xlane.f32.xlu0 %v4909
        %v4911 = vpop.xlane.xlu0 %4910
        %v4912 = vadd.f32 %v4889, %v4890
        %4913 = vadd.xlane.f32.xlu0 %v4912
        %v4914 = vpop.xlane.xlu0 %4913
        %vm4915 = vcmp.ge.f32.partialorder %v4893, 40.0
        %vm4916 = vcmp.ge.f32.partialorder %v4896, 40.0
        %vm4917 = vcmp.ge.f32.partialorder %v4899, 40.0
        %vm4918 = vcmp.ge.f32.partialorder %v4902, 40.0
        %vm4919 = vcmp.ge.f32.partialorder %v4905, 40.0
        %vm4920 = vcmp.ge.f32.partialorder %v4908, 40.0
        %vm4921 = vcmp.ge.f32.partialorder %v4911, 40.0
        %vm4922 = vcmp.ge.f32.partialorder %v4914, 40.0
        %v4923 = vsel %vm4915, %v4835, %v4771
        %v4924 = vsel %vm4916, %v4836, %v4772
        %v4925 = vsel %vm4917, %v4837, %v4773
        %v4926 = vsel %vm4918, %v4838, %v4774
        %v4927 = vsel %vm4919, %v4839, %v4775
        %v4928 = vsel %vm4920, %v4840, %v4776
        %v4929 = vsel %vm4921, %v4841, %v4777
        %v4930 = vsel %vm4922, %v4842, %v4778
        %v4931 = vsub.s32 %v4835, 1
        %v4932 = vsub.s32 %v4836, 1
        %v4933 = vsub.s32 %v4837, 1
        %v4934 = vsub.s32 %v4838, 1
        %v4935 = vsub.s32 %v4839, 1
        %v4936 = vsub.s32 %v4840, 1
        %v4937 = vsub.s32 %v4841, 1
        %v4938 = vsub.s32 %v4842, 1
        %v4939 = vsel %vm4915, %v4787, %v4931
        %v4940 = vsel %vm4916, %v4788, %v4932
        %v4941 = vsel %vm4917, %v4789, %v4933
        %v4942 = vsel %vm4918, %v4790, %v4934
        %v4943 = vsel %vm4919, %v4791, %v4935
        %v4944 = vsel %vm4920, %v4792, %v4936
        %v4945 = vsel %vm4921, %v4793, %v4937
        %v4946 = vsel %vm4922, %v4794, %v4938
        %v4947 = vshra.s32 %v4923, 1
        %v4948 = vshra.s32 %v4924, 1
        %v4949 = vshra.s32 %v4925, 1
        %v4950 = vshra.s32 %v4926, 1
        %v4951 = vshra.s32 %v4927, 1
        %v4952 = vshra.s32 %v4928, 1
        %v4953 = vshra.s32 %v4929, 1
        %v4954 = vshra.s32 %v4930, 1
        %v4955 = vshra.s32 %v4939, 1
        %v4956 = vshra.s32 %v4940, 1
        %v4957 = vshra.s32 %v4941, 1
        %v4958 = vshra.s32 %v4942, 1
        %v4959 = vshra.s32 %v4943, 1
        %v4960 = vshra.s32 %v4944, 1
        %v4961 = vshra.s32 %v4945, 1
        %v4962 = vshra.s32 %v4946, 1
        %v4963 = vadd.s32 %v4947, %v4955
        %v4964 = vadd.s32 %v4948, %v4956
        %v4965 = vadd.s32 %v4949, %v4957
        %v4966 = vadd.s32 %v4950, %v4958
        %v4967 = vadd.s32 %v4951, %v4959
        %v4968 = vadd.s32 %v4952, %v4960
        %v4969 = vadd.s32 %v4953, %v4961
        %v4970 = vadd.s32 %v4954, %v4962
        %v4971 = vor.u32 %v4923, %v4939
        %v4972 = vor.u32 %v4924, %v4940
        %v4973 = vor.u32 %v4925, %v4941
        %v4974 = vor.u32 %v4926, %v4942
        %v4975 = vor.u32 %v4927, %v4943
        %v4976 = vor.u32 %v4928, %v4944
        %v4977 = vor.u32 %v4929, %v4945
        %v4978 = vor.u32 %v4930, %v4946
        %v4979 = vand.u32 %v4971, 1
        %v4980 = vand.u32 %v4972, 1
        %v4981 = vand.u32 %v4973, 1
        %v4982 = vand.u32 %v4974, 1
        %v4983 = vand.u32 %v4975, 1
        %v4984 = vand.u32 %v4976, 1
        %v4985 = vand.u32 %v4977, 1
        %v4986 = vand.u32 %v4978, 1
        %v4987 = vadd.s32 %v4963, %v4979
        %v4988 = vadd.s32 %v4964, %v4980
        %v4989 = vadd.s32 %v4965, %v4981
        %v4990 = vadd.s32 %v4966, %v4982
        %v4991 = vadd.s32 %v4967, %v4983
        %v4992 = vadd.s32 %v4968, %v4984
        %v4993 = vadd.s32 %v4969, %v4985
        %v4994 = vadd.s32 %v4970, %v4986
        %vm4995 = vcmp.ge.s32.totalorder %v731, %v4987
        %vm4996 = vcmp.ge.s32.totalorder %v732, %v4987
        %vm4997 = vcmp.ge.s32.totalorder %v733, %v4988
        %vm4998 = vcmp.ge.s32.totalorder %v734, %v4988
        %vm4999 = vcmp.ge.s32.totalorder %v735, %v4989
        %vm5000 = vcmp.ge.s32.totalorder %v736, %v4989
        %vm5001 = vcmp.ge.s32.totalorder %v737, %v4990
        %vm5002 = vcmp.ge.s32.totalorder %v738, %v4990
        %vm5003 = vcmp.ge.s32.totalorder %v739, %v4991
        %vm5004 = vcmp.ge.s32.totalorder %v740, %v4991
        %vm5005 = vcmp.ge.s32.totalorder %v741, %v4992
        %vm5006 = vcmp.ge.s32.totalorder %v742, %v4992
        %vm5007 = vcmp.ge.s32.totalorder %v743, %v4993
        %vm5008 = vcmp.ge.s32.totalorder %v744, %v4993
        %vm5009 = vcmp.ge.s32.totalorder %v745, %v4994
        %vm5010 = vcmp.ge.s32.totalorder %v746, %v4994
        %v5011 = vsel %vm4995, 1, 0
        %v5012 = vsel %vm4996, 1, 0
        %v5013 = vsel %vm4997, 1, 0
        %v5014 = vsel %vm4998, 1, 0
        %v5015 = vsel %vm4999, 1, 0
        %v5016 = vsel %vm5000, 1, 0
        %v5017 = vsel %vm5001, 1, 0
        %v5018 = vsel %vm5002, 1, 0
        %v5019 = vsel %vm5003, 1, 0
        %v5020 = vsel %vm5004, 1, 0
        %v5021 = vsel %vm5005, 1, 0
        %v5022 = vsel %vm5006, 1, 0
        %v5023 = vsel %vm5007, 1, 0
        %v5024 = vsel %vm5008, 1, 0
        %v5025 = vsel %vm5009, 1, 0
        %v5026 = vsel %vm5010, 1, 0
        %v5027 = vcvt.s32.f32 %v5011
        %v5028 = vcvt.s32.f32 %v5012
        %v5029 = vcvt.s32.f32 %v5013
        %v5030 = vcvt.s32.f32 %v5014
        %v5031 = vcvt.s32.f32 %v5015
        %v5032 = vcvt.s32.f32 %v5016
        %v5033 = vcvt.s32.f32 %v5017
        %v5034 = vcvt.s32.f32 %v5018
        %v5035 = vcvt.s32.f32 %v5019
        %v5036 = vcvt.s32.f32 %v5020
        %v5037 = vcvt.s32.f32 %v5021
        %v5038 = vcvt.s32.f32 %v5022
        %v5039 = vcvt.s32.f32 %v5023
        %v5040 = vcvt.s32.f32 %v5024
        %v5041 = vcvt.s32.f32 %v5025
        %v5042 = vcvt.s32.f32 %v5026
        %v5043 = vadd.f32 %v5027, %v5028
        %5044 = vadd.xlane.f32.xlu0 %v5043
        %v5045 = vpop.xlane.xlu0 %5044
        %v5046 = vadd.f32 %v5029, %v5030
        %5047 = vadd.xlane.f32.xlu0 %v5046
        %v5048 = vpop.xlane.xlu0 %5047
        %v5049 = vadd.f32 %v5031, %v5032
        %5050 = vadd.xlane.f32.xlu0 %v5049
        %v5051 = vpop.xlane.xlu0 %5050
        %v5052 = vadd.f32 %v5033, %v5034
        %5053 = vadd.xlane.f32.xlu0 %v5052
        %v5054 = vpop.xlane.xlu0 %5053
        %v5055 = vadd.f32 %v5035, %v5036
        %5056 = vadd.xlane.f32.xlu0 %v5055
        %v5057 = vpop.xlane.xlu0 %5056
        %v5058 = vadd.f32 %v5037, %v5038
        %5059 = vadd.xlane.f32.xlu0 %v5058
        %v5060 = vpop.xlane.xlu0 %5059
        %v5061 = vadd.f32 %v5039, %v5040
        %5062 = vadd.xlane.f32.xlu0 %v5061
        %v5063 = vpop.xlane.xlu0 %5062
        %v5064 = vadd.f32 %v5041, %v5042
        %5065 = vadd.xlane.f32.xlu0 %v5064
        %v5066 = vpop.xlane.xlu0 %5065
        %vm5067 = vcmp.ge.f32.partialorder %v5045, 40.0
        %vm5068 = vcmp.ge.f32.partialorder %v5048, 40.0
        %vm5069 = vcmp.ge.f32.partialorder %v5051, 40.0
        %vm5070 = vcmp.ge.f32.partialorder %v5054, 40.0
        %vm5071 = vcmp.ge.f32.partialorder %v5057, 40.0
        %vm5072 = vcmp.ge.f32.partialorder %v5060, 40.0
        %vm5073 = vcmp.ge.f32.partialorder %v5063, 40.0
        %vm5074 = vcmp.ge.f32.partialorder %v5066, 40.0
        %v5075 = vsel %vm5067, %v4987, %v4923
        %v5076 = vsel %vm5068, %v4988, %v4924
        %v5077 = vsel %vm5069, %v4989, %v4925
        %v5078 = vsel %vm5070, %v4990, %v4926
        %v5079 = vsel %vm5071, %v4991, %v4927
        %v5080 = vsel %vm5072, %v4992, %v4928
        %v5081 = vsel %vm5073, %v4993, %v4929
        %v5082 = vsel %vm5074, %v4994, %v4930
        %v5083 = vsub.s32 %v4987, 1
        %v5084 = vsub.s32 %v4988, 1
        %v5085 = vsub.s32 %v4989, 1
        %v5086 = vsub.s32 %v4990, 1
        %v5087 = vsub.s32 %v4991, 1
        %v5088 = vsub.s32 %v4992, 1
        %v5089 = vsub.s32 %v4993, 1
        %v5090 = vsub.s32 %v4994, 1
        %v5091 = vsel %vm5067, %v4939, %v5083
        %v5092 = vsel %vm5068, %v4940, %v5084
        %v5093 = vsel %vm5069, %v4941, %v5085
        %v5094 = vsel %vm5070, %v4942, %v5086
        %v5095 = vsel %vm5071, %v4943, %v5087
        %v5096 = vsel %vm5072, %v4944, %v5088
        %v5097 = vsel %vm5073, %v4945, %v5089
        %v5098 = vsel %vm5074, %v4946, %v5090
        %v5099 = vshra.s32 %v5075, 1
        %v5100 = vshra.s32 %v5076, 1
        %v5101 = vshra.s32 %v5077, 1
        %v5102 = vshra.s32 %v5078, 1
        %v5103 = vshra.s32 %v5079, 1
        %v5104 = vshra.s32 %v5080, 1
        %v5105 = vshra.s32 %v5081, 1
        %v5106 = vshra.s32 %v5082, 1
        %v5107 = vshra.s32 %v5091, 1
        %v5108 = vshra.s32 %v5092, 1
        %v5109 = vshra.s32 %v5093, 1
        %v5110 = vshra.s32 %v5094, 1
        %v5111 = vshra.s32 %v5095, 1
        %v5112 = vshra.s32 %v5096, 1
        %v5113 = vshra.s32 %v5097, 1
        %v5114 = vshra.s32 %v5098, 1
        %v5115 = vadd.s32 %v5099, %v5107
        %v5116 = vadd.s32 %v5100, %v5108
        %v5117 = vadd.s32 %v5101, %v5109
        %v5118 = vadd.s32 %v5102, %v5110
        %v5119 = vadd.s32 %v5103, %v5111
        %v5120 = vadd.s32 %v5104, %v5112
        %v5121 = vadd.s32 %v5105, %v5113
        %v5122 = vadd.s32 %v5106, %v5114
        %v5123 = vor.u32 %v5075, %v5091
        %v5124 = vor.u32 %v5076, %v5092
        %v5125 = vor.u32 %v5077, %v5093
        %v5126 = vor.u32 %v5078, %v5094
        %v5127 = vor.u32 %v5079, %v5095
        %v5128 = vor.u32 %v5080, %v5096
        %v5129 = vor.u32 %v5081, %v5097
        %v5130 = vor.u32 %v5082, %v5098
        %v5131 = vand.u32 %v5123, 1
        %v5132 = vand.u32 %v5124, 1
        %v5133 = vand.u32 %v5125, 1
        %v5134 = vand.u32 %v5126, 1
        %v5135 = vand.u32 %v5127, 1
        %v5136 = vand.u32 %v5128, 1
        %v5137 = vand.u32 %v5129, 1
        %v5138 = vand.u32 %v5130, 1
        %v5139 = vadd.s32 %v5115, %v5131
        %v5140 = vadd.s32 %v5116, %v5132
        %v5141 = vadd.s32 %v5117, %v5133
        %v5142 = vadd.s32 %v5118, %v5134
        %v5143 = vadd.s32 %v5119, %v5135
        %v5144 = vadd.s32 %v5120, %v5136
        %v5145 = vadd.s32 %v5121, %v5137
        %v5146 = vadd.s32 %v5122, %v5138
        %vm5147 = vcmp.ge.s32.totalorder %v731, %v5139
        %vm5148 = vcmp.ge.s32.totalorder %v732, %v5139
        %vm5149 = vcmp.ge.s32.totalorder %v733, %v5140
        %vm5150 = vcmp.ge.s32.totalorder %v734, %v5140
        %vm5151 = vcmp.ge.s32.totalorder %v735, %v5141
        %vm5152 = vcmp.ge.s32.totalorder %v736, %v5141
        %vm5153 = vcmp.ge.s32.totalorder %v737, %v5142
        %vm5154 = vcmp.ge.s32.totalorder %v738, %v5142
        %vm5155 = vcmp.ge.s32.totalorder %v739, %v5143
        %vm5156 = vcmp.ge.s32.totalorder %v740, %v5143
        %vm5157 = vcmp.ge.s32.totalorder %v741, %v5144
        %vm5158 = vcmp.ge.s32.totalorder %v742, %v5144
        %vm5159 = vcmp.ge.s32.totalorder %v743, %v5145
        %vm5160 = vcmp.ge.s32.totalorder %v744, %v5145
        %vm5161 = vcmp.ge.s32.totalorder %v745, %v5146
        %vm5162 = vcmp.ge.s32.totalorder %v746, %v5146
        %v5163 = vsel %vm5147, 1, 0
        %v5164 = vsel %vm5148, 1, 0
        %v5165 = vsel %vm5149, 1, 0
        %v5166 = vsel %vm5150, 1, 0
        %v5167 = vsel %vm5151, 1, 0
        %v5168 = vsel %vm5152, 1, 0
        %v5169 = vsel %vm5153, 1, 0
        %v5170 = vsel %vm5154, 1, 0
        %v5171 = vsel %vm5155, 1, 0
        %v5172 = vsel %vm5156, 1, 0
        %v5173 = vsel %vm5157, 1, 0
        %v5174 = vsel %vm5158, 1, 0
        %v5175 = vsel %vm5159, 1, 0
        %v5176 = vsel %vm5160, 1, 0
        %v5177 = vsel %vm5161, 1, 0
        %v5178 = vsel %vm5162, 1, 0
        %v5179 = vcvt.s32.f32 %v5163
        %v5180 = vcvt.s32.f32 %v5164
        %v5181 = vcvt.s32.f32 %v5165
        %v5182 = vcvt.s32.f32 %v5166
        %v5183 = vcvt.s32.f32 %v5167
        %v5184 = vcvt.s32.f32 %v5168
        %v5185 = vcvt.s32.f32 %v5169
        %v5186 = vcvt.s32.f32 %v5170
        %v5187 = vcvt.s32.f32 %v5171
        %v5188 = vcvt.s32.f32 %v5172
        %v5189 = vcvt.s32.f32 %v5173
        %v5190 = vcvt.s32.f32 %v5174
        %v5191 = vcvt.s32.f32 %v5175
        %v5192 = vcvt.s32.f32 %v5176
        %v5193 = vcvt.s32.f32 %v5177
        %v5194 = vcvt.s32.f32 %v5178
        %v5195 = vadd.f32 %v5179, %v5180
        %5196 = vadd.xlane.f32.xlu0 %v5195
        %v5197 = vpop.xlane.xlu0 %5196
        %v5198 = vadd.f32 %v5181, %v5182
        %5199 = vadd.xlane.f32.xlu0 %v5198
        %v5200 = vpop.xlane.xlu0 %5199
        %v5201 = vadd.f32 %v5183, %v5184
        %5202 = vadd.xlane.f32.xlu0 %v5201
        %v5203 = vpop.xlane.xlu0 %5202
        %v5204 = vadd.f32 %v5185, %v5186
        %5205 = vadd.xlane.f32.xlu0 %v5204
        %v5206 = vpop.xlane.xlu0 %5205
        %v5207 = vadd.f32 %v5187, %v5188
        %5208 = vadd.xlane.f32.xlu0 %v5207
        %v5209 = vpop.xlane.xlu0 %5208
        %v5210 = vadd.f32 %v5189, %v5190
        %5211 = vadd.xlane.f32.xlu0 %v5210
        %v5212 = vpop.xlane.xlu0 %5211
        %v5213 = vadd.f32 %v5191, %v5192
        %5214 = vadd.xlane.f32.xlu0 %v5213
        %v5215 = vpop.xlane.xlu0 %5214
        %v5216 = vadd.f32 %v5193, %v5194
        %5217 = vadd.xlane.f32.xlu0 %v5216
        %v5218 = vpop.xlane.xlu0 %5217
        %vm5219 = vcmp.ge.f32.partialorder %v5197, 40.0
        %vm5220 = vcmp.ge.f32.partialorder %v5200, 40.0
        %vm5221 = vcmp.ge.f32.partialorder %v5203, 40.0
        %vm5222 = vcmp.ge.f32.partialorder %v5206, 40.0
        %vm5223 = vcmp.ge.f32.partialorder %v5209, 40.0
        %vm5224 = vcmp.ge.f32.partialorder %v5212, 40.0
        %vm5225 = vcmp.ge.f32.partialorder %v5215, 40.0
        %vm5226 = vcmp.ge.f32.partialorder %v5218, 40.0
        %v5227 = vsel %vm5219, %v5139, %v5075
        %v5228 = vsel %vm5220, %v5140, %v5076
        %v5229 = vsel %vm5221, %v5141, %v5077
        %v5230 = vsel %vm5222, %v5142, %v5078
        %v5231 = vsel %vm5223, %v5143, %v5079
        %v5232 = vsel %vm5224, %v5144, %v5080
        %v5233 = vsel %vm5225, %v5145, %v5081
        %v5234 = vsel %vm5226, %v5146, %v5082
        %v5235 = vsub.s32 %v5139, 1
        %v5236 = vsub.s32 %v5140, 1
        %v5237 = vsub.s32 %v5141, 1
        %v5238 = vsub.s32 %v5142, 1
        %v5239 = vsub.s32 %v5143, 1
        %v5240 = vsub.s32 %v5144, 1
        %v5241 = vsub.s32 %v5145, 1
        %v5242 = vsub.s32 %v5146, 1
        %v5243 = vsel %vm5219, %v5091, %v5235
        %v5244 = vsel %vm5220, %v5092, %v5236
        %v5245 = vsel %vm5221, %v5093, %v5237
        %v5246 = vsel %vm5222, %v5094, %v5238
        %v5247 = vsel %vm5223, %v5095, %v5239
        %v5248 = vsel %vm5224, %v5096, %v5240
        %v5249 = vsel %vm5225, %v5097, %v5241
        %v5250 = vsel %vm5226, %v5098, %v5242
        %v5251 = vshra.s32 %v5227, 1
        %v5252 = vshra.s32 %v5228, 1
        %v5253 = vshra.s32 %v5229, 1
        %v5254 = vshra.s32 %v5230, 1
        %v5255 = vshra.s32 %v5231, 1
        %v5256 = vshra.s32 %v5232, 1
        %v5257 = vshra.s32 %v5233, 1
        %v5258 = vshra.s32 %v5234, 1
        %v5259 = vshra.s32 %v5243, 1
        %v5260 = vshra.s32 %v5244, 1
        %v5261 = vshra.s32 %v5245, 1
        %v5262 = vshra.s32 %v5246, 1
        %v5263 = vshra.s32 %v5247, 1
        %v5264 = vshra.s32 %v5248, 1
        %v5265 = vshra.s32 %v5249, 1
        %v5266 = vshra.s32 %v5250, 1
        %v5267 = vadd.s32 %v5251, %v5259
        %v5268 = vadd.s32 %v5252, %v5260
        %v5269 = vadd.s32 %v5253, %v5261
        %v5270 = vadd.s32 %v5254, %v5262
        %v5271 = vadd.s32 %v5255, %v5263
        %v5272 = vadd.s32 %v5256, %v5264
        %v5273 = vadd.s32 %v5257, %v5265
        %v5274 = vadd.s32 %v5258, %v5266
        %v5275 = vor.u32 %v5227, %v5243
        %v5276 = vor.u32 %v5228, %v5244
        %v5277 = vor.u32 %v5229, %v5245
        %v5278 = vor.u32 %v5230, %v5246
        %v5279 = vor.u32 %v5231, %v5247
        %v5280 = vor.u32 %v5232, %v5248
        %v5281 = vor.u32 %v5233, %v5249
        %v5282 = vor.u32 %v5234, %v5250
        %v5283 = vand.u32 %v5275, 1
        %v5284 = vand.u32 %v5276, 1
        %v5285 = vand.u32 %v5277, 1
        %v5286 = vand.u32 %v5278, 1
        %v5287 = vand.u32 %v5279, 1
        %v5288 = vand.u32 %v5280, 1
        %v5289 = vand.u32 %v5281, 1
        %v5290 = vand.u32 %v5282, 1
        %v5291 = vadd.s32 %v5267, %v5283
        %v5292 = vadd.s32 %v5268, %v5284
        %v5293 = vadd.s32 %v5269, %v5285
        %v5294 = vadd.s32 %v5270, %v5286
        %v5295 = vadd.s32 %v5271, %v5287
        %v5296 = vadd.s32 %v5272, %v5288
        %v5297 = vadd.s32 %v5273, %v5289
        %v5298 = vadd.s32 %v5274, %v5290
        %vm5299 = vcmp.ge.s32.totalorder %v731, %v5291
        %vm5300 = vcmp.ge.s32.totalorder %v732, %v5291
        %vm5301 = vcmp.ge.s32.totalorder %v733, %v5292
        %vm5302 = vcmp.ge.s32.totalorder %v734, %v5292
        %vm5303 = vcmp.ge.s32.totalorder %v735, %v5293
        %vm5304 = vcmp.ge.s32.totalorder %v736, %v5293
        %vm5305 = vcmp.ge.s32.totalorder %v737, %v5294
        %vm5306 = vcmp.ge.s32.totalorder %v738, %v5294
        %vm5307 = vcmp.ge.s32.totalorder %v739, %v5295
        %vm5308 = vcmp.ge.s32.totalorder %v740, %v5295
        %vm5309 = vcmp.ge.s32.totalorder %v741, %v5296
        %vm5310 = vcmp.ge.s32.totalorder %v742, %v5296
        %vm5311 = vcmp.ge.s32.totalorder %v743, %v5297
        %vm5312 = vcmp.ge.s32.totalorder %v744, %v5297
        %vm5313 = vcmp.ge.s32.totalorder %v745, %v5298
        %vm5314 = vcmp.ge.s32.totalorder %v746, %v5298
        %v5315 = vsel %vm5299, 1, 0
        %v5316 = vsel %vm5300, 1, 0
        %v5317 = vsel %vm5301, 1, 0
        %v5318 = vsel %vm5302, 1, 0
        %v5319 = vsel %vm5303, 1, 0
        %v5320 = vsel %vm5304, 1, 0
        %v5321 = vsel %vm5305, 1, 0
        %v5322 = vsel %vm5306, 1, 0
        %v5323 = vsel %vm5307, 1, 0
        %v5324 = vsel %vm5308, 1, 0
        %v5325 = vsel %vm5309, 1, 0
        %v5326 = vsel %vm5310, 1, 0
        %v5327 = vsel %vm5311, 1, 0
        %v5328 = vsel %vm5312, 1, 0
        %v5329 = vsel %vm5313, 1, 0
        %v5330 = vsel %vm5314, 1, 0
        %v5331 = vcvt.s32.f32 %v5315
        %v5332 = vcvt.s32.f32 %v5316
        %v5333 = vcvt.s32.f32 %v5317
        %v5334 = vcvt.s32.f32 %v5318
        %v5335 = vcvt.s32.f32 %v5319
        %v5336 = vcvt.s32.f32 %v5320
        %v5337 = vcvt.s32.f32 %v5321
        %v5338 = vcvt.s32.f32 %v5322
        %v5339 = vcvt.s32.f32 %v5323
        %v5340 = vcvt.s32.f32 %v5324
        %v5341 = vcvt.s32.f32 %v5325
        %v5342 = vcvt.s32.f32 %v5326
        %v5343 = vcvt.s32.f32 %v5327
        %v5344 = vcvt.s32.f32 %v5328
        %v5345 = vcvt.s32.f32 %v5329
        %v5346 = vcvt.s32.f32 %v5330
        %v5347 = vadd.f32 %v5331, %v5332
        %5348 = vadd.xlane.f32.xlu0 %v5347
        %v5349 = vpop.xlane.xlu0 %5348
        %v5350 = vadd.f32 %v5333, %v5334
        %5351 = vadd.xlane.f32.xlu0 %v5350
        %v5352 = vpop.xlane.xlu0 %5351
        %v5353 = vadd.f32 %v5335, %v5336
        %5354 = vadd.xlane.f32.xlu0 %v5353
        %v5355 = vpop.xlane.xlu0 %5354
        %v5356 = vadd.f32 %v5337, %v5338
        %5357 = vadd.xlane.f32.xlu0 %v5356
        %v5358 = vpop.xlane.xlu0 %5357
        %v5359 = vadd.f32 %v5339, %v5340
        %5360 = vadd.xlane.f32.xlu0 %v5359
        %v5361 = vpop.xlane.xlu0 %5360
        %v5362 = vadd.f32 %v5341, %v5342
        %5363 = vadd.xlane.f32.xlu0 %v5362
        %v5364 = vpop.xlane.xlu0 %5363
        %v5365 = vadd.f32 %v5343, %v5344
        %5366 = vadd.xlane.f32.xlu0 %v5365
        %v5367 = vpop.xlane.xlu0 %5366
        %v5368 = vadd.f32 %v5345, %v5346
        %5369 = vadd.xlane.f32.xlu0 %v5368
        %v5370 = vpop.xlane.xlu0 %5369
        %vm5371 = vcmp.ge.f32.partialorder %v5349, 40.0
        %vm5372 = vcmp.ge.f32.partialorder %v5352, 40.0
        %vm5373 = vcmp.ge.f32.partialorder %v5355, 40.0
        %vm5374 = vcmp.ge.f32.partialorder %v5358, 40.0
        %vm5375 = vcmp.ge.f32.partialorder %v5361, 40.0
        %vm5376 = vcmp.ge.f32.partialorder %v5364, 40.0
        %vm5377 = vcmp.ge.f32.partialorder %v5367, 40.0
        %vm5378 = vcmp.ge.f32.partialorder %v5370, 40.0
        %v5379 = vsel %vm5371, %v5291, %v5227
        %v5380 = vsel %vm5372, %v5292, %v5228
        %v5381 = vsel %vm5373, %v5293, %v5229
        %v5382 = vsel %vm5374, %v5294, %v5230
        %v5383 = vsel %vm5375, %v5295, %v5231
        %v5384 = vsel %vm5376, %v5296, %v5232
        %v5385 = vsel %vm5377, %v5297, %v5233
        %v5386 = vsel %vm5378, %v5298, %v5234
        %v5387 = vsub.s32 %v5291, 1
        %v5388 = vsub.s32 %v5292, 1
        %v5389 = vsub.s32 %v5293, 1
        %v5390 = vsub.s32 %v5294, 1
        %v5391 = vsub.s32 %v5295, 1
        %v5392 = vsub.s32 %v5296, 1
        %v5393 = vsub.s32 %v5297, 1
        %v5394 = vsub.s32 %v5298, 1
        %v5395 = vsel %vm5371, %v5243, %v5387
        %v5396 = vsel %vm5372, %v5244, %v5388
        %v5397 = vsel %vm5373, %v5245, %v5389
        %v5398 = vsel %vm5374, %v5246, %v5390
        %v5399 = vsel %vm5375, %v5247, %v5391
        %v5400 = vsel %vm5376, %v5248, %v5392
        %v5401 = vsel %vm5377, %v5249, %v5393
        %v5402 = vsel %vm5378, %v5250, %v5394
        %v5403 = vshra.s32 %v5379, 1
        %v5404 = vshra.s32 %v5380, 1
        %v5405 = vshra.s32 %v5381, 1
        %v5406 = vshra.s32 %v5382, 1
        %v5407 = vshra.s32 %v5383, 1
        %v5408 = vshra.s32 %v5384, 1
        %v5409 = vshra.s32 %v5385, 1
        %v5410 = vshra.s32 %v5386, 1
        %v5411 = vshra.s32 %v5395, 1
        %v5412 = vshra.s32 %v5396, 1
        %v5413 = vshra.s32 %v5397, 1
        %v5414 = vshra.s32 %v5398, 1
        %v5415 = vshra.s32 %v5399, 1
        %v5416 = vshra.s32 %v5400, 1
        %v5417 = vshra.s32 %v5401, 1
        %v5418 = vshra.s32 %v5402, 1
        %v5419 = vadd.s32 %v5403, %v5411
        %v5420 = vadd.s32 %v5404, %v5412
        %v5421 = vadd.s32 %v5405, %v5413
        %v5422 = vadd.s32 %v5406, %v5414
        %v5423 = vadd.s32 %v5407, %v5415
        %v5424 = vadd.s32 %v5408, %v5416
        %v5425 = vadd.s32 %v5409, %v5417
        %v5426 = vadd.s32 %v5410, %v5418
        %v5427 = vor.u32 %v5379, %v5395
        %v5428 = vor.u32 %v5380, %v5396
        %v5429 = vor.u32 %v5381, %v5397
        %v5430 = vor.u32 %v5382, %v5398
        %v5431 = vor.u32 %v5383, %v5399
        %v5432 = vor.u32 %v5384, %v5400
        %v5433 = vor.u32 %v5385, %v5401
        %v5434 = vor.u32 %v5386, %v5402
        %v5435 = vand.u32 %v5427, 1
        %v5436 = vand.u32 %v5428, 1
        %v5437 = vand.u32 %v5429, 1
        %v5438 = vand.u32 %v5430, 1
        %v5439 = vand.u32 %v5431, 1
        %v5440 = vand.u32 %v5432, 1
        %v5441 = vand.u32 %v5433, 1
        %v5442 = vand.u32 %v5434, 1
        %v5443 = vadd.s32 %v5419, %v5435
        %v5444 = vadd.s32 %v5420, %v5436
        %v5445 = vadd.s32 %v5421, %v5437
        %v5446 = vadd.s32 %v5422, %v5438
        %v5447 = vadd.s32 %v5423, %v5439
        %v5448 = vadd.s32 %v5424, %v5440
        %v5449 = vadd.s32 %v5425, %v5441
        %v5450 = vadd.s32 %v5426, %v5442
        %vm5451 = vcmp.ge.s32.totalorder %v731, %v5443
        %vm5452 = vcmp.ge.s32.totalorder %v732, %v5443
        %vm5453 = vcmp.ge.s32.totalorder %v733, %v5444
        %vm5454 = vcmp.ge.s32.totalorder %v734, %v5444
        %vm5455 = vcmp.ge.s32.totalorder %v735, %v5445
        %vm5456 = vcmp.ge.s32.totalorder %v736, %v5445
        %vm5457 = vcmp.ge.s32.totalorder %v737, %v5446
        %vm5458 = vcmp.ge.s32.totalorder %v738, %v5446
        %vm5459 = vcmp.ge.s32.totalorder %v739, %v5447
        %vm5460 = vcmp.ge.s32.totalorder %v740, %v5447
        %vm5461 = vcmp.ge.s32.totalorder %v741, %v5448
        %vm5462 = vcmp.ge.s32.totalorder %v742, %v5448
        %vm5463 = vcmp.ge.s32.totalorder %v743, %v5449
        %vm5464 = vcmp.ge.s32.totalorder %v744, %v5449
        %vm5465 = vcmp.ge.s32.totalorder %v745, %v5450
        %vm5466 = vcmp.ge.s32.totalorder %v746, %v5450
        %v5467 = vsel %vm5451, 1, 0
        %v5468 = vsel %vm5452, 1, 0
        %v5469 = vsel %vm5453, 1, 0
        %v5470 = vsel %vm5454, 1, 0
        %v5471 = vsel %vm5455, 1, 0
        %v5472 = vsel %vm5456, 1, 0
        %v5473 = vsel %vm5457, 1, 0
        %v5474 = vsel %vm5458, 1, 0
        %v5475 = vsel %vm5459, 1, 0
        %v5476 = vsel %vm5460, 1, 0
        %v5477 = vsel %vm5461, 1, 0
        %v5478 = vsel %vm5462, 1, 0
        %v5479 = vsel %vm5463, 1, 0
        %v5480 = vsel %vm5464, 1, 0
        %v5481 = vsel %vm5465, 1, 0
        %v5482 = vsel %vm5466, 1, 0
        %v5483 = vcvt.s32.f32 %v5467
        %v5484 = vcvt.s32.f32 %v5468
        %v5485 = vcvt.s32.f32 %v5469
        %v5486 = vcvt.s32.f32 %v5470
        %v5487 = vcvt.s32.f32 %v5471
        %v5488 = vcvt.s32.f32 %v5472
        %v5489 = vcvt.s32.f32 %v5473
        %v5490 = vcvt.s32.f32 %v5474
        %v5491 = vcvt.s32.f32 %v5475
        %v5492 = vcvt.s32.f32 %v5476
        %v5493 = vcvt.s32.f32 %v5477
        %v5494 = vcvt.s32.f32 %v5478
        %v5495 = vcvt.s32.f32 %v5479
        %v5496 = vcvt.s32.f32 %v5480
        %v5497 = vcvt.s32.f32 %v5481
        %v5498 = vcvt.s32.f32 %v5482
        %v5499 = vadd.f32 %v5483, %v5484
        %5500 = vadd.xlane.f32.xlu0 %v5499
        %v5501 = vpop.xlane.xlu0 %5500
        %v5502 = vadd.f32 %v5485, %v5486
        %5503 = vadd.xlane.f32.xlu0 %v5502
        %v5504 = vpop.xlane.xlu0 %5503
        %v5505 = vadd.f32 %v5487, %v5488
        %5506 = vadd.xlane.f32.xlu0 %v5505
        %v5507 = vpop.xlane.xlu0 %5506
        %v5508 = vadd.f32 %v5489, %v5490
        %5509 = vadd.xlane.f32.xlu0 %v5508
        %v5510 = vpop.xlane.xlu0 %5509
        %v5511 = vadd.f32 %v5491, %v5492
        %5512 = vadd.xlane.f32.xlu0 %v5511
        %v5513 = vpop.xlane.xlu0 %5512
        %v5514 = vadd.f32 %v5493, %v5494
        %5515 = vadd.xlane.f32.xlu0 %v5514
        %v5516 = vpop.xlane.xlu0 %5515
        %v5517 = vadd.f32 %v5495, %v5496
        %5518 = vadd.xlane.f32.xlu0 %v5517
        %v5519 = vpop.xlane.xlu0 %5518
        %v5520 = vadd.f32 %v5497, %v5498
        %5521 = vadd.xlane.f32.xlu0 %v5520
        %v5522 = vpop.xlane.xlu0 %5521
        %vm5523 = vcmp.ge.f32.partialorder %v5501, 40.0
        %vm5524 = vcmp.ge.f32.partialorder %v5504, 40.0
        %vm5525 = vcmp.ge.f32.partialorder %v5507, 40.0
        %vm5526 = vcmp.ge.f32.partialorder %v5510, 40.0
        %vm5527 = vcmp.ge.f32.partialorder %v5513, 40.0
        %vm5528 = vcmp.ge.f32.partialorder %v5516, 40.0
        %vm5529 = vcmp.ge.f32.partialorder %v5519, 40.0
        %vm5530 = vcmp.ge.f32.partialorder %v5522, 40.0
        %v5531 = vsel %vm5523, %v5443, %v5379
        %v5532 = vsel %vm5524, %v5444, %v5380
        %v5533 = vsel %vm5525, %v5445, %v5381
        %v5534 = vsel %vm5526, %v5446, %v5382
        %v5535 = vsel %vm5527, %v5447, %v5383
        %v5536 = vsel %vm5528, %v5448, %v5384
        %v5537 = vsel %vm5529, %v5449, %v5385
        %v5538 = vsel %vm5530, %v5450, %v5386
        %vm5539 = vcmp.ge.s32.totalorder %v731, %v5531
        %vm5540 = vcmp.ge.s32.totalorder %v732, %v5531
        %vm5541 = vcmp.ge.s32.totalorder %v733, %v5532
        %vm5542 = vcmp.ge.s32.totalorder %v734, %v5532
        %vm5543 = vcmp.ge.s32.totalorder %v735, %v5533
        %vm5544 = vcmp.ge.s32.totalorder %v736, %v5533
        %vm5545 = vcmp.ge.s32.totalorder %v737, %v5534
        %vm5546 = vcmp.ge.s32.totalorder %v738, %v5534
        %vm5547 = vcmp.ge.s32.totalorder %v739, %v5535
        %vm5548 = vcmp.ge.s32.totalorder %v740, %v5535
        %vm5549 = vcmp.ge.s32.totalorder %v741, %v5536
        %vm5550 = vcmp.ge.s32.totalorder %v742, %v5536
        %vm5551 = vcmp.ge.s32.totalorder %v743, %v5537
        %vm5552 = vcmp.ge.s32.totalorder %v744, %v5537
        %vm5553 = vcmp.ge.s32.totalorder %v745, %v5538
        %vm5554 = vcmp.ge.s32.totalorder %v746, %v5538
        %v5555 = vsel %vm5539, %v625, 0.0
        %v5556 = vsel %vm5540, %v626, 0.0
        %v5557 = vsel %vm5541, %v627, 0.0
        %v5558 = vsel %vm5542, %v628, 0.0
        %v5559 = vsel %vm5543, %v629, 0.0
        %v5560 = vsel %vm5544, %v630, 0.0
        %v5561 = vsel %vm5545, %v631, 0.0
        %v5562 = vsel %vm5546, %v632, 0.0
        %v5563 = vsel %vm5547, %v633, 0.0
        %v5564 = vsel %vm5548, %v634, 0.0
        %v5565 = vsel %vm5549, %v635, 0.0
        %v5566 = vsel %vm5550, %v636, 0.0
        %v5567 = vsel %vm5551, %v637, 0.0
        %v5568 = vsel %vm5552, %v638, 0.0
        %v5569 = vsel %vm5553, %v639, 0.0
        %v5570 = vsel %vm5554, %v640, 0.0
        %vm5571 = vcmp.gt.f32.partialorder %v5555, 0.0
        %vm5572 = vcmp.gt.f32.partialorder %v5556, 0.0
        %vm5573 = vcmp.gt.f32.partialorder %v5557, 0.0
        %vm5574 = vcmp.gt.f32.partialorder %v5558, 0.0
        %vm5575 = vcmp.gt.f32.partialorder %v5559, 0.0
        %vm5576 = vcmp.gt.f32.partialorder %v5560, 0.0
        %vm5577 = vcmp.gt.f32.partialorder %v5561, 0.0
        %vm5578 = vcmp.gt.f32.partialorder %v5562, 0.0
        %vm5579 = vcmp.gt.f32.partialorder %v5563, 0.0
        %vm5580 = vcmp.gt.f32.partialorder %v5564, 0.0
        %vm5581 = vcmp.gt.f32.partialorder %v5565, 0.0
        %vm5582 = vcmp.gt.f32.partialorder %v5566, 0.0
        %vm5583 = vcmp.gt.f32.partialorder %v5567, 0.0
        %vm5584 = vcmp.gt.f32.partialorder %v5568, 0.0
        %vm5585 = vcmp.gt.f32.partialorder %v5569, 0.0
        %vm5586 = vcmp.gt.f32.partialorder %v5570, 0.0
        %v5587 = vsel %vm5571, 1, 0
        %v5588 = vsel %vm5572, 1, 0
        %v5589 = vsel %vm5573, 1, 0
        %v5590 = vsel %vm5574, 1, 0
        %v5591 = vsel %vm5575, 1, 0
        %v5592 = vsel %vm5576, 1, 0
        %v5593 = vsel %vm5577, 1, 0
        %v5594 = vsel %vm5578, 1, 0
        %v5595 = vsel %vm5579, 1, 0
        %v5596 = vsel %vm5580, 1, 0
        %v5597 = vsel %vm5581, 1, 0
        %v5598 = vsel %vm5582, 1, 0
        %v5599 = vsel %vm5583, 1, 0
        %v5600 = vsel %vm5584, 1, 0
        %v5601 = vsel %vm5585, 1, 0
        %v5602 = vsel %vm5586, 1, 0
        %v5603 = vcvt.s32.f32 %v5587
        %v5604 = vcvt.s32.f32 %v5588
        %v5605 = vcvt.s32.f32 %v5589
        %v5606 = vcvt.s32.f32 %v5590
        %v5607 = vcvt.s32.f32 %v5591
        %v5608 = vcvt.s32.f32 %v5592
        %v5609 = vcvt.s32.f32 %v5593
        %v5610 = vcvt.s32.f32 %v5594
        %v5611 = vcvt.s32.f32 %v5595
        %v5612 = vcvt.s32.f32 %v5596
        %v5613 = vcvt.s32.f32 %v5597
        %v5614 = vcvt.s32.f32 %v5598
        %v5615 = vcvt.s32.f32 %v5599
        %v5616 = vcvt.s32.f32 %v5600
        %v5617 = vcvt.s32.f32 %v5601
        %v5618 = vcvt.s32.f32 %v5602
        %vm5619 = vcmp.eq.f32.partialorder %v5555, 0.0
        %vm5620 = vcmp.eq.f32.partialorder %v5556, 0.0
        %vm5621 = vcmp.eq.f32.partialorder %v5557, 0.0
        %vm5622 = vcmp.eq.f32.partialorder %v5558, 0.0
        %vm5623 = vcmp.eq.f32.partialorder %v5559, 0.0
        %vm5624 = vcmp.eq.f32.partialorder %v5560, 0.0
        %vm5625 = vcmp.eq.f32.partialorder %v5561, 0.0
        %vm5626 = vcmp.eq.f32.partialorder %v5562, 0.0
        %vm5627 = vcmp.eq.f32.partialorder %v5563, 0.0
        %vm5628 = vcmp.eq.f32.partialorder %v5564, 0.0
        %vm5629 = vcmp.eq.f32.partialorder %v5565, 0.0
        %vm5630 = vcmp.eq.f32.partialorder %v5566, 0.0
        %vm5631 = vcmp.eq.f32.partialorder %v5567, 0.0
        %vm5632 = vcmp.eq.f32.partialorder %v5568, 0.0
        %vm5633 = vcmp.eq.f32.partialorder %v5569, 0.0
        %vm5634 = vcmp.eq.f32.partialorder %v5570, 0.0
        %v5635 = vsel %vm5619, 1, 0
        %v5636 = vsel %vm5620, 1, 0
        %v5637 = vsel %vm5621, 1, 0
        %v5638 = vsel %vm5622, 1, 0
        %v5639 = vsel %vm5623, 1, 0
        %v5640 = vsel %vm5624, 1, 0
        %v5641 = vsel %vm5625, 1, 0
        %v5642 = vsel %vm5626, 1, 0
        %v5643 = vsel %vm5627, 1, 0
        %v5644 = vsel %vm5628, 1, 0
        %v5645 = vsel %vm5629, 1, 0
        %v5646 = vsel %vm5630, 1, 0
        %v5647 = vsel %vm5631, 1, 0
        %v5648 = vsel %vm5632, 1, 0
        %v5649 = vsel %vm5633, 1, 0
        %v5650 = vsel %vm5634, 1, 0
        %v5651 = vcvt.s32.f32 %v5635
        %v5652 = vcvt.s32.f32 %v5636
        %v5653 = vcvt.s32.f32 %v5637
        %v5654 = vcvt.s32.f32 %v5638
        %v5655 = vcvt.s32.f32 %v5639
        %v5656 = vcvt.s32.f32 %v5640
        %v5657 = vcvt.s32.f32 %v5641
        %v5658 = vcvt.s32.f32 %v5642
        %v5659 = vcvt.s32.f32 %v5643
        %v5660 = vcvt.s32.f32 %v5644
        %v5661 = vcvt.s32.f32 %v5645
        %v5662 = vcvt.s32.f32 %v5646
        %v5663 = vcvt.s32.f32 %v5647
        %v5664 = vcvt.s32.f32 %v5648
        %v5665 = vcvt.s32.f32 %v5649
        %v5666 = vcvt.s32.f32 %v5650
        %v5667 = vadd.f32 %v5603, %v5605
        %v5668 = vadd.f32 %v5667, %v5607
        %v5669 = vadd.f32 %v5668, %v5609
        %v5670 = vadd.f32 %v5669, %v5611
        %v5671 = vadd.f32 %v5670, %v5613
        %v5672 = vadd.f32 %v5671, %v5615
        %v5673 = vadd.f32 %v5672, %v5617
        %v5674 = vrot.slane %v5673, 4
        %v5675 = vadd.f32 %v5673, %v5674
        %v5676 = vrot.slane %v5675, 2
        %v5677 = vadd.f32 %v5675, %v5676
        %v5678 = vrot.slane %v5677, 1
        %v5679 = vadd.f32 %v5677, %v5678
        %v5680 = vadd.f32 %v5604, %v5606
        %v5681 = vadd.f32 %v5680, %v5608
        %v5682 = vadd.f32 %v5681, %v5610
        %v5683 = vadd.f32 %v5682, %v5612
        %v5684 = vadd.f32 %v5683, %v5614
        %v5685 = vadd.f32 %v5684, %v5616
        %v5686 = vadd.f32 %v5685, %v5618
        %v5687 = vrot.slane %v5686, 4
        %v5688 = vadd.f32 %v5686, %v5687
        %v5689 = vrot.slane %v5688, 2
        %v5690 = vadd.f32 %v5688, %v5689
        %v5691 = vrot.slane %v5690, 1
        %v5692 = vadd.f32 %v5690, %v5691
        %v5693 = vmul.f32 %v5603, %v5555
        %v5694 = vmul.f32 %v5604, %v5556
        %v5695 = vmul.f32 %v5605, %v5557
        %v5696 = vmul.f32 %v5606, %v5558
        %v5697 = vmul.f32 %v5607, %v5559
        %v5698 = vmul.f32 %v5608, %v5560
        %v5699 = vmul.f32 %v5609, %v5561
        %v5700 = vmul.f32 %v5610, %v5562
        %v5701 = vmul.f32 %v5611, %v5563
        %v5702 = vmul.f32 %v5612, %v5564
        %v5703 = vmul.f32 %v5613, %v5565
        %v5704 = vmul.f32 %v5614, %v5566
        %v5705 = vmul.f32 %v5615, %v5567
        %v5706 = vmul.f32 %v5616, %v5568
        %v5707 = vmul.f32 %v5617, %v5569
        %v5708 = vmul.f32 %v5618, %v5570
        %v5709 = vadd.f32 %v5693, %v5695
        %v5710 = vadd.f32 %v5709, %v5697
        %v5711 = vadd.f32 %v5710, %v5699
        %v5712 = vadd.f32 %v5711, %v5701
        %v5713 = vadd.f32 %v5712, %v5703
        %v5714 = vadd.f32 %v5713, %v5705
        %v5715 = vadd.f32 %v5714, %v5707
        %v5716 = vrot.slane %v5715, 4
        %v5717 = vadd.f32 %v5715, %v5716
        %v5718 = vrot.slane %v5717, 2
        %v5719 = vadd.f32 %v5717, %v5718
        %v5720 = vrot.slane %v5719, 1
        %v5721 = vadd.f32 %v5719, %v5720
        %v5722 = vadd.f32 %v5694, %v5696
        %v5723 = vadd.f32 %v5722, %v5698
        %v5724 = vadd.f32 %v5723, %v5700
        %v5725 = vadd.f32 %v5724, %v5702
        %v5726 = vadd.f32 %v5725, %v5704
        %v5727 = vadd.f32 %v5726, %v5706
        %v5728 = vadd.f32 %v5727, %v5708
        %v5729 = vrot.slane %v5728, 4
        %v5730 = vadd.f32 %v5728, %v5729
        %v5731 = vrot.slane %v5730, 2
        %v5732 = vadd.f32 %v5730, %v5731
        %v5733 = vrot.slane %v5732, 1
        %v5734 = vadd.f32 %v5732, %v5733
        %v5735 = vadd.f32 %v5651, %v5653
        %v5736 = vadd.f32 %v5735, %v5655
        %v5737 = vadd.f32 %v5736, %v5657
        %v5738 = vadd.f32 %v5737, %v5659
        %v5739 = vadd.f32 %v5738, %v5661
        %v5740 = vadd.f32 %v5739, %v5663
        %v5741 = vadd.f32 %v5740, %v5665
        %v5742 = vrot.slane %v5741, 4
        %v5743 = vadd.f32 %v5741, %v5742
        %v5744 = vrot.slane %v5743, 2
        %v5745 = vadd.f32 %v5743, %v5744
        %v5746 = vrot.slane %v5745, 1
        %v5747 = vadd.f32 %v5745, %v5746
        %v5748 = vadd.f32 %v5652, %v5654
        %v5749 = vadd.f32 %v5748, %v5656
        %v5750 = vadd.f32 %v5749, %v5658
        %v5751 = vadd.f32 %v5750, %v5660
        %v5752 = vadd.f32 %v5751, %v5662
        %v5753 = vadd.f32 %v5752, %v5664
        %v5754 = vadd.f32 %v5753, %v5666
        %v5755 = vrot.slane %v5754, 4
        %v5756 = vadd.f32 %v5754, %v5755
        %v5757 = vrot.slane %v5756, 2
        %v5758 = vadd.f32 %v5756, %v5757
        %v5759 = vrot.slane %v5758, 1
        %v5760 = vadd.f32 %v5758, %v5759
        %v5761 = vmul.f32 %v482, 0.99
        %v5764 = vrot.slane %v5692, 7
        %vm5765 = vcmask 1040384
        %v5766 = vsel %vm5765, %v5679, %v5764
        %v5768 = vmul.f32 %v5761, %v5766
        %v5769 = vmul.f32 %v5721, 0.01
        %v5770 = vmul.f32 %v5734, 0.01
        %v5773 = vrot.slane %v5770, 7
        %v5774 = vsel %vm5765, %v5769, %v5773
        %v5776 = vadd.f32 %v5768, %v5774
        %v5777 = vmul.f32 %v5776, 0.0078125
        %v5780 = vrot.slane %v5760, 7
        %v5781 = vsel %vm5765, %v5747, %v5780
        %v5783 = vmul.f32 %v482, %v5781
        %v5785 = vperm.slane %v5783, 0
        %v5786 = vperm.slane %v5783, 1
        %v5789 = vsel %vm5765, %v5785, 0.0
        %v5790 = vsel %vm5765, %v5786, 0.0
        %v5791 = vadd.f32 %v5789, %v5790
        %5792 = vadd.xlane.f32.xlu0 %v5791
        %v5793 = vpop.xlane.xlu0 %5792
        %v5794 = vmul.f32 %v5793, 0.0078125
        %v5796 = vperm.slane %v5794, 0
        %v5798 = vadd.f32 %v5777, %v5796
        %v5799 = vlaneseq
        %vm5800 = vcmp.ge.s32.totalorder %v5799, 0
        %vm5801 = vcmp.lt.s32.totalorder %v5799, 256
        %vm5802 = vmand %vm5800, %vm5801
        %5803 = vst.msk [vmem:[%s443] sm:$0x3] %vm5802, %v5798
        %v5804 = vld [vmem:[#allocation7] sm:$0xf]
        %v5805 = vld [vmem:[#allocation7 + $0x4] sm:$0xf]
        %v5806 = vld [vmem:[#allocation7 + $0x8] sm:$0xf]
        %v5807 = vld [vmem:[#allocation7 + $0xc] sm:$0xf]
        %v5808 = vld [vmem:[#allocation7 + $0x10] sm:$0xf]
        %v5809 = vld [vmem:[#allocation7 + $0x14] sm:$0xf]
        %v5810 = vld [vmem:[#allocation7 + $0x18] sm:$0xf]
        %v5811 = vld [vmem:[#allocation7 + $0x1c] sm:$0xf]
        %v5812 = vld [vmem:[#allocation7 + $0x20] sm:$0xf]
        %v5813 = vld [vmem:[#allocation7 + $0x24] sm:$0xf]
        %v5814 = vld [vmem:[#allocation7 + $0x28] sm:$0xf]
        %v5815 = vld [vmem:[#allocation7 + $0x2c] sm:$0xf]
        %v5816 = vld [vmem:[#allocation7 + $0x30] sm:$0xf]
        %v5817 = vld [vmem:[#allocation7 + $0x34] sm:$0xf]
        %v5818 = vld [vmem:[#allocation7 + $0x38] sm:$0xf]
        %v5819 = vld [vmem:[#allocation7 + $0x3c] sm:$0xf]
        %v5820 = vld [vmem:[#allocation7 + $0x40] sm:$0xf]
        %v5821 = vld [vmem:[#allocation7 + $0x44] sm:$0xf]
        %v5822 = vld [vmem:[#allocation7 + $0x48] sm:$0xf]
        %v5823 = vld [vmem:[#allocation7 + $0x4c] sm:$0xf]
        %v5824 = vld [vmem:[#allocation7 + $0x50] sm:$0xf]
        %v5825 = vld [vmem:[#allocation7 + $0x54] sm:$0xf]
        %v5826 = vld [vmem:[#allocation7 + $0x58] sm:$0xf]
        %v5827 = vld [vmem:[#allocation7 + $0x5c] sm:$0xf]
        %v5828 = vld [vmem:[#allocation7 + $0x60] sm:$0xf]
        %v5829 = vld [vmem:[#allocation7 + $0x64] sm:$0xf]
        %v5830 = vld [vmem:[#allocation7 + $0x68] sm:$0xf]
        %v5831 = vld [vmem:[#allocation7 + $0x6c] sm:$0xf]
        %v5832 = vld [vmem:[#allocation7 + $0x70] sm:$0xf]
        %v5833 = vld [vmem:[#allocation7 + $0x74] sm:$0xf]
        %v5834 = vld [vmem:[#allocation7 + $0x78] sm:$0xf]
        %v5835 = vld [vmem:[#allocation7 + $0x7c] sm:$0xf]
        %v5836 = vld [vmem:[%s5] sm:$0x1]
        %v5837 = vpack.c.bf16 %v5557, %v5555
        %v5838 = vpack.c.bf16 %v5558, %v5556
        %v5839 = vpack.c.bf16 %v5561, %v5559
        %v5840 = vpack.c.bf16 %v5562, %v5560
        %v5841 = vpack.c.bf16 %v5565, %v5563
        %v5842 = vpack.c.bf16 %v5566, %v5564
        %v5843 = vpack.c.bf16 %v5569, %v5567
        %v5844 = vpack.c.bf16 %v5570, %v5568
        %v5877 = vunpack.c.l.b16 %v5804
        %v5878 = vunpack.c.l.b16 %v5805
        %v5879 = vunpack.c.l.b16 %v5806
        %v5880 = vunpack.c.l.b16 %v5807
        %v5881 = vunpack.c.l.b16 %v5808
        %v5882 = vunpack.c.l.b16 %v5809
        %v5883 = vunpack.c.l.b16 %v5810
        %v5884 = vunpack.c.l.b16 %v5811
        %v5885 = vunpack.c.l.b16 %v5812
        %v5886 = vunpack.c.l.b16 %v5813
        %v5887 = vunpack.c.l.b16 %v5814
        %v5888 = vunpack.c.l.b16 %v5815
        %v5889 = vunpack.c.l.b16 %v5816
        %v5890 = vunpack.c.l.b16 %v5817
        %v5891 = vunpack.c.l.b16 %v5818
        %v5892 = vunpack.c.l.b16 %v5819
        %v5893 = vunpack.c.l.b16 %v5820
        %v5894 = vunpack.c.l.b16 %v5821
        %v5895 = vunpack.c.l.b16 %v5822
        %v5896 = vunpack.c.l.b16 %v5823
        %v5897 = vunpack.c.l.b16 %v5824
        %v5898 = vunpack.c.l.b16 %v5825
        %v5899 = vunpack.c.l.b16 %v5826
        %v5900 = vunpack.c.l.b16 %v5827
        %v5901 = vunpack.c.l.b16 %v5828
        %v5902 = vunpack.c.l.b16 %v5829
        %v5903 = vunpack.c.l.b16 %v5830
        %v5904 = vunpack.c.l.b16 %v5831
        %v5905 = vunpack.c.l.b16 %v5832
        %v5906 = vunpack.c.l.b16 %v5833
        %v5907 = vunpack.c.l.b16 %v5834
        %v5908 = vunpack.c.l.b16 %v5835
        %v5909 = vpack.c.b16 %v5878, %v5877
        %v5910 = vpack.c.b16 %v5880, %v5879
        %v5911 = vpack.c.b16 %v5882, %v5881
        %v5912 = vpack.c.b16 %v5884, %v5883
        %v5913 = vpack.c.b16 %v5886, %v5885
        %v5914 = vpack.c.b16 %v5888, %v5887
        %v5915 = vpack.c.b16 %v5890, %v5889
        %v5916 = vpack.c.b16 %v5892, %v5891
        %v5917 = vpack.c.b16 %v5894, %v5893
        %v5918 = vpack.c.b16 %v5896, %v5895
        %v5919 = vpack.c.b16 %v5898, %v5897
        %v5920 = vpack.c.b16 %v5900, %v5899
        %v5921 = vpack.c.b16 %v5902, %v5901
        %v5922 = vpack.c.b16 %v5904, %v5903
        %v5923 = vpack.c.b16 %v5906, %v5905
        %v5924 = vpack.c.b16 %v5908, %v5907
        %5941 = vmatpush.bf16.msra.mxu0 %v5916
        %5942 = vmatpush.bf16.msra.mxu0 %v5915
        %5943 = vmatpush.bf16.msra.mxu0 %v5914
        %5944 = vmatpush.bf16.msra.mxu0 %v5913
        %5945 = vmatpush.bf16.msra.mxu0 %v5912
        %5946 = vmatpush.bf16.msra.mxu0 %v5911
        %5947 = vmatpush.bf16.msra.mxu0 %v5910
        %5948 = vmatpush.bf16.msra.mxu0 %v5909
        %5949 = vmatmul.bf16.gmra.mxu0 %v5837
        %v5950 = vpop.f32.mrf.mxu0
        %v5951 = vadd.f32 0.0, %v5950
        %v5952 = vpop.f32.mrf.mxu0
        %v5953 = vadd.f32 0.0, %v5952
        %5954 = vmatmul.bf16.gmra.mxu0 %v5839
        %v5955 = vpop.f32.mrf.mxu0
        %v5956 = vadd.f32 0.0, %v5955
        %v5957 = vpop.f32.mrf.mxu0
        %v5958 = vadd.f32 0.0, %v5957
        %5959 = vmatmul.bf16.gmra.mxu0 %v5841
        %v5960 = vpop.f32.mrf.mxu0
        %v5961 = vadd.f32 0.0, %v5960
        %v5962 = vpop.f32.mrf.mxu0
        %v5963 = vadd.f32 0.0, %v5962
        %5964 = vmatmul.bf16.gmra.mxu0 %v5843
        %v5965 = vpop.f32.mrf.mxu0
        %v5966 = vadd.f32 0.0, %v5965
        %v5967 = vpop.f32.mrf.mxu0
        %v5968 = vadd.f32 0.0, %v5967
        %5969 = vdwg.mxu0
        %5970 = vmatpush.bf16.msra.mxu0 %v5924
        %5971 = vmatpush.bf16.msra.mxu0 %v5923
        %5972 = vmatpush.bf16.msra.mxu0 %v5922
        %5973 = vmatpush.bf16.msra.mxu0 %v5921
        %5974 = vmatpush.bf16.msra.mxu0 %v5920
        %5975 = vmatpush.bf16.msra.mxu0 %v5919
        %5976 = vmatpush.bf16.msra.mxu0 %v5918
        %5977 = vmatpush.bf16.msra.mxu0 %v5917
        %5978 = vmatmul.bf16.gmra.mxu0 %v5838
        %v5979 = vpop.f32.mrf.mxu0
        %v5980 = vadd.f32 %v5951, %v5979
        %v5981 = vpop.f32.mrf.mxu0
        %v5982 = vadd.f32 %v5953, %v5981
        %5983 = vmatmul.bf16.gmra.mxu0 %v5840
        %v5984 = vpop.f32.mrf.mxu0
        %v5985 = vadd.f32 %v5956, %v5984
        %v5986 = vpop.f32.mrf.mxu0
        %v5987 = vadd.f32 %v5958, %v5986
        %5988 = vmatmul.bf16.gmra.mxu0 %v5842
        %v5989 = vpop.f32.mrf.mxu0
        %v5990 = vadd.f32 %v5961, %v5989
        %v5991 = vpop.f32.mrf.mxu0
        %v5992 = vadd.f32 %v5963, %v5991
        %5993 = vmatmul.bf16.gmra.mxu0 %v5844
        %v5994 = vpop.f32.mrf.mxu0
        %v5995 = vadd.f32 %v5966, %v5994
        %v5996 = vpop.f32.mrf.mxu0
        %v5997 = vadd.f32 %v5968, %v5996
        %5998 = vdwg.mxu0
        %v5999 = vtanh.pop %v5980
        %v6000 = vtanh.pop %v5982
        %v6001 = vtanh.pop %v5985
        %v6002 = vtanh.pop %v5987
        %v6003 = vtanh.pop %v5990
        %v6004 = vtanh.pop %v5992
        %v6005 = vtanh.pop %v5995
        %v6006 = vtanh.pop %v5997
        %vm6007 = vcmp.lt.s32.totalorder %v642, 64
        %v6009 = vperm.slane %v5836, 0
        %v6011 = vsub.f32 %v5999, %v6009
        %v6012 = vsub.f32 %v6000, %v6009
        %v6013 = vsub.f32 %v6001, %v6009
        %v6014 = vsub.f32 %v6002, %v6009
        %v6015 = vsub.f32 %v6003, %v6009
        %v6016 = vsub.f32 %v6004, %v6009
        %v6017 = vsub.f32 %v6005, %v6009
        %v6018 = vsub.f32 %v6006, %v6009
        %v6019 = vsel %vm6007, %v6011, -inf
        %v6020 = vsel %vm6007, %v6012, -inf
        %v6021 = vsel %vm6007, %v6013, -inf
        %v6022 = vsel %vm6007, %v6014, -inf
        %v6023 = vsel %vm6007, %v6015, -inf
        %v6024 = vsel %vm6007, %v6016, -inf
        %v6025 = vsel %vm6007, %v6017, -inf
        %v6026 = vsel %vm6007, %v6018, -inf
        %v6027 = vcvt.s32.f32 %v642
        %6028 = vmax.xlane.f32.xlu0 %v6019
        %v6029 = vpop.xlane.xlu0 %6028
        %6030 = vmax.xlane.f32.xlu0 %v6020
        %v6031 = vpop.xlane.xlu0 %6030
        %6032 = vmax.xlane.f32.xlu0 %v6021
        %v6033 = vpop.xlane.xlu0 %6032
        %6034 = vmax.xlane.f32.xlu0 %v6022
        %v6035 = vpop.xlane.xlu0 %6034
        %6036 = vmax.xlane.f32.xlu0 %v6023
        %v6037 = vpop.xlane.xlu0 %6036
        %6038 = vmax.xlane.f32.xlu0 %v6024
        %v6039 = vpop.xlane.xlu0 %6038
        %6040 = vmax.xlane.f32.xlu0 %v6025
        %v6041 = vpop.xlane.xlu0 %6040
        %6042 = vmax.xlane.f32.xlu0 %v6026
        %v6043 = vpop.xlane.xlu0 %6042
        %vm6044 = vcmp.eq.f32.partialorder %v6019, %v6029
        %vm6045 = vcmp.eq.f32.partialorder %v6020, %v6031
        %vm6046 = vcmp.eq.f32.partialorder %v6021, %v6033
        %vm6047 = vcmp.eq.f32.partialorder %v6022, %v6035
        %vm6048 = vcmp.eq.f32.partialorder %v6023, %v6037
        %vm6049 = vcmp.eq.f32.partialorder %v6024, %v6039
        %vm6050 = vcmp.eq.f32.partialorder %v6025, %v6041
        %vm6051 = vcmp.eq.f32.partialorder %v6026, %v6043
        %v6052 = vsel %vm6044, %v6027, 128.0
        %v6053 = vsel %vm6045, %v6027, 128.0
        %v6054 = vsel %vm6046, %v6027, 128.0
        %v6055 = vsel %vm6047, %v6027, 128.0
        %v6056 = vsel %vm6048, %v6027, 128.0
        %v6057 = vsel %vm6049, %v6027, 128.0
        %v6058 = vsel %vm6050, %v6027, 128.0
        %v6059 = vsel %vm6051, %v6027, 128.0
        %6060 = vmin.xlane.f32.xlu0 %v6052
        %v6061 = vpop.xlane.xlu0 %6060
        %6062 = vmin.xlane.f32.xlu0 %v6053
        %v6063 = vpop.xlane.xlu0 %6062
        %6064 = vmin.xlane.f32.xlu0 %v6054
        %v6065 = vpop.xlane.xlu0 %6064
        %6066 = vmin.xlane.f32.xlu0 %v6055
        %v6067 = vpop.xlane.xlu0 %6066
        %6068 = vmin.xlane.f32.xlu0 %v6056
        %v6069 = vpop.xlane.xlu0 %6068
        %6070 = vmin.xlane.f32.xlu0 %v6057
        %v6071 = vpop.xlane.xlu0 %6070
        %6072 = vmin.xlane.f32.xlu0 %v6058
        %v6073 = vpop.xlane.xlu0 %6072
        %6074 = vmin.xlane.f32.xlu0 %v6059
        %v6075 = vpop.xlane.xlu0 %6074
        %vm6076 = vcmp.eq.f32.partialorder %v6027, %v6061
        %vm6077 = vcmp.eq.f32.partialorder %v6027, %v6063
        %vm6078 = vcmp.eq.f32.partialorder %v6027, %v6065
        %vm6079 = vcmp.eq.f32.partialorder %v6027, %v6067
        %vm6080 = vcmp.eq.f32.partialorder %v6027, %v6069
        %vm6081 = vcmp.eq.f32.partialorder %v6027, %v6071
        %vm6082 = vcmp.eq.f32.partialorder %v6027, %v6073
        %vm6083 = vcmp.eq.f32.partialorder %v6027, %v6075
        %v6084 = vsel %vm6076, -inf, %v6019
        %v6085 = vsel %vm6077, -inf, %v6020
        %v6086 = vsel %vm6078, -inf, %v6021
        %v6087 = vsel %vm6079, -inf, %v6022
        %v6088 = vsel %vm6080, -inf, %v6023
        %v6089 = vsel %vm6081, -inf, %v6024
        %v6090 = vsel %vm6082, -inf, %v6025
        %v6091 = vsel %vm6083, -inf, %v6026
        %6092 = vmax.xlane.f32.xlu0 %v6084
        %v6093 = vpop.xlane.xlu0 %6092
        %6094 = vmax.xlane.f32.xlu0 %v6085
        %v6095 = vpop.xlane.xlu0 %6094
        %6096 = vmax.xlane.f32.xlu0 %v6086
        %v6097 = vpop.xlane.xlu0 %6096
        %6098 = vmax.xlane.f32.xlu0 %v6087
        %v6099 = vpop.xlane.xlu0 %6098
        %6100 = vmax.xlane.f32.xlu0 %v6088
        %v6101 = vpop.xlane.xlu0 %6100
        %6102 = vmax.xlane.f32.xlu0 %v6089
        %v6103 = vpop.xlane.xlu0 %6102
        %6104 = vmax.xlane.f32.xlu0 %v6090
        %v6105 = vpop.xlane.xlu0 %6104
        %6106 = vmax.xlane.f32.xlu0 %v6091
        %v6107 = vpop.xlane.xlu0 %6106
        %vm6108 = vcmp.eq.f32.partialorder %v6084, %v6093
        %vm6109 = vcmp.eq.f32.partialorder %v6085, %v6095
        %vm6110 = vcmp.eq.f32.partialorder %v6086, %v6097
        %vm6111 = vcmp.eq.f32.partialorder %v6087, %v6099
        %vm6112 = vcmp.eq.f32.partialorder %v6088, %v6101
        %vm6113 = vcmp.eq.f32.partialorder %v6089, %v6103
        %vm6114 = vcmp.eq.f32.partialorder %v6090, %v6105
        %vm6115 = vcmp.eq.f32.partialorder %v6091, %v6107
        %v6116 = vsel %vm6108, %v6027, 128.0
        %v6117 = vsel %vm6109, %v6027, 128.0
        %v6118 = vsel %vm6110, %v6027, 128.0
        %v6119 = vsel %vm6111, %v6027, 128.0
        %v6120 = vsel %vm6112, %v6027, 128.0
        %v6121 = vsel %vm6113, %v6027, 128.0
        %v6122 = vsel %vm6114, %v6027, 128.0
        %v6123 = vsel %vm6115, %v6027, 128.0
        %6124 = vmin.xlane.f32.xlu0 %v6116
        %v6125 = vpop.xlane.xlu0 %6124
        %6126 = vmin.xlane.f32.xlu0 %v6117
        %v6127 = vpop.xlane.xlu0 %6126
        %6128 = vmin.xlane.f32.xlu0 %v6118
        %v6129 = vpop.xlane.xlu0 %6128
        %6130 = vmin.xlane.f32.xlu0 %v6119
        %v6131 = vpop.xlane.xlu0 %6130
        %6132 = vmin.xlane.f32.xlu0 %v6120
        %v6133 = vpop.xlane.xlu0 %6132
        %6134 = vmin.xlane.f32.xlu0 %v6121
        %v6135 = vpop.xlane.xlu0 %6134
        %6136 = vmin.xlane.f32.xlu0 %v6122
        %v6137 = vpop.xlane.xlu0 %6136
        %6138 = vmin.xlane.f32.xlu0 %v6123
        %v6139 = vpop.xlane.xlu0 %6138
        %vm6140 = vcmp.eq.f32.partialorder %v6027, %v6125
        %vm6141 = vcmp.eq.f32.partialorder %v6027, %v6127
        %vm6142 = vcmp.eq.f32.partialorder %v6027, %v6129
        %vm6143 = vcmp.eq.f32.partialorder %v6027, %v6131
        %vm6144 = vcmp.eq.f32.partialorder %v6027, %v6133
        %vm6145 = vcmp.eq.f32.partialorder %v6027, %v6135
        %vm6146 = vcmp.eq.f32.partialorder %v6027, %v6137
        %vm6147 = vcmp.eq.f32.partialorder %v6027, %v6139
        %v6148 = vsel %vm6140, -inf, %v6084
        %v6149 = vsel %vm6141, -inf, %v6085
        %v6150 = vsel %vm6142, -inf, %v6086
        %v6151 = vsel %vm6143, -inf, %v6087
        %v6152 = vsel %vm6144, -inf, %v6088
        %v6153 = vsel %vm6145, -inf, %v6089
        %v6154 = vsel %vm6146, -inf, %v6090
        %v6155 = vsel %vm6147, -inf, %v6091
        %6156 = vmax.xlane.f32.xlu0 %v6148
        %v6157 = vpop.xlane.xlu0 %6156
        %6158 = vmax.xlane.f32.xlu0 %v6149
        %v6159 = vpop.xlane.xlu0 %6158
        %6160 = vmax.xlane.f32.xlu0 %v6150
        %v6161 = vpop.xlane.xlu0 %6160
        %6162 = vmax.xlane.f32.xlu0 %v6151
        %v6163 = vpop.xlane.xlu0 %6162
        %6164 = vmax.xlane.f32.xlu0 %v6152
        %v6165 = vpop.xlane.xlu0 %6164
        %6166 = vmax.xlane.f32.xlu0 %v6153
        %v6167 = vpop.xlane.xlu0 %6166
        %6168 = vmax.xlane.f32.xlu0 %v6154
        %v6169 = vpop.xlane.xlu0 %6168
        %6170 = vmax.xlane.f32.xlu0 %v6155
        %v6171 = vpop.xlane.xlu0 %6170
        %vm6172 = vcmp.eq.f32.partialorder %v6148, %v6157
        %vm6173 = vcmp.eq.f32.partialorder %v6149, %v6159
        %vm6174 = vcmp.eq.f32.partialorder %v6150, %v6161
        %vm6175 = vcmp.eq.f32.partialorder %v6151, %v6163
        %vm6176 = vcmp.eq.f32.partialorder %v6152, %v6165
        %vm6177 = vcmp.eq.f32.partialorder %v6153, %v6167
        %vm6178 = vcmp.eq.f32.partialorder %v6154, %v6169
        %vm6179 = vcmp.eq.f32.partialorder %v6155, %v6171
        %v6180 = vsel %vm6172, %v6027, 128.0
        %v6181 = vsel %vm6173, %v6027, 128.0
        %v6182 = vsel %vm6174, %v6027, 128.0
        %v6183 = vsel %vm6175, %v6027, 128.0
        %v6184 = vsel %vm6176, %v6027, 128.0
        %v6185 = vsel %vm6177, %v6027, 128.0
        %v6186 = vsel %vm6178, %v6027, 128.0
        %v6187 = vsel %vm6179, %v6027, 128.0
        %6188 = vmin.xlane.f32.xlu0 %v6180
        %v6189 = vpop.xlane.xlu0 %6188
        %6190 = vmin.xlane.f32.xlu0 %v6181
        %v6191 = vpop.xlane.xlu0 %6190
        %6192 = vmin.xlane.f32.xlu0 %v6182
        %v6193 = vpop.xlane.xlu0 %6192
        %6194 = vmin.xlane.f32.xlu0 %v6183
        %v6195 = vpop.xlane.xlu0 %6194
        %6196 = vmin.xlane.f32.xlu0 %v6184
        %v6197 = vpop.xlane.xlu0 %6196
        %6198 = vmin.xlane.f32.xlu0 %v6185
        %v6199 = vpop.xlane.xlu0 %6198
        %6200 = vmin.xlane.f32.xlu0 %v6186
        %v6201 = vpop.xlane.xlu0 %6200
        %6202 = vmin.xlane.f32.xlu0 %v6187
        %v6203 = vpop.xlane.xlu0 %6202
        %vm6204 = vcmp.eq.f32.partialorder %v6027, %v6189
        %vm6205 = vcmp.eq.f32.partialorder %v6027, %v6191
        %vm6206 = vcmp.eq.f32.partialorder %v6027, %v6193
        %vm6207 = vcmp.eq.f32.partialorder %v6027, %v6195
        %vm6208 = vcmp.eq.f32.partialorder %v6027, %v6197
        %vm6209 = vcmp.eq.f32.partialorder %v6027, %v6199
        %vm6210 = vcmp.eq.f32.partialorder %v6027, %v6201
        %vm6211 = vcmp.eq.f32.partialorder %v6027, %v6203
        %v6212 = vsel %vm6204, -inf, %v6148
        %v6213 = vsel %vm6205, -inf, %v6149
        %v6214 = vsel %vm6206, -inf, %v6150
        %v6215 = vsel %vm6207, -inf, %v6151
        %v6216 = vsel %vm6208, -inf, %v6152
        %v6217 = vsel %vm6209, -inf, %v6153
        %v6218 = vsel %vm6210, -inf, %v6154
        %v6219 = vsel %vm6211, -inf, %v6155
        %6220 = vmax.xlane.f32.xlu0 %v6212
        %v6221 = vpop.xlane.xlu0 %6220
        %6222 = vmax.xlane.f32.xlu0 %v6213
        %v6223 = vpop.xlane.xlu0 %6222
        %6224 = vmax.xlane.f32.xlu0 %v6214
        %v6225 = vpop.xlane.xlu0 %6224
        %6226 = vmax.xlane.f32.xlu0 %v6215
        %v6227 = vpop.xlane.xlu0 %6226
        %6228 = vmax.xlane.f32.xlu0 %v6216
        %v6229 = vpop.xlane.xlu0 %6228
        %6230 = vmax.xlane.f32.xlu0 %v6217
        %v6231 = vpop.xlane.xlu0 %6230
        %6232 = vmax.xlane.f32.xlu0 %v6218
        %v6233 = vpop.xlane.xlu0 %6232
        %6234 = vmax.xlane.f32.xlu0 %v6219
        %v6235 = vpop.xlane.xlu0 %6234
        %vm6236 = vcmp.eq.f32.partialorder %v6212, %v6221
        %vm6237 = vcmp.eq.f32.partialorder %v6213, %v6223
        %vm6238 = vcmp.eq.f32.partialorder %v6214, %v6225
        %vm6239 = vcmp.eq.f32.partialorder %v6215, %v6227
        %vm6240 = vcmp.eq.f32.partialorder %v6216, %v6229
        %vm6241 = vcmp.eq.f32.partialorder %v6217, %v6231
        %vm6242 = vcmp.eq.f32.partialorder %v6218, %v6233
        %vm6243 = vcmp.eq.f32.partialorder %v6219, %v6235
        %v6244 = vsel %vm6236, %v6027, 128.0
        %v6245 = vsel %vm6237, %v6027, 128.0
        %v6246 = vsel %vm6238, %v6027, 128.0
        %v6247 = vsel %vm6239, %v6027, 128.0
        %v6248 = vsel %vm6240, %v6027, 128.0
        %v6249 = vsel %vm6241, %v6027, 128.0
        %v6250 = vsel %vm6242, %v6027, 128.0
        %v6251 = vsel %vm6243, %v6027, 128.0
        %6252 = vmin.xlane.f32.xlu0 %v6244
        %v6253 = vpop.xlane.xlu0 %6252
        %6254 = vmin.xlane.f32.xlu0 %v6245
        %v6255 = vpop.xlane.xlu0 %6254
        %6256 = vmin.xlane.f32.xlu0 %v6246
        %v6257 = vpop.xlane.xlu0 %6256
        %6258 = vmin.xlane.f32.xlu0 %v6247
        %v6259 = vpop.xlane.xlu0 %6258
        %6260 = vmin.xlane.f32.xlu0 %v6248
        %v6261 = vpop.xlane.xlu0 %6260
        %6262 = vmin.xlane.f32.xlu0 %v6249
        %v6263 = vpop.xlane.xlu0 %6262
        %6264 = vmin.xlane.f32.xlu0 %v6250
        %v6265 = vpop.xlane.xlu0 %6264
        %6266 = vmin.xlane.f32.xlu0 %v6251
        %v6267 = vpop.xlane.xlu0 %6266
        %vm6268 = vcmp.eq.f32.partialorder %v6027, %v6253
        %vm6269 = vcmp.eq.f32.partialorder %v6027, %v6255
        %vm6270 = vcmp.eq.f32.partialorder %v6027, %v6257
        %vm6271 = vcmp.eq.f32.partialorder %v6027, %v6259
        %vm6272 = vcmp.eq.f32.partialorder %v6027, %v6261
        %vm6273 = vcmp.eq.f32.partialorder %v6027, %v6263
        %vm6274 = vcmp.eq.f32.partialorder %v6027, %v6265
        %vm6275 = vcmp.eq.f32.partialorder %v6027, %v6267
        %v6276 = vsel %vm6268, -inf, %v6212
        %v6277 = vsel %vm6269, -inf, %v6213
        %v6278 = vsel %vm6270, -inf, %v6214
        %v6279 = vsel %vm6271, -inf, %v6215
        %v6280 = vsel %vm6272, -inf, %v6216
        %v6281 = vsel %vm6273, -inf, %v6217
        %v6282 = vsel %vm6274, -inf, %v6218
        %v6283 = vsel %vm6275, -inf, %v6219
        %6284 = vmax.xlane.f32.xlu0 %v6276
        %v6285 = vpop.xlane.xlu0 %6284
        %6286 = vmax.xlane.f32.xlu0 %v6277
        %v6287 = vpop.xlane.xlu0 %6286
        %6288 = vmax.xlane.f32.xlu0 %v6278
        %v6289 = vpop.xlane.xlu0 %6288
        %6290 = vmax.xlane.f32.xlu0 %v6279
        %v6291 = vpop.xlane.xlu0 %6290
        %6292 = vmax.xlane.f32.xlu0 %v6280
        %v6293 = vpop.xlane.xlu0 %6292
        %6294 = vmax.xlane.f32.xlu0 %v6281
        %v6295 = vpop.xlane.xlu0 %6294
        %6296 = vmax.xlane.f32.xlu0 %v6282
        %v6297 = vpop.xlane.xlu0 %6296
        %6298 = vmax.xlane.f32.xlu0 %v6283
        %v6299 = vpop.xlane.xlu0 %6298
        %vm6300 = vcmp.eq.f32.partialorder %v6276, %v6285
        %vm6301 = vcmp.eq.f32.partialorder %v6277, %v6287
        %vm6302 = vcmp.eq.f32.partialorder %v6278, %v6289
        %vm6303 = vcmp.eq.f32.partialorder %v6279, %v6291
        %vm6304 = vcmp.eq.f32.partialorder %v6280, %v6293
        %vm6305 = vcmp.eq.f32.partialorder %v6281, %v6295
        %vm6306 = vcmp.eq.f32.partialorder %v6282, %v6297
        %vm6307 = vcmp.eq.f32.partialorder %v6283, %v6299
        %v6308 = vsel %vm6300, %v6027, 128.0
        %v6309 = vsel %vm6301, %v6027, 128.0
        %v6310 = vsel %vm6302, %v6027, 128.0
        %v6311 = vsel %vm6303, %v6027, 128.0
        %v6312 = vsel %vm6304, %v6027, 128.0
        %v6313 = vsel %vm6305, %v6027, 128.0
        %v6314 = vsel %vm6306, %v6027, 128.0
        %v6315 = vsel %vm6307, %v6027, 128.0
        %6316 = vmin.xlane.f32.xlu0 %v6308
        %v6317 = vpop.xlane.xlu0 %6316
        %6318 = vmin.xlane.f32.xlu0 %v6309
        %v6319 = vpop.xlane.xlu0 %6318
        %6320 = vmin.xlane.f32.xlu0 %v6310
        %v6321 = vpop.xlane.xlu0 %6320
        %6322 = vmin.xlane.f32.xlu0 %v6311
        %v6323 = vpop.xlane.xlu0 %6322
        %6324 = vmin.xlane.f32.xlu0 %v6312
        %v6325 = vpop.xlane.xlu0 %6324
        %6326 = vmin.xlane.f32.xlu0 %v6313
        %v6327 = vpop.xlane.xlu0 %6326
        %6328 = vmin.xlane.f32.xlu0 %v6314
        %v6329 = vpop.xlane.xlu0 %6328
        %6330 = vmin.xlane.f32.xlu0 %v6315
        %v6331 = vpop.xlane.xlu0 %6330
        %vm6332 = vcmp.eq.f32.partialorder %v6027, %v6317
        %vm6333 = vcmp.eq.f32.partialorder %v6027, %v6319
        %vm6334 = vcmp.eq.f32.partialorder %v6027, %v6321
        %vm6335 = vcmp.eq.f32.partialorder %v6027, %v6323
        %vm6336 = vcmp.eq.f32.partialorder %v6027, %v6325
        %vm6337 = vcmp.eq.f32.partialorder %v6027, %v6327
        %vm6338 = vcmp.eq.f32.partialorder %v6027, %v6329
        %vm6339 = vcmp.eq.f32.partialorder %v6027, %v6331
        %v6340 = vsel %vm6332, -inf, %v6276
        %v6341 = vsel %vm6333, -inf, %v6277
        %v6342 = vsel %vm6334, -inf, %v6278
        %v6343 = vsel %vm6335, -inf, %v6279
        %v6344 = vsel %vm6336, -inf, %v6280
        %v6345 = vsel %vm6337, -inf, %v6281
        %v6346 = vsel %vm6338, -inf, %v6282
        %v6347 = vsel %vm6339, -inf, %v6283
        %6348 = vmax.xlane.f32.xlu0 %v6340
        %v6349 = vpop.xlane.xlu0 %6348
        %6350 = vmax.xlane.f32.xlu0 %v6341
        %v6351 = vpop.xlane.xlu0 %6350
        %6352 = vmax.xlane.f32.xlu0 %v6342
        %v6353 = vpop.xlane.xlu0 %6352
        %6354 = vmax.xlane.f32.xlu0 %v6343
        %v6355 = vpop.xlane.xlu0 %6354
        %6356 = vmax.xlane.f32.xlu0 %v6344
        %v6357 = vpop.xlane.xlu0 %6356
        %6358 = vmax.xlane.f32.xlu0 %v6345
        %v6359 = vpop.xlane.xlu0 %6358
        %6360 = vmax.xlane.f32.xlu0 %v6346
        %v6361 = vpop.xlane.xlu0 %6360
        %6362 = vmax.xlane.f32.xlu0 %v6347
        %v6363 = vpop.xlane.xlu0 %6362
        %vm6364 = vcmp.eq.f32.partialorder %v6340, %v6349
        %vm6365 = vcmp.eq.f32.partialorder %v6341, %v6351
        %vm6366 = vcmp.eq.f32.partialorder %v6342, %v6353
        %vm6367 = vcmp.eq.f32.partialorder %v6343, %v6355
        %vm6368 = vcmp.eq.f32.partialorder %v6344, %v6357
        %vm6369 = vcmp.eq.f32.partialorder %v6345, %v6359
        %vm6370 = vcmp.eq.f32.partialorder %v6346, %v6361
        %vm6371 = vcmp.eq.f32.partialorder %v6347, %v6363
        %v6372 = vsel %vm6364, %v6027, 128.0
        %v6373 = vsel %vm6365, %v6027, 128.0
        %v6374 = vsel %vm6366, %v6027, 128.0
        %v6375 = vsel %vm6367, %v6027, 128.0
        %v6376 = vsel %vm6368, %v6027, 128.0
        %v6377 = vsel %vm6369, %v6027, 128.0
        %v6378 = vsel %vm6370, %v6027, 128.0
        %v6379 = vsel %vm6371, %v6027, 128.0
        %6380 = vmin.xlane.f32.xlu0 %v6372
        %v6381 = vpop.xlane.xlu0 %6380
        %6382 = vmin.xlane.f32.xlu0 %v6373
        %v6383 = vpop.xlane.xlu0 %6382
        %6384 = vmin.xlane.f32.xlu0 %v6374
        %v6385 = vpop.xlane.xlu0 %6384
        %6386 = vmin.xlane.f32.xlu0 %v6375
        %v6387 = vpop.xlane.xlu0 %6386
        %6388 = vmin.xlane.f32.xlu0 %v6376
        %v6389 = vpop.xlane.xlu0 %6388
        %6390 = vmin.xlane.f32.xlu0 %v6377
        %v6391 = vpop.xlane.xlu0 %6390
        %6392 = vmin.xlane.f32.xlu0 %v6378
        %v6393 = vpop.xlane.xlu0 %6392
        %6394 = vmin.xlane.f32.xlu0 %v6379
        %v6395 = vpop.xlane.xlu0 %6394
        %vm6396 = vcmp.eq.f32.partialorder %v6027, %v6381
        %vm6397 = vcmp.eq.f32.partialorder %v6027, %v6383
        %vm6398 = vcmp.eq.f32.partialorder %v6027, %v6385
        %vm6399 = vcmp.eq.f32.partialorder %v6027, %v6387
        %vm6400 = vcmp.eq.f32.partialorder %v6027, %v6389
        %vm6401 = vcmp.eq.f32.partialorder %v6027, %v6391
        %vm6402 = vcmp.eq.f32.partialorder %v6027, %v6393
        %vm6403 = vcmp.eq.f32.partialorder %v6027, %v6395
        %v6404 = vsel %vm6396, -inf, %v6340
        %v6405 = vsel %vm6397, -inf, %v6341
        %v6406 = vsel %vm6398, -inf, %v6342
        %v6407 = vsel %vm6399, -inf, %v6343
        %v6408 = vsel %vm6400, -inf, %v6344
        %v6409 = vsel %vm6401, -inf, %v6345
        %v6410 = vsel %vm6402, -inf, %v6346
        %v6411 = vsel %vm6403, -inf, %v6347
        %6412 = vmax.xlane.f32.xlu0 %v6404
        %v6413 = vpop.xlane.xlu0 %6412
        %6414 = vmax.xlane.f32.xlu0 %v6405
        %v6415 = vpop.xlane.xlu0 %6414
        %6416 = vmax.xlane.f32.xlu0 %v6406
        %v6417 = vpop.xlane.xlu0 %6416
        %6418 = vmax.xlane.f32.xlu0 %v6407
        %v6419 = vpop.xlane.xlu0 %6418
        %6420 = vmax.xlane.f32.xlu0 %v6408
        %v6421 = vpop.xlane.xlu0 %6420
        %6422 = vmax.xlane.f32.xlu0 %v6409
        %v6423 = vpop.xlane.xlu0 %6422
        %6424 = vmax.xlane.f32.xlu0 %v6410
        %v6425 = vpop.xlane.xlu0 %6424
        %6426 = vmax.xlane.f32.xlu0 %v6411
        %v6427 = vpop.xlane.xlu0 %6426
        %vm6428 = vcmp.eq.f32.partialorder %v6404, %v6413
        %vm6429 = vcmp.eq.f32.partialorder %v6405, %v6415
        %vm6430 = vcmp.eq.f32.partialorder %v6406, %v6417
        %vm6431 = vcmp.eq.f32.partialorder %v6407, %v6419
        %vm6432 = vcmp.eq.f32.partialorder %v6408, %v6421
        %vm6433 = vcmp.eq.f32.partialorder %v6409, %v6423
        %vm6434 = vcmp.eq.f32.partialorder %v6410, %v6425
        %vm6435 = vcmp.eq.f32.partialorder %v6411, %v6427
        %v6436 = vsel %vm6428, %v6027, 128.0
        %v6437 = vsel %vm6429, %v6027, 128.0
        %v6438 = vsel %vm6430, %v6027, 128.0
        %v6439 = vsel %vm6431, %v6027, 128.0
        %v6440 = vsel %vm6432, %v6027, 128.0
        %v6441 = vsel %vm6433, %v6027, 128.0
        %v6442 = vsel %vm6434, %v6027, 128.0
        %v6443 = vsel %vm6435, %v6027, 128.0
        %6444 = vmin.xlane.f32.xlu0 %v6436
        %v6445 = vpop.xlane.xlu0 %6444
        %6446 = vmin.xlane.f32.xlu0 %v6437
        %v6447 = vpop.xlane.xlu0 %6446
        %6448 = vmin.xlane.f32.xlu0 %v6438
        %v6449 = vpop.xlane.xlu0 %6448
        %6450 = vmin.xlane.f32.xlu0 %v6439
        %v6451 = vpop.xlane.xlu0 %6450
        %6452 = vmin.xlane.f32.xlu0 %v6440
        %v6453 = vpop.xlane.xlu0 %6452
        %6454 = vmin.xlane.f32.xlu0 %v6441
        %v6455 = vpop.xlane.xlu0 %6454
        %6456 = vmin.xlane.f32.xlu0 %v6442
        %v6457 = vpop.xlane.xlu0 %6456
        %6458 = vmin.xlane.f32.xlu0 %v6443
        %v6459 = vpop.xlane.xlu0 %6458
        %vm6460 = vcmp.eq.f32.partialorder %v6027, %v6445
        %vm6461 = vcmp.eq.f32.partialorder %v6027, %v6447
        %vm6462 = vcmp.eq.f32.partialorder %v6027, %v6449
        %vm6463 = vcmp.eq.f32.partialorder %v6027, %v6451
        %vm6464 = vcmp.eq.f32.partialorder %v6027, %v6453
        %vm6465 = vcmp.eq.f32.partialorder %v6027, %v6455
        %vm6466 = vcmp.eq.f32.partialorder %v6027, %v6457
        %vm6467 = vcmp.eq.f32.partialorder %v6027, %v6459
        %v6468 = vsel %vm6460, -inf, %v6404
        %v6469 = vsel %vm6461, -inf, %v6405
        %v6470 = vsel %vm6462, -inf, %v6406
        %v6471 = vsel %vm6463, -inf, %v6407
        %v6472 = vsel %vm6464, -inf, %v6408
        %v6473 = vsel %vm6465, -inf, %v6409
        %v6474 = vsel %vm6466, -inf, %v6410
        %v6475 = vsel %vm6467, -inf, %v6411
        %6476 = vmax.xlane.f32.xlu0 %v6468
        %v6477 = vpop.xlane.xlu0 %6476
        %6478 = vmax.xlane.f32.xlu0 %v6469
        %v6479 = vpop.xlane.xlu0 %6478
        %6480 = vmax.xlane.f32.xlu0 %v6470
        %v6481 = vpop.xlane.xlu0 %6480
        %6482 = vmax.xlane.f32.xlu0 %v6471
        %v6483 = vpop.xlane.xlu0 %6482
        %6484 = vmax.xlane.f32.xlu0 %v6472
        %v6485 = vpop.xlane.xlu0 %6484
        %6486 = vmax.xlane.f32.xlu0 %v6473
        %v6487 = vpop.xlane.xlu0 %6486
        %6488 = vmax.xlane.f32.xlu0 %v6474
        %v6489 = vpop.xlane.xlu0 %6488
        %6490 = vmax.xlane.f32.xlu0 %v6475
        %v6491 = vpop.xlane.xlu0 %6490
        %vm6492 = vcmp.eq.f32.partialorder %v6468, %v6477
        %vm6493 = vcmp.eq.f32.partialorder %v6469, %v6479
        %vm6494 = vcmp.eq.f32.partialorder %v6470, %v6481
        %vm6495 = vcmp.eq.f32.partialorder %v6471, %v6483
        %vm6496 = vcmp.eq.f32.partialorder %v6472, %v6485
        %vm6497 = vcmp.eq.f32.partialorder %v6473, %v6487
        %vm6498 = vcmp.eq.f32.partialorder %v6474, %v6489
        %vm6499 = vcmp.eq.f32.partialorder %v6475, %v6491
        %v6500 = vsel %vm6492, %v6027, 128.0
        %v6501 = vsel %vm6493, %v6027, 128.0
        %v6502 = vsel %vm6494, %v6027, 128.0
        %v6503 = vsel %vm6495, %v6027, 128.0
        %v6504 = vsel %vm6496, %v6027, 128.0
        %v6505 = vsel %vm6497, %v6027, 128.0
        %v6506 = vsel %vm6498, %v6027, 128.0
        %v6507 = vsel %vm6499, %v6027, 128.0
        %6508 = vmin.xlane.f32.xlu0 %v6500
        %v6509 = vpop.xlane.xlu0 %6508
        %6510 = vmin.xlane.f32.xlu0 %v6501
        %v6511 = vpop.xlane.xlu0 %6510
        %6512 = vmin.xlane.f32.xlu0 %v6502
        %v6513 = vpop.xlane.xlu0 %6512
        %6514 = vmin.xlane.f32.xlu0 %v6503
        %v6515 = vpop.xlane.xlu0 %6514
        %6516 = vmin.xlane.f32.xlu0 %v6504
        %v6517 = vpop.xlane.xlu0 %6516
        %6518 = vmin.xlane.f32.xlu0 %v6505
        %v6519 = vpop.xlane.xlu0 %6518
        %6520 = vmin.xlane.f32.xlu0 %v6506
        %v6521 = vpop.xlane.xlu0 %6520
        %6522 = vmin.xlane.f32.xlu0 %v6507
        %v6523 = vpop.xlane.xlu0 %6522
        %vm6524 = vcmp.eq.f32.partialorder %v6027, %v6509
        %vm6525 = vcmp.eq.f32.partialorder %v6027, %v6511
        %vm6526 = vcmp.eq.f32.partialorder %v6027, %v6513
        %vm6527 = vcmp.eq.f32.partialorder %v6027, %v6515
        %vm6528 = vcmp.eq.f32.partialorder %v6027, %v6517
        %vm6529 = vcmp.eq.f32.partialorder %v6027, %v6519
        %vm6530 = vcmp.eq.f32.partialorder %v6027, %v6521
        %vm6531 = vcmp.eq.f32.partialorder %v6027, %v6523
        %v6532 = vsel %vm6524, -inf, %v6468
        %v6533 = vsel %vm6525, -inf, %v6469
        %v6534 = vsel %vm6526, -inf, %v6470
        %v6535 = vsel %vm6527, -inf, %v6471
        %v6536 = vsel %vm6528, -inf, %v6472
        %v6537 = vsel %vm6529, -inf, %v6473
        %v6538 = vsel %vm6530, -inf, %v6474
        %v6539 = vsel %vm6531, -inf, %v6475
        %6540 = vmax.xlane.f32.xlu0 %v6532
        %v6541 = vpop.xlane.xlu0 %6540
        %6542 = vmax.xlane.f32.xlu0 %v6533
        %v6543 = vpop.xlane.xlu0 %6542
        %6544 = vmax.xlane.f32.xlu0 %v6534
        %v6545 = vpop.xlane.xlu0 %6544
        %6546 = vmax.xlane.f32.xlu0 %v6535
        %v6547 = vpop.xlane.xlu0 %6546
        %6548 = vmax.xlane.f32.xlu0 %v6536
        %v6549 = vpop.xlane.xlu0 %6548
        %6550 = vmax.xlane.f32.xlu0 %v6537
        %v6551 = vpop.xlane.xlu0 %6550
        %6552 = vmax.xlane.f32.xlu0 %v6538
        %v6553 = vpop.xlane.xlu0 %6552
        %6554 = vmax.xlane.f32.xlu0 %v6539
        %v6555 = vpop.xlane.xlu0 %6554
        %vm6556 = vcmp.eq.f32.partialorder %v6532, %v6541
        %vm6557 = vcmp.eq.f32.partialorder %v6533, %v6543
        %vm6558 = vcmp.eq.f32.partialorder %v6534, %v6545
        %vm6559 = vcmp.eq.f32.partialorder %v6535, %v6547
        %vm6560 = vcmp.eq.f32.partialorder %v6536, %v6549
        %vm6561 = vcmp.eq.f32.partialorder %v6537, %v6551
        %vm6562 = vcmp.eq.f32.partialorder %v6538, %v6553
        %vm6563 = vcmp.eq.f32.partialorder %v6539, %v6555
        %v6564 = vsel %vm6556, %v6027, 128.0
        %v6565 = vsel %vm6557, %v6027, 128.0
        %v6566 = vsel %vm6558, %v6027, 128.0
        %v6567 = vsel %vm6559, %v6027, 128.0
        %v6568 = vsel %vm6560, %v6027, 128.0
        %v6569 = vsel %vm6561, %v6027, 128.0
        %v6570 = vsel %vm6562, %v6027, 128.0
        %v6571 = vsel %vm6563, %v6027, 128.0
        %6572 = vmin.xlane.f32.xlu0 %v6564
        %v6573 = vpop.xlane.xlu0 %6572
        %6574 = vmin.xlane.f32.xlu0 %v6565
        %v6575 = vpop.xlane.xlu0 %6574
        %6576 = vmin.xlane.f32.xlu0 %v6566
        %v6577 = vpop.xlane.xlu0 %6576
        %6578 = vmin.xlane.f32.xlu0 %v6567
        %v6579 = vpop.xlane.xlu0 %6578
        %6580 = vmin.xlane.f32.xlu0 %v6568
        %v6581 = vpop.xlane.xlu0 %6580
        %6582 = vmin.xlane.f32.xlu0 %v6569
        %v6583 = vpop.xlane.xlu0 %6582
        %6584 = vmin.xlane.f32.xlu0 %v6570
        %v6585 = vpop.xlane.xlu0 %6584
        %6586 = vmin.xlane.f32.xlu0 %v6571
        %v6587 = vpop.xlane.xlu0 %6586
        %vm6588 = vcmp.eq.f32.partialorder %v6027, %v6573
        %vm6589 = vcmp.eq.f32.partialorder %v6027, %v6575
        %vm6590 = vcmp.eq.f32.partialorder %v6027, %v6577
        %vm6591 = vcmp.eq.f32.partialorder %v6027, %v6579
        %vm6592 = vcmp.eq.f32.partialorder %v6027, %v6581
        %vm6593 = vcmp.eq.f32.partialorder %v6027, %v6583
        %vm6594 = vcmp.eq.f32.partialorder %v6027, %v6585
        %vm6595 = vcmp.eq.f32.partialorder %v6027, %v6587
        %v6596 = vsel %vm6588, -inf, %v6532
        %v6597 = vsel %vm6589, -inf, %v6533
        %v6598 = vsel %vm6590, -inf, %v6534
        %v6599 = vsel %vm6591, -inf, %v6535
        %v6600 = vsel %vm6592, -inf, %v6536
        %v6601 = vsel %vm6593, -inf, %v6537
        %v6602 = vsel %vm6594, -inf, %v6538
        %v6603 = vsel %vm6595, -inf, %v6539
        %6604 = vmax.xlane.f32.xlu0 %v6596
        %v6605 = vpop.xlane.xlu0 %6604
        %6606 = vmax.xlane.f32.xlu0 %v6597
        %v6607 = vpop.xlane.xlu0 %6606
        %6608 = vmax.xlane.f32.xlu0 %v6598
        %v6609 = vpop.xlane.xlu0 %6608
        %6610 = vmax.xlane.f32.xlu0 %v6599
        %v6611 = vpop.xlane.xlu0 %6610
        %6612 = vmax.xlane.f32.xlu0 %v6600
        %v6613 = vpop.xlane.xlu0 %6612
        %6614 = vmax.xlane.f32.xlu0 %v6601
        %v6615 = vpop.xlane.xlu0 %6614
        %6616 = vmax.xlane.f32.xlu0 %v6602
        %v6617 = vpop.xlane.xlu0 %6616
        %6618 = vmax.xlane.f32.xlu0 %v6603
        %v6619 = vpop.xlane.xlu0 %6618
        %vm6620 = vcmp.eq.f32.partialorder %v6596, %v6605
        %vm6621 = vcmp.eq.f32.partialorder %v6597, %v6607
        %vm6622 = vcmp.eq.f32.partialorder %v6598, %v6609
        %vm6623 = vcmp.eq.f32.partialorder %v6599, %v6611
        %vm6624 = vcmp.eq.f32.partialorder %v6600, %v6613
        %vm6625 = vcmp.eq.f32.partialorder %v6601, %v6615
        %vm6626 = vcmp.eq.f32.partialorder %v6602, %v6617
        %vm6627 = vcmp.eq.f32.partialorder %v6603, %v6619
        %v6628 = vsel %vm6620, %v6027, 128.0
        %v6629 = vsel %vm6621, %v6027, 128.0
        %v6630 = vsel %vm6622, %v6027, 128.0
        %v6631 = vsel %vm6623, %v6027, 128.0
        %v6632 = vsel %vm6624, %v6027, 128.0
        %v6633 = vsel %vm6625, %v6027, 128.0
        %v6634 = vsel %vm6626, %v6027, 128.0
        %v6635 = vsel %vm6627, %v6027, 128.0
        %6636 = vmin.xlane.f32.xlu0 %v6628
        %v6637 = vpop.xlane.xlu0 %6636
        %6638 = vmin.xlane.f32.xlu0 %v6629
        %v6639 = vpop.xlane.xlu0 %6638
        %6640 = vmin.xlane.f32.xlu0 %v6630
        %v6641 = vpop.xlane.xlu0 %6640
        %6642 = vmin.xlane.f32.xlu0 %v6631
        %v6643 = vpop.xlane.xlu0 %6642
        %6644 = vmin.xlane.f32.xlu0 %v6632
        %v6645 = vpop.xlane.xlu0 %6644
        %6646 = vmin.xlane.f32.xlu0 %v6633
        %v6647 = vpop.xlane.xlu0 %6646
        %6648 = vmin.xlane.f32.xlu0 %v6634
        %v6649 = vpop.xlane.xlu0 %6648
        %6650 = vmin.xlane.f32.xlu0 %v6635
        %v6651 = vpop.xlane.xlu0 %6650
        %vm6652 = vcmp.eq.f32.partialorder %v6027, %v6637
        %vm6653 = vcmp.eq.f32.partialorder %v6027, %v6639
        %vm6654 = vcmp.eq.f32.partialorder %v6027, %v6641
        %vm6655 = vcmp.eq.f32.partialorder %v6027, %v6643
        %vm6656 = vcmp.eq.f32.partialorder %v6027, %v6645
        %vm6657 = vcmp.eq.f32.partialorder %v6027, %v6647
        %vm6658 = vcmp.eq.f32.partialorder %v6027, %v6649
        %vm6659 = vcmp.eq.f32.partialorder %v6027, %v6651
        %v6660 = vsel %vm6652, -inf, %v6596
        %v6661 = vsel %vm6653, -inf, %v6597
        %v6662 = vsel %vm6654, -inf, %v6598
        %v6663 = vsel %vm6655, -inf, %v6599
        %v6664 = vsel %vm6656, -inf, %v6600
        %v6665 = vsel %vm6657, -inf, %v6601
        %v6666 = vsel %vm6658, -inf, %v6602
        %v6667 = vsel %vm6659, -inf, %v6603
        %6668 = vmax.xlane.f32.xlu0 %v6660
        %v6669 = vpop.xlane.xlu0 %6668
        %6670 = vmax.xlane.f32.xlu0 %v6661
        %v6671 = vpop.xlane.xlu0 %6670
        %6672 = vmax.xlane.f32.xlu0 %v6662
        %v6673 = vpop.xlane.xlu0 %6672
        %6674 = vmax.xlane.f32.xlu0 %v6663
        %v6675 = vpop.xlane.xlu0 %6674
        %6676 = vmax.xlane.f32.xlu0 %v6664
        %v6677 = vpop.xlane.xlu0 %6676
        %6678 = vmax.xlane.f32.xlu0 %v6665
        %v6679 = vpop.xlane.xlu0 %6678
        %6680 = vmax.xlane.f32.xlu0 %v6666
        %v6681 = vpop.xlane.xlu0 %6680
        %6682 = vmax.xlane.f32.xlu0 %v6667
        %v6683 = vpop.xlane.xlu0 %6682
        %vm6684 = vcmp.eq.f32.partialorder %v6660, %v6669
        %vm6685 = vcmp.eq.f32.partialorder %v6661, %v6671
        %vm6686 = vcmp.eq.f32.partialorder %v6662, %v6673
        %vm6687 = vcmp.eq.f32.partialorder %v6663, %v6675
        %vm6688 = vcmp.eq.f32.partialorder %v6664, %v6677
        %vm6689 = vcmp.eq.f32.partialorder %v6665, %v6679
        %vm6690 = vcmp.eq.f32.partialorder %v6666, %v6681
        %vm6691 = vcmp.eq.f32.partialorder %v6667, %v6683
        %v6692 = vsel %vm6684, %v6027, 128.0
        %v6693 = vsel %vm6685, %v6027, 128.0
        %v6694 = vsel %vm6686, %v6027, 128.0
        %v6695 = vsel %vm6687, %v6027, 128.0
        %v6696 = vsel %vm6688, %v6027, 128.0
        %v6697 = vsel %vm6689, %v6027, 128.0
        %v6698 = vsel %vm6690, %v6027, 128.0
        %v6699 = vsel %vm6691, %v6027, 128.0
        %6700 = vmin.xlane.f32.xlu0 %v6692
        %v6701 = vpop.xlane.xlu0 %6700
        %6702 = vmin.xlane.f32.xlu0 %v6693
        %v6703 = vpop.xlane.xlu0 %6702
        %6704 = vmin.xlane.f32.xlu0 %v6694
        %v6705 = vpop.xlane.xlu0 %6704
        %6706 = vmin.xlane.f32.xlu0 %v6695
        %v6707 = vpop.xlane.xlu0 %6706
        %6708 = vmin.xlane.f32.xlu0 %v6696
        %v6709 = vpop.xlane.xlu0 %6708
        %6710 = vmin.xlane.f32.xlu0 %v6697
        %v6711 = vpop.xlane.xlu0 %6710
        %6712 = vmin.xlane.f32.xlu0 %v6698
        %v6713 = vpop.xlane.xlu0 %6712
        %6714 = vmin.xlane.f32.xlu0 %v6699
        %v6715 = vpop.xlane.xlu0 %6714
        %vm6716 = vcmp.eq.f32.partialorder %v6027, %v6701
        %vm6717 = vcmp.eq.f32.partialorder %v6027, %v6703
        %vm6718 = vcmp.eq.f32.partialorder %v6027, %v6705
        %vm6719 = vcmp.eq.f32.partialorder %v6027, %v6707
        %vm6720 = vcmp.eq.f32.partialorder %v6027, %v6709
        %vm6721 = vcmp.eq.f32.partialorder %v6027, %v6711
        %vm6722 = vcmp.eq.f32.partialorder %v6027, %v6713
        %vm6723 = vcmp.eq.f32.partialorder %v6027, %v6715
        %v6724 = vsel %vm6716, -inf, %v6660
        %v6725 = vsel %vm6717, -inf, %v6661
        %v6726 = vsel %vm6718, -inf, %v6662
        %v6727 = vsel %vm6719, -inf, %v6663
        %v6728 = vsel %vm6720, -inf, %v6664
        %v6729 = vsel %vm6721, -inf, %v6665
        %v6730 = vsel %vm6722, -inf, %v6666
        %v6731 = vsel %vm6723, -inf, %v6667
        %6732 = vmax.xlane.f32.xlu0 %v6724
        %v6733 = vpop.xlane.xlu0 %6732
        %6734 = vmax.xlane.f32.xlu0 %v6725
        %v6735 = vpop.xlane.xlu0 %6734
        %6736 = vmax.xlane.f32.xlu0 %v6726
        %v6737 = vpop.xlane.xlu0 %6736
        %6738 = vmax.xlane.f32.xlu0 %v6727
        %v6739 = vpop.xlane.xlu0 %6738
        %6740 = vmax.xlane.f32.xlu0 %v6728
        %v6741 = vpop.xlane.xlu0 %6740
        %6742 = vmax.xlane.f32.xlu0 %v6729
        %v6743 = vpop.xlane.xlu0 %6742
        %6744 = vmax.xlane.f32.xlu0 %v6730
        %v6745 = vpop.xlane.xlu0 %6744
        %6746 = vmax.xlane.f32.xlu0 %v6731
        %v6747 = vpop.xlane.xlu0 %6746
        %vm6748 = vcmp.eq.f32.partialorder %v6724, %v6733
        %vm6749 = vcmp.eq.f32.partialorder %v6725, %v6735
        %vm6750 = vcmp.eq.f32.partialorder %v6726, %v6737
        %vm6751 = vcmp.eq.f32.partialorder %v6727, %v6739
        %vm6752 = vcmp.eq.f32.partialorder %v6728, %v6741
        %vm6753 = vcmp.eq.f32.partialorder %v6729, %v6743
        %vm6754 = vcmp.eq.f32.partialorder %v6730, %v6745
        %vm6755 = vcmp.eq.f32.partialorder %v6731, %v6747
        %v6756 = vsel %vm6748, %v6027, 128.0
        %v6757 = vsel %vm6749, %v6027, 128.0
        %v6758 = vsel %vm6750, %v6027, 128.0
        %v6759 = vsel %vm6751, %v6027, 128.0
        %v6760 = vsel %vm6752, %v6027, 128.0
        %v6761 = vsel %vm6753, %v6027, 128.0
        %v6762 = vsel %vm6754, %v6027, 128.0
        %v6763 = vsel %vm6755, %v6027, 128.0
        %6764 = vmin.xlane.f32.xlu0 %v6756
        %v6765 = vpop.xlane.xlu0 %6764
        %6766 = vmin.xlane.f32.xlu0 %v6757
        %v6767 = vpop.xlane.xlu0 %6766
        %6768 = vmin.xlane.f32.xlu0 %v6758
        %v6769 = vpop.xlane.xlu0 %6768
        %6770 = vmin.xlane.f32.xlu0 %v6759
        %v6771 = vpop.xlane.xlu0 %6770
        %6772 = vmin.xlane.f32.xlu0 %v6760
        %v6773 = vpop.xlane.xlu0 %6772
        %6774 = vmin.xlane.f32.xlu0 %v6761
        %v6775 = vpop.xlane.xlu0 %6774
        %6776 = vmin.xlane.f32.xlu0 %v6762
        %v6777 = vpop.xlane.xlu0 %6776
        %6778 = vmin.xlane.f32.xlu0 %v6763
        %v6779 = vpop.xlane.xlu0 %6778
        %vm6780 = vcmp.eq.f32.partialorder %v6027, %v6765
        %vm6781 = vcmp.eq.f32.partialorder %v6027, %v6767
        %vm6782 = vcmp.eq.f32.partialorder %v6027, %v6769
        %vm6783 = vcmp.eq.f32.partialorder %v6027, %v6771
        %vm6784 = vcmp.eq.f32.partialorder %v6027, %v6773
        %vm6785 = vcmp.eq.f32.partialorder %v6027, %v6775
        %vm6786 = vcmp.eq.f32.partialorder %v6027, %v6777
        %vm6787 = vcmp.eq.f32.partialorder %v6027, %v6779
        %v6788 = vsel %vm6780, -inf, %v6724
        %v6789 = vsel %vm6781, -inf, %v6725
        %v6790 = vsel %vm6782, -inf, %v6726
        %v6791 = vsel %vm6783, -inf, %v6727
        %v6792 = vsel %vm6784, -inf, %v6728
        %v6793 = vsel %vm6785, -inf, %v6729
        %v6794 = vsel %vm6786, -inf, %v6730
        %v6795 = vsel %vm6787, -inf, %v6731
        %6796 = vmax.xlane.f32.xlu0 %v6788
        %v6797 = vpop.xlane.xlu0 %6796
        %6798 = vmax.xlane.f32.xlu0 %v6789
        %v6799 = vpop.xlane.xlu0 %6798
        %6800 = vmax.xlane.f32.xlu0 %v6790
        %v6801 = vpop.xlane.xlu0 %6800
        %6802 = vmax.xlane.f32.xlu0 %v6791
        %v6803 = vpop.xlane.xlu0 %6802
        %6804 = vmax.xlane.f32.xlu0 %v6792
        %v6805 = vpop.xlane.xlu0 %6804
        %6806 = vmax.xlane.f32.xlu0 %v6793
        %v6807 = vpop.xlane.xlu0 %6806
        %6808 = vmax.xlane.f32.xlu0 %v6794
        %v6809 = vpop.xlane.xlu0 %6808
        %6810 = vmax.xlane.f32.xlu0 %v6795
        %v6811 = vpop.xlane.xlu0 %6810
        %vm6812 = vcmp.eq.f32.partialorder %v6788, %v6797
        %vm6813 = vcmp.eq.f32.partialorder %v6789, %v6799
        %vm6814 = vcmp.eq.f32.partialorder %v6790, %v6801
        %vm6815 = vcmp.eq.f32.partialorder %v6791, %v6803
        %vm6816 = vcmp.eq.f32.partialorder %v6792, %v6805
        %vm6817 = vcmp.eq.f32.partialorder %v6793, %v6807
        %vm6818 = vcmp.eq.f32.partialorder %v6794, %v6809
        %vm6819 = vcmp.eq.f32.partialorder %v6795, %v6811
        %v6820 = vsel %vm6812, %v6027, 128.0
        %v6821 = vsel %vm6813, %v6027, 128.0
        %v6822 = vsel %vm6814, %v6027, 128.0
        %v6823 = vsel %vm6815, %v6027, 128.0
        %v6824 = vsel %vm6816, %v6027, 128.0
        %v6825 = vsel %vm6817, %v6027, 128.0
        %v6826 = vsel %vm6818, %v6027, 128.0
        %v6827 = vsel %vm6819, %v6027, 128.0
        %6828 = vmin.xlane.f32.xlu0 %v6820
        %v6829 = vpop.xlane.xlu0 %6828
        %6830 = vmin.xlane.f32.xlu0 %v6821
        %v6831 = vpop.xlane.xlu0 %6830
        %6832 = vmin.xlane.f32.xlu0 %v6822
        %v6833 = vpop.xlane.xlu0 %6832
        %6834 = vmin.xlane.f32.xlu0 %v6823
        %v6835 = vpop.xlane.xlu0 %6834
        %6836 = vmin.xlane.f32.xlu0 %v6824
        %v6837 = vpop.xlane.xlu0 %6836
        %6838 = vmin.xlane.f32.xlu0 %v6825
        %v6839 = vpop.xlane.xlu0 %6838
        %6840 = vmin.xlane.f32.xlu0 %v6826
        %v6841 = vpop.xlane.xlu0 %6840
        %6842 = vmin.xlane.f32.xlu0 %v6827
        %v6843 = vpop.xlane.xlu0 %6842
        %vm6844 = vcmp.eq.f32.partialorder %v6027, %v6829
        %vm6845 = vcmp.eq.f32.partialorder %v6027, %v6831
        %vm6846 = vcmp.eq.f32.partialorder %v6027, %v6833
        %vm6847 = vcmp.eq.f32.partialorder %v6027, %v6835
        %vm6848 = vcmp.eq.f32.partialorder %v6027, %v6837
        %vm6849 = vcmp.eq.f32.partialorder %v6027, %v6839
        %vm6850 = vcmp.eq.f32.partialorder %v6027, %v6841
        %vm6851 = vcmp.eq.f32.partialorder %v6027, %v6843
        %v6852 = vsel %vm6844, -inf, %v6788
        %v6853 = vsel %vm6845, -inf, %v6789
        %v6854 = vsel %vm6846, -inf, %v6790
        %v6855 = vsel %vm6847, -inf, %v6791
        %v6856 = vsel %vm6848, -inf, %v6792
        %v6857 = vsel %vm6849, -inf, %v6793
        %v6858 = vsel %vm6850, -inf, %v6794
        %v6859 = vsel %vm6851, -inf, %v6795
        %6860 = vmax.xlane.f32.xlu0 %v6852
        %v6861 = vpop.xlane.xlu0 %6860
        %6862 = vmax.xlane.f32.xlu0 %v6853
        %v6863 = vpop.xlane.xlu0 %6862
        %6864 = vmax.xlane.f32.xlu0 %v6854
        %v6865 = vpop.xlane.xlu0 %6864
        %6866 = vmax.xlane.f32.xlu0 %v6855
        %v6867 = vpop.xlane.xlu0 %6866
        %6868 = vmax.xlane.f32.xlu0 %v6856
        %v6869 = vpop.xlane.xlu0 %6868
        %6870 = vmax.xlane.f32.xlu0 %v6857
        %v6871 = vpop.xlane.xlu0 %6870
        %6872 = vmax.xlane.f32.xlu0 %v6858
        %v6873 = vpop.xlane.xlu0 %6872
        %6874 = vmax.xlane.f32.xlu0 %v6859
        %v6875 = vpop.xlane.xlu0 %6874
        %vm6876 = vcmp.eq.f32.partialorder %v6852, %v6861
        %vm6877 = vcmp.eq.f32.partialorder %v6853, %v6863
        %vm6878 = vcmp.eq.f32.partialorder %v6854, %v6865
        %vm6879 = vcmp.eq.f32.partialorder %v6855, %v6867
        %vm6880 = vcmp.eq.f32.partialorder %v6856, %v6869
        %vm6881 = vcmp.eq.f32.partialorder %v6857, %v6871
        %vm6882 = vcmp.eq.f32.partialorder %v6858, %v6873
        %vm6883 = vcmp.eq.f32.partialorder %v6859, %v6875
        %v6884 = vsel %vm6876, %v6027, 128.0
        %v6885 = vsel %vm6877, %v6027, 128.0
        %v6886 = vsel %vm6878, %v6027, 128.0
        %v6887 = vsel %vm6879, %v6027, 128.0
        %v6888 = vsel %vm6880, %v6027, 128.0
        %v6889 = vsel %vm6881, %v6027, 128.0
        %v6890 = vsel %vm6882, %v6027, 128.0
        %v6891 = vsel %vm6883, %v6027, 128.0
        %6892 = vmin.xlane.f32.xlu0 %v6884
        %v6893 = vpop.xlane.xlu0 %6892
        %6894 = vmin.xlane.f32.xlu0 %v6885
        %v6895 = vpop.xlane.xlu0 %6894
        %6896 = vmin.xlane.f32.xlu0 %v6886
        %v6897 = vpop.xlane.xlu0 %6896
        %6898 = vmin.xlane.f32.xlu0 %v6887
        %v6899 = vpop.xlane.xlu0 %6898
        %6900 = vmin.xlane.f32.xlu0 %v6888
        %v6901 = vpop.xlane.xlu0 %6900
        %6902 = vmin.xlane.f32.xlu0 %v6889
        %v6903 = vpop.xlane.xlu0 %6902
        %6904 = vmin.xlane.f32.xlu0 %v6890
        %v6905 = vpop.xlane.xlu0 %6904
        %6906 = vmin.xlane.f32.xlu0 %v6891
        %v6907 = vpop.xlane.xlu0 %6906
        %vm6908 = vcmp.eq.f32.partialorder %v6027, %v6893
        %vm6909 = vcmp.eq.f32.partialorder %v6027, %v6895
        %vm6910 = vcmp.eq.f32.partialorder %v6027, %v6897
        %vm6911 = vcmp.eq.f32.partialorder %v6027, %v6899
        %vm6912 = vcmp.eq.f32.partialorder %v6027, %v6901
        %vm6913 = vcmp.eq.f32.partialorder %v6027, %v6903
        %vm6914 = vcmp.eq.f32.partialorder %v6027, %v6905
        %vm6915 = vcmp.eq.f32.partialorder %v6027, %v6907
        %v6916 = vsel %vm6908, -inf, %v6852
        %v6917 = vsel %vm6909, -inf, %v6853
        %v6918 = vsel %vm6910, -inf, %v6854
        %v6919 = vsel %vm6911, -inf, %v6855
        %v6920 = vsel %vm6912, -inf, %v6856
        %v6921 = vsel %vm6913, -inf, %v6857
        %v6922 = vsel %vm6914, -inf, %v6858
        %v6923 = vsel %vm6915, -inf, %v6859
        %6924 = vmax.xlane.f32.xlu0 %v6916
        %v6925 = vpop.xlane.xlu0 %6924
        %6926 = vmax.xlane.f32.xlu0 %v6917
        %v6927 = vpop.xlane.xlu0 %6926
        %6928 = vmax.xlane.f32.xlu0 %v6918
        %v6929 = vpop.xlane.xlu0 %6928
        %6930 = vmax.xlane.f32.xlu0 %v6919
        %v6931 = vpop.xlane.xlu0 %6930
        %6932 = vmax.xlane.f32.xlu0 %v6920
        %v6933 = vpop.xlane.xlu0 %6932
        %6934 = vmax.xlane.f32.xlu0 %v6921
        %v6935 = vpop.xlane.xlu0 %6934
        %6936 = vmax.xlane.f32.xlu0 %v6922
        %v6937 = vpop.xlane.xlu0 %6936
        %6938 = vmax.xlane.f32.xlu0 %v6923
        %v6939 = vpop.xlane.xlu0 %6938
        %vm6940 = vcmp.eq.f32.partialorder %v6916, %v6925
        %vm6941 = vcmp.eq.f32.partialorder %v6917, %v6927
        %vm6942 = vcmp.eq.f32.partialorder %v6918, %v6929
        %vm6943 = vcmp.eq.f32.partialorder %v6919, %v6931
        %vm6944 = vcmp.eq.f32.partialorder %v6920, %v6933
        %vm6945 = vcmp.eq.f32.partialorder %v6921, %v6935
        %vm6946 = vcmp.eq.f32.partialorder %v6922, %v6937
        %vm6947 = vcmp.eq.f32.partialorder %v6923, %v6939
        %v6948 = vsel %vm6940, %v6027, 128.0
        %v6949 = vsel %vm6941, %v6027, 128.0
        %v6950 = vsel %vm6942, %v6027, 128.0
        %v6951 = vsel %vm6943, %v6027, 128.0
        %v6952 = vsel %vm6944, %v6027, 128.0
        %v6953 = vsel %vm6945, %v6027, 128.0
        %v6954 = vsel %vm6946, %v6027, 128.0
        %v6955 = vsel %vm6947, %v6027, 128.0
        %6956 = vmin.xlane.f32.xlu0 %v6948
        %v6957 = vpop.xlane.xlu0 %6956
        %6958 = vmin.xlane.f32.xlu0 %v6949
        %v6959 = vpop.xlane.xlu0 %6958
        %6960 = vmin.xlane.f32.xlu0 %v6950
        %v6961 = vpop.xlane.xlu0 %6960
        %6962 = vmin.xlane.f32.xlu0 %v6951
        %v6963 = vpop.xlane.xlu0 %6962
        %6964 = vmin.xlane.f32.xlu0 %v6952
        %v6965 = vpop.xlane.xlu0 %6964
        %6966 = vmin.xlane.f32.xlu0 %v6953
        %v6967 = vpop.xlane.xlu0 %6966
        %6968 = vmin.xlane.f32.xlu0 %v6954
        %v6969 = vpop.xlane.xlu0 %6968
        %6970 = vmin.xlane.f32.xlu0 %v6955
        %v6971 = vpop.xlane.xlu0 %6970
        %vm6972 = vcmp.eq.f32.partialorder %v6027, %v6957
        %vm6973 = vcmp.eq.f32.partialorder %v6027, %v6959
        %vm6974 = vcmp.eq.f32.partialorder %v6027, %v6961
        %vm6975 = vcmp.eq.f32.partialorder %v6027, %v6963
        %vm6976 = vcmp.eq.f32.partialorder %v6027, %v6965
        %vm6977 = vcmp.eq.f32.partialorder %v6027, %v6967
        %vm6978 = vcmp.eq.f32.partialorder %v6027, %v6969
        %vm6979 = vcmp.eq.f32.partialorder %v6027, %v6971
        %v6980 = vsel %vm6972, -inf, %v6916
        %v6981 = vsel %vm6973, -inf, %v6917
        %v6982 = vsel %vm6974, -inf, %v6918
        %v6983 = vsel %vm6975, -inf, %v6919
        %v6984 = vsel %vm6976, -inf, %v6920
        %v6985 = vsel %vm6977, -inf, %v6921
        %v6986 = vsel %vm6978, -inf, %v6922
        %v6987 = vsel %vm6979, -inf, %v6923
        %6988 = vmax.xlane.f32.xlu0 %v6980
        %v6989 = vpop.xlane.xlu0 %6988
        %6990 = vmax.xlane.f32.xlu0 %v6981
        %v6991 = vpop.xlane.xlu0 %6990
        %6992 = vmax.xlane.f32.xlu0 %v6982
        %v6993 = vpop.xlane.xlu0 %6992
        %6994 = vmax.xlane.f32.xlu0 %v6983
        %v6995 = vpop.xlane.xlu0 %6994
        %6996 = vmax.xlane.f32.xlu0 %v6984
        %v6997 = vpop.xlane.xlu0 %6996
        %6998 = vmax.xlane.f32.xlu0 %v6985
        %v6999 = vpop.xlane.xlu0 %6998
        %7000 = vmax.xlane.f32.xlu0 %v6986
        %v7001 = vpop.xlane.xlu0 %7000
        %7002 = vmax.xlane.f32.xlu0 %v6987
        %v7003 = vpop.xlane.xlu0 %7002
        %vm7004 = vcmp.ge.f32.partialorder %v6019, %v6989
        %vm7005 = vcmp.ge.f32.partialorder %v6020, %v6991
        %vm7006 = vcmp.ge.f32.partialorder %v6021, %v6993
        %vm7007 = vcmp.ge.f32.partialorder %v6022, %v6995
        %vm7008 = vcmp.ge.f32.partialorder %v6023, %v6997
        %vm7009 = vcmp.ge.f32.partialorder %v6024, %v6999
        %vm7010 = vcmp.ge.f32.partialorder %v6025, %v7001
        %vm7011 = vcmp.ge.f32.partialorder %v6026, %v7003
        %v7012 = vsel %vm7004, %v5999, 0.0
        %v7013 = vsel %vm7005, %v6000, 0.0
        %v7014 = vsel %vm7006, %v6001, 0.0
        %v7015 = vsel %vm7007, %v6002, 0.0
        %v7016 = vsel %vm7008, %v6003, 0.0
        %v7017 = vsel %vm7009, %v6004, 0.0
        %v7018 = vsel %vm7010, %v6005, 0.0
        %v7019 = vsel %vm7011, %v6006, 0.0
        %vm7020 = vcmp.gt.f32.partialorder %v7012, 0.0
        %vm7021 = vcmp.gt.f32.partialorder %v7013, 0.0
        %vm7022 = vcmp.gt.f32.partialorder %v7014, 0.0
        %vm7023 = vcmp.gt.f32.partialorder %v7015, 0.0
        %vm7024 = vcmp.gt.f32.partialorder %v7016, 0.0
        %vm7025 = vcmp.gt.f32.partialorder %v7017, 0.0
        %vm7026 = vcmp.gt.f32.partialorder %v7018, 0.0
        %vm7027 = vcmp.gt.f32.partialorder %v7019, 0.0
        %v7028 = vsel %vm7020, 1, 0
        %v7029 = vsel %vm7021, 1, 0
        %v7030 = vsel %vm7022, 1, 0
        %v7031 = vsel %vm7023, 1, 0
        %v7032 = vsel %vm7024, 1, 0
        %v7033 = vsel %vm7025, 1, 0
        %v7034 = vsel %vm7026, 1, 0
        %v7035 = vsel %vm7027, 1, 0
        %v7036 = vcvt.s32.f32 %v7028
        %v7037 = vcvt.s32.f32 %v7029
        %v7038 = vcvt.s32.f32 %v7030
        %v7039 = vcvt.s32.f32 %v7031
        %v7040 = vcvt.s32.f32 %v7032
        %v7041 = vcvt.s32.f32 %v7033
        %v7042 = vcvt.s32.f32 %v7034
        %v7043 = vcvt.s32.f32 %v7035
        %vm7044 = vcmp.eq.f32.partialorder %v7012, 0.0
        %vm7045 = vcmp.eq.f32.partialorder %v7013, 0.0
        %vm7046 = vcmp.eq.f32.partialorder %v7014, 0.0
        %vm7047 = vcmp.eq.f32.partialorder %v7015, 0.0
        %vm7048 = vcmp.eq.f32.partialorder %v7016, 0.0
        %vm7049 = vcmp.eq.f32.partialorder %v7017, 0.0
        %vm7050 = vcmp.eq.f32.partialorder %v7018, 0.0
        %vm7051 = vcmp.eq.f32.partialorder %v7019, 0.0
        %v7052 = vsel %vm7044, 1, 0
        %v7053 = vsel %vm7045, 1, 0
        %v7054 = vsel %vm7046, 1, 0
        %v7055 = vsel %vm7047, 1, 0
        %v7056 = vsel %vm7048, 1, 0
        %v7057 = vsel %vm7049, 1, 0
        %v7058 = vsel %vm7050, 1, 0
        %v7059 = vsel %vm7051, 1, 0
        %v7060 = vcvt.s32.f32 %v7052
        %v7061 = vcvt.s32.f32 %v7053
        %v7062 = vcvt.s32.f32 %v7054
        %v7063 = vcvt.s32.f32 %v7055
        %v7064 = vcvt.s32.f32 %v7056
        %v7065 = vcvt.s32.f32 %v7057
        %v7066 = vcvt.s32.f32 %v7058
        %v7067 = vcvt.s32.f32 %v7059
        %v7068 = vadd.f32 %v7036, %v7037
        %v7069 = vadd.f32 %v7068, %v7038
        %v7070 = vadd.f32 %v7069, %v7039
        %v7071 = vadd.f32 %v7070, %v7040
        %v7072 = vadd.f32 %v7071, %v7041
        %v7073 = vadd.f32 %v7072, %v7042
        %v7074 = vadd.f32 %v7073, %v7043
        %v7075 = vrot.slane %v7074, 4
        %v7076 = vadd.f32 %v7074, %v7075
        %v7077 = vrot.slane %v7076, 2
        %v7078 = vadd.f32 %v7076, %v7077
        %v7079 = vrot.slane %v7078, 1
        %v7080 = vadd.f32 %v7078, %v7079
        %v7081 = vmul.f32 %v7036, %v7012
        %v7082 = vmul.f32 %v7037, %v7013
        %v7083 = vmul.f32 %v7038, %v7014
        %v7084 = vmul.f32 %v7039, %v7015
        %v7085 = vmul.f32 %v7040, %v7016
        %v7086 = vmul.f32 %v7041, %v7017
        %v7087 = vmul.f32 %v7042, %v7018
        %v7088 = vmul.f32 %v7043, %v7019
        %v7089 = vadd.f32 %v7081, %v7082
        %v7090 = vadd.f32 %v7089, %v7083
        %v7091 = vadd.f32 %v7090, %v7084
        %v7092 = vadd.f32 %v7091, %v7085
        %v7093 = vadd.f32 %v7092, %v7086
        %v7094 = vadd.f32 %v7093, %v7087
        %v7095 = vadd.f32 %v7094, %v7088
        %v7096 = vrot.slane %v7095, 4
        %v7097 = vadd.f32 %v7095, %v7096
        %v7098 = vrot.slane %v7097, 2
        %v7099 = vadd.f32 %v7097, %v7098
        %v7100 = vrot.slane %v7099, 1
        %v7101 = vadd.f32 %v7099, %v7100
        %v7102 = vadd.f32 %v7060, %v7061
        %v7103 = vadd.f32 %v7102, %v7062
        %v7104 = vadd.f32 %v7103, %v7063
        %v7105 = vadd.f32 %v7104, %v7064
        %v7106 = vadd.f32 %v7105, %v7065
        %v7107 = vadd.f32 %v7106, %v7066
        %v7108 = vadd.f32 %v7107, %v7067
        %v7109 = vrot.slane %v7108, 4
        %v7110 = vadd.f32 %v7108, %v7109
        %v7111 = vrot.slane %v7110, 2
        %v7112 = vadd.f32 %v7110, %v7111
        %v7113 = vrot.slane %v7112, 1
        %v7114 = vadd.f32 %v7112, %v7113
        %v7115 = vmul.f32 %v5836, 0.99
        %v7116 = vmul.f32 %v7115, %v7080
        %v7117 = vmul.f32 %v7101, 0.01
        %v7118 = vadd.f32 %v7116, %v7117
        %v7119 = vmul.f32 %v7118, 0.0078125
        %v7120 = vmul.f32 %v5836, %v7114
        %v7121 = vsel %vm5765, %v7120, 0.0
        %7122 = vadd.xlane.f32.xlu0 %v7121
        %v7123 = vpop.xlane.xlu0 %7122
        %v7124 = vmul.f32 %v7123, 0.0078125
        %v7125 = vadd.f32 %v7119, %v7124
        %7126 = vst [vmem:[%s449] sm:$0x1] %v7125
        %v7127 = vld [vmem:[#allocation8] sm:$0xf]
        %v7128 = vld [vmem:[#allocation8 + $0x4] sm:$0xf]
        %v7129 = vld [vmem:[#allocation8 + $0x8] sm:$0xf]
        %v7130 = vld [vmem:[#allocation8 + $0xc] sm:$0xf]
        %v7131 = vld [vmem:[#allocation8 + $0x10] sm:$0xf]
        %v7132 = vld [vmem:[#allocation8 + $0x14] sm:$0xf]
        %v7133 = vld [vmem:[#allocation8 + $0x18] sm:$0xf]
        %v7134 = vld [vmem:[#allocation8 + $0x1c] sm:$0xf]
        %v7135 = vld [vmem:[#allocation8 + $0x20] sm:$0xf]
        %v7136 = vld [vmem:[#allocation8 + $0x24] sm:$0xf]
        %v7137 = vld [vmem:[#allocation8 + $0x28] sm:$0xf]
        %v7138 = vld [vmem:[#allocation8 + $0x2c] sm:$0xf]
        %v7139 = vld [vmem:[#allocation8 + $0x30] sm:$0xf]
        %v7140 = vld [vmem:[#allocation8 + $0x34] sm:$0xf]
        %v7141 = vld [vmem:[#allocation8 + $0x38] sm:$0xf]
        %v7142 = vld [vmem:[#allocation8 + $0x3c] sm:$0xf]
        %v7143 = vld [vmem:[%s6] sm:$0x1]
        %v7144 = vpack.c.bf16 %v7013, %v7012
        %v7145 = vpack.c.bf16 %v7015, %v7014
        %v7146 = vpack.c.bf16 %v7017, %v7016
        %v7147 = vpack.c.bf16 %v7019, %v7018
        %v7164 = vunpack.c.l.b16 %v7127
        %v7165 = vunpack.c.l.b16 %v7128
        %v7166 = vunpack.c.l.b16 %v7129
        %v7167 = vunpack.c.l.b16 %v7130
        %v7168 = vunpack.c.l.b16 %v7131
        %v7169 = vunpack.c.l.b16 %v7132
        %v7170 = vunpack.c.l.b16 %v7133
        %v7171 = vunpack.c.l.b16 %v7134
        %v7172 = vunpack.c.l.b16 %v7135
        %v7173 = vunpack.c.l.b16 %v7136
        %v7174 = vunpack.c.l.b16 %v7137
        %v7175 = vunpack.c.l.b16 %v7138
        %v7176 = vunpack.c.l.b16 %v7139
        %v7177 = vunpack.c.l.b16 %v7140
        %v7178 = vunpack.c.l.b16 %v7141
        %v7179 = vunpack.c.l.b16 %v7142
        %v7180 = vpack.c.b16 %v7165, %v7164
        %v7181 = vpack.c.b16 %v7167, %v7166
        %v7182 = vpack.c.b16 %v7169, %v7168
        %v7183 = vpack.c.b16 %v7171, %v7170
        %v7184 = vpack.c.b16 %v7173, %v7172
        %v7185 = vpack.c.b16 %v7175, %v7174
        %v7186 = vpack.c.b16 %v7177, %v7176
        %v7187 = vpack.c.b16 %v7179, %v7178
        %7196 = vmatpush.bf16.msra.mxu0 %v7187
        %7197 = vmatpush.bf16.msra.mxu0 %v7186
        %7198 = vmatpush.bf16.msra.mxu0 %v7185
        %7199 = vmatpush.bf16.msra.mxu0 %v7184
        %7200 = vmatpush.bf16.msra.mxu0 %v7183
        %7201 = vmatpush.bf16.msra.mxu0 %v7182
        %7202 = vmatpush.bf16.msra.mxu0 %v7181
        %7203 = vmatpush.bf16.msra.mxu0 %v7180
        %7204 = vmatmul.bf16.gmra.mxu0 %v7144
        %v7205 = vpop.f32.mrf.mxu0
        %v7206 = vadd.f32 0.0, %v7205
        %v7207 = vpop.f32.mrf.mxu0
        %v7208 = vadd.f32 0.0, %v7207
        %7209 = vmatmul.bf16.gmra.mxu0 %v7145
        %v7210 = vpop.f32.mrf.mxu0
        %v7211 = vadd.f32 0.0, %v7210
        %v7212 = vpop.f32.mrf.mxu0
        %v7213 = vadd.f32 0.0, %v7212
        %7214 = vmatmul.bf16.gmra.mxu0 %v7146
        %v7215 = vpop.f32.mrf.mxu0
        %v7216 = vadd.f32 0.0, %v7215
        %v7217 = vpop.f32.mrf.mxu0
        %v7218 = vadd.f32 0.0, %v7217
        %7219 = vmatmul.bf16.gmra.mxu0 %v7147
        %v7220 = vpop.f32.mrf.mxu0
        %v7221 = vadd.f32 0.0, %v7220
        %v7222 = vpop.f32.mrf.mxu0
        %v7223 = vadd.f32 0.0, %v7222
        %7224 = vdwg.mxu0
        %vm7225 = vcmp.lt.s32.totalorder %v642, 32
        %v7227 = vperm.slane %v7143, 0
        %v7229 = vsub.f32 %v7206, %v7227
        %v7230 = vsub.f32 %v7208, %v7227
        %v7231 = vsub.f32 %v7211, %v7227
        %v7232 = vsub.f32 %v7213, %v7227
        %v7233 = vsub.f32 %v7216, %v7227
        %v7234 = vsub.f32 %v7218, %v7227
        %v7235 = vsub.f32 %v7221, %v7227
        %v7236 = vsub.f32 %v7223, %v7227
        %v7237 = vsel %vm7225, %v7229, -inf
        %v7238 = vsel %vm7225, %v7230, -inf
        %v7239 = vsel %vm7225, %v7231, -inf
        %v7240 = vsel %vm7225, %v7232, -inf
        %v7241 = vsel %vm7225, %v7233, -inf
        %v7242 = vsel %vm7225, %v7234, -inf
        %v7243 = vsel %vm7225, %v7235, -inf
        %v7244 = vsel %vm7225, %v7236, -inf
        %7245 = vmax.xlane.f32.xlu0 %v7237
        %v7246 = vpop.xlane.xlu0 %7245
        %7247 = vmax.xlane.f32.xlu0 %v7238
        %v7248 = vpop.xlane.xlu0 %7247
        %7249 = vmax.xlane.f32.xlu0 %v7239
        %v7250 = vpop.xlane.xlu0 %7249
        %7251 = vmax.xlane.f32.xlu0 %v7240
        %v7252 = vpop.xlane.xlu0 %7251
        %7253 = vmax.xlane.f32.xlu0 %v7241
        %v7254 = vpop.xlane.xlu0 %7253
        %7255 = vmax.xlane.f32.xlu0 %v7242
        %v7256 = vpop.xlane.xlu0 %7255
        %7257 = vmax.xlane.f32.xlu0 %v7243
        %v7258 = vpop.xlane.xlu0 %7257
        %7259 = vmax.xlane.f32.xlu0 %v7244
        %v7260 = vpop.xlane.xlu0 %7259
        %vm7261 = vcmp.eq.f32.partialorder %v7237, %v7246
        %vm7262 = vcmp.eq.f32.partialorder %v7238, %v7248
        %vm7263 = vcmp.eq.f32.partialorder %v7239, %v7250
        %vm7264 = vcmp.eq.f32.partialorder %v7240, %v7252
        %vm7265 = vcmp.eq.f32.partialorder %v7241, %v7254
        %vm7266 = vcmp.eq.f32.partialorder %v7242, %v7256
        %vm7267 = vcmp.eq.f32.partialorder %v7243, %v7258
        %vm7268 = vcmp.eq.f32.partialorder %v7244, %v7260
        %v7269 = vsel %vm7261, %v6027, 128.0
        %v7270 = vsel %vm7262, %v6027, 128.0
        %v7271 = vsel %vm7263, %v6027, 128.0
        %v7272 = vsel %vm7264, %v6027, 128.0
        %v7273 = vsel %vm7265, %v6027, 128.0
        %v7274 = vsel %vm7266, %v6027, 128.0
        %v7275 = vsel %vm7267, %v6027, 128.0
        %v7276 = vsel %vm7268, %v6027, 128.0
        %7277 = vmin.xlane.f32.xlu0 %v7269
        %v7278 = vpop.xlane.xlu0 %7277
        %7279 = vmin.xlane.f32.xlu0 %v7270
        %v7280 = vpop.xlane.xlu0 %7279
        %7281 = vmin.xlane.f32.xlu0 %v7271
        %v7282 = vpop.xlane.xlu0 %7281
        %7283 = vmin.xlane.f32.xlu0 %v7272
        %v7284 = vpop.xlane.xlu0 %7283
        %7285 = vmin.xlane.f32.xlu0 %v7273
        %v7286 = vpop.xlane.xlu0 %7285
        %7287 = vmin.xlane.f32.xlu0 %v7274
        %v7288 = vpop.xlane.xlu0 %7287
        %7289 = vmin.xlane.f32.xlu0 %v7275
        %v7290 = vpop.xlane.xlu0 %7289
        %7291 = vmin.xlane.f32.xlu0 %v7276
        %v7292 = vpop.xlane.xlu0 %7291
        %vm7293 = vcmp.eq.f32.partialorder %v6027, %v7278
        %vm7294 = vcmp.eq.f32.partialorder %v6027, %v7280
        %vm7295 = vcmp.eq.f32.partialorder %v6027, %v7282
        %vm7296 = vcmp.eq.f32.partialorder %v6027, %v7284
        %vm7297 = vcmp.eq.f32.partialorder %v6027, %v7286
        %vm7298 = vcmp.eq.f32.partialorder %v6027, %v7288
        %vm7299 = vcmp.eq.f32.partialorder %v6027, %v7290
        %vm7300 = vcmp.eq.f32.partialorder %v6027, %v7292
        %v7301 = vsel %vm7293, -inf, %v7237
        %v7302 = vsel %vm7294, -inf, %v7238
        %v7303 = vsel %vm7295, -inf, %v7239
        %v7304 = vsel %vm7296, -inf, %v7240
        %v7305 = vsel %vm7297, -inf, %v7241
        %v7306 = vsel %vm7298, -inf, %v7242
        %v7307 = vsel %vm7299, -inf, %v7243
        %v7308 = vsel %vm7300, -inf, %v7244
        %7309 = vmax.xlane.f32.xlu0 %v7301
        %v7310 = vpop.xlane.xlu0 %7309
        %7311 = vmax.xlane.f32.xlu0 %v7302
        %v7312 = vpop.xlane.xlu0 %7311
        %7313 = vmax.xlane.f32.xlu0 %v7303
        %v7314 = vpop.xlane.xlu0 %7313
        %7315 = vmax.xlane.f32.xlu0 %v7304
        %v7316 = vpop.xlane.xlu0 %7315
        %7317 = vmax.xlane.f32.xlu0 %v7305
        %v7318 = vpop.xlane.xlu0 %7317
        %7319 = vmax.xlane.f32.xlu0 %v7306
        %v7320 = vpop.xlane.xlu0 %7319
        %7321 = vmax.xlane.f32.xlu0 %v7307
        %v7322 = vpop.xlane.xlu0 %7321
        %7323 = vmax.xlane.f32.xlu0 %v7308
        %v7324 = vpop.xlane.xlu0 %7323
        %vm7325 = vcmp.eq.f32.partialorder %v7301, %v7310
        %vm7326 = vcmp.eq.f32.partialorder %v7302, %v7312
        %vm7327 = vcmp.eq.f32.partialorder %v7303, %v7314
        %vm7328 = vcmp.eq.f32.partialorder %v7304, %v7316
        %vm7329 = vcmp.eq.f32.partialorder %v7305, %v7318
        %vm7330 = vcmp.eq.f32.partialorder %v7306, %v7320
        %vm7331 = vcmp.eq.f32.partialorder %v7307, %v7322
        %vm7332 = vcmp.eq.f32.partialorder %v7308, %v7324
        %v7333 = vsel %vm7325, %v6027, 128.0
        %v7334 = vsel %vm7326, %v6027, 128.0
        %v7335 = vsel %vm7327, %v6027, 128.0
        %v7336 = vsel %vm7328, %v6027, 128.0
        %v7337 = vsel %vm7329, %v6027, 128.0
        %v7338 = vsel %vm7330, %v6027, 128.0
        %v7339 = vsel %vm7331, %v6027, 128.0
        %v7340 = vsel %vm7332, %v6027, 128.0
        %7341 = vmin.xlane.f32.xlu0 %v7333
        %v7342 = vpop.xlane.xlu0 %7341
        %7343 = vmin.xlane.f32.xlu0 %v7334
        %v7344 = vpop.xlane.xlu0 %7343
        %7345 = vmin.xlane.f32.xlu0 %v7335
        %v7346 = vpop.xlane.xlu0 %7345
        %7347 = vmin.xlane.f32.xlu0 %v7336
        %v7348 = vpop.xlane.xlu0 %7347
        %7349 = vmin.xlane.f32.xlu0 %v7337
        %v7350 = vpop.xlane.xlu0 %7349
        %7351 = vmin.xlane.f32.xlu0 %v7338
        %v7352 = vpop.xlane.xlu0 %7351
        %7353 = vmin.xlane.f32.xlu0 %v7339
        %v7354 = vpop.xlane.xlu0 %7353
        %7355 = vmin.xlane.f32.xlu0 %v7340
        %v7356 = vpop.xlane.xlu0 %7355
        %vm7357 = vcmp.eq.f32.partialorder %v6027, %v7342
        %vm7358 = vcmp.eq.f32.partialorder %v6027, %v7344
        %vm7359 = vcmp.eq.f32.partialorder %v6027, %v7346
        %vm7360 = vcmp.eq.f32.partialorder %v6027, %v7348
        %vm7361 = vcmp.eq.f32.partialorder %v6027, %v7350
        %vm7362 = vcmp.eq.f32.partialorder %v6027, %v7352
        %vm7363 = vcmp.eq.f32.partialorder %v6027, %v7354
        %vm7364 = vcmp.eq.f32.partialorder %v6027, %v7356
        %v7365 = vsel %vm7357, -inf, %v7301
        %v7366 = vsel %vm7358, -inf, %v7302
        %v7367 = vsel %vm7359, -inf, %v7303
        %v7368 = vsel %vm7360, -inf, %v7304
        %v7369 = vsel %vm7361, -inf, %v7305
        %v7370 = vsel %vm7362, -inf, %v7306
        %v7371 = vsel %vm7363, -inf, %v7307
        %v7372 = vsel %vm7364, -inf, %v7308
        %7373 = vmax.xlane.f32.xlu0 %v7365
        %v7374 = vpop.xlane.xlu0 %7373
        %7375 = vmax.xlane.f32.xlu0 %v7366
        %v7376 = vpop.xlane.xlu0 %7375
        %7377 = vmax.xlane.f32.xlu0 %v7367
        %v7378 = vpop.xlane.xlu0 %7377
        %7379 = vmax.xlane.f32.xlu0 %v7368
        %v7380 = vpop.xlane.xlu0 %7379
        %7381 = vmax.xlane.f32.xlu0 %v7369
        %v7382 = vpop.xlane.xlu0 %7381
        %7383 = vmax.xlane.f32.xlu0 %v7370
        %v7384 = vpop.xlane.xlu0 %7383
        %7385 = vmax.xlane.f32.xlu0 %v7371
        %v7386 = vpop.xlane.xlu0 %7385
        %7387 = vmax.xlane.f32.xlu0 %v7372
        %v7388 = vpop.xlane.xlu0 %7387
        %vm7389 = vcmp.eq.f32.partialorder %v7365, %v7374
        %vm7390 = vcmp.eq.f32.partialorder %v7366, %v7376
        %vm7391 = vcmp.eq.f32.partialorder %v7367, %v7378
        %vm7392 = vcmp.eq.f32.partialorder %v7368, %v7380
        %vm7393 = vcmp.eq.f32.partialorder %v7369, %v7382
        %vm7394 = vcmp.eq.f32.partialorder %v7370, %v7384
        %vm7395 = vcmp.eq.f32.partialorder %v7371, %v7386
        %vm7396 = vcmp.eq.f32.partialorder %v7372, %v7388
        %v7397 = vsel %vm7389, %v6027, 128.0
        %v7398 = vsel %vm7390, %v6027, 128.0
        %v7399 = vsel %vm7391, %v6027, 128.0
        %v7400 = vsel %vm7392, %v6027, 128.0
        %v7401 = vsel %vm7393, %v6027, 128.0
        %v7402 = vsel %vm7394, %v6027, 128.0
        %v7403 = vsel %vm7395, %v6027, 128.0
        %v7404 = vsel %vm7396, %v6027, 128.0
        %7405 = vmin.xlane.f32.xlu0 %v7397
        %v7406 = vpop.xlane.xlu0 %7405
        %7407 = vmin.xlane.f32.xlu0 %v7398
        %v7408 = vpop.xlane.xlu0 %7407
        %7409 = vmin.xlane.f32.xlu0 %v7399
        %v7410 = vpop.xlane.xlu0 %7409
        %7411 = vmin.xlane.f32.xlu0 %v7400
        %v7412 = vpop.xlane.xlu0 %7411
        %7413 = vmin.xlane.f32.xlu0 %v7401
        %v7414 = vpop.xlane.xlu0 %7413
        %7415 = vmin.xlane.f32.xlu0 %v7402
        %v7416 = vpop.xlane.xlu0 %7415
        %7417 = vmin.xlane.f32.xlu0 %v7403
        %v7418 = vpop.xlane.xlu0 %7417
        %7419 = vmin.xlane.f32.xlu0 %v7404
        %v7420 = vpop.xlane.xlu0 %7419
        %vm7421 = vcmp.eq.f32.partialorder %v6027, %v7406
        %vm7422 = vcmp.eq.f32.partialorder %v6027, %v7408
        %vm7423 = vcmp.eq.f32.partialorder %v6027, %v7410
        %vm7424 = vcmp.eq.f32.partialorder %v6027, %v7412
        %vm7425 = vcmp.eq.f32.partialorder %v6027, %v7414
        %vm7426 = vcmp.eq.f32.partialorder %v6027, %v7416
        %vm7427 = vcmp.eq.f32.partialorder %v6027, %v7418
        %vm7428 = vcmp.eq.f32.partialorder %v6027, %v7420
        %v7429 = vsel %vm7421, -inf, %v7365
        %v7430 = vsel %vm7422, -inf, %v7366
        %v7431 = vsel %vm7423, -inf, %v7367
        %v7432 = vsel %vm7424, -inf, %v7368
        %v7433 = vsel %vm7425, -inf, %v7369
        %v7434 = vsel %vm7426, -inf, %v7370
        %v7435 = vsel %vm7427, -inf, %v7371
        %v7436 = vsel %vm7428, -inf, %v7372
        %7437 = vmax.xlane.f32.xlu0 %v7429
        %v7438 = vpop.xlane.xlu0 %7437
        %7439 = vmax.xlane.f32.xlu0 %v7430
        %v7440 = vpop.xlane.xlu0 %7439
        %7441 = vmax.xlane.f32.xlu0 %v7431
        %v7442 = vpop.xlane.xlu0 %7441
        %7443 = vmax.xlane.f32.xlu0 %v7432
        %v7444 = vpop.xlane.xlu0 %7443
        %7445 = vmax.xlane.f32.xlu0 %v7433
        %v7446 = vpop.xlane.xlu0 %7445
        %7447 = vmax.xlane.f32.xlu0 %v7434
        %v7448 = vpop.xlane.xlu0 %7447
        %7449 = vmax.xlane.f32.xlu0 %v7435
        %v7450 = vpop.xlane.xlu0 %7449
        %7451 = vmax.xlane.f32.xlu0 %v7436
        %v7452 = vpop.xlane.xlu0 %7451
        %vm7453 = vcmp.eq.f32.partialorder %v7429, %v7438
        %vm7454 = vcmp.eq.f32.partialorder %v7430, %v7440
        %vm7455 = vcmp.eq.f32.partialorder %v7431, %v7442
        %vm7456 = vcmp.eq.f32.partialorder %v7432, %v7444
        %vm7457 = vcmp.eq.f32.partialorder %v7433, %v7446
        %vm7458 = vcmp.eq.f32.partialorder %v7434, %v7448
        %vm7459 = vcmp.eq.f32.partialorder %v7435, %v7450
        %vm7460 = vcmp.eq.f32.partialorder %v7436, %v7452
        %v7461 = vsel %vm7453, %v6027, 128.0
        %v7462 = vsel %vm7454, %v6027, 128.0
        %v7463 = vsel %vm7455, %v6027, 128.0
        %v7464 = vsel %vm7456, %v6027, 128.0
        %v7465 = vsel %vm7457, %v6027, 128.0
        %v7466 = vsel %vm7458, %v6027, 128.0
        %v7467 = vsel %vm7459, %v6027, 128.0
        %v7468 = vsel %vm7460, %v6027, 128.0
        %7469 = vmin.xlane.f32.xlu0 %v7461
        %v7470 = vpop.xlane.xlu0 %7469
        %7471 = vmin.xlane.f32.xlu0 %v7462
        %v7472 = vpop.xlane.xlu0 %7471
        %7473 = vmin.xlane.f32.xlu0 %v7463
        %v7474 = vpop.xlane.xlu0 %7473
        %7475 = vmin.xlane.f32.xlu0 %v7464
        %v7476 = vpop.xlane.xlu0 %7475
        %7477 = vmin.xlane.f32.xlu0 %v7465
        %v7478 = vpop.xlane.xlu0 %7477
        %7479 = vmin.xlane.f32.xlu0 %v7466
        %v7480 = vpop.xlane.xlu0 %7479
        %7481 = vmin.xlane.f32.xlu0 %v7467
        %v7482 = vpop.xlane.xlu0 %7481
        %7483 = vmin.xlane.f32.xlu0 %v7468
        %v7484 = vpop.xlane.xlu0 %7483
        %vm7485 = vcmp.eq.f32.partialorder %v6027, %v7470
        %vm7486 = vcmp.eq.f32.partialorder %v6027, %v7472
        %vm7487 = vcmp.eq.f32.partialorder %v6027, %v7474
        %vm7488 = vcmp.eq.f32.partialorder %v6027, %v7476
        %vm7489 = vcmp.eq.f32.partialorder %v6027, %v7478
        %vm7490 = vcmp.eq.f32.partialorder %v6027, %v7480
        %vm7491 = vcmp.eq.f32.partialorder %v6027, %v7482
        %vm7492 = vcmp.eq.f32.partialorder %v6027, %v7484
        %v7493 = vsel %vm7485, -inf, %v7429
        %v7494 = vsel %vm7486, -inf, %v7430
        %v7495 = vsel %vm7487, -inf, %v7431
        %v7496 = vsel %vm7488, -inf, %v7432
        %v7497 = vsel %vm7489, -inf, %v7433
        %v7498 = vsel %vm7490, -inf, %v7434
        %v7499 = vsel %vm7491, -inf, %v7435
        %v7500 = vsel %vm7492, -inf, %v7436
        %7501 = vmax.xlane.f32.xlu0 %v7493
        %v7502 = vpop.xlane.xlu0 %7501
        %7503 = vmax.xlane.f32.xlu0 %v7494
        %v7504 = vpop.xlane.xlu0 %7503
        %7505 = vmax.xlane.f32.xlu0 %v7495
        %v7506 = vpop.xlane.xlu0 %7505
        %7507 = vmax.xlane.f32.xlu0 %v7496
        %v7508 = vpop.xlane.xlu0 %7507
        %7509 = vmax.xlane.f32.xlu0 %v7497
        %v7510 = vpop.xlane.xlu0 %7509
        %7511 = vmax.xlane.f32.xlu0 %v7498
        %v7512 = vpop.xlane.xlu0 %7511
        %7513 = vmax.xlane.f32.xlu0 %v7499
        %v7514 = vpop.xlane.xlu0 %7513
        %7515 = vmax.xlane.f32.xlu0 %v7500
        %v7516 = vpop.xlane.xlu0 %7515
        %vm7517 = vcmp.eq.f32.partialorder %v7493, %v7502
        %vm7518 = vcmp.eq.f32.partialorder %v7494, %v7504
        %vm7519 = vcmp.eq.f32.partialorder %v7495, %v7506
        %vm7520 = vcmp.eq.f32.partialorder %v7496, %v7508
        %vm7521 = vcmp.eq.f32.partialorder %v7497, %v7510
        %vm7522 = vcmp.eq.f32.partialorder %v7498, %v7512
        %vm7523 = vcmp.eq.f32.partialorder %v7499, %v7514
        %vm7524 = vcmp.eq.f32.partialorder %v7500, %v7516
        %v7525 = vsel %vm7517, %v6027, 128.0
        %v7526 = vsel %vm7518, %v6027, 128.0
        %v7527 = vsel %vm7519, %v6027, 128.0
        %v7528 = vsel %vm7520, %v6027, 128.0
        %v7529 = vsel %vm7521, %v6027, 128.0
        %v7530 = vsel %vm7522, %v6027, 128.0
        %v7531 = vsel %vm7523, %v6027, 128.0
        %v7532 = vsel %vm7524, %v6027, 128.0
        %7533 = vmin.xlane.f32.xlu0 %v7525
        %v7534 = vpop.xlane.xlu0 %7533
        %7535 = vmin.xlane.f32.xlu0 %v7526
        %v7536 = vpop.xlane.xlu0 %7535
        %7537 = vmin.xlane.f32.xlu0 %v7527
        %v7538 = vpop.xlane.xlu0 %7537
        %7539 = vmin.xlane.f32.xlu0 %v7528
        %v7540 = vpop.xlane.xlu0 %7539
        %7541 = vmin.xlane.f32.xlu0 %v7529
        %v7542 = vpop.xlane.xlu0 %7541
        %7543 = vmin.xlane.f32.xlu0 %v7530
        %v7544 = vpop.xlane.xlu0 %7543
        %7545 = vmin.xlane.f32.xlu0 %v7531
        %v7546 = vpop.xlane.xlu0 %7545
        %7547 = vmin.xlane.f32.xlu0 %v7532
        %v7548 = vpop.xlane.xlu0 %7547
        %vm7549 = vcmp.eq.f32.partialorder %v6027, %v7534
        %vm7550 = vcmp.eq.f32.partialorder %v6027, %v7536
        %vm7551 = vcmp.eq.f32.partialorder %v6027, %v7538
        %vm7552 = vcmp.eq.f32.partialorder %v6027, %v7540
        %vm7553 = vcmp.eq.f32.partialorder %v6027, %v7542
        %vm7554 = vcmp.eq.f32.partialorder %v6027, %v7544
        %vm7555 = vcmp.eq.f32.partialorder %v6027, %v7546
        %vm7556 = vcmp.eq.f32.partialorder %v6027, %v7548
        %v7557 = vsel %vm7549, -inf, %v7493
        %v7558 = vsel %vm7550, -inf, %v7494
        %v7559 = vsel %vm7551, -inf, %v7495
        %v7560 = vsel %vm7552, -inf, %v7496
        %v7561 = vsel %vm7553, -inf, %v7497
        %v7562 = vsel %vm7554, -inf, %v7498
        %v7563 = vsel %vm7555, -inf, %v7499
        %v7564 = vsel %vm7556, -inf, %v7500
        %7565 = vmax.xlane.f32.xlu0 %v7557
        %v7566 = vpop.xlane.xlu0 %7565
        %7567 = vmax.xlane.f32.xlu0 %v7558
        %v7568 = vpop.xlane.xlu0 %7567
        %7569 = vmax.xlane.f32.xlu0 %v7559
        %v7570 = vpop.xlane.xlu0 %7569
        %7571 = vmax.xlane.f32.xlu0 %v7560
        %v7572 = vpop.xlane.xlu0 %7571
        %7573 = vmax.xlane.f32.xlu0 %v7561
        %v7574 = vpop.xlane.xlu0 %7573
        %7575 = vmax.xlane.f32.xlu0 %v7562
        %v7576 = vpop.xlane.xlu0 %7575
        %7577 = vmax.xlane.f32.xlu0 %v7563
        %v7578 = vpop.xlane.xlu0 %7577
        %7579 = vmax.xlane.f32.xlu0 %v7564
        %v7580 = vpop.xlane.xlu0 %7579
        %vm7581 = vcmp.eq.f32.partialorder %v7557, %v7566
        %vm7582 = vcmp.eq.f32.partialorder %v7558, %v7568
        %vm7583 = vcmp.eq.f32.partialorder %v7559, %v7570
        %vm7584 = vcmp.eq.f32.partialorder %v7560, %v7572
        %vm7585 = vcmp.eq.f32.partialorder %v7561, %v7574
        %vm7586 = vcmp.eq.f32.partialorder %v7562, %v7576
        %vm7587 = vcmp.eq.f32.partialorder %v7563, %v7578
        %vm7588 = vcmp.eq.f32.partialorder %v7564, %v7580
        %v7589 = vsel %vm7581, %v6027, 128.0
        %v7590 = vsel %vm7582, %v6027, 128.0
        %v7591 = vsel %vm7583, %v6027, 128.0
        %v7592 = vsel %vm7584, %v6027, 128.0
        %v7593 = vsel %vm7585, %v6027, 128.0
        %v7594 = vsel %vm7586, %v6027, 128.0
        %v7595 = vsel %vm7587, %v6027, 128.0
        %v7596 = vsel %vm7588, %v6027, 128.0
        %7597 = vmin.xlane.f32.xlu0 %v7589
        %v7598 = vpop.xlane.xlu0 %7597
        %7599 = vmin.xlane.f32.xlu0 %v7590
        %v7600 = vpop.xlane.xlu0 %7599
        %7601 = vmin.xlane.f32.xlu0 %v7591
        %v7602 = vpop.xlane.xlu0 %7601
        %7603 = vmin.xlane.f32.xlu0 %v7592
        %v7604 = vpop.xlane.xlu0 %7603
        %7605 = vmin.xlane.f32.xlu0 %v7593
        %v7606 = vpop.xlane.xlu0 %7605
        %7607 = vmin.xlane.f32.xlu0 %v7594
        %v7608 = vpop.xlane.xlu0 %7607
        %7609 = vmin.xlane.f32.xlu0 %v7595
        %v7610 = vpop.xlane.xlu0 %7609
        %7611 = vmin.xlane.f32.xlu0 %v7596
        %v7612 = vpop.xlane.xlu0 %7611
        %vm7613 = vcmp.eq.f32.partialorder %v6027, %v7598
        %vm7614 = vcmp.eq.f32.partialorder %v6027, %v7600
        %vm7615 = vcmp.eq.f32.partialorder %v6027, %v7602
        %vm7616 = vcmp.eq.f32.partialorder %v6027, %v7604
        %vm7617 = vcmp.eq.f32.partialorder %v6027, %v7606
        %vm7618 = vcmp.eq.f32.partialorder %v6027, %v7608
        %vm7619 = vcmp.eq.f32.partialorder %v6027, %v7610
        %vm7620 = vcmp.eq.f32.partialorder %v6027, %v7612
        %v7621 = vsel %vm7613, -inf, %v7557
        %v7622 = vsel %vm7614, -inf, %v7558
        %v7623 = vsel %vm7615, -inf, %v7559
        %v7624 = vsel %vm7616, -inf, %v7560
        %v7625 = vsel %vm7617, -inf, %v7561
        %v7626 = vsel %vm7618, -inf, %v7562
        %v7627 = vsel %vm7619, -inf, %v7563
        %v7628 = vsel %vm7620, -inf, %v7564
        %7629 = vmax.xlane.f32.xlu0 %v7621
        %v7630 = vpop.xlane.xlu0 %7629
        %7631 = vmax.xlane.f32.xlu0 %v7622
        %v7632 = vpop.xlane.xlu0 %7631
        %7633 = vmax.xlane.f32.xlu0 %v7623
        %v7634 = vpop.xlane.xlu0 %7633
        %7635 = vmax.xlane.f32.xlu0 %v7624
        %v7636 = vpop.xlane.xlu0 %7635
        %7637 = vmax.xlane.f32.xlu0 %v7625
        %v7638 = vpop.xlane.xlu0 %7637
        %7639 = vmax.xlane.f32.xlu0 %v7626
        %v7640 = vpop.xlane.xlu0 %7639
        %7641 = vmax.xlane.f32.xlu0 %v7627
        %v7642 = vpop.xlane.xlu0 %7641
        %7643 = vmax.xlane.f32.xlu0 %v7628
        %v7644 = vpop.xlane.xlu0 %7643
        %vm7645 = vcmp.eq.f32.partialorder %v7621, %v7630
        %vm7646 = vcmp.eq.f32.partialorder %v7622, %v7632
        %vm7647 = vcmp.eq.f32.partialorder %v7623, %v7634
        %vm7648 = vcmp.eq.f32.partialorder %v7624, %v7636
        %vm7649 = vcmp.eq.f32.partialorder %v7625, %v7638
        %vm7650 = vcmp.eq.f32.partialorder %v7626, %v7640
        %vm7651 = vcmp.eq.f32.partialorder %v7627, %v7642
        %vm7652 = vcmp.eq.f32.partialorder %v7628, %v7644
        %v7653 = vsel %vm7645, %v6027, 128.0
        %v7654 = vsel %vm7646, %v6027, 128.0
        %v7655 = vsel %vm7647, %v6027, 128.0
        %v7656 = vsel %vm7648, %v6027, 128.0
        %v7657 = vsel %vm7649, %v6027, 128.0
        %v7658 = vsel %vm7650, %v6027, 128.0
        %v7659 = vsel %vm7651, %v6027, 128.0
        %v7660 = vsel %vm7652, %v6027, 128.0
        %7661 = vmin.xlane.f32.xlu0 %v7653
        %v7662 = vpop.xlane.xlu0 %7661
        %7663 = vmin.xlane.f32.xlu0 %v7654
        %v7664 = vpop.xlane.xlu0 %7663
        %7665 = vmin.xlane.f32.xlu0 %v7655
        %v7666 = vpop.xlane.xlu0 %7665
        %7667 = vmin.xlane.f32.xlu0 %v7656
        %v7668 = vpop.xlane.xlu0 %7667
        %7669 = vmin.xlane.f32.xlu0 %v7657
        %v7670 = vpop.xlane.xlu0 %7669
        %7671 = vmin.xlane.f32.xlu0 %v7658
        %v7672 = vpop.xlane.xlu0 %7671
        %7673 = vmin.xlane.f32.xlu0 %v7659
        %v7674 = vpop.xlane.xlu0 %7673
        %7675 = vmin.xlane.f32.xlu0 %v7660
        %v7676 = vpop.xlane.xlu0 %7675
        %vm7677 = vcmp.eq.f32.partialorder %v6027, %v7662
        %vm7678 = vcmp.eq.f32.partialorder %v6027, %v7664
        %vm7679 = vcmp.eq.f32.partialorder %v6027, %v7666
        %vm7680 = vcmp.eq.f32.partialorder %v6027, %v7668
        %vm7681 = vcmp.eq.f32.partialorder %v6027, %v7670
        %vm7682 = vcmp.eq.f32.partialorder %v6027, %v7672
        %vm7683 = vcmp.eq.f32.partialorder %v6027, %v7674
        %vm7684 = vcmp.eq.f32.partialorder %v6027, %v7676
        %v7685 = vsel %vm7677, -inf, %v7621
        %v7686 = vsel %vm7678, -inf, %v7622
        %v7687 = vsel %vm7679, -inf, %v7623
        %v7688 = vsel %vm7680, -inf, %v7624
        %v7689 = vsel %vm7681, -inf, %v7625
        %v7690 = vsel %vm7682, -inf, %v7626
        %v7691 = vsel %vm7683, -inf, %v7627
        %v7692 = vsel %vm7684, -inf, %v7628
        %7693 = vmax.xlane.f32.xlu0 %v7685
        %v7694 = vpop.xlane.xlu0 %7693
        %7695 = vmax.xlane.f32.xlu0 %v7686
        %v7696 = vpop.xlane.xlu0 %7695
        %7697 = vmax.xlane.f32.xlu0 %v7687
        %v7698 = vpop.xlane.xlu0 %7697
        %7699 = vmax.xlane.f32.xlu0 %v7688
        %v7700 = vpop.xlane.xlu0 %7699
        %7701 = vmax.xlane.f32.xlu0 %v7689
        %v7702 = vpop.xlane.xlu0 %7701
        %7703 = vmax.xlane.f32.xlu0 %v7690
        %v7704 = vpop.xlane.xlu0 %7703
        %7705 = vmax.xlane.f32.xlu0 %v7691
        %v7706 = vpop.xlane.xlu0 %7705
        %7707 = vmax.xlane.f32.xlu0 %v7692
        %v7708 = vpop.xlane.xlu0 %7707
        %vm7709 = vcmp.ge.f32.partialorder %v7237, %v7694
        %vm7710 = vcmp.ge.f32.partialorder %v7238, %v7696
        %vm7711 = vcmp.ge.f32.partialorder %v7239, %v7698
        %vm7712 = vcmp.ge.f32.partialorder %v7240, %v7700
        %vm7713 = vcmp.ge.f32.partialorder %v7241, %v7702
        %vm7714 = vcmp.ge.f32.partialorder %v7242, %v7704
        %vm7715 = vcmp.ge.f32.partialorder %v7243, %v7706
        %vm7716 = vcmp.ge.f32.partialorder %v7244, %v7708
        %v7717 = vsel %vm7709, %v7206, 0.0
        %v7718 = vsel %vm7710, %v7208, 0.0
        %v7719 = vsel %vm7711, %v7211, 0.0
        %v7720 = vsel %vm7712, %v7213, 0.0
        %v7721 = vsel %vm7713, %v7216, 0.0
        %v7722 = vsel %vm7714, %v7218, 0.0
        %v7723 = vsel %vm7715, %v7221, 0.0
        %v7724 = vsel %vm7716, %v7223, 0.0
        %v7725 = vsel %vm7225, %v7717, -inf
        %v7726 = vsel %vm7225, %v7718, -inf
        %v7727 = vsel %vm7225, %v7719, -inf
        %v7728 = vsel %vm7225, %v7720, -inf
        %v7729 = vsel %vm7225, %v7721, -inf
        %v7730 = vsel %vm7225, %v7722, -inf
        %v7731 = vsel %vm7225, %v7723, -inf
        %v7732 = vsel %vm7225, %v7724, -inf
        %7733 = vmax.xlane.f32.xlu0 %v7725
        %v7734 = vpop.xlane.xlu0 %7733
        %7735 = vmax.xlane.f32.xlu0 %v7726
        %v7736 = vpop.xlane.xlu0 %7735
        %7737 = vmax.xlane.f32.xlu0 %v7727
        %v7738 = vpop.xlane.xlu0 %7737
        %7739 = vmax.xlane.f32.xlu0 %v7728
        %v7740 = vpop.xlane.xlu0 %7739
        %7741 = vmax.xlane.f32.xlu0 %v7729
        %v7742 = vpop.xlane.xlu0 %7741
        %7743 = vmax.xlane.f32.xlu0 %v7730
        %v7744 = vpop.xlane.xlu0 %7743
        %7745 = vmax.xlane.f32.xlu0 %v7731
        %v7746 = vpop.xlane.xlu0 %7745
        %7747 = vmax.xlane.f32.xlu0 %v7732
        %v7748 = vpop.xlane.xlu0 %7747
        %v7749 = vsub.f32 %v7725, %v7734
        %v7750 = vsub.f32 %v7726, %v7736
        %v7751 = vsub.f32 %v7727, %v7738
        %v7752 = vsub.f32 %v7728, %v7740
        %v7753 = vsub.f32 %v7729, %v7742
        %v7754 = vsub.f32 %v7730, %v7744
        %v7755 = vsub.f32 %v7731, %v7746
        %v7756 = vsub.f32 %v7732, %v7748
        %v7757 = vmul.f32 %v7749, 1.442695
        %v7758 = vpow.pop %v7757
        %v7759 = vmul.f32 %v7750, 1.442695
        %v7760 = vpow.pop %v7759
        %v7761 = vmul.f32 %v7751, 1.442695
        %v7762 = vpow.pop %v7761
        %v7763 = vmul.f32 %v7752, 1.442695
        %v7764 = vpow.pop %v7763
        %v7765 = vmul.f32 %v7753, 1.442695
        %v7766 = vpow.pop %v7765
        %v7767 = vmul.f32 %v7754, 1.442695
        %v7768 = vpow.pop %v7767
        %v7769 = vmul.f32 %v7755, 1.442695
        %v7770 = vpow.pop %v7769
        %v7771 = vmul.f32 %v7756, 1.442695
        %v7772 = vpow.pop %v7771
        %7773 = vadd.xlane.f32.xlu0 %v7758
        %v7774 = vpop.xlane.xlu0 %7773
        %7775 = vadd.xlane.f32.xlu0 %v7760
        %v7776 = vpop.xlane.xlu0 %7775
        %7777 = vadd.xlane.f32.xlu0 %v7762
        %v7778 = vpop.xlane.xlu0 %7777
        %7779 = vadd.xlane.f32.xlu0 %v7764
        %v7780 = vpop.xlane.xlu0 %7779
        %7781 = vadd.xlane.f32.xlu0 %v7766
        %v7782 = vpop.xlane.xlu0 %7781
        %7783 = vadd.xlane.f32.xlu0 %v7768
        %v7784 = vpop.xlane.xlu0 %7783
        %7785 = vadd.xlane.f32.xlu0 %v7770
        %v7786 = vpop.xlane.xlu0 %7785
        %7787 = vadd.xlane.f32.xlu0 %v7772
        %v7788 = vpop.xlane.xlu0 %7787
        %v7789 = vrcp.pop %v7774
        %v7790 = vrcp.pop %v7776
        %v7791 = vrcp.pop %v7778
        %v7792 = vrcp.pop %v7780
        %v7793 = vrcp.pop %v7782
        %v7794 = vrcp.pop %v7784
        %v7795 = vrcp.pop %v7786
        %v7796 = vrcp.pop %v7788
        %v7797 = vmul.f32 %v7774, %v7789
        %v7798 = vmul.f32 %v7776, %v7790
        %v7799 = vmul.f32 %v7778, %v7791
        %v7800 = vmul.f32 %v7780, %v7792
        %v7801 = vmul.f32 %v7782, %v7793
        %v7802 = vmul.f32 %v7784, %v7794
        %v7803 = vmul.f32 %v7786, %v7795
        %v7804 = vmul.f32 %v7788, %v7796
        %v7805 = vsub.f32 2.0, %v7797
        %v7806 = vsub.f32 2.0, %v7798
        %v7807 = vsub.f32 2.0, %v7799
        %v7808 = vsub.f32 2.0, %v7800
        %v7809 = vsub.f32 2.0, %v7801
        %v7810 = vsub.f32 2.0, %v7802
        %v7811 = vsub.f32 2.0, %v7803
        %v7812 = vsub.f32 2.0, %v7804
        %v7813 = vmul.f32 %v7789, %v7805
        %v7814 = vmul.f32 %v7790, %v7806
        %v7815 = vmul.f32 %v7791, %v7807
        %v7816 = vmul.f32 %v7792, %v7808
        %v7817 = vmul.f32 %v7793, %v7809
        %v7818 = vmul.f32 %v7794, %v7810
        %v7819 = vmul.f32 %v7795, %v7811
        %v7820 = vmul.f32 %v7796, %v7812
        %v7821 = vmul.f32 %v7758, %v7813
        %v7822 = vmul.f32 %v7760, %v7814
        %v7823 = vmul.f32 %v7762, %v7815
        %v7824 = vmul.f32 %v7764, %v7816
        %v7825 = vmul.f32 %v7766, %v7817
        %v7826 = vmul.f32 %v7768, %v7818
        %v7827 = vmul.f32 %v7770, %v7819
        %v7828 = vmul.f32 %v7772, %v7820
        %7829 = vst [vmem:[%s436] sm:$0xff] %v7821
        %7830 = vst [vmem:[%s436 + $0x8] sm:$0xff] %v7822
        %7831 = vst [vmem:[%s436 + $0x10] sm:$0xff] %v7823
        %7832 = vst [vmem:[%s436 + $0x18] sm:$0xff] %v7824
        %7833 = vst [vmem:[%s436 + $0x20] sm:$0xff] %v7825
        %7834 = vst [vmem:[%s436 + $0x28] sm:$0xff] %v7826
        %7835 = vst [vmem:[%s436 + $0x30] sm:$0xff] %v7827
        %7836 = vst [vmem:[%s436 + $0x38] sm:$0xff] %v7828
        %vm7837 = vcmp.gt.f32.partialorder %v7821, 0.0
        %vm7838 = vcmp.gt.f32.partialorder %v7822, 0.0
        %vm7839 = vcmp.gt.f32.partialorder %v7823, 0.0
        %vm7840 = vcmp.gt.f32.partialorder %v7824, 0.0
        %vm7841 = vcmp.gt.f32.partialorder %v7825, 0.0
        %vm7842 = vcmp.gt.f32.partialorder %v7826, 0.0
        %vm7843 = vcmp.gt.f32.partialorder %v7827, 0.0
        %vm7844 = vcmp.gt.f32.partialorder %v7828, 0.0
        %v7845 = vsel %vm7837, 1, 0
        %v7846 = vsel %vm7838, 1, 0
        %v7847 = vsel %vm7839, 1, 0
        %v7848 = vsel %vm7840, 1, 0
        %v7849 = vsel %vm7841, 1, 0
        %v7850 = vsel %vm7842, 1, 0
        %v7851 = vsel %vm7843, 1, 0
        %v7852 = vsel %vm7844, 1, 0
        %v7853 = vcvt.s32.f32 %v7845
        %v7854 = vcvt.s32.f32 %v7846
        %v7855 = vcvt.s32.f32 %v7847
        %v7856 = vcvt.s32.f32 %v7848
        %v7857 = vcvt.s32.f32 %v7849
        %v7858 = vcvt.s32.f32 %v7850
        %v7859 = vcvt.s32.f32 %v7851
        %v7860 = vcvt.s32.f32 %v7852
        %vm7861 = vcmp.eq.f32.partialorder %v7821, 0.0
        %vm7862 = vcmp.eq.f32.partialorder %v7822, 0.0
        %vm7863 = vcmp.eq.f32.partialorder %v7823, 0.0
        %vm7864 = vcmp.eq.f32.partialorder %v7824, 0.0
        %vm7865 = vcmp.eq.f32.partialorder %v7825, 0.0
        %vm7866 = vcmp.eq.f32.partialorder %v7826, 0.0
        %vm7867 = vcmp.eq.f32.partialorder %v7827, 0.0
        %vm7868 = vcmp.eq.f32.partialorder %v7828, 0.0
        %v7869 = vsel %vm7861, 1, 0
        %v7870 = vsel %vm7862, 1, 0
        %v7871 = vsel %vm7863, 1, 0
        %v7872 = vsel %vm7864, 1, 0
        %v7873 = vsel %vm7865, 1, 0
        %v7874 = vsel %vm7866, 1, 0
        %v7875 = vsel %vm7867, 1, 0
        %v7876 = vsel %vm7868, 1, 0
        %v7877 = vcvt.s32.f32 %v7869
        %v7878 = vcvt.s32.f32 %v7870
        %v7879 = vcvt.s32.f32 %v7871
        %v7880 = vcvt.s32.f32 %v7872
        %v7881 = vcvt.s32.f32 %v7873
        %v7882 = vcvt.s32.f32 %v7874
        %v7883 = vcvt.s32.f32 %v7875
        %v7884 = vcvt.s32.f32 %v7876
        %v7885 = vadd.f32 %v7853, %v7854
        %v7886 = vadd.f32 %v7885, %v7855
        %v7887 = vadd.f32 %v7886, %v7856
        %v7888 = vadd.f32 %v7887, %v7857
        %v7889 = vadd.f32 %v7888, %v7858
        %v7890 = vadd.f32 %v7889, %v7859
        %v7891 = vadd.f32 %v7890, %v7860
        %v7892 = vrot.slane %v7891, 4
        %v7893 = vadd.f32 %v7891, %v7892
        %v7894 = vrot.slane %v7893, 2
        %v7895 = vadd.f32 %v7893, %v7894
        %v7896 = vrot.slane %v7895, 1
        %v7897 = vadd.f32 %v7895, %v7896
        %v7898 = vmul.f32 %v7853, %v7821
        %v7899 = vmul.f32 %v7854, %v7822
        %v7900 = vmul.f32 %v7855, %v7823
        %v7901 = vmul.f32 %v7856, %v7824
        %v7902 = vmul.f32 %v7857, %v7825
        %v7903 = vmul.f32 %v7858, %v7826
        %v7904 = vmul.f32 %v7859, %v7827
        %v7905 = vmul.f32 %v7860, %v7828
        %v7906 = vadd.f32 %v7898, %v7899
        %v7907 = vadd.f32 %v7906, %v7900
        %v7908 = vadd.f32 %v7907, %v7901
        %v7909 = vadd.f32 %v7908, %v7902
        %v7910 = vadd.f32 %v7909, %v7903
        %v7911 = vadd.f32 %v7910, %v7904
        %v7912 = vadd.f32 %v7911, %v7905
        %v7913 = vrot.slane %v7912, 4
        %v7914 = vadd.f32 %v7912, %v7913
        %v7915 = vrot.slane %v7914, 2
        %v7916 = vadd.f32 %v7914, %v7915
        %v7917 = vrot.slane %v7916, 1
        %v7918 = vadd.f32 %v7916, %v7917
        %v7919 = vadd.f32 %v7877, %v7878
        %v7920 = vadd.f32 %v7919, %v7879
        %v7921 = vadd.f32 %v7920, %v7880
        %v7922 = vadd.f32 %v7921, %v7881
        %v7923 = vadd.f32 %v7922, %v7882
        %v7924 = vadd.f32 %v7923, %v7883
        %v7925 = vadd.f32 %v7924, %v7884
        %v7926 = vrot.slane %v7925, 4
        %v7927 = vadd.f32 %v7925, %v7926
        %v7928 = vrot.slane %v7927, 2
        %v7929 = vadd.f32 %v7927, %v7928
        %v7930 = vrot.slane %v7929, 1
        %v7931 = vadd.f32 %v7929, %v7930
        %v7932 = vmul.f32 %v7143, 0.99
        %v7933 = vmul.f32 %v7932, %v7897
        %v7934 = vmul.f32 %v7918, 0.01
        %v7935 = vadd.f32 %v7933, %v7934
        %v7936 = vmul.f32 %v7935, 0.0078125
        %v7937 = vmul.f32 %v7143, %v7931
        %v7938 = vsel %vm5765, %v7937, 0.0
        %7939 = vadd.xlane.f32.xlu0 %v7938
        %v7940 = vpop.xlane.xlu0 %7939
        %v7941 = vmul.f32 %v7940, 0.0078125
        %v7942 = vadd.f32 %v7936, %v7941
        %7943 = vst [vmem:[%s455] sm:$0x1] %v7942
        %s7944 = sand.u32 %s196, 1
        %s7945 = scalar_lea.sflag [#allocation4], %s7944
        %s7946 = sand.u32 %s196, 1
        %s7947 = smul.addr %s7946, 64
        %s7948 = scalar_lea.vmem [#allocation10], %s7947
        %s7949 = sand.u32 %s36, 1
        %s7950 = scalar_lea.sflag [#allocation12], %s7949
        %s7951 = sand.u32 %s222, 1
        %s7952 = smul.addr %s7951, 2
        %s7953 = scalar_lea.vmem [#allocation11], %s7952
        %s7954 = sand.u32 %s36, 1
        %s7955 = scalar_lea.sflag [#allocation12], %s7954
        %s7956 = sand.u32 %s248, 1
        %s7957 = scalar_lea.vmem [#allocation13], %s7956
        %s7958 = sand.u32 %s274, 1
        %s7959 = scalar_lea.sflag [#allocation15], %s7958
        %s7960 = sand.u32 %s274, 1
        %s7961 = scalar_lea.vmem [#allocation14], %s7960
        // Predicated region
        $region65: #{tpu_custom_call.1} parent=47 // pred_check
          %p7962 = pneg %p206
        $region66: #{tpu_custom_call.1} parent=47 // pred_check_branch
          %7964 = sbr.rel (%p7962) target = $region68
        $region67: #{tpu_custom_call.1} parent=47 // pred_region
          %s7965 = smul.u32 8, %s36
          %7967 = vsyncadd %s7945, 0
          %s7968 = smul.addr %s7965, 8
          %s7969 = scalar_lea.hbm %s7, %s7968
          %s7970 = sshll.u32 %s7948, 4
          %s7971 = int_to_ptr.vmem [resolvable:$true] %s7970
          %s7972 = sshll.u32 %s7969, 4
          %s7973 = int_to_ptr.hbm [resolvable:$true] %s7972
          %7978 = dma.vmem_to_hbm [thread:$0]  %s7971, 1024, %s7973, %s7945, 128, 128, 8
        $region68: #{tpu_custom_call.1} parent=47 // pred_fallthru
          _
        // Predicated region
        $region69: #{tpu_custom_call.1} parent=47 // pred_check
          %p7979 = pneg %p232
        $region70: #{tpu_custom_call.1} parent=47 // pred_check_branch
          %7981 = sbr.rel (%p7979) target = $region72
        $region71: #{tpu_custom_call.1} parent=47 // pred_region
          %7983 = vsyncadd %s7950, 0
          %s7984 = smul.addr %s36, 2
          %s7985 = scalar_lea.hbm %s8, %s7984
          %s7987 = sshll.u32 %s7953, 4
          %s7988 = int_to_ptr.vmem [resolvable:$true] %s7987
          %s7989 = sshll.u32 %s7985, 4
          %s7990 = int_to_ptr.hbm [resolvable:$true] %s7989
          %7992 = dma.vmem_to_hbm [thread:$0]  %s7988, 32, %s7990, %s7950
        $region72: #{tpu_custom_call.1} parent=47 // pred_fallthru
          _
        // Predicated region
        $region73: #{tpu_custom_call.1} parent=47 // pred_check
          %p7993 = pneg %p258
        $region74: #{tpu_custom_call.1} parent=47 // pred_check_branch
          %7995 = sbr.rel (%p7993) target = $region76
        $region75: #{tpu_custom_call.1} parent=47 // pred_region
          %7997 = vsyncadd %s7955, 0
          %s7998 = scalar_lea.hbm %s9, %s36
          %s8000 = sshll.u32 %s7957, 4
          %s8001 = int_to_ptr.vmem [resolvable:$true] %s8000
          %s8002 = sshll.u32 %s7998, 4
          %s8003 = int_to_ptr.hbm [resolvable:$true] %s8002
          %8005 = dma.vmem_to_hbm [thread:$0]  %s8001, 16, %s8003, %s7955
        $region76: #{tpu_custom_call.1} parent=47 // pred_fallthru
          _
        // Predicated region
        $region77: #{tpu_custom_call.1} parent=47 // pred_check
          %p8006 = pneg %p284
        $region78: #{tpu_custom_call.1} parent=47 // pred_check_branch
          %8008 = sbr.rel (%p8006) target = $region80
        $region79: #{tpu_custom_call.1} parent=47 // pred_region
          %8010 = vsyncadd %s7959, 0
          %s8011 = scalar_lea.hbm %s10, %s36
          %s8013 = sshll.u32 %s7961, 4
          %s8014 = int_to_ptr.vmem [resolvable:$true] %s8013
          %s8015 = sshll.u32 %s8011, 4
          %s8016 = int_to_ptr.hbm [resolvable:$true] %s8015
          %8018 = dma.vmem_to_hbm [thread:$0]  %s8014, 16, %s8016, %s7959
        $region80: #{tpu_custom_call.1} parent=47 // pred_fallthru
          _
      $region48: #{tpu_custom_call.1} parent=5 // pred_fallthru
        _
      %p8019 = scmp.le.s32.totalorder 2, %s31
      // Predicated region
      $region81: #{tpu_custom_call.1} parent=5 // pred_check
        %p8020 = pneg %p8019
      $region82: #{tpu_custom_call.1} parent=5 // pred_check_branch
        %8022 = sbr.rel (%p8020) target = $region84
      $region83: #{tpu_custom_call.1} parent=5 // pred_region
        %s8023 = ssub.s32 %s31, 2
        // Predicated region
        $region85: #{tpu_custom_call.1} parent=83 // pred_check
          %p8024 = pneg %p212
        $region86: #{tpu_custom_call.1} parent=83 // pred_check_branch
          %8026 = sbr.rel (%p8024) target = $region88
        $region87: #{tpu_custom_call.1} parent=83 // pred_region
          %s8027 = sand.u32 %s197, 1
          %s8028 = scalar_lea.sflag [#allocation4], %s8027
          %s8029 = sand.u32 %s197, 1
          %s8030 = smul.addr %s8029, 64
          %s8031 = scalar_lea.vmem [#allocation10], %s8030
          %8033 = dma.done %s8028, 1024
        $region88: #{tpu_custom_call.1} parent=83 // pred_fallthru
          _
        // Predicated region
        $region89: #{tpu_custom_call.1} parent=83 // pred_check
          %p8034 = pneg %p238
        $region90: #{tpu_custom_call.1} parent=83 // pred_check_branch
          %8036 = sbr.rel (%p8034) target = $region92
        $region91: #{tpu_custom_call.1} parent=83 // pred_region
          %s8037 = sand.u32 %s37, 1
          %s8038 = scalar_lea.sflag [#allocation12], %s8037
          %s8039 = sand.u32 %s223, 1
          %s8040 = smul.addr %s8039, 2
          %s8041 = scalar_lea.vmem [#allocation11], %s8040
          %8043 = dma.done %s8038, 32
        $region92: #{tpu_custom_call.1} parent=83 // pred_fallthru
          _
        // Predicated region
        $region93: #{tpu_custom_call.1} parent=83 // pred_check
          %p8044 = pneg %p264
        $region94: #{tpu_custom_call.1} parent=83 // pred_check_branch
          %8046 = sbr.rel (%p8044) target = $region96
        $region95: #{tpu_custom_call.1} parent=83 // pred_region
          %s8047 = sand.u32 %s37, 1
          %s8048 = scalar_lea.sflag [#allocation12], %s8047
          %s8049 = sand.u32 %s249, 1
          %s8050 = scalar_lea.vmem [#allocation13], %s8049
          %8052 = dma.done %s8048, 16
        $region96: #{tpu_custom_call.1} parent=83 // pred_fallthru
          _
        // Predicated region
        $region97: #{tpu_custom_call.1} parent=83 // pred_check
          %p8053 = pneg %p290
        $region98: #{tpu_custom_call.1} parent=83 // pred_check_branch
          %8055 = sbr.rel (%p8053) target = $region100
        $region99: #{tpu_custom_call.1} parent=83 // pred_region
          %s8056 = sand.u32 %s275, 1
          %s8057 = scalar_lea.sflag [#allocation15], %s8056
          %s8058 = sand.u32 %s275, 1
          %s8059 = scalar_lea.vmem [#allocation14], %s8058
          %8061 = dma.done %s8057, 16
        $region100: #{tpu_custom_call.1} parent=83 // pred_fallthru
          _
      $region84: #{tpu_custom_call.1} parent=5 // pred_fallthru
        _
    $region6: #{tpu_custom_call.1} parent=1 // loop_footer
      %s35 = sadd.s32 1, %s31
    $region7: #{tpu_custom_call.1} parent=1 // loop_footer_branch
      %30 = sbr.rel target = $region3
    $region8: #{tpu_custom_call.1} parent=1 // loop_exit
      _
    %8062 = vsyncpa [#allocation3], 1
    %s8063 = scalar_lea.sflag [#allocation3], 1
    %8064 = vsyncpa %s8063, 1
    %8065 = vsyncpa [#allocation6], 1
    %8066 = vsyncpa [#allocation9], 1
    %8067 = vsyncpa [#allocation4], 1
    %s8068 = scalar_lea.sflag [#allocation4], 1
    %8069 = vsyncpa %s8068, 1
    %8070 = vsyncpa [#allocation12], 1
    %s8071 = scalar_lea.sflag [#allocation12], 1
    %8072 = vsyncpa %s8071, 1
    %8073 = vsyncpa [#allocation15], 1
    %s8074 = scalar_lea.sflag [#allocation15], 1
    %8075 = vsyncpa %s8074, 1

</llo_original>
